<compile_context>
chip_gen: v5e
topology: v5e:2x2
jax: 0.10.0
libtpu: 0.0.40
codegen_flags: <defaults>
</compile_context>

<pallas_src>
import functools

import jax
import jax.numpy as jnp
from jax.experimental import pallas as pl
from jax.experimental.pallas import tpu as pltpu

# ---------------------------------------------------------------------------
# Scaled-down MixText / BERT config (example-sized; architecture preserved)
# ---------------------------------------------------------------------------
VOCAB = 128          # bert-base: 30522
MAX_POS = 64         # bert-base: 512
HIDDEN = 256         # bert-base: 768
FFN = 4 * HIDDEN     # BERT intermediate = 4*H
NUM_LAYERS = 2       # bert-base: 12
NUM_HEADS = 4        # bert-base: 12
CLS_HIDDEN = 128     # MixText head: Linear(H,128) -> Tanh -> Linear(128,n)
N_LABELS = 10        # Yahoo! Answers: 10 classes
CLS_PAD = 128        # classifier output padded to 128 lanes (unmasked stores)

LN_EPS = 1e-12       # BERT LayerNorm eps
NORM_EPS = 1e-12     # F.normalize default eps


def _layer_norm(x, gamma, beta):
    mu = jnp.mean(x, axis=-1, keepdims=True)
    xc = x - mu
    var = jnp.mean(xc * xc, axis=-1, keepdims=True)
    return xc * jax.lax.rsqrt(var + LN_EPS) * gamma + beta


# ---------------------------------------------------------------------------
# Single fused kernel: embed + L encoder layers + pool/classify/normalize
# ---------------------------------------------------------------------------
def _fused_forward_kernel(ids_ref, wemb_ref, pos_type_ref, eg_ref, eb_ref,
                          wqkv_ref, bqkv_ref, wo_ref, bo_ref, g1_ref, b1_ref,
                          w1_ref, fb1_ref, w2_ref, fb2_ref, g2_ref, b2_ref,
                          hw1_ref, hb1_ref, hw2_ref, hb2_ref,
                          o_ref, qkv_s, ctx_s, *, S, H, NH, L, V):
    hd = H // NH
    scale = 1.0 / float(hd) ** 0.5

    # ---- embedding: one-hot MXU lookup + pos/type add + LayerNorm ----------
    # TODO(synk): replace one-hot with a row gather for the real 30522 vocab.
    ids = ids_ref[0]                                            # [S, 1] int32
    iota = jax.lax.broadcasted_iota(jnp.int32, (S, V), 1)
    onehot = (iota == ids).astype(jnp.bfloat16)                 # [S, V]
    x = jnp.dot(onehot, wemb_ref[...], preferred_element_type=jnp.float32)
    x = _layer_norm(x + pos_type_ref[...], eg_ref[...], eb_ref[...])  # [S,H] f32

    # ---- encoder layers (static unroll over L; weights VMEM-resident) ------
    for l in range(L):
        xb = x.astype(jnp.bfloat16)

        # fused QKV: one lane-dense [S,H]x[H,3H] bf16 MXU push, f32 accumulate
        qkv_s[...] = jnp.dot(xb, wqkv_ref[l],
                             preferred_element_type=jnp.float32) + bqkv_ref[l]

        # per-head attention; contexts land in a VMEM slab so the output
        # projection below is one full-K [S,H]x[H,H] matmul.
        # TODO(synk): head-batched / flash formulation at bert-base scale.
        for h in range(NH):
            cs = h * hd
            q = (qkv_s[:, cs:cs + hd] * scale).astype(jnp.bfloat16)   # [S,hd]
            k = qkv_s[:, H + cs:H + cs + hd].astype(jnp.bfloat16)
            v = qkv_s[:, 2 * H + cs:2 * H + cs + hd].astype(jnp.bfloat16)
            s = jnp.einsum('qd,kd->qk', q, k,
                           preferred_element_type=jnp.float32)        # [S,S]
            s = s - jnp.max(s, axis=-1, keepdims=True)                # stable
            e = jnp.exp(s)
            p = e * pl.reciprocal(jnp.sum(e, axis=-1, keepdims=True),
                                  approx=True)                        # EUP vrcp
            ctx_s[:, cs:cs + hd] = jnp.dot(p.astype(jnp.bfloat16), v,
                                           preferred_element_type=jnp.float32)

        attn = jnp.dot(ctx_s[...].astype(jnp.bfloat16), wo_ref[l],
                       preferred_element_type=jnp.float32) + bo_ref[l]
        x1 = _layer_norm(x + attn, g1_ref[l], b1_ref[l])

        hmid = jnp.dot(x1.astype(jnp.bfloat16), w1_ref[l],
                       preferred_element_type=jnp.float32) + fb1_ref[l]
        hmid = jax.nn.gelu(hmid)          # TODO(synk): HF BERT uses exact erf GELU
        ffn = jnp.dot(hmid.astype(jnp.bfloat16), w2_ref[l],
                      preferred_element_type=jnp.float32) + fb2_ref[l]
        x = _layer_norm(x1 + ffn, g2_ref[l], b2_ref[l])

    # ---- mean pool + Linear + Tanh + Linear(padded to 128) + L2-normalize --
    # TODO(synk): no attention_mask -> padded tokens would be pooled too.
    pooled = jnp.mean(x, axis=0, keepdims=True)                  # [1, H]
    hcls = jnp.tanh(jnp.dot(pooled.astype(jnp.bfloat16), hw1_ref[...],
                            preferred_element_type=jnp.float32) + hb1_ref[...])
    logits = jnp.dot(hcls.astype(jnp.bfloat16), hw2_ref[...],
                     preferred_element_type=jnp.float32) + hb2_ref[...]  # [1,128]
    ssq = jnp.sum(logits * logits, axis=1, keepdims=True)        # pads are 0
    inv = jax.lax.rsqrt(jnp.maximum(ssq, NORM_EPS * NORM_EPS))   # EUP rsqrt
    o_ref[0] = logits * inv


# ---------------------------------------------------------------------------
# Wrapper: one pallas_call, grid over batch (parallel -> both TCs on v7x)
# ---------------------------------------------------------------------------
def bottom_model_forward(params, ids):
    """ids: [B, S] int32 token ids -> [B, N_LABELS] L2-normalized outputs."""
    B, S = ids.shape
    H, L, V = HIDDEN, NUM_LAYERS, VOCAB

    ids3 = ids.reshape(B, S, 1).astype(jnp.int32)
    # positional + token-type(=0) rows, [S, H]; added in-kernel (no [BS,H] tile)
    pos_type = params["pos_emb"][:S] + params["type_emb"][0:1]

    full2 = lambda b: (0, 0)
    full3 = lambda b: (0, 0, 0)
    spec2 = lambda shape: pl.BlockSpec(shape, full2)
    spec3 = lambda shape: pl.BlockSpec(shape, full3)

    out = pl.pallas_call(
        functools.partial(_fused_forward_kernel, S=S, H=H, NH=NUM_HEADS, L=L, V=V),
        out_shape=jax.ShapeDtypeStruct((B, 1, CLS_PAD), jnp.float32),
        grid=(B,),
        in_specs=[
            pl.BlockSpec((1, S, 1), lambda b: (b, 0, 0)),        # token ids
            spec2((V, H)),                                       # word embedding
            spec2((S, H)),                                       # pos+type rows
            spec2((1, H)), spec2((1, H)),                        # embedding LN
            spec3((L, H, 3 * H)), spec3((L, 1, 3 * H)),          # fused QKV w/b
            spec3((L, H, H)), spec3((L, 1, H)),                  # attn out proj
            spec3((L, 1, H)), spec3((L, 1, H)),                  # LN1
            spec3((L, H, FFN)), spec3((L, 1, FFN)),              # FFN up
            spec3((L, FFN, H)), spec3((L, 1, H)),                # FFN down
            spec3((L, 1, H)), spec3((L, 1, H)),                  # LN2
            spec2((H, CLS_HIDDEN)), spec2((1, CLS_HIDDEN)),      # head linear 1
            spec2((CLS_HIDDEN, CLS_PAD)), spec2((1, CLS_PAD)),   # head linear 2 (padded)
        ],
        out_specs=pl.BlockSpec((1, 1, CLS_PAD), lambda b: (b, 0, 0)),
        scratch_shapes=[pltpu.VMEM((S, 3 * H), jnp.float32),     # fused QKV
                        pltpu.VMEM((S, H), jnp.float32)],        # head contexts
        compiler_params=pltpu.CompilerParams(
            dimension_semantics=("parallel",),                   # v7x: 2 TCs
            vmem_limit_bytes=32 * 1024 * 1024),
    )(ids3, params["word_emb"], pos_type, params["emb_ln_g"], params["emb_ln_b"],
      params["wqkv"], params["bqkv"], params["wo"], params["bo"],
      params["ln1_g"], params["ln1_b"], params["w1"], params["b1"],
      params["w2"], params["b2"], params["ln2_g"], params["ln2_b"],
      params["hw1"], params["hb1"], params["hw2p"], params["hb2p"])

    return out[:, 0, :N_LABELS]


# ---------------------------------------------------------------------------
# Deterministic synthetic parameters (bf16 matmul weights, f32 bias/LN)
# ---------------------------------------------------------------------------
def init_params(key):
    keys = iter(jax.random.split(key, 32))
    nrm = lambda shape: jax.random.normal(next(keys), shape, jnp.float32)

    def w(shape, fan_in):
        return ((fan_in ** -0.5) * nrm(shape)).astype(jnp.bfloat16)

    def ln(shape):
        return 1.0 + 0.05 * nrm(shape), 0.05 * nrm(shape)

    L, H = NUM_LAYERS, HIDDEN
    p = {}
    p["word_emb"] = (0.02 * nrm((VOCAB, H))).astype(jnp.bfloat16)
    p["pos_emb"] = 0.02 * nrm((MAX_POS, H))
    p["type_emb"] = 0.02 * nrm((2, H))
    p["emb_ln_g"], p["emb_ln_b"] = ln((1, H))

    # layer weights host-stacked along a leading L axis; QKV fused (wq|wk|wv)
    p["wqkv"] = w((L, H, 3 * H), H)
    p["bqkv"] = 0.02 * nrm((L, 1, 3 * H))
    p["wo"] = w((L, H, H), H)
    p["bo"] = 0.02 * nrm((L, 1, H))
    p["ln1_g"], p["ln1_b"] = ln((L, 1, H))
    p["w1"] = w((L, H, FFN), H)
    p["b1"] = 0.02 * nrm((L, 1, FFN))
    p["w2"] = w((L, FFN, H), FFN)
    p["b2"] = 0.02 * nrm((L, 1, H))
    p["ln2_g"], p["ln2_b"] = ln((L, 1, H))

    p["hw1"] = w((H, CLS_HIDDEN), H)
    p["hb1"] = 0.02 * nrm((1, CLS_HIDDEN))
    # classifier zero-padded to 128 lanes; padded logits are exactly 0
    hw2 = (CLS_HIDDEN ** -0.5) * nrm((CLS_HIDDEN, N_LABELS))
    hb2 = 0.02 * nrm((1, N_LABELS))
    p["hw2p"] = (jnp.zeros((CLS_HIDDEN, CLS_PAD), jnp.float32)
                 .at[:, :N_LABELS].set(hw2)).astype(jnp.bfloat16)
    p["hb2p"] = jnp.zeros((1, CLS_PAD), jnp.float32).at[:, :N_LABELS].set(hb2)
    return p


if __name__ == "__main__":
    key = jax.random.PRNGKey(0)
    kp, kx = jax.random.split(key)
    params = init_params(kp)

    # Token-id input, PyTorch style: batch=2, seq_len=16.
    ids = jax.random.randint(kx, (2, 16), 0, VOCAB, dtype=jnp.int32)

    fwd = jax.jit(bottom_model_forward)
    out = jax.block_until_ready(fwd(params, ids))

    assert out.shape == (2, N_LABELS)
    assert bool(jnp.all(jnp.isfinite(out)))
    # rows are unit-norm after F.normalize(dim=1)
    assert bool(jnp.allclose(jnp.linalg.norm(out, axis=1), 1.0, atol=1e-3))
    print("KERNEL_OK")
</pallas_src>

<mosaic_0001>
module attributes {stable_mosaic.version = 11 : i64} {
  func.func @_fused_forward_kernel(%arg0: i32, %arg1: memref<1x16x1xi32, #tpu.memory_space<vmem>>, %arg2: memref<128x256xbf16, #tpu.memory_space<vmem>>, %arg3: memref<16x256xf32, #tpu.memory_space<vmem>>, %arg4: memref<1x256xf32, #tpu.memory_space<vmem>>, %arg5: memref<1x256xf32, #tpu.memory_space<vmem>>, %arg6: memref<2x256x768xbf16, #tpu.memory_space<vmem>>, %arg7: memref<2x1x768xf32, #tpu.memory_space<vmem>>, %arg8: memref<2x256x256xbf16, #tpu.memory_space<vmem>>, %arg9: memref<2x1x256xf32, #tpu.memory_space<vmem>>, %arg10: memref<2x1x256xf32, #tpu.memory_space<vmem>>, %arg11: memref<2x1x256xf32, #tpu.memory_space<vmem>>, %arg12: memref<2x256x1024xbf16, #tpu.memory_space<vmem>>, %arg13: memref<2x1x1024xf32, #tpu.memory_space<vmem>>, %arg14: memref<2x1024x256xbf16, #tpu.memory_space<vmem>>, %arg15: memref<2x1x256xf32, #tpu.memory_space<vmem>>, %arg16: memref<2x1x256xf32, #tpu.memory_space<vmem>>, %arg17: memref<2x1x256xf32, #tpu.memory_space<vmem>>, %arg18: memref<256x128xbf16, #tpu.memory_space<vmem>>, %arg19: memref<1x128xf32, #tpu.memory_space<vmem>>, %arg20: memref<128x128xbf16, #tpu.memory_space<vmem>>, %arg21: memref<1x128xf32, #tpu.memory_space<vmem>>, %arg22: memref<1x1x128xf32, #tpu.memory_space<vmem>>, %arg23: memref<16x768xf32, #tpu.memory_space<vmem>>, %arg24: memref<16x256xf32, #tpu.memory_space<vmem>>) attributes {dimension_semantics = [#tpu.dimension_semantics<parallel>], iteration_bounds = array<i64: 2>, scalar_prefetch = 0 : i64, scratch_operands = 2 : i64, tpu.core_type = #tpu.core_type<tc>, window_params = [{transform_indices = @transform_0, window_bounds = array<i64: 1, 16, 1>}, {pipeline_mode = #tpu.pipeline_mode<synchronous>, transform_indices = @transform_1, window_bounds = array<i64: 128, 256>}, {pipeline_mode = #tpu.pipeline_mode<synchronous>, transform_indices = @transform_2, window_bounds = array<i64: 16, 256>}, {pipeline_mode = #tpu.pipeline_mode<synchronous>, transform_indices = @transform_3, window_bounds = array<i64: 1, 256>}, {pipeline_mode = #tpu.pipeline_mode<synchronous>, transform_indices = @transform_4, window_bounds = array<i64: 1, 256>}, {pipeline_mode = #tpu.pipeline_mode<synchronous>, transform_indices = @transform_5, window_bounds = array<i64: 2, 256, 768>}, {pipeline_mode = #tpu.pipeline_mode<synchronous>, transform_indices = @transform_6, window_bounds = array<i64: 2, 1, 768>}, {pipeline_mode = #tpu.pipeline_mode<synchronous>, transform_indices = @transform_7, window_bounds = array<i64: 2, 256, 256>}, {pipeline_mode = #tpu.pipeline_mode<synchronous>, transform_indices = @transform_8, window_bounds = array<i64: 2, 1, 256>}, {pipeline_mode = #tpu.pipeline_mode<synchronous>, transform_indices = @transform_9, window_bounds = array<i64: 2, 1, 256>}, {pipeline_mode = #tpu.pipeline_mode<synchronous>, transform_indices = @transform_10, window_bounds = array<i64: 2, 1, 256>}, {pipeline_mode = #tpu.pipeline_mode<synchronous>, transform_indices = @transform_11, window_bounds = array<i64: 2, 256, 1024>}, {pipeline_mode = #tpu.pipeline_mode<synchronous>, transform_indices = @transform_12, window_bounds = array<i64: 2, 1, 1024>}, {pipeline_mode = #tpu.pipeline_mode<synchronous>, transform_indices = @transform_13, window_bounds = array<i64: 2, 1024, 256>}, {pipeline_mode = #tpu.pipeline_mode<synchronous>, transform_indices = @transform_14, window_bounds = array<i64: 2, 1, 256>}, {pipeline_mode = #tpu.pipeline_mode<synchronous>, transform_indices = @transform_15, window_bounds = array<i64: 2, 1, 256>}, {pipeline_mode = #tpu.pipeline_mode<synchronous>, transform_indices = @transform_16, window_bounds = array<i64: 2, 1, 256>}, {pipeline_mode = #tpu.pipeline_mode<synchronous>, transform_indices = @transform_17, window_bounds = array<i64: 256, 128>}, {pipeline_mode = #tpu.pipeline_mode<synchronous>, transform_indices = @transform_18, window_bounds = array<i64: 1, 128>}, {pipeline_mode = #tpu.pipeline_mode<synchronous>, transform_indices = @transform_19, window_bounds = array<i64: 128, 128>}, {pipeline_mode = #tpu.pipeline_mode<synchronous>, transform_indices = @transform_20, window_bounds = array<i64: 1, 128>}, {transform_indices = @transform_21, window_bounds = array<i64: 1, 1, 128>}]} {
    %c0 = arith.constant 0 : index
    %c0_0 = arith.constant 0 : index
    %c0_1 = arith.constant 0 : index
    %0 = vector.load %arg1[%c0, %c0_0, %c0_1] : memref<1x16x1xi32, #tpu.memory_space<vmem>>, vector<1x16x1xi32>
    %1 = vector.shape_cast %0 : vector<1x16x1xi32> to vector<16x1xi32>
    %2 = tpu.iota {dimensions = array<i32: 1>} : vector<16x128xi32>
    %3 = vector.broadcast %1 : vector<16x1xi32> to vector<16x128xi32>
    %4 = arith.cmpi eq, %2, %3 : vector<16x128xi32>
    %5 = arith.extui %4 : vector<16x128xi1> to vector<16x128xi32>
    %6 = arith.sitofp %5 : vector<16x128xi32> to vector<16x128xf32>
    %7 = arith.truncf %6 : vector<16x128xf32> to vector<16x128xbf16>
    %c0_2 = arith.constant 0 : index
    %c0_3 = arith.constant 0 : index
    %8 = vector.load %arg2[%c0_2, %c0_3] : memref<128x256xbf16, #tpu.memory_space<vmem>>, vector<128x256xbf16>
    %cst = arith.constant dense<0.000000e+00> : vector<16x256xf32>
    %9 = tpu.matmul %7, %8, %cst {dimension_numbers = #tpu.dot_dimension_numbers<[1], [0], [0], [1], [0, 0, 1, 1], [], []>} : vector<16x128xbf16>, vector<128x256xbf16>, vector<16x256xf32> -> vector<16x256xf32>
    %c0_4 = arith.constant 0 : index
    %c0_5 = arith.constant 0 : index
    %10 = vector.load %arg3[%c0_4, %c0_5] : memref<16x256xf32, #tpu.memory_space<vmem>>, vector<16x256xf32>
    %11 = arith.addf %9, %10 : vector<16x256xf32>
    %c0_6 = arith.constant 0 : index
    %c0_7 = arith.constant 0 : index
    %12 = vector.load %arg4[%c0_6, %c0_7] : memref<1x256xf32, #tpu.memory_space<vmem>>, vector<1x256xf32>
    %c0_8 = arith.constant 0 : index
    %c0_9 = arith.constant 0 : index
    %13 = vector.load %arg5[%c0_8, %c0_9] : memref<1x256xf32, #tpu.memory_space<vmem>>, vector<1x256xf32>
    %cst_10 = arith.constant dense<0.000000e+00> : vector<16xf32>
    %14 = vector.multi_reduction <add>, %11, %cst_10 [1] : vector<16x256xf32> to vector<16xf32>
    %15 = vector.shape_cast %14 : vector<16xf32> to vector<16x1xf32>
    %cst_11 = arith.constant 2.560000e+02 : f32
    %16 = vector.broadcast %cst_11 : f32 to vector<16x1xf32>
    %17 = arith.divf %15, %16 : vector<16x1xf32>
    %18 = vector.broadcast %17 : vector<16x1xf32> to vector<16x256xf32>
    %19 = arith.subf %11, %18 : vector<16x256xf32>
    %20 = arith.mulf %19, %19 : vector<16x256xf32>
    %cst_12 = arith.constant dense<0.000000e+00> : vector<16xf32>
    %21 = vector.multi_reduction <add>, %20, %cst_12 [1] : vector<16x256xf32> to vector<16xf32>
    %22 = vector.shape_cast %21 : vector<16xf32> to vector<16x1xf32>
    %cst_13 = arith.constant 2.560000e+02 : f32
    %23 = vector.broadcast %cst_13 : f32 to vector<16x1xf32>
    %24 = arith.divf %22, %23 : vector<16x1xf32>
    %cst_14 = arith.constant 9.99999996E-13 : f32
    %25 = vector.broadcast %cst_14 : f32 to vector<16x1xf32>
    %26 = arith.addf %24, %25 : vector<16x1xf32>
    %27 = math.rsqrt %26 : vector<16x1xf32>
    %28 = vector.broadcast %27 : vector<16x1xf32> to vector<16x256xf32>
    %29 = arith.mulf %19, %28 : vector<16x256xf32>
    %30 = vector.broadcast %12 : vector<1x256xf32> to vector<16x256xf32>
    %31 = arith.mulf %29, %30 : vector<16x256xf32>
    %32 = vector.broadcast %13 : vector<1x256xf32> to vector<16x256xf32>
    %33 = arith.addf %31, %32 : vector<16x256xf32>
    %34 = arith.truncf %33 : vector<16x256xf32> to vector<16x256xbf16>
    %c0_15 = arith.constant 0 : index
    %c0_16 = arith.constant 0 : index
    %c0_17 = arith.constant 0 : index
    %35 = vector.load %arg6[%c0_15, %c0_16, %c0_17] : memref<2x256x768xbf16, #tpu.memory_space<vmem>>, vector<1x256x768xbf16>
    %36 = vector.shape_cast %35 : vector<1x256x768xbf16> to vector<256x768xbf16>
    %cst_18 = arith.constant dense<0.000000e+00> : vector<16x768xf32>
    %37 = tpu.matmul %34, %36, %cst_18 {dimension_numbers = #tpu.dot_dimension_numbers<[1], [0], [0], [1], [0, 0, 1, 1], [], []>} : vector<16x256xbf16>, vector<256x768xbf16>, vector<16x768xf32> -> vector<16x768xf32>
    %c0_19 = arith.constant 0 : index
    %c0_20 = arith.constant 0 : index
    %c0_21 = arith.constant 0 : index
    %38 = vector.load %arg7[%c0_19, %c0_20, %c0_21] : memref<2x1x768xf32, #tpu.memory_space<vmem>>, vector<1x1x768xf32>
    %39 = vector.shape_cast %38 : vector<1x1x768xf32> to vector<1x768xf32>
    %40 = vector.broadcast %39 : vector<1x768xf32> to vector<16x768xf32>
    %41 = arith.addf %37, %40 : vector<16x768xf32>
    %c0_22 = arith.constant 0 : index
    %c0_23 = arith.constant 0 : index
    %42 = vector.load %arg23[%c0_22, %c0_23] : memref<16x768xf32, #tpu.memory_space<vmem>>, vector<16x768xf32>
    tpu.vector_store %arg23[%c0_22, %c0_23], %41 {strides = array<i32>} : memref<16x768xf32, #tpu.memory_space<vmem>>, vector<16x768xf32>,
    %c0_24 = arith.constant 0 : index
    %c0_25 = arith.constant 0 : index
    %43 = vector.load %arg23[%c0_24, %c0_25] : memref<16x768xf32, #tpu.memory_space<vmem>>, vector<16x64xf32>
    %cst_26 = arith.constant 1.250000e-01 : f32
    %44 = vector.broadcast %cst_26 : f32 to vector<16x64xf32>
    %45 = arith.mulf %43, %44 : vector<16x64xf32>
    %46 = arith.truncf %45 : vector<16x64xf32> to vector<16x64xbf16>
    %c0_27 = arith.constant 0 : index
    %c256 = arith.constant 256 : index
    %47 = vector.load %arg23[%c0_27, %c256] : memref<16x768xf32, #tpu.memory_space<vmem>>, vector<16x64xf32>
    %48 = arith.truncf %47 : vector<16x64xf32> to vector<16x64xbf16>
    %c0_28 = arith.constant 0 : index
    %c512 = arith.constant 512 : index
    %49 = vector.load %arg23[%c0_28, %c512] : memref<16x768xf32, #tpu.memory_space<vmem>>, vector<16x64xf32>
    %50 = arith.truncf %49 : vector<16x64xf32> to vector<16x64xbf16>
    "tpu.trace_start"() <{level = 10 : i32, message = "qd,kd->qk"}> : () -> ()
    %cst_29 = arith.constant dense<0.000000e+00> : vector<16x16xf32>
    %51 = tpu.matmul %46, %48, %cst_29 {dimension_numbers = #tpu.dot_dimension_numbers<[1], [1], [0], [0], [0, 0, 1, 0], [], []>} : vector<16x64xbf16>, vector<16x64xbf16>, vector<16x16xf32> -> vector<16x16xf32>
    "tpu.trace_stop"() : () -> ()
    %cst_30 = arith.constant dense<0xFF800000> : vector<16xf32>
    %52 = vector.multi_reduction <maximumf>, %51, %cst_30 [1] : vector<16x16xf32> to vector<16xf32>
    %53 = vector.shape_cast %52 : vector<16xf32> to vector<16x1xf32>
    %54 = vector.broadcast %53 : vector<16x1xf32> to vector<16x16xf32>
    %55 = arith.subf %51, %54 : vector<16x16xf32>
    %56 = math.exp %55 : vector<16x16xf32>
    %cst_31 = arith.constant dense<0.000000e+00> : vector<16xf32>
    %57 = vector.multi_reduction <add>, %56, %cst_31 [1] : vector<16x16xf32> to vector<16xf32>
    %58 = vector.shape_cast %57 : vector<16xf32> to vector<16x1xf32>
    %59 = tpu.reciprocal %58 {approx = true} : vector<16x1xf32> -> vector<16x1xf32>
    %60 = vector.broadcast %59 : vector<16x1xf32> to vector<16x16xf32>
    %61 = arith.mulf %56, %60 : vector<16x16xf32>
    %62 = arith.truncf %61 : vector<16x16xf32> to vector<16x16xbf16>
    %cst_32 = arith.constant dense<0.000000e+00> : vector<16x64xf32>
    %63 = tpu.matmul %62, %50, %cst_32 {dimension_numbers = #tpu.dot_dimension_numbers<[1], [0], [0], [1], [0, 0, 1, 1], [], []>} : vector<16x16xbf16>, vector<16x64xbf16>, vector<16x64xf32> -> vector<16x64xf32>
    %c0_33 = arith.constant 0 : index
    %c0_34 = arith.constant 0 : index
    %64 = vector.load %arg24[%c0_33, %c0_34] : memref<16x256xf32, #tpu.memory_space<vmem>>, vector<16x64xf32>
    tpu.vector_store %arg24[%c0_33, %c0_34], %63 {strides = array<i32>} : memref<16x256xf32, #tpu.memory_space<vmem>>, vector<16x64xf32>,
    %c0_35 = arith.constant 0 : index
    %c64 = arith.constant 64 : index
    %65 = vector.load %arg23[%c0_35, %c64] : memref<16x768xf32, #tpu.memory_space<vmem>>, vector<16x64xf32>
    %cst_36 = arith.constant 1.250000e-01 : f32
    %66 = vector.broadcast %cst_36 : f32 to vector<16x64xf32>
    %67 = arith.mulf %65, %66 : vector<16x64xf32>
    %68 = arith.truncf %67 : vector<16x64xf32> to vector<16x64xbf16>
    %c0_37 = arith.constant 0 : index
    %c320 = arith.constant 320 : index
    %69 = vector.load %arg23[%c0_37, %c320] : memref<16x768xf32, #tpu.memory_space<vmem>>, vector<16x64xf32>
    %70 = arith.truncf %69 : vector<16x64xf32> to vector<16x64xbf16>
    %c0_38 = arith.constant 0 : index
    %c576 = arith.constant 576 : index
    %71 = vector.load %arg23[%c0_38, %c576] : memref<16x768xf32, #tpu.memory_space<vmem>>, vector<16x64xf32>
    %72 = arith.truncf %71 : vector<16x64xf32> to vector<16x64xbf16>
    "tpu.trace_start"() <{level = 10 : i32, message = "qd,kd->qk"}> : () -> ()
    %cst_39 = arith.constant dense<0.000000e+00> : vector<16x16xf32>
    %73 = tpu.matmul %68, %70, %cst_39 {dimension_numbers = #tpu.dot_dimension_numbers<[1], [1], [0], [0], [0, 0, 1, 0], [], []>} : vector<16x64xbf16>, vector<16x64xbf16>, vector<16x16xf32> -> vector<16x16xf32>
    "tpu.trace_stop"() : () -> ()
    %cst_40 = arith.constant dense<0xFF800000> : vector<16xf32>
    %74 = vector.multi_reduction <maximumf>, %73, %cst_40 [1] : vector<16x16xf32> to vector<16xf32>
    %75 = vector.shape_cast %74 : vector<16xf32> to vector<16x1xf32>
    %76 = vector.broadcast %75 : vector<16x1xf32> to vector<16x16xf32>
    %77 = arith.subf %73, %76 : vector<16x16xf32>
    %78 = math.exp %77 : vector<16x16xf32>
    %cst_41 = arith.constant dense<0.000000e+00> : vector<16xf32>
    %79 = vector.multi_reduction <add>, %78, %cst_41 [1] : vector<16x16xf32> to vector<16xf32>
    %80 = vector.shape_cast %79 : vector<16xf32> to vector<16x1xf32>
    %81 = tpu.reciprocal %80 {approx = true} : vector<16x1xf32> -> vector<16x1xf32>
    %82 = vector.broadcast %81 : vector<16x1xf32> to vector<16x16xf32>
    %83 = arith.mulf %78, %82 : vector<16x16xf32>
    %84 = arith.truncf %83 : vector<16x16xf32> to vector<16x16xbf16>
    %cst_42 = arith.constant dense<0.000000e+00> : vector<16x64xf32>
    %85 = tpu.matmul %84, %72, %cst_42 {dimension_numbers = #tpu.dot_dimension_numbers<[1], [0], [0], [1], [0, 0, 1, 1], [], []>} : vector<16x16xbf16>, vector<16x64xbf16>, vector<16x64xf32> -> vector<16x64xf32>
    %c0_43 = arith.constant 0 : index
    %c64_44 = arith.constant 64 : index
    %86 = vector.load %arg24[%c0_43, %c64_44] : memref<16x256xf32, #tpu.memory_space<vmem>>, vector<16x64xf32>
    tpu.vector_store %arg24[%c0_43, %c64_44], %85 {strides = array<i32>} : memref<16x256xf32, #tpu.memory_space<vmem>>, vector<16x64xf32>,
    %c0_45 = arith.constant 0 : index
    %c128 = arith.constant 128 : index
    %87 = vector.load %arg23[%c0_45, %c128] : memref<16x768xf32, #tpu.memory_space<vmem>>, vector<16x64xf32>
    %cst_46 = arith.constant 1.250000e-01 : f32
    %88 = vector.broadcast %cst_46 : f32 to vector<16x64xf32>
    %89 = arith.mulf %87, %88 : vector<16x64xf32>
    %90 = arith.truncf %89 : vector<16x64xf32> to vector<16x64xbf16>
    %c0_47 = arith.constant 0 : index
    %c384 = arith.constant 384 : index
    %91 = vector.load %arg23[%c0_47, %c384] : memref<16x768xf32, #tpu.memory_space<vmem>>, vector<16x64xf32>
    %92 = arith.truncf %91 : vector<16x64xf32> to vector<16x64xbf16>
    %c0_48 = arith.constant 0 : index
    %c640 = arith.constant 640 : index
    %93 = vector.load %arg23[%c0_48, %c640] : memref<16x768xf32, #tpu.memory_space<vmem>>, vector<16x64xf32>
    %94 = arith.truncf %93 : vector<16x64xf32> to vector<16x64xbf16>
    "tpu.trace_start"() <{level = 10 : i32, message = "qd,kd->qk"}> : () -> ()
    %cst_49 = arith.constant dense<0.000000e+00> : vector<16x16xf32>
    %95 = tpu.matmul %90, %92, %cst_49 {dimension_numbers = #tpu.dot_dimension_numbers<[1], [1], [0], [0], [0, 0, 1, 0], [], []>} : vector<16x64xbf16>, vector<16x64xbf16>, vector<16x16xf32> -> vector<16x16xf32>
    "tpu.trace_stop"() : () -> ()
    %cst_50 = arith.constant dense<0xFF800000> : vector<16xf32>
    %96 = vector.multi_reduction <maximumf>, %95, %cst_50 [1] : vector<16x16xf32> to vector<16xf32>
    %97 = vector.shape_cast %96 : vector<16xf32> to vector<16x1xf32>
    %98 = vector.broadcast %97 : vector<16x1xf32> to vector<16x16xf32>
    %99 = arith.subf %95, %98 : vector<16x16xf32>
    %100 = math.exp %99 : vector<16x16xf32>
    %cst_51 = arith.constant dense<0.000000e+00> : vector<16xf32>
    %101 = vector.multi_reduction <add>, %100, %cst_51 [1] : vector<16x16xf32> to vector<16xf32>
    %102 = vector.shape_cast %101 : vector<16xf32> to vector<16x1xf32>
    %103 = tpu.reciprocal %102 {approx = true} : vector<16x1xf32> -> vector<16x1xf32>
    %104 = vector.broadcast %103 : vector<16x1xf32> to vector<16x16xf32>
    %105 = arith.mulf %100, %104 : vector<16x16xf32>
    %106 = arith.truncf %105 : vector<16x16xf32> to vector<16x16xbf16>
    %cst_52 = arith.constant dense<0.000000e+00> : vector<16x64xf32>
    %107 = tpu.matmul %106, %94, %cst_52 {dimension_numbers = #tpu.dot_dimension_numbers<[1], [0], [0], [1], [0, 0, 1, 1], [], []>} : vector<16x16xbf16>, vector<16x64xbf16>, vector<16x64xf32> -> vector<16x64xf32>
    %c0_53 = arith.constant 0 : index
    %c128_54 = arith.constant 128 : index
    %108 = vector.load %arg24[%c0_53, %c128_54] : memref<16x256xf32, #tpu.memory_space<vmem>>, vector<16x64xf32>
    tpu.vector_store %arg24[%c0_53, %c128_54], %107 {strides = array<i32>} : memref<16x256xf32, #tpu.memory_space<vmem>>, vector<16x64xf32>,
    %c0_55 = arith.constant 0 : index
    %c192 = arith.constant 192 : index
    %109 = vector.load %arg23[%c0_55, %c192] : memref<16x768xf32, #tpu.memory_space<vmem>>, vector<16x64xf32>
    %cst_56 = arith.constant 1.250000e-01 : f32
    %110 = vector.broadcast %cst_56 : f32 to vector<16x64xf32>
    %111 = arith.mulf %109, %110 : vector<16x64xf32>
    %112 = arith.truncf %111 : vector<16x64xf32> to vector<16x64xbf16>
    %c0_57 = arith.constant 0 : index
    %c448 = arith.constant 448 : index
    %113 = vector.load %arg23[%c0_57, %c448] : memref<16x768xf32, #tpu.memory_space<vmem>>, vector<16x64xf32>
    %114 = arith.truncf %113 : vector<16x64xf32> to vector<16x64xbf16>
    %c0_58 = arith.constant 0 : index
    %c704 = arith.constant 704 : index
    %115 = vector.load %arg23[%c0_58, %c704] : memref<16x768xf32, #tpu.memory_space<vmem>>, vector<16x64xf32>
    %116 = arith.truncf %115 : vector<16x64xf32> to vector<16x64xbf16>
    "tpu.trace_start"() <{level = 10 : i32, message = "qd,kd->qk"}> : () -> ()
    %cst_59 = arith.constant dense<0.000000e+00> : vector<16x16xf32>
    %117 = tpu.matmul %112, %114, %cst_59 {dimension_numbers = #tpu.dot_dimension_numbers<[1], [1], [0], [0], [0, 0, 1, 0], [], []>} : vector<16x64xbf16>, vector<16x64xbf16>, vector<16x16xf32> -> vector<16x16xf32>
    "tpu.trace_stop"() : () -> ()
    %cst_60 = arith.constant dense<0xFF800000> : vector<16xf32>
    %118 = vector.multi_reduction <maximumf>, %117, %cst_60 [1] : vector<16x16xf32> to vector<16xf32>
    %119 = vector.shape_cast %118 : vector<16xf32> to vector<16x1xf32>
    %120 = vector.broadcast %119 : vector<16x1xf32> to vector<16x16xf32>
    %121 = arith.subf %117, %120 : vector<16x16xf32>
    %122 = math.exp %121 : vector<16x16xf32>
    %cst_61 = arith.constant dense<0.000000e+00> : vector<16xf32>
    %123 = vector.multi_reduction <add>, %122, %cst_61 [1] : vector<16x16xf32> to vector<16xf32>
    %124 = vector.shape_cast %123 : vector<16xf32> to vector<16x1xf32>
    %125 = tpu.reciprocal %124 {approx = true} : vector<16x1xf32> -> vector<16x1xf32>
    %126 = vector.broadcast %125 : vector<16x1xf32> to vector<16x16xf32>
    %127 = arith.mulf %122, %126 : vector<16x16xf32>
    %128 = arith.truncf %127 : vector<16x16xf32> to vector<16x16xbf16>
    %cst_62 = arith.constant dense<0.000000e+00> : vector<16x64xf32>
    %129 = tpu.matmul %128, %116, %cst_62 {dimension_numbers = #tpu.dot_dimension_numbers<[1], [0], [0], [1], [0, 0, 1, 1], [], []>} : vector<16x16xbf16>, vector<16x64xbf16>, vector<16x64xf32> -> vector<16x64xf32>
    %c0_63 = arith.constant 0 : index
    %c192_64 = arith.constant 192 : index
    %130 = vector.load %arg24[%c0_63, %c192_64] : memref<16x256xf32, #tpu.memory_space<vmem>>, vector<16x64xf32>
    tpu.vector_store %arg24[%c0_63, %c192_64], %129 {strides = array<i32>} : memref<16x256xf32, #tpu.memory_space<vmem>>, vector<16x64xf32>,
    %c0_65 = arith.constant 0 : index
    %c0_66 = arith.constant 0 : index
    %131 = vector.load %arg24[%c0_65, %c0_66] : memref<16x256xf32, #tpu.memory_space<vmem>>, vector<16x256xf32>
    %132 = arith.truncf %131 : vector<16x256xf32> to vector<16x256xbf16>
    %c0_67 = arith.constant 0 : index
    %c0_68 = arith.constant 0 : index
    %c0_69 = arith.constant 0 : index
    %133 = vector.load %arg8[%c0_67, %c0_68, %c0_69] : memref<2x256x256xbf16, #tpu.memory_space<vmem>>, vector<1x256x256xbf16>
    %134 = vector.shape_cast %133 : vector<1x256x256xbf16> to vector<256x256xbf16>
    %cst_70 = arith.constant dense<0.000000e+00> : vector<16x256xf32>
    %135 = tpu.matmul %132, %134, %cst_70 {dimension_numbers = #tpu.dot_dimension_numbers<[1], [0], [0], [1], [0, 0, 1, 1], [], []>} : vector<16x256xbf16>, vector<256x256xbf16>, vector<16x256xf32> -> vector<16x256xf32>
    %c0_71 = arith.constant 0 : index
    %c0_72 = arith.constant 0 : index
    %c0_73 = arith.constant 0 : index
    %136 = vector.load %arg9[%c0_71, %c0_72, %c0_73] : memref<2x1x256xf32, #tpu.memory_space<vmem>>, vector<1x1x256xf32>
    %137 = vector.shape_cast %136 : vector<1x1x256xf32> to vector<1x256xf32>
    %138 = vector.broadcast %137 : vector<1x256xf32> to vector<16x256xf32>
    %139 = arith.addf %135, %138 : vector<16x256xf32>
    %140 = arith.addf %33, %139 : vector<16x256xf32>
    %c0_74 = arith.constant 0 : index
    %c0_75 = arith.constant 0 : index
    %c0_76 = arith.constant 0 : index
    %141 = vector.load %arg10[%c0_74, %c0_75, %c0_76] : memref<2x1x256xf32, #tpu.memory_space<vmem>>, vector<1x1x256xf32>
    %142 = vector.shape_cast %141 : vector<1x1x256xf32> to vector<1x256xf32>
    %c0_77 = arith.constant 0 : index
    %c0_78 = arith.constant 0 : index
    %c0_79 = arith.constant 0 : index
    %143 = vector.load %arg11[%c0_77, %c0_78, %c0_79] : memref<2x1x256xf32, #tpu.memory_space<vmem>>, vector<1x1x256xf32>
    %144 = vector.shape_cast %143 : vector<1x1x256xf32> to vector<1x256xf32>
    %cst_80 = arith.constant dense<0.000000e+00> : vector<16xf32>
    %145 = vector.multi_reduction <add>, %140, %cst_80 [1] : vector<16x256xf32> to vector<16xf32>
    %146 = vector.shape_cast %145 : vector<16xf32> to vector<16x1xf32>
    %cst_81 = arith.constant 2.560000e+02 : f32
    %147 = vector.broadcast %cst_81 : f32 to vector<16x1xf32>
    %148 = arith.divf %146, %147 : vector<16x1xf32>
    %149 = vector.broadcast %148 : vector<16x1xf32> to vector<16x256xf32>
    %150 = arith.subf %140, %149 : vector<16x256xf32>
    %151 = arith.mulf %150, %150 : vector<16x256xf32>
    %cst_82 = arith.constant dense<0.000000e+00> : vector<16xf32>
    %152 = vector.multi_reduction <add>, %151, %cst_82 [1] : vector<16x256xf32> to vector<16xf32>
    %153 = vector.shape_cast %152 : vector<16xf32> to vector<16x1xf32>
    %cst_83 = arith.constant 2.560000e+02 : f32
    %154 = vector.broadcast %cst_83 : f32 to vector<16x1xf32>
    %155 = arith.divf %153, %154 : vector<16x1xf32>
    %cst_84 = arith.constant 9.99999996E-13 : f32
    %156 = vector.broadcast %cst_84 : f32 to vector<16x1xf32>
    %157 = arith.addf %155, %156 : vector<16x1xf32>
    %158 = math.rsqrt %157 : vector<16x1xf32>
    %159 = vector.broadcast %158 : vector<16x1xf32> to vector<16x256xf32>
    %160 = arith.mulf %150, %159 : vector<16x256xf32>
    %161 = vector.broadcast %142 : vector<1x256xf32> to vector<16x256xf32>
    %162 = arith.mulf %160, %161 : vector<16x256xf32>
    %163 = vector.broadcast %144 : vector<1x256xf32> to vector<16x256xf32>
    %164 = arith.addf %162, %163 : vector<16x256xf32>
    %165 = arith.truncf %164 : vector<16x256xf32> to vector<16x256xbf16>
    %c0_85 = arith.constant 0 : index
    %c0_86 = arith.constant 0 : index
    %c0_87 = arith.constant 0 : index
    %166 = vector.load %arg12[%c0_85, %c0_86, %c0_87] : memref<2x256x1024xbf16, #tpu.memory_space<vmem>>, vector<1x256x1024xbf16>
    %167 = vector.shape_cast %166 : vector<1x256x1024xbf16> to vector<256x1024xbf16>
    %cst_88 = arith.constant dense<0.000000e+00> : vector<16x1024xf32>
    %168 = tpu.matmul %165, %167, %cst_88 {dimension_numbers = #tpu.dot_dimension_numbers<[1], [0], [0], [1], [0, 0, 1, 1], [], []>} : vector<16x256xbf16>, vector<256x1024xbf16>, vector<16x1024xf32> -> vector<16x1024xf32>
    %c0_89 = arith.constant 0 : index
    %c0_90 = arith.constant 0 : index
    %c0_91 = arith.constant 0 : index
    %169 = vector.load %arg13[%c0_89, %c0_90, %c0_91] : memref<2x1x1024xf32, #tpu.memory_space<vmem>>, vector<1x1x1024xf32>
    %170 = vector.shape_cast %169 : vector<1x1x1024xf32> to vector<1x1024xf32>
    %171 = vector.broadcast %170 : vector<1x1024xf32> to vector<16x1024xf32>
    %172 = arith.addf %168, %171 : vector<16x1024xf32>
    %173 = arith.mulf %172, %172 : vector<16x1024xf32>
    %174 = arith.mulf %172, %173 : vector<16x1024xf32>
    %cst_92 = arith.constant 4.471500e-02 : f32
    %175 = vector.broadcast %cst_92 : f32 to vector<16x1024xf32>
    %176 = arith.mulf %175, %174 : vector<16x1024xf32>
    %177 = arith.addf %172, %176 : vector<16x1024xf32>
    %cst_93 = arith.constant 0.797884583 : f32
    %178 = vector.broadcast %cst_93 : f32 to vector<16x1024xf32>
    %179 = arith.mulf %178, %177 : vector<16x1024xf32>
    %180 = math.tanh %179 : vector<16x1024xf32>
    %cst_94 = arith.constant 1.000000e+00 : f32
    %181 = vector.broadcast %cst_94 : f32 to vector<16x1024xf32>
    %182 = arith.addf %181, %180 : vector<16x1024xf32>
    %cst_95 = arith.constant 5.000000e-01 : f32
    %183 = vector.broadcast %cst_95 : f32 to vector<16x1024xf32>
    %184 = arith.mulf %183, %182 : vector<16x1024xf32>
    %185 = arith.mulf %172, %184 : vector<16x1024xf32>
    %186 = arith.truncf %185 : vector<16x1024xf32> to vector<16x1024xbf16>
    %c0_96 = arith.constant 0 : index
    %c0_97 = arith.constant 0 : index
    %c0_98 = arith.constant 0 : index
    %187 = vector.load %arg14[%c0_96, %c0_97, %c0_98] : memref<2x1024x256xbf16, #tpu.memory_space<vmem>>, vector<1x1024x256xbf16>
    %188 = vector.shape_cast %187 : vector<1x1024x256xbf16> to vector<1024x256xbf16>
    %cst_99 = arith.constant dense<0.000000e+00> : vector<16x256xf32>
    %189 = tpu.matmul %186, %188, %cst_99 {dimension_numbers = #tpu.dot_dimension_numbers<[1], [0], [0], [1], [0, 0, 1, 1], [], []>} : vector<16x1024xbf16>, vector<1024x256xbf16>, vector<16x256xf32> -> vector<16x256xf32>
    %c0_100 = arith.constant 0 : index
    %c0_101 = arith.constant 0 : index
    %c0_102 = arith.constant 0 : index
    %190 = vector.load %arg15[%c0_100, %c0_101, %c0_102] : memref<2x1x256xf32, #tpu.memory_space<vmem>>, vector<1x1x256xf32>
    %191 = vector.shape_cast %190 : vector<1x1x256xf32> to vector<1x256xf32>
    %192 = vector.broadcast %191 : vector<1x256xf32> to vector<16x256xf32>
    %193 = arith.addf %189, %192 : vector<16x256xf32>
    %194 = arith.addf %164, %193 : vector<16x256xf32>
    %c0_103 = arith.constant 0 : index
    %c0_104 = arith.constant 0 : index
    %c0_105 = arith.constant 0 : index
    %195 = vector.load %arg16[%c0_103, %c0_104, %c0_105] : memref<2x1x256xf32, #tpu.memory_space<vmem>>, vector<1x1x256xf32>
    %196 = vector.shape_cast %195 : vector<1x1x256xf32> to vector<1x256xf32>
    %c0_106 = arith.constant 0 : index
    %c0_107 = arith.constant 0 : index
    %c0_108 = arith.constant 0 : index
    %197 = vector.load %arg17[%c0_106, %c0_107, %c0_108] : memref<2x1x256xf32, #tpu.memory_space<vmem>>, vector<1x1x256xf32>
    %198 = vector.shape_cast %197 : vector<1x1x256xf32> to vector<1x256xf32>
    %cst_109 = arith.constant dense<0.000000e+00> : vector<16xf32>
    %199 = vector.multi_reduction <add>, %194, %cst_109 [1] : vector<16x256xf32> to vector<16xf32>
    %200 = vector.shape_cast %199 : vector<16xf32> to vector<16x1xf32>
    %cst_110 = arith.constant 2.560000e+02 : f32
    %201 = vector.broadcast %cst_110 : f32 to vector<16x1xf32>
    %202 = arith.divf %200, %201 : vector<16x1xf32>
    %203 = vector.broadcast %202 : vector<16x1xf32> to vector<16x256xf32>
    %204 = arith.subf %194, %203 : vector<16x256xf32>
    %205 = arith.mulf %204, %204 : vector<16x256xf32>
    %cst_111 = arith.constant dense<0.000000e+00> : vector<16xf32>
    %206 = vector.multi_reduction <add>, %205, %cst_111 [1] : vector<16x256xf32> to vector<16xf32>
    %207 = vector.shape_cast %206 : vector<16xf32> to vector<16x1xf32>
    %cst_112 = arith.constant 2.560000e+02 : f32
    %208 = vector.broadcast %cst_112 : f32 to vector<16x1xf32>
    %209 = arith.divf %207, %208 : vector<16x1xf32>
    %cst_113 = arith.constant 9.99999996E-13 : f32
    %210 = vector.broadcast %cst_113 : f32 to vector<16x1xf32>
    %211 = arith.addf %209, %210 : vector<16x1xf32>
    %212 = math.rsqrt %211 : vector<16x1xf32>
    %213 = vector.broadcast %212 : vector<16x1xf32> to vector<16x256xf32>
    %214 = arith.mulf %204, %213 : vector<16x256xf32>
    %215 = vector.broadcast %196 : vector<1x256xf32> to vector<16x256xf32>
    %216 = arith.mulf %214, %215 : vector<16x256xf32>
    %217 = vector.broadcast %198 : vector<1x256xf32> to vector<16x256xf32>
    %218 = arith.addf %216, %217 : vector<16x256xf32>
    %219 = arith.truncf %218 : vector<16x256xf32> to vector<16x256xbf16>
    %c1 = arith.constant 1 : index
    %c0_114 = arith.constant 0 : index
    %c0_115 = arith.constant 0 : index
    %220 = vector.load %arg6[%c1, %c0_114, %c0_115] : memref<2x256x768xbf16, #tpu.memory_space<vmem>>, vector<1x256x768xbf16>
    %221 = vector.shape_cast %220 : vector<1x256x768xbf16> to vector<256x768xbf16>
    %cst_116 = arith.constant dense<0.000000e+00> : vector<16x768xf32>
    %222 = tpu.matmul %219, %221, %cst_116 {dimension_numbers = #tpu.dot_dimension_numbers<[1], [0], [0], [1], [0, 0, 1, 1], [], []>} : vector<16x256xbf16>, vector<256x768xbf16>, vector<16x768xf32> -> vector<16x768xf32>
    %c1_117 = arith.constant 1 : index
    %c0_118 = arith.constant 0 : index
    %c0_119 = arith.constant 0 : index
    %223 = vector.load %arg7[%c1_117, %c0_118, %c0_119] : memref<2x1x768xf32, #tpu.memory_space<vmem>>, vector<1x1x768xf32>
    %224 = vector.shape_cast %223 : vector<1x1x768xf32> to vector<1x768xf32>
    %225 = vector.broadcast %224 : vector<1x768xf32> to vector<16x768xf32>
    %226 = arith.addf %222, %225 : vector<16x768xf32>
    %c0_120 = arith.constant 0 : index
    %c0_121 = arith.constant 0 : index
    %227 = vector.load %arg23[%c0_120, %c0_121] : memref<16x768xf32, #tpu.memory_space<vmem>>, vector<16x768xf32>
    tpu.vector_store %arg23[%c0_120, %c0_121], %226 {strides = array<i32>} : memref<16x768xf32, #tpu.memory_space<vmem>>, vector<16x768xf32>,
    %c0_122 = arith.constant 0 : index
    %c0_123 = arith.constant 0 : index
    %228 = vector.load %arg23[%c0_122, %c0_123] : memref<16x768xf32, #tpu.memory_space<vmem>>, vector<16x64xf32>
    %cst_124 = arith.constant 1.250000e-01 : f32
    %229 = vector.broadcast %cst_124 : f32 to vector<16x64xf32>
    %230 = arith.mulf %228, %229 : vector<16x64xf32>
    %231 = arith.truncf %230 : vector<16x64xf32> to vector<16x64xbf16>
    %c0_125 = arith.constant 0 : index
    %c256_126 = arith.constant 256 : index
    %232 = vector.load %arg23[%c0_125, %c256_126] : memref<16x768xf32, #tpu.memory_space<vmem>>, vector<16x64xf32>
    %233 = arith.truncf %232 : vector<16x64xf32> to vector<16x64xbf16>
    %c0_127 = arith.constant 0 : index
    %c512_128 = arith.constant 512 : index
    %234 = vector.load %arg23[%c0_127, %c512_128] : memref<16x768xf32, #tpu.memory_space<vmem>>, vector<16x64xf32>
    %235 = arith.truncf %234 : vector<16x64xf32> to vector<16x64xbf16>
    "tpu.trace_start"() <{level = 10 : i32, message = "qd,kd->qk"}> : () -> ()
    %cst_129 = arith.constant dense<0.000000e+00> : vector<16x16xf32>
    %236 = tpu.matmul %231, %233, %cst_129 {dimension_numbers = #tpu.dot_dimension_numbers<[1], [1], [0], [0], [0, 0, 1, 0], [], []>} : vector<16x64xbf16>, vector<16x64xbf16>, vector<16x16xf32> -> vector<16x16xf32>
    "tpu.trace_stop"() : () -> ()
    %cst_130 = arith.constant dense<0xFF800000> : vector<16xf32>
    %237 = vector.multi_reduction <maximumf>, %236, %cst_130 [1] : vector<16x16xf32> to vector<16xf32>
    %238 = vector.shape_cast %237 : vector<16xf32> to vector<16x1xf32>
    %239 = vector.broadcast %238 : vector<16x1xf32> to vector<16x16xf32>
    %240 = arith.subf %236, %239 : vector<16x16xf32>
    %241 = math.exp %240 : vector<16x16xf32>
    %cst_131 = arith.constant dense<0.000000e+00> : vector<16xf32>
    %242 = vector.multi_reduction <add>, %241, %cst_131 [1] : vector<16x16xf32> to vector<16xf32>
    %243 = vector.shape_cast %242 : vector<16xf32> to vector<16x1xf32>
    %244 = tpu.reciprocal %243 {approx = true} : vector<16x1xf32> -> vector<16x1xf32>
    %245 = vector.broadcast %244 : vector<16x1xf32> to vector<16x16xf32>
    %246 = arith.mulf %241, %245 : vector<16x16xf32>
    %247 = arith.truncf %246 : vector<16x16xf32> to vector<16x16xbf16>
    %cst_132 = arith.constant dense<0.000000e+00> : vector<16x64xf32>
    %248 = tpu.matmul %247, %235, %cst_132 {dimension_numbers = #tpu.dot_dimension_numbers<[1], [0], [0], [1], [0, 0, 1, 1], [], []>} : vector<16x16xbf16>, vector<16x64xbf16>, vector<16x64xf32> -> vector<16x64xf32>
    %c0_133 = arith.constant 0 : index
    %c0_134 = arith.constant 0 : index
    %249 = vector.load %arg24[%c0_133, %c0_134] : memref<16x256xf32, #tpu.memory_space<vmem>>, vector<16x64xf32>
    tpu.vector_store %arg24[%c0_133, %c0_134], %248 {strides = array<i32>} : memref<16x256xf32, #tpu.memory_space<vmem>>, vector<16x64xf32>,
    %c0_135 = arith.constant 0 : index
    %c64_136 = arith.constant 64 : index
    %250 = vector.load %arg23[%c0_135, %c64_136] : memref<16x768xf32, #tpu.memory_space<vmem>>, vector<16x64xf32>
    %cst_137 = arith.constant 1.250000e-01 : f32
    %251 = vector.broadcast %cst_137 : f32 to vector<16x64xf32>
    %252 = arith.mulf %250, %251 : vector<16x64xf32>
    %253 = arith.truncf %252 : vector<16x64xf32> to vector<16x64xbf16>
    %c0_138 = arith.constant 0 : index
    %c320_139 = arith.constant 320 : index
    %254 = vector.load %arg23[%c0_138, %c320_139] : memref<16x768xf32, #tpu.memory_space<vmem>>, vector<16x64xf32>
    %255 = arith.truncf %254 : vector<16x64xf32> to vector<16x64xbf16>
    %c0_140 = arith.constant 0 : index
    %c576_141 = arith.constant 576 : index
    %256 = vector.load %arg23[%c0_140, %c576_141] : memref<16x768xf32, #tpu.memory_space<vmem>>, vector<16x64xf32>
    %257 = arith.truncf %256 : vector<16x64xf32> to vector<16x64xbf16>
    "tpu.trace_start"() <{level = 10 : i32, message = "qd,kd->qk"}> : () -> ()
    %cst_142 = arith.constant dense<0.000000e+00> : vector<16x16xf32>
    %258 = tpu.matmul %253, %255, %cst_142 {dimension_numbers = #tpu.dot_dimension_numbers<[1], [1], [0], [0], [0, 0, 1, 0], [], []>} : vector<16x64xbf16>, vector<16x64xbf16>, vector<16x16xf32> -> vector<16x16xf32>
    "tpu.trace_stop"() : () -> ()
    %cst_143 = arith.constant dense<0xFF800000> : vector<16xf32>
    %259 = vector.multi_reduction <maximumf>, %258, %cst_143 [1] : vector<16x16xf32> to vector<16xf32>
    %260 = vector.shape_cast %259 : vector<16xf32> to vector<16x1xf32>
    %261 = vector.broadcast %260 : vector<16x1xf32> to vector<16x16xf32>
    %262 = arith.subf %258, %261 : vector<16x16xf32>
    %263 = math.exp %262 : vector<16x16xf32>
    %cst_144 = arith.constant dense<0.000000e+00> : vector<16xf32>
    %264 = vector.multi_reduction <add>, %263, %cst_144 [1] : vector<16x16xf32> to vector<16xf32>
    %265 = vector.shape_cast %264 : vector<16xf32> to vector<16x1xf32>
    %266 = tpu.reciprocal %265 {approx = true} : vector<16x1xf32> -> vector<16x1xf32>
    %267 = vector.broadcast %266 : vector<16x1xf32> to vector<16x16xf32>
    %268 = arith.mulf %263, %267 : vector<16x16xf32>
    %269 = arith.truncf %268 : vector<16x16xf32> to vector<16x16xbf16>
    %cst_145 = arith.constant dense<0.000000e+00> : vector<16x64xf32>
    %270 = tpu.matmul %269, %257, %cst_145 {dimension_numbers = #tpu.dot_dimension_numbers<[1], [0], [0], [1], [0, 0, 1, 1], [], []>} : vector<16x16xbf16>, vector<16x64xbf16>, vector<16x64xf32> -> vector<16x64xf32>
    %c0_146 = arith.constant 0 : index
    %c64_147 = arith.constant 64 : index
    %271 = vector.load %arg24[%c0_146, %c64_147] : memref<16x256xf32, #tpu.memory_space<vmem>>, vector<16x64xf32>
    tpu.vector_store %arg24[%c0_146, %c64_147], %270 {strides = array<i32>} : memref<16x256xf32, #tpu.memory_space<vmem>>, vector<16x64xf32>,
    %c0_148 = arith.constant 0 : index
    %c128_149 = arith.constant 128 : index
    %272 = vector.load %arg23[%c0_148, %c128_149] : memref<16x768xf32, #tpu.memory_space<vmem>>, vector<16x64xf32>
    %cst_150 = arith.constant 1.250000e-01 : f32
    %273 = vector.broadcast %cst_150 : f32 to vector<16x64xf32>
    %274 = arith.mulf %272, %273 : vector<16x64xf32>
    %275 = arith.truncf %274 : vector<16x64xf32> to vector<16x64xbf16>
    %c0_151 = arith.constant 0 : index
    %c384_152 = arith.constant 384 : index
    %276 = vector.load %arg23[%c0_151, %c384_152] : memref<16x768xf32, #tpu.memory_space<vmem>>, vector<16x64xf32>
    %277 = arith.truncf %276 : vector<16x64xf32> to vector<16x64xbf16>
    %c0_153 = arith.constant 0 : index
    %c640_154 = arith.constant 640 : index
    %278 = vector.load %arg23[%c0_153, %c640_154] : memref<16x768xf32, #tpu.memory_space<vmem>>, vector<16x64xf32>
    %279 = arith.truncf %278 : vector<16x64xf32> to vector<16x64xbf16>
    "tpu.trace_start"() <{level = 10 : i32, message = "qd,kd->qk"}> : () -> ()
    %cst_155 = arith.constant dense<0.000000e+00> : vector<16x16xf32>
    %280 = tpu.matmul %275, %277, %cst_155 {dimension_numbers = #tpu.dot_dimension_numbers<[1], [1], [0], [0], [0, 0, 1, 0], [], []>} : vector<16x64xbf16>, vector<16x64xbf16>, vector<16x16xf32> -> vector<16x16xf32>
    "tpu.trace_stop"() : () -> ()
    %cst_156 = arith.constant dense<0xFF800000> : vector<16xf32>
    %281 = vector.multi_reduction <maximumf>, %280, %cst_156 [1] : vector<16x16xf32> to vector<16xf32>
    %282 = vector.shape_cast %281 : vector<16xf32> to vector<16x1xf32>
    %283 = vector.broadcast %282 : vector<16x1xf32> to vector<16x16xf32>
    %284 = arith.subf %280, %283 : vector<16x16xf32>
    %285 = math.exp %284 : vector<16x16xf32>
    %cst_157 = arith.constant dense<0.000000e+00> : vector<16xf32>
    %286 = vector.multi_reduction <add>, %285, %cst_157 [1] : vector<16x16xf32> to vector<16xf32>
    %287 = vector.shape_cast %286 : vector<16xf32> to vector<16x1xf32>
    %288 = tpu.reciprocal %287 {approx = true} : vector<16x1xf32> -> vector<16x1xf32>
    %289 = vector.broadcast %288 : vector<16x1xf32> to vector<16x16xf32>
    %290 = arith.mulf %285, %289 : vector<16x16xf32>
    %291 = arith.truncf %290 : vector<16x16xf32> to vector<16x16xbf16>
    %cst_158 = arith.constant dense<0.000000e+00> : vector<16x64xf32>
    %292 = tpu.matmul %291, %279, %cst_158 {dimension_numbers = #tpu.dot_dimension_numbers<[1], [0], [0], [1], [0, 0, 1, 1], [], []>} : vector<16x16xbf16>, vector<16x64xbf16>, vector<16x64xf32> -> vector<16x64xf32>
    %c0_159 = arith.constant 0 : index
    %c128_160 = arith.constant 128 : index
    %293 = vector.load %arg24[%c0_159, %c128_160] : memref<16x256xf32, #tpu.memory_space<vmem>>, vector<16x64xf32>
    tpu.vector_store %arg24[%c0_159, %c128_160], %292 {strides = array<i32>} : memref<16x256xf32, #tpu.memory_space<vmem>>, vector<16x64xf32>,
    %c0_161 = arith.constant 0 : index
    %c192_162 = arith.constant 192 : index
    %294 = vector.load %arg23[%c0_161, %c192_162] : memref<16x768xf32, #tpu.memory_space<vmem>>, vector<16x64xf32>
    %cst_163 = arith.constant 1.250000e-01 : f32
    %295 = vector.broadcast %cst_163 : f32 to vector<16x64xf32>
    %296 = arith.mulf %294, %295 : vector<16x64xf32>
    %297 = arith.truncf %296 : vector<16x64xf32> to vector<16x64xbf16>
    %c0_164 = arith.constant 0 : index
    %c448_165 = arith.constant 448 : index
    %298 = vector.load %arg23[%c0_164, %c448_165] : memref<16x768xf32, #tpu.memory_space<vmem>>, vector<16x64xf32>
    %299 = arith.truncf %298 : vector<16x64xf32> to vector<16x64xbf16>
    %c0_166 = arith.constant 0 : index
    %c704_167 = arith.constant 704 : index
    %300 = vector.load %arg23[%c0_166, %c704_167] : memref<16x768xf32, #tpu.memory_space<vmem>>, vector<16x64xf32>
    %301 = arith.truncf %300 : vector<16x64xf32> to vector<16x64xbf16>
    "tpu.trace_start"() <{level = 10 : i32, message = "qd,kd->qk"}> : () -> ()
    %cst_168 = arith.constant dense<0.000000e+00> : vector<16x16xf32>
    %302 = tpu.matmul %297, %299, %cst_168 {dimension_numbers = #tpu.dot_dimension_numbers<[1], [1], [0], [0], [0, 0, 1, 0], [], []>} : vector<16x64xbf16>, vector<16x64xbf16>, vector<16x16xf32> -> vector<16x16xf32>
    "tpu.trace_stop"() : () -> ()
    %cst_169 = arith.constant dense<0xFF800000> : vector<16xf32>
    %303 = vector.multi_reduction <maximumf>, %302, %cst_169 [1] : vector<16x16xf32> to vector<16xf32>
    %304 = vector.shape_cast %303 : vector<16xf32> to vector<16x1xf32>
    %305 = vector.broadcast %304 : vector<16x1xf32> to vector<16x16xf32>
    %306 = arith.subf %302, %305 : vector<16x16xf32>
    %307 = math.exp %306 : vector<16x16xf32>
    %cst_170 = arith.constant dense<0.000000e+00> : vector<16xf32>
    %308 = vector.multi_reduction <add>, %307, %cst_170 [1] : vector<16x16xf32> to vector<16xf32>
    %309 = vector.shape_cast %308 : vector<16xf32> to vector<16x1xf32>
    %310 = tpu.reciprocal %309 {approx = true} : vector<16x1xf32> -> vector<16x1xf32>
    %311 = vector.broadcast %310 : vector<16x1xf32> to vector<16x16xf32>
    %312 = arith.mulf %307, %311 : vector<16x16xf32>
    %313 = arith.truncf %312 : vector<16x16xf32> to vector<16x16xbf16>
    %cst_171 = arith.constant dense<0.000000e+00> : vector<16x64xf32>
    %314 = tpu.matmul %313, %301, %cst_171 {dimension_numbers = #tpu.dot_dimension_numbers<[1], [0], [0], [1], [0, 0, 1, 1], [], []>} : vector<16x16xbf16>, vector<16x64xbf16>, vector<16x64xf32> -> vector<16x64xf32>
    %c0_172 = arith.constant 0 : index
    %c192_173 = arith.constant 192 : index
    %315 = vector.load %arg24[%c0_172, %c192_173] : memref<16x256xf32, #tpu.memory_space<vmem>>, vector<16x64xf32>
    tpu.vector_store %arg24[%c0_172, %c192_173], %314 {strides = array<i32>} : memref<16x256xf32, #tpu.memory_space<vmem>>, vector<16x64xf32>,
    %c0_174 = arith.constant 0 : index
    %c0_175 = arith.constant 0 : index
    %316 = vector.load %arg24[%c0_174, %c0_175] : memref<16x256xf32, #tpu.memory_space<vmem>>, vector<16x256xf32>
    %317 = arith.truncf %316 : vector<16x256xf32> to vector<16x256xbf16>
    %c1_176 = arith.constant 1 : index
    %c0_177 = arith.constant 0 : index
    %c0_178 = arith.constant 0 : index
    %318 = vector.load %arg8[%c1_176, %c0_177, %c0_178] : memref<2x256x256xbf16, #tpu.memory_space<vmem>>, vector<1x256x256xbf16>
    %319 = vector.shape_cast %318 : vector<1x256x256xbf16> to vector<256x256xbf16>
    %cst_179 = arith.constant dense<0.000000e+00> : vector<16x256xf32>
    %320 = tpu.matmul %317, %319, %cst_179 {dimension_numbers = #tpu.dot_dimension_numbers<[1], [0], [0], [1], [0, 0, 1, 1], [], []>} : vector<16x256xbf16>, vector<256x256xbf16>, vector<16x256xf32> -> vector<16x256xf32>
    %c1_180 = arith.constant 1 : index
    %c0_181 = arith.constant 0 : index
    %c0_182 = arith.constant 0 : index
    %321 = vector.load %arg9[%c1_180, %c0_181, %c0_182] : memref<2x1x256xf32, #tpu.memory_space<vmem>>, vector<1x1x256xf32>
    %322 = vector.shape_cast %321 : vector<1x1x256xf32> to vector<1x256xf32>
    %323 = vector.broadcast %322 : vector<1x256xf32> to vector<16x256xf32>
    %324 = arith.addf %320, %323 : vector<16x256xf32>
    %325 = arith.addf %218, %324 : vector<16x256xf32>
    %c1_183 = arith.constant 1 : index
    %c0_184 = arith.constant 0 : index
    %c0_185 = arith.constant 0 : index
    %326 = vector.load %arg10[%c1_183, %c0_184, %c0_185] : memref<2x1x256xf32, #tpu.memory_space<vmem>>, vector<1x1x256xf32>
    %327 = vector.shape_cast %326 : vector<1x1x256xf32> to vector<1x256xf32>
    %c1_186 = arith.constant 1 : index
    %c0_187 = arith.constant 0 : index
    %c0_188 = arith.constant 0 : index
    %328 = vector.load %arg11[%c1_186, %c0_187, %c0_188] : memref<2x1x256xf32, #tpu.memory_space<vmem>>, vector<1x1x256xf32>
    %329 = vector.shape_cast %328 : vector<1x1x256xf32> to vector<1x256xf32>
    %cst_189 = arith.constant dense<0.000000e+00> : vector<16xf32>
    %330 = vector.multi_reduction <add>, %325, %cst_189 [1] : vector<16x256xf32> to vector<16xf32>
    %331 = vector.shape_cast %330 : vector<16xf32> to vector<16x1xf32>
    %cst_190 = arith.constant 2.560000e+02 : f32
    %332 = vector.broadcast %cst_190 : f32 to vector<16x1xf32>
    %333 = arith.divf %331, %332 : vector<16x1xf32>
    %334 = vector.broadcast %333 : vector<16x1xf32> to vector<16x256xf32>
    %335 = arith.subf %325, %334 : vector<16x256xf32>
    %336 = arith.mulf %335, %335 : vector<16x256xf32>
    %cst_191 = arith.constant dense<0.000000e+00> : vector<16xf32>
    %337 = vector.multi_reduction <add>, %336, %cst_191 [1] : vector<16x256xf32> to vector<16xf32>
    %338 = vector.shape_cast %337 : vector<16xf32> to vector<16x1xf32>
    %cst_192 = arith.constant 2.560000e+02 : f32
    %339 = vector.broadcast %cst_192 : f32 to vector<16x1xf32>
    %340 = arith.divf %338, %339 : vector<16x1xf32>
    %cst_193 = arith.constant 9.99999996E-13 : f32
    %341 = vector.broadcast %cst_193 : f32 to vector<16x1xf32>
    %342 = arith.addf %340, %341 : vector<16x1xf32>
    %343 = math.rsqrt %342 : vector<16x1xf32>
    %344 = vector.broadcast %343 : vector<16x1xf32> to vector<16x256xf32>
    %345 = arith.mulf %335, %344 : vector<16x256xf32>
    %346 = vector.broadcast %327 : vector<1x256xf32> to vector<16x256xf32>
    %347 = arith.mulf %345, %346 : vector<16x256xf32>
    %348 = vector.broadcast %329 : vector<1x256xf32> to vector<16x256xf32>
    %349 = arith.addf %347, %348 : vector<16x256xf32>
    %350 = arith.truncf %349 : vector<16x256xf32> to vector<16x256xbf16>
    %c1_194 = arith.constant 1 : index
    %c0_195 = arith.constant 0 : index
    %c0_196 = arith.constant 0 : index
    %351 = vector.load %arg12[%c1_194, %c0_195, %c0_196] : memref<2x256x1024xbf16, #tpu.memory_space<vmem>>, vector<1x256x1024xbf16>
    %352 = vector.shape_cast %351 : vector<1x256x1024xbf16> to vector<256x1024xbf16>
    %cst_197 = arith.constant dense<0.000000e+00> : vector<16x1024xf32>
    %353 = tpu.matmul %350, %352, %cst_197 {dimension_numbers = #tpu.dot_dimension_numbers<[1], [0], [0], [1], [0, 0, 1, 1], [], []>} : vector<16x256xbf16>, vector<256x1024xbf16>, vector<16x1024xf32> -> vector<16x1024xf32>
    %c1_198 = arith.constant 1 : index
    %c0_199 = arith.constant 0 : index
    %c0_200 = arith.constant 0 : index
    %354 = vector.load %arg13[%c1_198, %c0_199, %c0_200] : memref<2x1x1024xf32, #tpu.memory_space<vmem>>, vector<1x1x1024xf32>
    %355 = vector.shape_cast %354 : vector<1x1x1024xf32> to vector<1x1024xf32>
    %356 = vector.broadcast %355 : vector<1x1024xf32> to vector<16x1024xf32>
    %357 = arith.addf %353, %356 : vector<16x1024xf32>
    %358 = arith.mulf %357, %357 : vector<16x1024xf32>
    %359 = arith.mulf %357, %358 : vector<16x1024xf32>
    %cst_201 = arith.constant 4.471500e-02 : f32
    %360 = vector.broadcast %cst_201 : f32 to vector<16x1024xf32>
    %361 = arith.mulf %360, %359 : vector<16x1024xf32>
    %362 = arith.addf %357, %361 : vector<16x1024xf32>
    %cst_202 = arith.constant 0.797884583 : f32
    %363 = vector.broadcast %cst_202 : f32 to vector<16x1024xf32>
    %364 = arith.mulf %363, %362 : vector<16x1024xf32>
    %365 = math.tanh %364 : vector<16x1024xf32>
    %cst_203 = arith.constant 1.000000e+00 : f32
    %366 = vector.broadcast %cst_203 : f32 to vector<16x1024xf32>
    %367 = arith.addf %366, %365 : vector<16x1024xf32>
    %cst_204 = arith.constant 5.000000e-01 : f32
    %368 = vector.broadcast %cst_204 : f32 to vector<16x1024xf32>
    %369 = arith.mulf %368, %367 : vector<16x1024xf32>
    %370 = arith.mulf %357, %369 : vector<16x1024xf32>
    %371 = arith.truncf %370 : vector<16x1024xf32> to vector<16x1024xbf16>
    %c1_205 = arith.constant 1 : index
    %c0_206 = arith.constant 0 : index
    %c0_207 = arith.constant 0 : index
    %372 = vector.load %arg14[%c1_205, %c0_206, %c0_207] : memref<2x1024x256xbf16, #tpu.memory_space<vmem>>, vector<1x1024x256xbf16>
    %373 = vector.shape_cast %372 : vector<1x1024x256xbf16> to vector<1024x256xbf16>
    %cst_208 = arith.constant dense<0.000000e+00> : vector<16x256xf32>
    %374 = tpu.matmul %371, %373, %cst_208 {dimension_numbers = #tpu.dot_dimension_numbers<[1], [0], [0], [1], [0, 0, 1, 1], [], []>} : vector<16x1024xbf16>, vector<1024x256xbf16>, vector<16x256xf32> -> vector<16x256xf32>
    %c1_209 = arith.constant 1 : index
    %c0_210 = arith.constant 0 : index
    %c0_211 = arith.constant 0 : index
    %375 = vector.load %arg15[%c1_209, %c0_210, %c0_211] : memref<2x1x256xf32, #tpu.memory_space<vmem>>, vector<1x1x256xf32>
    %376 = vector.shape_cast %375 : vector<1x1x256xf32> to vector<1x256xf32>
    %377 = vector.broadcast %376 : vector<1x256xf32> to vector<16x256xf32>
    %378 = arith.addf %374, %377 : vector<16x256xf32>
    %379 = arith.addf %349, %378 : vector<16x256xf32>
    %c1_212 = arith.constant 1 : index
    %c0_213 = arith.constant 0 : index
    %c0_214 = arith.constant 0 : index
    %380 = vector.load %arg16[%c1_212, %c0_213, %c0_214] : memref<2x1x256xf32, #tpu.memory_space<vmem>>, vector<1x1x256xf32>
    %381 = vector.shape_cast %380 : vector<1x1x256xf32> to vector<1x256xf32>
    %c1_215 = arith.constant 1 : index
    %c0_216 = arith.constant 0 : index
    %c0_217 = arith.constant 0 : index
    %382 = vector.load %arg17[%c1_215, %c0_216, %c0_217] : memref<2x1x256xf32, #tpu.memory_space<vmem>>, vector<1x1x256xf32>
    %383 = vector.shape_cast %382 : vector<1x1x256xf32> to vector<1x256xf32>
    %cst_218 = arith.constant dense<0.000000e+00> : vector<16xf32>
    %384 = vector.multi_reduction <add>, %379, %cst_218 [1] : vector<16x256xf32> to vector<16xf32>
    %385 = vector.shape_cast %384 : vector<16xf32> to vector<16x1xf32>
    %cst_219 = arith.constant 2.560000e+02 : f32
    %386 = vector.broadcast %cst_219 : f32 to vector<16x1xf32>
    %387 = arith.divf %385, %386 : vector<16x1xf32>
    %388 = vector.broadcast %387 : vector<16x1xf32> to vector<16x256xf32>
    %389 = arith.subf %379, %388 : vector<16x256xf32>
    %390 = arith.mulf %389, %389 : vector<16x256xf32>
    %cst_220 = arith.constant dense<0.000000e+00> : vector<16xf32>
    %391 = vector.multi_reduction <add>, %390, %cst_220 [1] : vector<16x256xf32> to vector<16xf32>
    %392 = vector.shape_cast %391 : vector<16xf32> to vector<16x1xf32>
    %cst_221 = arith.constant 2.560000e+02 : f32
    %393 = vector.broadcast %cst_221 : f32 to vector<16x1xf32>
    %394 = arith.divf %392, %393 : vector<16x1xf32>
    %cst_222 = arith.constant 9.99999996E-13 : f32
    %395 = vector.broadcast %cst_222 : f32 to vector<16x1xf32>
    %396 = arith.addf %394, %395 : vector<16x1xf32>
    %397 = math.rsqrt %396 : vector<16x1xf32>
    %398 = vector.broadcast %397 : vector<16x1xf32> to vector<16x256xf32>
    %399 = arith.mulf %389, %398 : vector<16x256xf32>
    %400 = vector.broadcast %381 : vector<1x256xf32> to vector<16x256xf32>
    %401 = arith.mulf %399, %400 : vector<16x256xf32>
    %402 = vector.broadcast %383 : vector<1x256xf32> to vector<16x256xf32>
    %403 = arith.addf %401, %402 : vector<16x256xf32>
    %cst_223 = arith.constant dense<0.000000e+00> : vector<256xf32>
    %404 = vector.multi_reduction <add>, %403, %cst_223 [0] : vector<16x256xf32> to vector<256xf32>
    %405 = vector.shape_cast %404 : vector<256xf32> to vector<1x256xf32>
    %cst_224 = arith.constant 1.600000e+01 : f32
    %406 = vector.broadcast %cst_224 : f32 to vector<1x256xf32>
    %407 = arith.divf %405, %406 : vector<1x256xf32>
    %408 = arith.truncf %407 : vector<1x256xf32> to vector<1x256xbf16>
    %c0_225 = arith.constant 0 : index
    %c0_226 = arith.constant 0 : index
    %409 = vector.load %arg18[%c0_225, %c0_226] : memref<256x128xbf16, #tpu.memory_space<vmem>>, vector<256x128xbf16>
    %cst_227 = arith.constant dense<0.000000e+00> : vector<1x128xf32>
    %410 = tpu.matmul %408, %409, %cst_227 {dimension_numbers = #tpu.dot_dimension_numbers<[1], [0], [0], [1], [0, 0, 1, 1], [], []>} : vector<1x256xbf16>, vector<256x128xbf16>, vector<1x128xf32> -> vector<1x128xf32>
    %c0_228 = arith.constant 0 : index
    %c0_229 = arith.constant 0 : index
    %411 = vector.load %arg19[%c0_228, %c0_229] : memref<1x128xf32, #tpu.memory_space<vmem>>, vector<1x128xf32>
    %412 = arith.addf %410, %411 : vector<1x128xf32>
    %413 = math.tanh %412 : vector<1x128xf32>
    %414 = arith.truncf %413 : vector<1x128xf32> to vector<1x128xbf16>
    %c0_230 = arith.constant 0 : index
    %c0_231 = arith.constant 0 : index
    %415 = vector.load %arg20[%c0_230, %c0_231] : memref<128x128xbf16, #tpu.memory_space<vmem>>, vector<128x128xbf16>
    %cst_232 = arith.constant dense<0.000000e+00> : vector<1x128xf32>
    %416 = tpu.matmul %414, %415, %cst_232 {dimension_numbers = #tpu.dot_dimension_numbers<[1], [0], [0], [1], [0, 0, 1, 1], [], []>} : vector<1x128xbf16>, vector<128x128xbf16>, vector<1x128xf32> -> vector<1x128xf32>
    %c0_233 = arith.constant 0 : index
    %c0_234 = arith.constant 0 : index
    %417 = vector.load %arg21[%c0_233, %c0_234] : memref<1x128xf32, #tpu.memory_space<vmem>>, vector<1x128xf32>
    %418 = arith.addf %416, %417 : vector<1x128xf32>
    %419 = arith.mulf %418, %418 : vector<1x128xf32>
    %cst_235 = arith.constant dense<0.000000e+00> : vector<1xf32>
    %420 = vector.multi_reduction <add>, %419, %cst_235 [1] : vector<1x128xf32> to vector<1xf32>
    %421 = vector.shape_cast %420 : vector<1xf32> to vector<1x1xf32>
    %cst_236 = arith.constant 1.000000e-24 : f32
    %422 = vector.broadcast %cst_236 : f32 to vector<1x1xf32>
    %423 = arith.maximumf %421, %422 : vector<1x1xf32>
    %424 = math.rsqrt %423 : vector<1x1xf32>
    %425 = vector.broadcast %424 : vector<1x1xf32> to vector<1x128xf32>
    %426 = arith.mulf %418, %425 : vector<1x128xf32>
    %c0_237 = arith.constant 0 : index
    %c0_238 = arith.constant 0 : index
    %c0_239 = arith.constant 0 : index
    %427 = vector.load %arg22[%c0_237, %c0_238, %c0_239] : memref<1x1x128xf32, #tpu.memory_space<vmem>>, vector<1x1x128xf32>
    %428 = vector.shape_cast %427 : vector<1x1x128xf32> to vector<1x128xf32>
    %429 = vector.shape_cast %426 : vector<1x128xf32> to vector<1x1x128xf32>
    tpu.vector_store %arg22[%c0_237, %c0_238, %c0_239], %429 {strides = array<i32>} : memref<1x1x128xf32, #tpu.memory_space<vmem>>, vector<1x1x128xf32>,
    return
  }
  func.func @transform_0(%arg0: i32) -> (i32, i32, i32) {
    %c0_i32 = arith.constant 0 : i32
    %c0_i32_0 = arith.constant 0 : i32
    %c0_i32_1 = arith.constant 0 : i32
    return %arg0, %c0_i32, %c0_i32_0 : i32, i32, i32
  }
  func.func @transform_1(%arg0: i32) -> (i32, i32) {
    %c0_i32 = arith.constant 0 : i32
    %c0_i32_0 = arith.constant 0 : i32
    %c0_i32_1 = arith.constant 0 : i32
    return %c0_i32, %c0_i32_0 : i32, i32
  }
  func.func @transform_2(%arg0: i32) -> (i32, i32) {
    %c0_i32 = arith.constant 0 : i32
    %c0_i32_0 = arith.constant 0 : i32
    %c0_i32_1 = arith.constant 0 : i32
    return %c0_i32, %c0_i32_0 : i32, i32
  }
  func.func @transform_3(%arg0: i32) -> (i32, i32) {
    %c0_i32 = arith.constant 0 : i32
    %c0_i32_0 = arith.constant 0 : i32
    %c0_i32_1 = arith.constant 0 : i32
    return %c0_i32, %c0_i32_0 : i32, i32
  }
  func.func @transform_4(%arg0: i32) -> (i32, i32) {
    %c0_i32 = arith.constant 0 : i32
    %c0_i32_0 = arith.constant 0 : i32
    %c0_i32_1 = arith.constant 0 : i32
    return %c0_i32, %c0_i32_0 : i32, i32
  }
  func.func @transform_5(%arg0: i32) -> (i32, i32, i32) {
    %c0_i32 = arith.constant 0 : i32
    %c0_i32_0 = arith.constant 0 : i32
    %c0_i32_1 = arith.constant 0 : i32
    %c0_i32_2 = arith.constant 0 : i32
    return %c0_i32, %c0_i32_0, %c0_i32_1 : i32, i32, i32
  }
  func.func @transform_6(%arg0: i32) -> (i32, i32, i32) {
    %c0_i32 = arith.constant 0 : i32
    %c0_i32_0 = arith.constant 0 : i32
    %c0_i32_1 = arith.constant 0 : i32
    %c0_i32_2 = arith.constant 0 : i32
    return %c0_i32, %c0_i32_0, %c0_i32_1 : i32, i32, i32
  }
  func.func @transform_7(%arg0: i32) -> (i32, i32, i32) {
    %c0_i32 = arith.constant 0 : i32
    %c0_i32_0 = arith.constant 0 : i32
    %c0_i32_1 = arith.constant 0 : i32
    %c0_i32_2 = arith.constant 0 : i32
    return %c0_i32, %c0_i32_0, %c0_i32_1 : i32, i32, i32
  }
  func.func @transform_8(%arg0: i32) -> (i32, i32, i32) {
    %c0_i32 = arith.constant 0 : i32
    %c0_i32_0 = arith.constant 0 : i32
    %c0_i32_1 = arith.constant 0 : i32
    %c0_i32_2 = arith.constant 0 : i32
    return %c0_i32, %c0_i32_0, %c0_i32_1 : i32, i32, i32
  }
  func.func @transform_9(%arg0: i32) -> (i32, i32, i32) {
    %c0_i32 = arith.constant 0 : i32
    %c0_i32_0 = arith.constant 0 : i32
    %c0_i32_1 = arith.constant 0 : i32
    %c0_i32_2 = arith.constant 0 : i32
    return %c0_i32, %c0_i32_0, %c0_i32_1 : i32, i32, i32
  }
  func.func @transform_10(%arg0: i32) -> (i32, i32, i32) {
    %c0_i32 = arith.constant 0 : i32
    %c0_i32_0 = arith.constant 0 : i32
    %c0_i32_1 = arith.constant 0 : i32
    %c0_i32_2 = arith.constant 0 : i32
    return %c0_i32, %c0_i32_0, %c0_i32_1 : i32, i32, i32
  }
  func.func @transform_11(%arg0: i32) -> (i32, i32, i32) {
    %c0_i32 = arith.constant 0 : i32
    %c0_i32_0 = arith.constant 0 : i32
    %c0_i32_1 = arith.constant 0 : i32
    %c0_i32_2 = arith.constant 0 : i32
    return %c0_i32, %c0_i32_0, %c0_i32_1 : i32, i32, i32
  }
  func.func @transform_12(%arg0: i32) -> (i32, i32, i32) {
    %c0_i32 = arith.constant 0 : i32
    %c0_i32_0 = arith.constant 0 : i32
    %c0_i32_1 = arith.constant 0 : i32
    %c0_i32_2 = arith.constant 0 : i32
    return %c0_i32, %c0_i32_0, %c0_i32_1 : i32, i32, i32
  }
  func.func @transform_13(%arg0: i32) -> (i32, i32, i32) {
    %c0_i32 = arith.constant 0 : i32
    %c0_i32_0 = arith.constant 0 : i32
    %c0_i32_1 = arith.constant 0 : i32
    %c0_i32_2 = arith.constant 0 : i32
    return %c0_i32, %c0_i32_0, %c0_i32_1 : i32, i32, i32
  }
  func.func @transform_14(%arg0: i32) -> (i32, i32, i32) {
    %c0_i32 = arith.constant 0 : i32
    %c0_i32_0 = arith.constant 0 : i32
    %c0_i32_1 = arith.constant 0 : i32
    %c0_i32_2 = arith.constant 0 : i32
    return %c0_i32, %c0_i32_0, %c0_i32_1 : i32, i32, i32
  }
  func.func @transform_15(%arg0: i32) -> (i32, i32, i32) {
    %c0_i32 = arith.constant 0 : i32
    %c0_i32_0 = arith.constant 0 : i32
    %c0_i32_1 = arith.constant 0 : i32
    %c0_i32_2 = arith.constant 0 : i32
    return %c0_i32, %c0_i32_0, %c0_i32_1 : i32, i32, i32
  }
  func.func @transform_16(%arg0: i32) -> (i32, i32, i32) {
    %c0_i32 = arith.constant 0 : i32
    %c0_i32_0 = arith.constant 0 : i32
    %c0_i32_1 = arith.constant 0 : i32
    %c0_i32_2 = arith.constant 0 : i32
    return %c0_i32, %c0_i32_0, %c0_i32_1 : i32, i32, i32
  }
  func.func @transform_17(%arg0: i32) -> (i32, i32) {
    %c0_i32 = arith.constant 0 : i32
    %c0_i32_0 = arith.constant 0 : i32
    %c0_i32_1 = arith.constant 0 : i32
    return %c0_i32, %c0_i32_0 : i32, i32
  }
  func.func @transform_18(%arg0: i32) -> (i32, i32) {
    %c0_i32 = arith.constant 0 : i32
    %c0_i32_0 = arith.constant 0 : i32
    %c0_i32_1 = arith.constant 0 : i32
    return %c0_i32, %c0_i32_0 : i32, i32
  }
  func.func @transform_19(%arg0: i32) -> (i32, i32) {
    %c0_i32 = arith.constant 0 : i32
    %c0_i32_0 = arith.constant 0 : i32
    %c0_i32_1 = arith.constant 0 : i32
    return %c0_i32, %c0_i32_0 : i32, i32
  }
  func.func @transform_20(%arg0: i32) -> (i32, i32) {
    %c0_i32 = arith.constant 0 : i32
    %c0_i32_0 = arith.constant 0 : i32
    %c0_i32_1 = arith.constant 0 : i32
    return %c0_i32, %c0_i32_0 : i32, i32
  }
  func.func @transform_21(%arg0: i32) -> (i32, i32, i32) {
    %c0_i32 = arith.constant 0 : i32
    %c0_i32_0 = arith.constant 0 : i32
    %c0_i32_1 = arith.constant 0 : i32
    return %arg0, %c0_i32, %c0_i32_0 : i32, i32, i32
  }
}

</mosaic_0001>

<llo_original>
// kernel: bottom_model_forward.1
$region0: #{bottom_model_forward.1}
  #allocation0 [shape = 'u32[]', space=smem, size = 0x4, offset = 0x4, fixed_abs, tag = 'smem constant byte address 0x4 - core index']
  #allocation1 [shape = 'u32[72,128]{1,0:T(1,128)}', space=vmem, size = 0x9000, scoped, tag = 'internal scratch']
  #allocation2 [shape = 'f32[16,768]{1,0:T(8,128)}', space=vmem, size = 0xc000, scoped, tag = 'scratch operand']
  #allocation3 [shape = 'f32[16,256]{1,0:T(8,128)}', space=vmem, size = 0x4000, scoped, tag = 'scratch operand']
  %s0 = inlined_call_operand.vmem [shape: s32[2,16,1], index: 0, kind: input, shape index: {}]
  %s1 = inlined_call_operand.hbm [shape: bf16[128,256], index: 1, kind: input, shape index: {}]
  %s2 = inlined_call_operand.vmem [shape: f32[16,256], index: 2, kind: input, shape index: {}]
  %s3 = inlined_call_operand.hbm [shape: f32[1,256], index: 3, kind: input, shape index: {}]
  %s4 = inlined_call_operand.hbm [shape: f32[1,256], index: 4, kind: input, shape index: {}]
  %s5 = inlined_call_operand.hbm [shape: bf16[2,256,768], index: 5, kind: input, shape index: {}]
  %s6 = inlined_call_operand.vmem [shape: f32[2,1,768], index: 6, kind: input, shape index: {}]
  %s7 = inlined_call_operand.hbm [shape: bf16[2,256,256], index: 7, kind: input, shape index: {}]
  %s8 = inlined_call_operand.vmem [shape: f32[2,1,256], index: 8, kind: input, shape index: {}]
  %s9 = inlined_call_operand.vmem [shape: f32[2,1,256], index: 9, kind: input, shape index: {}]
  %s10 = inlined_call_operand.vmem [shape: f32[2,1,256], index: 10, kind: input, shape index: {}]
  %s11 = inlined_call_operand.hbm [shape: bf16[2,256,1024], index: 11, kind: input, shape index: {}]
  %s12 = inlined_call_operand.vmem [shape: f32[2,1,1024], index: 12, kind: input, shape index: {}]
  %s13 = inlined_call_operand.hbm [shape: bf16[2,1024,256], index: 13, kind: input, shape index: {}]
  %s14 = inlined_call_operand.hbm [shape: f32[2,1,256], index: 14, kind: input, shape index: {}]
  %s15 = inlined_call_operand.vmem [shape: f32[2,1,256], index: 15, kind: input, shape index: {}]
  %s16 = inlined_call_operand.vmem [shape: f32[2,1,256], index: 16, kind: input, shape index: {}]
  %s17 = inlined_call_operand.hbm [shape: bf16[256,128], index: 17, kind: input, shape index: {}]
  %s18 = inlined_call_operand.hbm [shape: f32[1,128], index: 18, kind: input, shape index: {}]
  %s19 = inlined_call_operand.vmem [shape: bf16[128,128], index: 19, kind: input, shape index: {}]
  %s20 = inlined_call_operand.hbm [shape: f32[1,128], index: 20, kind: input, shape index: {}]
  %s21 = inlined_call_operand.hbm [shape: f32[2,1,128], index: 21, kind: output, shape index: {}]
  %s22 = sld [smem:[#allocation0]]
  $region161: #{bottom_model_forward.1} parent=0
    _
  %s24 = ssub.s32 1, %s22
  %s25 = scalar_select 0, %s24, %s22
  $region1: #{bottom_model_forward.1} parent=0
    #allocation4 [shape = 'u8[65536]{0}', space=vmem, size = 0x10000, scoped, tag = 'input window, operand 1, single buffered']
    #allocation5 [shape = 's32[2]{0}', space=sflag, size = 0x8, scoped, tag = 'scoped memory for bottom_model_forward.1']
    #allocation6 [shape = 's32[2]{0}', space=sflag, size = 0x8, scoped, tag = 'scoped memory for bottom_model_forward.1']
    #allocation7 [shape = 'u8[1024]{0}', space=vmem, size = 0x400, scoped, tag = 'input window, operand 3, single buffered']
    #allocation8 [shape = 's32[1]{0}', space=sflag, size = 0x4, scoped, tag = 'scoped memory for bottom_model_forward.1']
    #allocation9 [shape = 'u8[1024]{0}', space=vmem, size = 0x400, scoped, tag = 'input window, operand 4, single buffered']
    #allocation10 [shape = 'u8[786432]{0}', space=vmem, size = 0xc0000, scoped, tag = 'input window, operand 5, single buffered']
    #allocation11 [shape = 's32[1]{0}', space=sflag, size = 0x4, scoped, tag = 'scoped memory for bottom_model_forward.1']
    #allocation12 [shape = 'u8[262144]{0}', space=vmem, size = 0x40000, scoped, tag = 'input window, operand 7, single buffered']
    #allocation13 [shape = 'u8[1048576]{0}', space=vmem, size = 0x100000, scoped, tag = 'input window, operand 11, single buffered']
    #allocation14 [shape = 's32[1]{0}', space=sflag, size = 0x4, scoped, tag = 'scoped memory for bottom_model_forward.1']
    #allocation15 [shape = 'u8[1048576]{0}', space=vmem, size = 0x100000, scoped, tag = 'input window, operand 13, single buffered']
    #allocation16 [shape = 'u8[2048]{0}', space=vmem, size = 0x800, scoped, tag = 'input window, operand 14, single buffered']
    #allocation17 [shape = 's32[1]{0}', space=sflag, size = 0x4, scoped, tag = 'scoped memory for bottom_model_forward.1']
    #allocation18 [shape = 'u8[65536]{0}', space=vmem, size = 0x10000, scoped, tag = 'input window, operand 17, single buffered']
    #allocation19 [shape = 'u8[512]{0}', space=vmem, size = 0x400, scoped, tag = 'input window, operand 18, single buffered']
    #allocation20 [shape = 's32[1]{0}', space=sflag, size = 0x4, scoped, tag = 'scoped memory for bottom_model_forward.1']
    #allocation21 [shape = 'u8[512]{0}', space=vmem, size = 0x400, scoped, tag = 'input window, operand 20, single buffered']
    #allocation22 [shape = 'u8[1024]{0}', space=vmem, size = 0x400, scoped, tag = 'output window, operand 0']
    %26 = vsyncpa [#allocation5], 0
    %27 = vsyncpa [#allocation8], 0
    %28 = vsyncpa [#allocation11], 0
    %29 = vsyncpa [#allocation14], 0
    %30 = vsyncpa [#allocation17], 0
    %31 = vsyncpa [#allocation20], 0
    %32 = vsyncpa [#allocation6], 0
    %s33 = scalar_lea.sflag [#allocation6], 1
    %34 = vsyncpa %s33, 0
    loop: start=0, step=1, limit=4
    $region2: #{bottom_model_forward.1} parent=1 // loop_pre_header
      _
    $region3: #{bottom_model_forward.1} parent=1 // loop_header
      %s36 = sphi 0, %s40
      %p37 = scmp.ge.s32.totalorder %s36, 4
      %s46 = sphi 0, %s48
      %s49 = sphi 0, %s46
      %s50 = sphi 0, %s49
      %s66 = sphi 0, %s50
      %s70 = sphi 0, %s70
      %s72 = sphi 0, %s70
      %s73 = sphi 0, %s72
      %s87 = sphi 0, %s73
      %s91 = sphi 0, %s91
      %s93 = sphi 0, %s91
      %s94 = sphi 0, %s93
      %s108 = sphi 0, %s94
      %s112 = sphi 0, %s112
      %s114 = sphi 0, %s112
      %s115 = sphi 0, %s114
      %s129 = sphi 0, %s115
      %s133 = sphi 0, %s133
      %s135 = sphi 0, %s133
      %s136 = sphi 0, %s135
      %s150 = sphi 0, %s136
      %s154 = sphi 0, %s154
      %s156 = sphi 0, %s154
      %s157 = sphi 0, %s156
      %s171 = sphi 0, %s157
      %s175 = sphi 0, %s175
      %s177 = sphi 0, %s175
      %s178 = sphi 0, %s177
      %s192 = sphi 0, %s178
      %s196 = sphi 0, %s196
      %s198 = sphi 0, %s196
      %s199 = sphi 0, %s198
      %s213 = sphi 0, %s199
      %s217 = sphi 0, %s217
      %s219 = sphi 0, %s217
      %s220 = sphi 0, %s219
      %s234 = sphi 0, %s220
      %s238 = sphi 0, %s238
      %s240 = sphi 0, %s238
      %s241 = sphi 0, %s240
      %s255 = sphi 0, %s241
      %s259 = sphi 0, %s259
      %s261 = sphi 0, %s259
      %s262 = sphi 0, %s261
      %s276 = sphi 0, %s262
      %s280 = sphi 0, %s280
      %s282 = sphi 0, %s280
      %s283 = sphi 0, %s282
      %s297 = sphi 0, %s283
      %s301 = sphi 0, %s301
      %s303 = sphi 0, %s301
      %s304 = sphi 0, %s303
      %s318 = sphi 0, %s304
      %s322 = sphi 0, %s322
      %s324 = sphi 0, %s322
      %s325 = sphi 0, %s324
      %s339 = sphi 0, %s325
      %s343 = sphi 0, %s343
      %s345 = sphi 0, %s343
      %s346 = sphi 0, %s345
      %s360 = sphi 0, %s346
      %s364 = sphi 0, %s364
      %s366 = sphi 0, %s364
      %s367 = sphi 0, %s366
      %s381 = sphi 0, %s367
      %s385 = sphi 0, %s385
      %s387 = sphi 0, %s385
      %s388 = sphi 0, %s387
      %s402 = sphi 0, %s388
      %s406 = sphi 0, %s406
      %s408 = sphi 0, %s406
      %s409 = sphi 0, %s408
      %s423 = sphi 0, %s409
      %s427 = sphi 0, %s427
      %s429 = sphi 0, %s427
      %s430 = sphi 0, %s429
      %s444 = sphi 0, %s430
      %s448 = sphi 0, %s448
      %s450 = sphi 0, %s448
      %s451 = sphi 0, %s450
      %s465 = sphi 0, %s451
      %s469 = sphi 0, %s469
      %s471 = sphi 0, %s469
      %s472 = sphi 0, %s471
      %s486 = sphi 0, %s472
      %s492 = sphi 0, %s494
      %s495 = sphi 0, %s492
      %s496 = sphi 0, %s495
      %s512 = sphi 0, %s496
    $region4: #{bottom_model_forward.1} parent=1 // loop_header_branch
      %39 = sbr.rel (%p37) target = $region8
    $region5: #{bottom_model_forward.1} parent=1 // loop_body
      %s41 = ssub.s32 %s36, 1
      %s42 = ssub.s32 %s36, 2
      %s43 = sadd.s32 %s36, 1
      %s44 = ssub.s32 %s36, %s43
      %p45 = scmp.eq.s32.totalorder %s44, 0
      %s47 = sadd.s32 %s46, 1
      %s48 = scalar_select %p45, %s46, %s47
      %p51 = pneg %p45
      %p52 = scmp.eq.s32.totalorder %s36, 1
      %p53 = por %p51, %p52
      %p54 = scmp.ne.s32.totalorder %s46, %s49
      %p55 = scmp.eq.s32.totalorder %s36, 0
      %p56 = por %p54, %p55
      %p57 = scmp.ne.s32.totalorder %s46, %s49
      %p58 = scmp.eq.s32.totalorder %s41, 1
      %p59 = por %p57, %p58
      %p60 = scmp.ne.s32.totalorder %s49, %s50
      %p61 = scmp.eq.s32.totalorder %s41, 0
      %p62 = por %p60, %p61
      %p63 = scmp.ne.s32.totalorder %s49, %s50
      %p64 = scmp.eq.s32.totalorder %s42, 1
      %p65 = por %p63, %p64
      %p67 = scmp.ne.s32.totalorder %s50, %s66
      %p68 = scmp.eq.s32.totalorder %s42, 0
      %p69 = por %p67, %p68
      %s71 = sadd.s32 %s70, 1
      %p74 = scmp.eq.s32.totalorder %s36, 1
      %p75 = scmp.ne.s32.totalorder %s70, %s72
      %p76 = scmp.eq.s32.totalorder %s36, 0
      %p77 = por %p75, %p76
      %p78 = scmp.ne.s32.totalorder %s70, %s72
      %p79 = scmp.eq.s32.totalorder %s41, 1
      %p80 = por %p78, %p79
      %p81 = scmp.ne.s32.totalorder %s72, %s73
      %p82 = scmp.eq.s32.totalorder %s41, 0
      %p83 = por %p81, %p82
      %p84 = scmp.ne.s32.totalorder %s72, %s73
      %p85 = scmp.eq.s32.totalorder %s42, 1
      %p86 = por %p84, %p85
      %p88 = scmp.ne.s32.totalorder %s73, %s87
      %p89 = scmp.eq.s32.totalorder %s42, 0
      %p90 = por %p88, %p89
      %s92 = sadd.s32 %s91, 1
      %p95 = scmp.eq.s32.totalorder %s36, 1
      %p96 = scmp.ne.s32.totalorder %s91, %s93
      %p97 = scmp.eq.s32.totalorder %s36, 0
      %p98 = por %p96, %p97
      %p99 = scmp.ne.s32.totalorder %s91, %s93
      %p100 = scmp.eq.s32.totalorder %s41, 1
      %p101 = por %p99, %p100
      %p102 = scmp.ne.s32.totalorder %s93, %s94
      %p103 = scmp.eq.s32.totalorder %s41, 0
      %p104 = por %p102, %p103
      %p105 = scmp.ne.s32.totalorder %s93, %s94
      %p106 = scmp.eq.s32.totalorder %s42, 1
      %p107 = por %p105, %p106
      %p109 = scmp.ne.s32.totalorder %s94, %s108
      %p110 = scmp.eq.s32.totalorder %s42, 0
      %p111 = por %p109, %p110
      %s113 = sadd.s32 %s112, 1
      %p116 = scmp.eq.s32.totalorder %s36, 1
      %p117 = scmp.ne.s32.totalorder %s112, %s114
      %p118 = scmp.eq.s32.totalorder %s36, 0
      %p119 = por %p117, %p118
      %p120 = scmp.ne.s32.totalorder %s112, %s114
      %p121 = scmp.eq.s32.totalorder %s41, 1
      %p122 = por %p120, %p121
      %p123 = scmp.ne.s32.totalorder %s114, %s115
      %p124 = scmp.eq.s32.totalorder %s41, 0
      %p125 = por %p123, %p124
      %p126 = scmp.ne.s32.totalorder %s114, %s115
      %p127 = scmp.eq.s32.totalorder %s42, 1
      %p128 = por %p126, %p127
      %p130 = scmp.ne.s32.totalorder %s115, %s129
      %p131 = scmp.eq.s32.totalorder %s42, 0
      %p132 = por %p130, %p131
      %s134 = sadd.s32 %s133, 1
      %p137 = scmp.eq.s32.totalorder %s36, 1
      %p138 = scmp.ne.s32.totalorder %s133, %s135
      %p139 = scmp.eq.s32.totalorder %s36, 0
      %p140 = por %p138, %p139
      %p141 = scmp.ne.s32.totalorder %s133, %s135
      %p142 = scmp.eq.s32.totalorder %s41, 1
      %p143 = por %p141, %p142
      %p144 = scmp.ne.s32.totalorder %s135, %s136
      %p145 = scmp.eq.s32.totalorder %s41, 0
      %p146 = por %p144, %p145
      %p147 = scmp.ne.s32.totalorder %s135, %s136
      %p148 = scmp.eq.s32.totalorder %s42, 1
      %p149 = por %p147, %p148
      %p151 = scmp.ne.s32.totalorder %s136, %s150
      %p152 = scmp.eq.s32.totalorder %s42, 0
      %p153 = por %p151, %p152
      %s155 = sadd.s32 %s154, 1
      %p158 = scmp.eq.s32.totalorder %s36, 1
      %p159 = scmp.ne.s32.totalorder %s154, %s156
      %p160 = scmp.eq.s32.totalorder %s36, 0
      %p161 = por %p159, %p160
      %p162 = scmp.ne.s32.totalorder %s154, %s156
      %p163 = scmp.eq.s32.totalorder %s41, 1
      %p164 = por %p162, %p163
      %p165 = scmp.ne.s32.totalorder %s156, %s157
      %p166 = scmp.eq.s32.totalorder %s41, 0
      %p167 = por %p165, %p166
      %p168 = scmp.ne.s32.totalorder %s156, %s157
      %p169 = scmp.eq.s32.totalorder %s42, 1
      %p170 = por %p168, %p169
      %p172 = scmp.ne.s32.totalorder %s157, %s171
      %p173 = scmp.eq.s32.totalorder %s42, 0
      %p174 = por %p172, %p173
      %s176 = sadd.s32 %s175, 1
      %p179 = scmp.eq.s32.totalorder %s36, 1
      %p180 = scmp.ne.s32.totalorder %s175, %s177
      %p181 = scmp.eq.s32.totalorder %s36, 0
      %p182 = por %p180, %p181
      %p183 = scmp.ne.s32.totalorder %s175, %s177
      %p184 = scmp.eq.s32.totalorder %s41, 1
      %p185 = por %p183, %p184
      %p186 = scmp.ne.s32.totalorder %s177, %s178
      %p187 = scmp.eq.s32.totalorder %s41, 0
      %p188 = por %p186, %p187
      %p189 = scmp.ne.s32.totalorder %s177, %s178
      %p190 = scmp.eq.s32.totalorder %s42, 1
      %p191 = por %p189, %p190
      %p193 = scmp.ne.s32.totalorder %s178, %s192
      %p194 = scmp.eq.s32.totalorder %s42, 0
      %p195 = por %p193, %p194
      %s197 = sadd.s32 %s196, 1
      %p200 = scmp.eq.s32.totalorder %s36, 1
      %p201 = scmp.ne.s32.totalorder %s196, %s198
      %p202 = scmp.eq.s32.totalorder %s36, 0
      %p203 = por %p201, %p202
      %p204 = scmp.ne.s32.totalorder %s196, %s198
      %p205 = scmp.eq.s32.totalorder %s41, 1
      %p206 = por %p204, %p205
      %p207 = scmp.ne.s32.totalorder %s198, %s199
      %p208 = scmp.eq.s32.totalorder %s41, 0
      %p209 = por %p207, %p208
      %p210 = scmp.ne.s32.totalorder %s198, %s199
      %p211 = scmp.eq.s32.totalorder %s42, 1
      %p212 = por %p210, %p211
      %p214 = scmp.ne.s32.totalorder %s199, %s213
      %p215 = scmp.eq.s32.totalorder %s42, 0
      %p216 = por %p214, %p215
      %s218 = sadd.s32 %s217, 1
      %p221 = scmp.eq.s32.totalorder %s36, 1
      %p222 = scmp.ne.s32.totalorder %s217, %s219
      %p223 = scmp.eq.s32.totalorder %s36, 0
      %p224 = por %p222, %p223
      %p225 = scmp.ne.s32.totalorder %s217, %s219
      %p226 = scmp.eq.s32.totalorder %s41, 1
      %p227 = por %p225, %p226
      %p228 = scmp.ne.s32.totalorder %s219, %s220
      %p229 = scmp.eq.s32.totalorder %s41, 0
      %p230 = por %p228, %p229
      %p231 = scmp.ne.s32.totalorder %s219, %s220
      %p232 = scmp.eq.s32.totalorder %s42, 1
      %p233 = por %p231, %p232
      %p235 = scmp.ne.s32.totalorder %s220, %s234
      %p236 = scmp.eq.s32.totalorder %s42, 0
      %p237 = por %p235, %p236
      %s239 = sadd.s32 %s238, 1
      %p242 = scmp.eq.s32.totalorder %s36, 1
      %p243 = scmp.ne.s32.totalorder %s238, %s240
      %p244 = scmp.eq.s32.totalorder %s36, 0
      %p245 = por %p243, %p244
      %p246 = scmp.ne.s32.totalorder %s238, %s240
      %p247 = scmp.eq.s32.totalorder %s41, 1
      %p248 = por %p246, %p247
      %p249 = scmp.ne.s32.totalorder %s240, %s241
      %p250 = scmp.eq.s32.totalorder %s41, 0
      %p251 = por %p249, %p250
      %p252 = scmp.ne.s32.totalorder %s240, %s241
      %p253 = scmp.eq.s32.totalorder %s42, 1
      %p254 = por %p252, %p253
      %p256 = scmp.ne.s32.totalorder %s241, %s255
      %p257 = scmp.eq.s32.totalorder %s42, 0
      %p258 = por %p256, %p257
      %s260 = sadd.s32 %s259, 1
      %p263 = scmp.eq.s32.totalorder %s36, 1
      %p264 = scmp.ne.s32.totalorder %s259, %s261
      %p265 = scmp.eq.s32.totalorder %s36, 0
      %p266 = por %p264, %p265
      %p267 = scmp.ne.s32.totalorder %s259, %s261
      %p268 = scmp.eq.s32.totalorder %s41, 1
      %p269 = por %p267, %p268
      %p270 = scmp.ne.s32.totalorder %s261, %s262
      %p271 = scmp.eq.s32.totalorder %s41, 0
      %p272 = por %p270, %p271
      %p273 = scmp.ne.s32.totalorder %s261, %s262
      %p274 = scmp.eq.s32.totalorder %s42, 1
      %p275 = por %p273, %p274
      %p277 = scmp.ne.s32.totalorder %s262, %s276
      %p278 = scmp.eq.s32.totalorder %s42, 0
      %p279 = por %p277, %p278
      %s281 = sadd.s32 %s280, 1
      %p284 = scmp.eq.s32.totalorder %s36, 1
      %p285 = scmp.ne.s32.totalorder %s280, %s282
      %p286 = scmp.eq.s32.totalorder %s36, 0
      %p287 = por %p285, %p286
      %p288 = scmp.ne.s32.totalorder %s280, %s282
      %p289 = scmp.eq.s32.totalorder %s41, 1
      %p290 = por %p288, %p289
      %p291 = scmp.ne.s32.totalorder %s282, %s283
      %p292 = scmp.eq.s32.totalorder %s41, 0
      %p293 = por %p291, %p292
      %p294 = scmp.ne.s32.totalorder %s282, %s283
      %p295 = scmp.eq.s32.totalorder %s42, 1
      %p296 = por %p294, %p295
      %p298 = scmp.ne.s32.totalorder %s283, %s297
      %p299 = scmp.eq.s32.totalorder %s42, 0
      %p300 = por %p298, %p299
      %s302 = sadd.s32 %s301, 1
      %p305 = scmp.eq.s32.totalorder %s36, 1
      %p306 = scmp.ne.s32.totalorder %s301, %s303
      %p307 = scmp.eq.s32.totalorder %s36, 0
      %p308 = por %p306, %p307
      %p309 = scmp.ne.s32.totalorder %s301, %s303
      %p310 = scmp.eq.s32.totalorder %s41, 1
      %p311 = por %p309, %p310
      %p312 = scmp.ne.s32.totalorder %s303, %s304
      %p313 = scmp.eq.s32.totalorder %s41, 0
      %p314 = por %p312, %p313
      %p315 = scmp.ne.s32.totalorder %s303, %s304
      %p316 = scmp.eq.s32.totalorder %s42, 1
      %p317 = por %p315, %p316
      %p319 = scmp.ne.s32.totalorder %s304, %s318
      %p320 = scmp.eq.s32.totalorder %s42, 0
      %p321 = por %p319, %p320
      %s323 = sadd.s32 %s322, 1
      %p326 = scmp.eq.s32.totalorder %s36, 1
      %p327 = scmp.ne.s32.totalorder %s322, %s324
      %p328 = scmp.eq.s32.totalorder %s36, 0
      %p329 = por %p327, %p328
      %p330 = scmp.ne.s32.totalorder %s322, %s324
      %p331 = scmp.eq.s32.totalorder %s41, 1
      %p332 = por %p330, %p331
      %p333 = scmp.ne.s32.totalorder %s324, %s325
      %p334 = scmp.eq.s32.totalorder %s41, 0
      %p335 = por %p333, %p334
      %p336 = scmp.ne.s32.totalorder %s324, %s325
      %p337 = scmp.eq.s32.totalorder %s42, 1
      %p338 = por %p336, %p337
      %p340 = scmp.ne.s32.totalorder %s325, %s339
      %p341 = scmp.eq.s32.totalorder %s42, 0
      %p342 = por %p340, %p341
      %s344 = sadd.s32 %s343, 1
      %p347 = scmp.eq.s32.totalorder %s36, 1
      %p348 = scmp.ne.s32.totalorder %s343, %s345
      %p349 = scmp.eq.s32.totalorder %s36, 0
      %p350 = por %p348, %p349
      %p351 = scmp.ne.s32.totalorder %s343, %s345
      %p352 = scmp.eq.s32.totalorder %s41, 1
      %p353 = por %p351, %p352
      %p354 = scmp.ne.s32.totalorder %s345, %s346
      %p355 = scmp.eq.s32.totalorder %s41, 0
      %p356 = por %p354, %p355
      %p357 = scmp.ne.s32.totalorder %s345, %s346
      %p358 = scmp.eq.s32.totalorder %s42, 1
      %p359 = por %p357, %p358
      %p361 = scmp.ne.s32.totalorder %s346, %s360
      %p362 = scmp.eq.s32.totalorder %s42, 0
      %p363 = por %p361, %p362
      %s365 = sadd.s32 %s364, 1
      %p368 = scmp.eq.s32.totalorder %s36, 1
      %p369 = scmp.ne.s32.totalorder %s364, %s366
      %p370 = scmp.eq.s32.totalorder %s36, 0
      %p371 = por %p369, %p370
      %p372 = scmp.ne.s32.totalorder %s364, %s366
      %p373 = scmp.eq.s32.totalorder %s41, 1
      %p374 = por %p372, %p373
      %p375 = scmp.ne.s32.totalorder %s366, %s367
      %p376 = scmp.eq.s32.totalorder %s41, 0
      %p377 = por %p375, %p376
      %p378 = scmp.ne.s32.totalorder %s366, %s367
      %p379 = scmp.eq.s32.totalorder %s42, 1
      %p380 = por %p378, %p379
      %p382 = scmp.ne.s32.totalorder %s367, %s381
      %p383 = scmp.eq.s32.totalorder %s42, 0
      %p384 = por %p382, %p383
      %s386 = sadd.s32 %s385, 1
      %p389 = scmp.eq.s32.totalorder %s36, 1
      %p390 = scmp.ne.s32.totalorder %s385, %s387
      %p391 = scmp.eq.s32.totalorder %s36, 0
      %p392 = por %p390, %p391
      %p393 = scmp.ne.s32.totalorder %s385, %s387
      %p394 = scmp.eq.s32.totalorder %s41, 1
      %p395 = por %p393, %p394
      %p396 = scmp.ne.s32.totalorder %s387, %s388
      %p397 = scmp.eq.s32.totalorder %s41, 0
      %p398 = por %p396, %p397
      %p399 = scmp.ne.s32.totalorder %s387, %s388
      %p400 = scmp.eq.s32.totalorder %s42, 1
      %p401 = por %p399, %p400
      %p403 = scmp.ne.s32.totalorder %s388, %s402
      %p404 = scmp.eq.s32.totalorder %s42, 0
      %p405 = por %p403, %p404
      %s407 = sadd.s32 %s406, 1
      %p410 = scmp.eq.s32.totalorder %s36, 1
      %p411 = scmp.ne.s32.totalorder %s406, %s408
      %p412 = scmp.eq.s32.totalorder %s36, 0
      %p413 = por %p411, %p412
      %p414 = scmp.ne.s32.totalorder %s406, %s408
      %p415 = scmp.eq.s32.totalorder %s41, 1
      %p416 = por %p414, %p415
      %p417 = scmp.ne.s32.totalorder %s408, %s409
      %p418 = scmp.eq.s32.totalorder %s41, 0
      %p419 = por %p417, %p418
      %p420 = scmp.ne.s32.totalorder %s408, %s409
      %p421 = scmp.eq.s32.totalorder %s42, 1
      %p422 = por %p420, %p421
      %p424 = scmp.ne.s32.totalorder %s409, %s423
      %p425 = scmp.eq.s32.totalorder %s42, 0
      %p426 = por %p424, %p425
      %s428 = sadd.s32 %s427, 1
      %p431 = scmp.eq.s32.totalorder %s36, 1
      %p432 = scmp.ne.s32.totalorder %s427, %s429
      %p433 = scmp.eq.s32.totalorder %s36, 0
      %p434 = por %p432, %p433
      %p435 = scmp.ne.s32.totalorder %s427, %s429
      %p436 = scmp.eq.s32.totalorder %s41, 1
      %p437 = por %p435, %p436
      %p438 = scmp.ne.s32.totalorder %s429, %s430
      %p439 = scmp.eq.s32.totalorder %s41, 0
      %p440 = por %p438, %p439
      %p441 = scmp.ne.s32.totalorder %s429, %s430
      %p442 = scmp.eq.s32.totalorder %s42, 1
      %p443 = por %p441, %p442
      %p445 = scmp.ne.s32.totalorder %s430, %s444
      %p446 = scmp.eq.s32.totalorder %s42, 0
      %p447 = por %p445, %p446
      %s449 = sadd.s32 %s448, 1
      %p452 = scmp.eq.s32.totalorder %s36, 1
      %p453 = scmp.ne.s32.totalorder %s448, %s450
      %p454 = scmp.eq.s32.totalorder %s36, 0
      %p455 = por %p453, %p454
      %p456 = scmp.ne.s32.totalorder %s448, %s450
      %p457 = scmp.eq.s32.totalorder %s41, 1
      %p458 = por %p456, %p457
      %p459 = scmp.ne.s32.totalorder %s450, %s451
      %p460 = scmp.eq.s32.totalorder %s41, 0
      %p461 = por %p459, %p460
      %p462 = scmp.ne.s32.totalorder %s450, %s451
      %p463 = scmp.eq.s32.totalorder %s42, 1
      %p464 = por %p462, %p463
      %p466 = scmp.ne.s32.totalorder %s451, %s465
      %p467 = scmp.eq.s32.totalorder %s42, 0
      %p468 = por %p466, %p467
      %s470 = sadd.s32 %s469, 1
      %p473 = scmp.eq.s32.totalorder %s36, 1
      %p474 = scmp.ne.s32.totalorder %s469, %s471
      %p475 = scmp.eq.s32.totalorder %s36, 0
      %p476 = por %p474, %p475
      %p477 = scmp.ne.s32.totalorder %s469, %s471
      %p478 = scmp.eq.s32.totalorder %s41, 1
      %p479 = por %p477, %p478
      %p480 = scmp.ne.s32.totalorder %s471, %s472
      %p481 = scmp.eq.s32.totalorder %s41, 0
      %p482 = por %p480, %p481
      %p483 = scmp.ne.s32.totalorder %s471, %s472
      %p484 = scmp.eq.s32.totalorder %s42, 1
      %p485 = por %p483, %p484
      %p487 = scmp.ne.s32.totalorder %s472, %s486
      %p488 = scmp.eq.s32.totalorder %s42, 0
      %p489 = por %p487, %p488
      %s490 = ssub.s32 %s36, %s43
      %p491 = scmp.eq.s32.totalorder %s490, 0
      %s493 = sadd.s32 %s492, 1
      %s494 = scalar_select %p491, %s492, %s493
      %p497 = pneg %p491
      %p498 = scmp.eq.s32.totalorder %s36, 1
      %p499 = por %p497, %p498
      %p500 = scmp.ne.s32.totalorder %s492, %s495
      %p501 = scmp.eq.s32.totalorder %s36, 0
      %p502 = por %p500, %p501
      %p503 = scmp.ne.s32.totalorder %s492, %s495
      %p504 = scmp.eq.s32.totalorder %s41, 1
      %p505 = por %p503, %p504
      %p506 = scmp.ne.s32.totalorder %s495, %s496
      %p507 = scmp.eq.s32.totalorder %s41, 0
      %p508 = por %p506, %p507
      %p509 = scmp.ne.s32.totalorder %s495, %s496
      %p510 = scmp.eq.s32.totalorder %s42, 1
      %p511 = por %p509, %p510
      %p513 = scmp.ne.s32.totalorder %s496, %s512
      %p514 = scmp.eq.s32.totalorder %s42, 0
      %p515 = por %p513, %p514
      %p516 = scmp.le.s32.totalorder 1, %s36
      %p517 = scmp.lt.s32.totalorder %s36, 3
      %p518 = pnand %p516, %p517
      %p519 = pneg %p518
      // Predicated region
      $region9: #{bottom_model_forward.1} parent=5 // pred_check
        _
      $region10: #{bottom_model_forward.1} parent=5 // pred_check_branch
        %521 = sbr.rel (%p518) target = $region12
      $region11: #{bottom_model_forward.1} parent=5 // pred_region
        %s522 = ssub.s32 %s36, 1
        // Predicated region
        $region13: #{bottom_model_forward.1} parent=11 // pred_check
          %p523 = pneg %p83
        $region14: #{bottom_model_forward.1} parent=11 // pred_check_branch
          %525 = sbr.rel (%p523) target = $region16
        $region15: #{bottom_model_forward.1} parent=11 // pred_region
          %527 = vsyncadd [#allocation5], 0
          %s528 = sshll.u32 %s1, 4
          %s529 = int_to_ptr.hbm [resolvable:$true] %s528
          %s530 = sshll.u32 [#allocation4], 4
          %s531 = int_to_ptr.vmem [resolvable:$true] %s530
          %536 = dma.hbm_to_vmem [thread:$0]  %s529, 2048, %s531, [#allocation5], 128, 128, 8
        $region16: #{bottom_model_forward.1} parent=11 // pred_fallthru
          _
        // Predicated region
        $region17: #{bottom_model_forward.1} parent=11 // pred_check
          %p537 = pneg %p104
        $region18: #{bottom_model_forward.1} parent=11 // pred_check_branch
          %539 = sbr.rel (%p537) target = $region20
        $region19: #{bottom_model_forward.1} parent=11 // pred_region
          _
        $region20: #{bottom_model_forward.1} parent=11 // pred_fallthru
          _
        // Predicated region
        $region21: #{bottom_model_forward.1} parent=11 // pred_check
          %p540 = pneg %p125
        $region22: #{bottom_model_forward.1} parent=11 // pred_check_branch
          %542 = sbr.rel (%p540) target = $region24
        $region23: #{bottom_model_forward.1} parent=11 // pred_region
          %544 = vsyncadd [#allocation8], 0
          %s546 = sshll.u32 %s3, 4
          %s547 = int_to_ptr.hbm [resolvable:$true] %s546
          %s548 = sshll.u32 [#allocation7], 4
          %s549 = int_to_ptr.vmem [resolvable:$true] %s548
          %551 = dma.hbm_to_vmem [thread:$0]  %s547, 32, %s549, [#allocation8]
        $region24: #{bottom_model_forward.1} parent=11 // pred_fallthru
          _
        // Predicated region
        $region25: #{bottom_model_forward.1} parent=11 // pred_check
          %p552 = pneg %p146
        $region26: #{bottom_model_forward.1} parent=11 // pred_check_branch
          %554 = sbr.rel (%p552) target = $region28
        $region27: #{bottom_model_forward.1} parent=11 // pred_region
          %556 = vsyncadd [#allocation8], 0
          %s558 = sshll.u32 %s4, 4
          %s559 = int_to_ptr.hbm [resolvable:$true] %s558
          %s560 = sshll.u32 [#allocation9], 4
          %s561 = int_to_ptr.vmem [resolvable:$true] %s560
          %563 = dma.hbm_to_vmem [thread:$0]  %s559, 32, %s561, [#allocation8]
        $region28: #{bottom_model_forward.1} parent=11 // pred_fallthru
          _
        // Predicated region
        $region29: #{bottom_model_forward.1} parent=11 // pred_check
          %p564 = pneg %p167
        $region30: #{bottom_model_forward.1} parent=11 // pred_check_branch
          %566 = sbr.rel (%p564) target = $region32
        $region31: #{bottom_model_forward.1} parent=11 // pred_region
          %568 = vsyncadd [#allocation11], 0
          %s569 = sshll.u32 %s5, 4
          %s570 = int_to_ptr.hbm [resolvable:$true] %s569
          %s571 = sshll.u32 [#allocation10], 4
          %s572 = int_to_ptr.vmem [resolvable:$true] %s571
          %577 = dma.hbm_to_vmem [thread:$0]  %s570, 24576, %s572, [#allocation11], 384, 384, 24
        $region32: #{bottom_model_forward.1} parent=11 // pred_fallthru
          _
        // Predicated region
        $region33: #{bottom_model_forward.1} parent=11 // pred_check
          %p578 = pneg %p188
        $region34: #{bottom_model_forward.1} parent=11 // pred_check_branch
          %580 = sbr.rel (%p578) target = $region36
        $region35: #{bottom_model_forward.1} parent=11 // pred_region
          _
        $region36: #{bottom_model_forward.1} parent=11 // pred_fallthru
          _
        // Predicated region
        $region37: #{bottom_model_forward.1} parent=11 // pred_check
          %p581 = pneg %p209
        $region38: #{bottom_model_forward.1} parent=11 // pred_check_branch
          %583 = sbr.rel (%p581) target = $region40
        $region39: #{bottom_model_forward.1} parent=11 // pred_region
          %585 = vsyncadd [#allocation11], 0
          %s586 = sshll.u32 %s7, 4
          %s587 = int_to_ptr.hbm [resolvable:$true] %s586
          %s588 = sshll.u32 [#allocation12], 4
          %s589 = int_to_ptr.vmem [resolvable:$true] %s588
          %594 = dma.hbm_to_vmem [thread:$0]  %s587, 8192, %s589, [#allocation11], 128, 128, 8
        $region40: #{bottom_model_forward.1} parent=11 // pred_fallthru
          _
        // Predicated region
        $region41: #{bottom_model_forward.1} parent=11 // pred_check
          %p595 = pneg %p230
        $region42: #{bottom_model_forward.1} parent=11 // pred_check_branch
          %597 = sbr.rel (%p595) target = $region44
        $region43: #{bottom_model_forward.1} parent=11 // pred_region
          _
        $region44: #{bottom_model_forward.1} parent=11 // pred_fallthru
          _
        // Predicated region
        $region45: #{bottom_model_forward.1} parent=11 // pred_check
          %p598 = pneg %p251
        $region46: #{bottom_model_forward.1} parent=11 // pred_check_branch
          %600 = sbr.rel (%p598) target = $region48
        $region47: #{bottom_model_forward.1} parent=11 // pred_region
          _
        $region48: #{bottom_model_forward.1} parent=11 // pred_fallthru
          _
        // Predicated region
        $region49: #{bottom_model_forward.1} parent=11 // pred_check
          %p601 = pneg %p272
        $region50: #{bottom_model_forward.1} parent=11 // pred_check_branch
          %603 = sbr.rel (%p601) target = $region52
        $region51: #{bottom_model_forward.1} parent=11 // pred_region
          _
        $region52: #{bottom_model_forward.1} parent=11 // pred_fallthru
          _
        // Predicated region
        $region53: #{bottom_model_forward.1} parent=11 // pred_check
          %p604 = pneg %p293
        $region54: #{bottom_model_forward.1} parent=11 // pred_check_branch
          %606 = sbr.rel (%p604) target = $region56
        $region55: #{bottom_model_forward.1} parent=11 // pred_region
          %608 = vsyncadd [#allocation14], 0
          %s609 = sshll.u32 %s11, 4
          %s610 = int_to_ptr.hbm [resolvable:$true] %s609
          %s611 = sshll.u32 [#allocation13], 4
          %s612 = int_to_ptr.vmem [resolvable:$true] %s611
          %617 = dma.hbm_to_vmem [thread:$0]  %s610, 32768, %s612, [#allocation14], 512, 512, 32
        $region56: #{bottom_model_forward.1} parent=11 // pred_fallthru
          _
        // Predicated region
        $region57: #{bottom_model_forward.1} parent=11 // pred_check
          %p618 = pneg %p314
        $region58: #{bottom_model_forward.1} parent=11 // pred_check_branch
          %620 = sbr.rel (%p618) target = $region60
        $region59: #{bottom_model_forward.1} parent=11 // pred_region
          _
        $region60: #{bottom_model_forward.1} parent=11 // pred_fallthru
          _
        // Predicated region
        $region61: #{bottom_model_forward.1} parent=11 // pred_check
          %p621 = pneg %p335
        $region62: #{bottom_model_forward.1} parent=11 // pred_check_branch
          %623 = sbr.rel (%p621) target = $region64
        $region63: #{bottom_model_forward.1} parent=11 // pred_region
          %625 = vsyncadd [#allocation14], 0
          %s626 = sshll.u32 %s13, 4
          %s627 = int_to_ptr.hbm [resolvable:$true] %s626
          %s628 = sshll.u32 [#allocation15], 4
          %s629 = int_to_ptr.vmem [resolvable:$true] %s628
          %634 = dma.hbm_to_vmem [thread:$0]  %s627, 32768, %s629, [#allocation14], 128, 128, 8
        $region64: #{bottom_model_forward.1} parent=11 // pred_fallthru
          _
        // Predicated region
        $region65: #{bottom_model_forward.1} parent=11 // pred_check
          %p635 = pneg %p356
        $region66: #{bottom_model_forward.1} parent=11 // pred_check_branch
          %637 = sbr.rel (%p635) target = $region68
        $region67: #{bottom_model_forward.1} parent=11 // pred_region
          %639 = vsyncadd [#allocation17], 0
          %s640 = sshll.u32 %s14, 4
          %s641 = int_to_ptr.hbm [resolvable:$true] %s640
          %s642 = sshll.u32 [#allocation16], 4
          %s643 = int_to_ptr.vmem [resolvable:$true] %s642
          %648 = dma.hbm_to_vmem [thread:$0]  %s641, 64, %s643, [#allocation17], 32, 32, 2
        $region68: #{bottom_model_forward.1} parent=11 // pred_fallthru
          _
        // Predicated region
        $region69: #{bottom_model_forward.1} parent=11 // pred_check
          %p649 = pneg %p377
        $region70: #{bottom_model_forward.1} parent=11 // pred_check_branch
          %651 = sbr.rel (%p649) target = $region72
        $region71: #{bottom_model_forward.1} parent=11 // pred_region
          _
        $region72: #{bottom_model_forward.1} parent=11 // pred_fallthru
          _
        // Predicated region
        $region73: #{bottom_model_forward.1} parent=11 // pred_check
          %p652 = pneg %p398
        $region74: #{bottom_model_forward.1} parent=11 // pred_check_branch
          %654 = sbr.rel (%p652) target = $region76
        $region75: #{bottom_model_forward.1} parent=11 // pred_region
          _
        $region76: #{bottom_model_forward.1} parent=11 // pred_fallthru
          _
        // Predicated region
        $region77: #{bottom_model_forward.1} parent=11 // pred_check
          %p655 = pneg %p419
        $region78: #{bottom_model_forward.1} parent=11 // pred_check_branch
          %657 = sbr.rel (%p655) target = $region80
        $region79: #{bottom_model_forward.1} parent=11 // pred_region
          %659 = vsyncadd [#allocation17], 0
          %s660 = sshll.u32 %s17, 4
          %s661 = int_to_ptr.hbm [resolvable:$true] %s660
          %s662 = sshll.u32 [#allocation18], 4
          %s663 = int_to_ptr.vmem [resolvable:$true] %s662
          %668 = dma.hbm_to_vmem [thread:$0]  %s661, 2048, %s663, [#allocation17], 64, 64, 4
        $region80: #{bottom_model_forward.1} parent=11 // pred_fallthru
          _
        // Predicated region
        $region81: #{bottom_model_forward.1} parent=11 // pred_check
          %p669 = pneg %p440
        $region82: #{bottom_model_forward.1} parent=11 // pred_check_branch
          %671 = sbr.rel (%p669) target = $region84
        $region83: #{bottom_model_forward.1} parent=11 // pred_region
          %673 = vsyncadd [#allocation20], 0
          %s675 = sshll.u32 %s18, 4
          %s676 = int_to_ptr.hbm [resolvable:$true] %s675
          %s677 = sshll.u32 [#allocation19], 4
          %s678 = int_to_ptr.vmem [resolvable:$true] %s677
          %680 = dma.hbm_to_vmem [thread:$0]  %s676, 16, %s678, [#allocation20]
        $region84: #{bottom_model_forward.1} parent=11 // pred_fallthru
          _
        // Predicated region
        $region85: #{bottom_model_forward.1} parent=11 // pred_check
          %p681 = pneg %p461
        $region86: #{bottom_model_forward.1} parent=11 // pred_check_branch
          %683 = sbr.rel (%p681) target = $region88
        $region87: #{bottom_model_forward.1} parent=11 // pred_region
          _
        $region88: #{bottom_model_forward.1} parent=11 // pred_fallthru
          _
        // Predicated region
        $region89: #{bottom_model_forward.1} parent=11 // pred_check
          %p684 = pneg %p482
        $region90: #{bottom_model_forward.1} parent=11 // pred_check_branch
          %686 = sbr.rel (%p684) target = $region92
        $region91: #{bottom_model_forward.1} parent=11 // pred_region
          %688 = vsyncadd [#allocation20], 0
          %s690 = sshll.u32 %s20, 4
          %s691 = int_to_ptr.hbm [resolvable:$true] %s690
          %s692 = sshll.u32 [#allocation21], 4
          %s693 = int_to_ptr.vmem [resolvable:$true] %s692
          %695 = dma.hbm_to_vmem [thread:$0]  %s691, 16, %s693, [#allocation20]
        $region92: #{bottom_model_forward.1} parent=11 // pred_fallthru
          _
      $region12: #{bottom_model_forward.1} parent=5 // pred_fallthru
        _
      %p696 = scmp.lt.s32.totalorder %s36, 2
      // Predicated region
      $region93: #{bottom_model_forward.1} parent=5 // pred_check
        %p697 = pneg %p696
      $region94: #{bottom_model_forward.1} parent=5 // pred_check_branch
        %699 = sbr.rel (%p697) target = $region96
      $region95: #{bottom_model_forward.1} parent=5 // pred_region
        // Predicated region
        $region97: #{bottom_model_forward.1} parent=95 // pred_check
          %p700 = pneg %p56
        $region98: #{bottom_model_forward.1} parent=95 // pred_check_branch
          %702 = sbr.rel (%p700) target = $region100
        $region99: #{bottom_model_forward.1} parent=95 // pred_region
          %p703 = scmp.lt.s32.totalorder %s36, 1
          %s704 = scalar_select %p703, %s36, 1
          %s705 = smul.addr %s704, 2
          %s706 = smul.addr %s705, 8
          %s707 = scalar_lea.vmem %s0, %s706
        $region100: #{bottom_model_forward.1} parent=95 // pred_fallthru
          _
      $region96: #{bottom_model_forward.1} parent=5 // pred_fallthru
        _
      %p708 = scmp.le.s32.totalorder 1, %s36
      %p709 = scmp.lt.s32.totalorder %s36, 3
      %p710 = pnand %p708, %p709
      %p711 = pneg %p710
      // Predicated region
      $region101: #{bottom_model_forward.1} parent=5 // pred_check
        _
      $region102: #{bottom_model_forward.1} parent=5 // pred_check_branch
        %713 = sbr.rel (%p710) target = $region104
      $region103: #{bottom_model_forward.1} parent=5 // pred_region
        %s714 = ssub.s32 %s36, 1
        // Predicated region
        $region105: #{bottom_model_forward.1} parent=103 // pred_check
          %p715 = pneg %p83
        $region106: #{bottom_model_forward.1} parent=103 // pred_check_branch
          %717 = sbr.rel (%p715) target = $region108
        $region107: #{bottom_model_forward.1} parent=103 // pred_region
          %719 = dma.done [#allocation5], 2048
        $region108: #{bottom_model_forward.1} parent=103 // pred_fallthru
          _
        // Predicated region
        $region109: #{bottom_model_forward.1} parent=103 // pred_check
          %p720 = pneg %p125
        $region110: #{bottom_model_forward.1} parent=103 // pred_check_branch
          %722 = sbr.rel (%p720) target = $region112
        $region111: #{bottom_model_forward.1} parent=103 // pred_region
          %724 = dma.done [#allocation8], 32
        $region112: #{bottom_model_forward.1} parent=103 // pred_fallthru
          _
        // Predicated region
        $region113: #{bottom_model_forward.1} parent=103 // pred_check
          %p725 = pneg %p146
        $region114: #{bottom_model_forward.1} parent=103 // pred_check_branch
          %727 = sbr.rel (%p725) target = $region116
        $region115: #{bottom_model_forward.1} parent=103 // pred_region
          %729 = dma.done [#allocation8], 32
        $region116: #{bottom_model_forward.1} parent=103 // pred_fallthru
          _
        // Predicated region
        $region117: #{bottom_model_forward.1} parent=103 // pred_check
          %p730 = pneg %p167
        $region118: #{bottom_model_forward.1} parent=103 // pred_check_branch
          %732 = sbr.rel (%p730) target = $region120
        $region119: #{bottom_model_forward.1} parent=103 // pred_region
          %734 = dma.done [#allocation11], 24576
        $region120: #{bottom_model_forward.1} parent=103 // pred_fallthru
          _
        // Predicated region
        $region121: #{bottom_model_forward.1} parent=103 // pred_check
          %p735 = pneg %p209
        $region122: #{bottom_model_forward.1} parent=103 // pred_check_branch
          %737 = sbr.rel (%p735) target = $region124
        $region123: #{bottom_model_forward.1} parent=103 // pred_region
          %739 = dma.done [#allocation11], 8192
        $region124: #{bottom_model_forward.1} parent=103 // pred_fallthru
          _
        // Predicated region
        $region125: #{bottom_model_forward.1} parent=103 // pred_check
          %p740 = pneg %p293
        $region126: #{bottom_model_forward.1} parent=103 // pred_check_branch
          %742 = sbr.rel (%p740) target = $region128
        $region127: #{bottom_model_forward.1} parent=103 // pred_region
          %744 = dma.done [#allocation14], 32768
        $region128: #{bottom_model_forward.1} parent=103 // pred_fallthru
          _
        // Predicated region
        $region129: #{bottom_model_forward.1} parent=103 // pred_check
          %p745 = pneg %p335
        $region130: #{bottom_model_forward.1} parent=103 // pred_check_branch
          %747 = sbr.rel (%p745) target = $region132
        $region131: #{bottom_model_forward.1} parent=103 // pred_region
          %749 = dma.done [#allocation14], 32768
        $region132: #{bottom_model_forward.1} parent=103 // pred_fallthru
          _
        // Predicated region
        $region133: #{bottom_model_forward.1} parent=103 // pred_check
          %p750 = pneg %p356
        $region134: #{bottom_model_forward.1} parent=103 // pred_check_branch
          %752 = sbr.rel (%p750) target = $region136
        $region135: #{bottom_model_forward.1} parent=103 // pred_region
          %754 = dma.done [#allocation17], 64
        $region136: #{bottom_model_forward.1} parent=103 // pred_fallthru
          _
        // Predicated region
        $region137: #{bottom_model_forward.1} parent=103 // pred_check
          %p755 = pneg %p419
        $region138: #{bottom_model_forward.1} parent=103 // pred_check_branch
          %757 = sbr.rel (%p755) target = $region140
        $region139: #{bottom_model_forward.1} parent=103 // pred_region
          %759 = dma.done [#allocation17], 2048
        $region140: #{bottom_model_forward.1} parent=103 // pred_fallthru
          _
        // Predicated region
        $region141: #{bottom_model_forward.1} parent=103 // pred_check
          %p760 = pneg %p440
        $region142: #{bottom_model_forward.1} parent=103 // pred_check_branch
          %762 = sbr.rel (%p760) target = $region144
        $region143: #{bottom_model_forward.1} parent=103 // pred_region
          %764 = dma.done [#allocation20], 16
        $region144: #{bottom_model_forward.1} parent=103 // pred_fallthru
          _
        // Predicated region
        $region145: #{bottom_model_forward.1} parent=103 // pred_check
          %p765 = pneg %p482
        $region146: #{bottom_model_forward.1} parent=103 // pred_check_branch
          %767 = sbr.rel (%p765) target = $region148
        $region147: #{bottom_model_forward.1} parent=103 // pred_region
          %769 = dma.done [#allocation20], 16
        $region148: #{bottom_model_forward.1} parent=103 // pred_fallthru
          _
        %p770 = scmp.lt.s32.totalorder %s41, 1
        %s771 = scalar_select %p770, %s41, 1
        %s772 = smul.addr %s771, 2
        %s773 = smul.addr %s772, 8
        %s774 = scalar_lea.vmem %s0, %s773
        %p775 = pneg %p62
        %p776 = pneg %p59
        %p777 = pneg %p83
        %p778 = pneg %p80
        %p779 = pneg %p104
        %p780 = pneg %p101
        %p781 = pneg %p125
        %p782 = pneg %p122
        %p783 = pneg %p146
        %p784 = pneg %p143
        %p785 = pneg %p167
        %p786 = pneg %p164
        %p787 = pneg %p188
        %p788 = pneg %p185
        %p789 = pneg %p209
        %p790 = pneg %p206
        %p791 = pneg %p230
        %p792 = pneg %p227
        %p793 = pneg %p251
        %p794 = pneg %p248
        %p795 = pneg %p272
        %p796 = pneg %p269
        %p797 = pneg %p293
        %p798 = pneg %p290
        %p799 = pneg %p314
        %p800 = pneg %p311
        %p801 = pneg %p335
        %p802 = pneg %p332
        %p803 = pneg %p356
        %p804 = pneg %p353
        %p805 = pneg %p377
        %p806 = pneg %p374
        %p807 = pneg %p398
        %p808 = pneg %p395
        %p809 = pneg %p419
        %p810 = pneg %p416
        %p811 = pneg %p440
        %p812 = pneg %p437
        %p813 = pneg %p461
        %p814 = pneg %p458
        %p815 = pneg %p482
        %p816 = pneg %p479
        %p817 = pneg %p508
        %p818 = pneg %p505
        %s819 = sand.u32 %s495, 1
        %s820 = scalar_lea.sflag [#allocation6], %s819
        %s821 = sand.u32 %s495, 1
        %s822 = scalar_lea.vmem [#allocation22], %s821
        %p823 = scmp.lt.s32.totalorder %s41, 1
        %s824 = scalar_select %p823, %s41, 1
        %s825 = smul.addr %s824, 2
        %s826 = smul.addr %s825, 8
        %s827 = scalar_lea.vmem %s0, %s826
        %v829 = vld [vmem:[%s827] sm:$0xff]
        %v830 = vld [vmem:[%s827 + $0x8] sm:$0xff]
        %v831 = vlaneseq
        %v832 = vand.u32 %v831, 127
        %833 = vset.pattern.permute.xlu0 0
        %834 = vperm.xlu0 %833, %v829
        %v835 = vpop.permute.xlu0 %834
        %836 = vset.pattern.permute.xlu0 0
        %837 = vperm.xlu0 %836, %v830
        %v838 = vpop.permute.xlu0 %837
        %vm839 = vcmp.eq.s32.totalorder %v832, %v835
        %vm840 = vcmp.eq.s32.totalorder %v832, %v838
        %v841 = vsel %vm839, 1, 0
        %v842 = vsel %vm840, 1, 0
        %v843 = vcvt.s32.f32 %v841
        %v844 = vcvt.s32.f32 %v842
        %v845 = vpack.c.bf16 %v844, %v843
        %v846 = vld [vmem:[#allocation4] sm:$0xff]
        %v847 = vld [vmem:[#allocation4 + $0x8] sm:$0xff]
        %v848 = vld [vmem:[#allocation4 + $0x10] sm:$0xff]
        %v849 = vld [vmem:[#allocation4 + $0x18] sm:$0xff]
        %v850 = vld [vmem:[#allocation4 + $0x20] sm:$0xff]
        %v851 = vld [vmem:[#allocation4 + $0x28] sm:$0xff]
        %v852 = vld [vmem:[#allocation4 + $0x30] sm:$0xff]
        %v853 = vld [vmem:[#allocation4 + $0x38] sm:$0xff]
        %v854 = vld [vmem:[#allocation4 + $0x40] sm:$0xff]
        %v855 = vld [vmem:[#allocation4 + $0x48] sm:$0xff]
        %v856 = vld [vmem:[#allocation4 + $0x50] sm:$0xff]
        %v857 = vld [vmem:[#allocation4 + $0x58] sm:$0xff]
        %v858 = vld [vmem:[#allocation4 + $0x60] sm:$0xff]
        %v859 = vld [vmem:[#allocation4 + $0x68] sm:$0xff]
        %v860 = vld [vmem:[#allocation4 + $0x70] sm:$0xff]
        %v861 = vld [vmem:[#allocation4 + $0x78] sm:$0xff]
        %v862 = vld [vmem:[%s2] sm:$0xff]
        %v863 = vld [vmem:[%s2 + $0x8] sm:$0xff]
        %v864 = vld [vmem:[%s2 + $0x10] sm:$0xff]
        %v865 = vld [vmem:[%s2 + $0x18] sm:$0xff]
        %v882 = vunpack.c.l.b16 %v846
        %v883 = vunpack.c.h.b16 %v846
        %v884 = vunpack.c.l.b16 %v847
        %v885 = vunpack.c.h.b16 %v847
        %v886 = vunpack.c.l.b16 %v848
        %v887 = vunpack.c.h.b16 %v848
        %v888 = vunpack.c.l.b16 %v849
        %v889 = vunpack.c.h.b16 %v849
        %v890 = vunpack.c.l.b16 %v850
        %v891 = vunpack.c.h.b16 %v850
        %v892 = vunpack.c.l.b16 %v851
        %v893 = vunpack.c.h.b16 %v851
        %v894 = vunpack.c.l.b16 %v852
        %v895 = vunpack.c.h.b16 %v852
        %v896 = vunpack.c.l.b16 %v853
        %v897 = vunpack.c.h.b16 %v853
        %v898 = vunpack.c.l.b16 %v854
        %v899 = vunpack.c.h.b16 %v854
        %v900 = vunpack.c.l.b16 %v855
        %v901 = vunpack.c.h.b16 %v855
        %v902 = vunpack.c.l.b16 %v856
        %v903 = vunpack.c.h.b16 %v856
        %v904 = vunpack.c.l.b16 %v857
        %v905 = vunpack.c.h.b16 %v857
        %v906 = vunpack.c.l.b16 %v858
        %v907 = vunpack.c.h.b16 %v858
        %v908 = vunpack.c.l.b16 %v859
        %v909 = vunpack.c.h.b16 %v859
        %v910 = vunpack.c.l.b16 %v860
        %v911 = vunpack.c.h.b16 %v860
        %v912 = vunpack.c.l.b16 %v861
        %v913 = vunpack.c.h.b16 %v861
        %v914 = vpack.c.b16 %v884, %v882
        %v915 = vpack.c.b16 %v885, %v883
        %v916 = vpack.c.b16 %v888, %v886
        %v917 = vpack.c.b16 %v889, %v887
        %v918 = vpack.c.b16 %v892, %v890
        %v919 = vpack.c.b16 %v893, %v891
        %v920 = vpack.c.b16 %v896, %v894
        %v921 = vpack.c.b16 %v897, %v895
        %v922 = vpack.c.b16 %v900, %v898
        %v923 = vpack.c.b16 %v901, %v899
        %v924 = vpack.c.b16 %v904, %v902
        %v925 = vpack.c.b16 %v905, %v903
        %v926 = vpack.c.b16 %v908, %v906
        %v927 = vpack.c.b16 %v909, %v907
        %v928 = vpack.c.b16 %v912, %v910
        %v929 = vpack.c.b16 %v913, %v911
        %946 = vmatpush.bf16.msra.mxu0 %v928
        %947 = vmatpush.bf16.msra.mxu0 %v926
        %948 = vmatpush.bf16.msra.mxu0 %v924
        %949 = vmatpush.bf16.msra.mxu0 %v922
        %950 = vmatpush.bf16.msra.mxu0 %v920
        %951 = vmatpush.bf16.msra.mxu0 %v918
        %952 = vmatpush.bf16.msra.mxu0 %v916
        %953 = vmatpush.bf16.msra.mxu0 %v914
        %954 = vmatmul.bf16.gmra.mxu0 %v845
        %v955 = vpop.f32.mrf.mxu0
        %v956 = vadd.f32 %v862, %v955
        %v957 = vpop.f32.mrf.mxu0
        %v958 = vadd.f32 %v864, %v957
        %959 = vdwg.mxu0
        %960 = vmatpush.bf16.msra.mxu0 %v929
        %961 = vmatpush.bf16.msra.mxu0 %v927
        %962 = vmatpush.bf16.msra.mxu0 %v925
        %963 = vmatpush.bf16.msra.mxu0 %v923
        %964 = vmatpush.bf16.msra.mxu0 %v921
        %965 = vmatpush.bf16.msra.mxu0 %v919
        %966 = vmatpush.bf16.msra.mxu0 %v917
        %967 = vmatpush.bf16.msra.mxu0 %v915
        %968 = vmatmul.bf16.gmra.mxu0 %v845
        %v969 = vpop.f32.mrf.mxu0
        %v970 = vadd.f32 %v863, %v969
        %v971 = vpop.f32.mrf.mxu0
        %v972 = vadd.f32 %v865, %v971
        %973 = vdwg.mxu0
        %v974 = vld [vmem:[#allocation7] sm:$0x3]
        %v975 = vld [vmem:[#allocation9] sm:$0x3]
        %v976 = vadd.f32 %v956, %v970
        %977 = vadd.xlane.f32.xlu0 %v976
        %v978 = vpop.xlane.xlu0 %977
        %v979 = vadd.f32 %v958, %v972
        %980 = vadd.xlane.f32.xlu0 %v979
        %v981 = vpop.xlane.xlu0 %980
        %v982 = vrcp.pop 256.0
        %v983 = vmul.f32 256.0, %v982
        %v984 = vsub.f32 1.0, %v983
        %v985 = vmul.f32 %v982, %v984
        %v986 = vadd.f32 %v982, %v985
        %vm987 = vweird.f32 %v982
        %v988 = vsel %vm987, %v982, %v986
        %v989 = vmul.f32 %v978, %v988
        %v990 = vmul.f32 %v981, %v988
        %v991 = vsub.f32 %v956, %v989
        %v992 = vsub.f32 %v970, %v989
        %v993 = vsub.f32 %v958, %v990
        %v994 = vsub.f32 %v972, %v990
        %v995 = vmul.f32 %v991, %v991
        %v996 = vmul.f32 %v992, %v992
        %v997 = vmul.f32 %v993, %v993
        %v998 = vmul.f32 %v994, %v994
        %v999 = vadd.f32 %v995, %v996
        %1000 = vadd.xlane.f32.xlu0 %v999
        %v1001 = vpop.xlane.xlu0 %1000
        %v1002 = vadd.f32 %v997, %v998
        %1003 = vadd.xlane.f32.xlu0 %v1002
        %v1004 = vpop.xlane.xlu0 %1003
        %v1005 = vmul.f32 %v1001, %v988
        %v1006 = vmul.f32 %v1004, %v988
        %v1007 = vadd.f32 %v1005, 1e-12
        %v1008 = vadd.f32 %v1006, 1e-12
        %v1009 = vrsqrt.pop %v1007
        %v1010 = vmul.f32 %v1009, %v1007
        %v1011 = vmul.f32 %v1010, %v1009
        %v1012 = vmul.f32 0.5, %v1011
        %v1013 = vsub.f32 1.5, %v1012
        %v1014 = vmul.f32 %v1009, %v1013
        %vm1015 = vweird.f32 %v1007
        %vm1016 = vweird.f32 %v1009
        %vm1017 = vmor %vm1015, %vm1016
        %v1018 = vsel %vm1017, %v1009, %v1014
        %v1019 = vrsqrt.pop %v1008
        %v1020 = vmul.f32 %v1019, %v1008
        %v1021 = vmul.f32 %v1020, %v1019
        %v1022 = vmul.f32 0.5, %v1021
        %v1023 = vsub.f32 1.5, %v1022
        %v1024 = vmul.f32 %v1019, %v1023
        %vm1025 = vweird.f32 %v1008
        %vm1026 = vweird.f32 %v1019
        %vm1027 = vmor %vm1025, %vm1026
        %v1028 = vsel %vm1027, %v1019, %v1024
        %v1029 = vmul.f32 %v991, %v1018
        %v1030 = vmul.f32 %v992, %v1018
        %v1031 = vmul.f32 %v993, %v1028
        %v1032 = vmul.f32 %v994, %v1028
        %v1034 = vperm.slane %v974, 0
        %v1035 = vperm.slane %v974, 1
        %v1038 = vmul.f32 %v1029, %v1034
        %v1039 = vmul.f32 %v1030, %v1035
        %v1040 = vmul.f32 %v1031, %v1034
        %v1041 = vmul.f32 %v1032, %v1035
        %v1043 = vperm.slane %v975, 0
        %v1044 = vperm.slane %v975, 1
        %v1047 = vadd.f32 %v1038, %v1043
        %v1048 = vadd.f32 %v1039, %v1044
        %v1049 = vadd.f32 %v1040, %v1043
        %v1050 = vadd.f32 %v1041, %v1044
        %v1051 = vpack.c.bf16 %v1049, %v1047
        %v1052 = vpack.c.bf16 %v1050, %v1048
        %v1053 = vld [vmem:[#allocation10] sm:$0xff]
        %v1054 = vld [vmem:[#allocation10 + $0x8] sm:$0xff]
        %v1055 = vld [vmem:[#allocation10 + $0x10] sm:$0xff]
        %v1056 = vld [vmem:[#allocation10 + $0x18] sm:$0xff]
        %v1057 = vld [vmem:[#allocation10 + $0x20] sm:$0xff]
        %v1058 = vld [vmem:[#allocation10 + $0x28] sm:$0xff]
        %v1059 = vld [vmem:[#allocation10 + $0x30] sm:$0xff]
        %v1060 = vld [vmem:[#allocation10 + $0x38] sm:$0xff]
        %v1061 = vld [vmem:[#allocation10 + $0x40] sm:$0xff]
        %v1062 = vld [vmem:[#allocation10 + $0x48] sm:$0xff]
        %v1063 = vld [vmem:[#allocation10 + $0x50] sm:$0xff]
        %v1064 = vld [vmem:[#allocation10 + $0x58] sm:$0xff]
        %v1065 = vld [vmem:[#allocation10 + $0x60] sm:$0xff]
        %v1066 = vld [vmem:[#allocation10 + $0x68] sm:$0xff]
        %v1067 = vld [vmem:[#allocation10 + $0x70] sm:$0xff]
        %v1068 = vld [vmem:[#allocation10 + $0x78] sm:$0xff]
        %v1069 = vld [vmem:[#allocation10 + $0x80] sm:$0xff]
        %v1070 = vld [vmem:[#allocation10 + $0x88] sm:$0xff]
        %v1071 = vld [vmem:[#allocation10 + $0x90] sm:$0xff]
        %v1072 = vld [vmem:[#allocation10 + $0x98] sm:$0xff]
        %v1073 = vld [vmem:[#allocation10 + $0xa0] sm:$0xff]
        %v1074 = vld [vmem:[#allocation10 + $0xa8] sm:$0xff]
        %v1075 = vld [vmem:[#allocation10 + $0xb0] sm:$0xff]
        %v1076 = vld [vmem:[#allocation10 + $0xb8] sm:$0xff]
        %v1077 = vld [vmem:[#allocation10 + $0xc0] sm:$0xff]
        %v1078 = vld [vmem:[#allocation10 + $0xc8] sm:$0xff]
        %v1079 = vld [vmem:[#allocation10 + $0xd0] sm:$0xff]
        %v1080 = vld [vmem:[#allocation10 + $0xd8] sm:$0xff]
        %v1081 = vld [vmem:[#allocation10 + $0xe0] sm:$0xff]
        %v1082 = vld [vmem:[#allocation10 + $0xe8] sm:$0xff]
        %v1083 = vld [vmem:[#allocation10 + $0xf0] sm:$0xff]
        %v1084 = vld [vmem:[#allocation10 + $0xf8] sm:$0xff]
        %v1085 = vld [vmem:[#allocation10 + $0x100] sm:$0xff]
        %v1086 = vld [vmem:[#allocation10 + $0x108] sm:$0xff]
        %v1087 = vld [vmem:[#allocation10 + $0x110] sm:$0xff]
        %v1088 = vld [vmem:[#allocation10 + $0x118] sm:$0xff]
        %v1089 = vld [vmem:[#allocation10 + $0x120] sm:$0xff]
        %v1090 = vld [vmem:[#allocation10 + $0x128] sm:$0xff]
        %v1091 = vld [vmem:[#allocation10 + $0x130] sm:$0xff]
        %v1092 = vld [vmem:[#allocation10 + $0x138] sm:$0xff]
        %v1093 = vld [vmem:[#allocation10 + $0x140] sm:$0xff]
        %v1094 = vld [vmem:[#allocation10 + $0x148] sm:$0xff]
        %v1095 = vld [vmem:[#allocation10 + $0x150] sm:$0xff]
        %v1096 = vld [vmem:[#allocation10 + $0x158] sm:$0xff]
        %v1097 = vld [vmem:[#allocation10 + $0x160] sm:$0xff]
        %v1098 = vld [vmem:[#allocation10 + $0x168] sm:$0xff]
        %v1099 = vld [vmem:[#allocation10 + $0x170] sm:$0xff]
        %v1100 = vld [vmem:[#allocation10 + $0x178] sm:$0xff]
        %v1101 = vld [vmem:[#allocation10 + $0x180] sm:$0xff]
        %v1102 = vld [vmem:[#allocation10 + $0x188] sm:$0xff]
        %v1103 = vld [vmem:[#allocation10 + $0x190] sm:$0xff]
        %v1104 = vld [vmem:[#allocation10 + $0x198] sm:$0xff]
        %v1105 = vld [vmem:[#allocation10 + $0x1a0] sm:$0xff]
        %v1106 = vld [vmem:[#allocation10 + $0x1a8] sm:$0xff]
        %v1107 = vld [vmem:[#allocation10 + $0x1b0] sm:$0xff]
        %v1108 = vld [vmem:[#allocation10 + $0x1b8] sm:$0xff]
        %v1109 = vld [vmem:[#allocation10 + $0x1c0] sm:$0xff]
        %v1110 = vld [vmem:[#allocation10 + $0x1c8] sm:$0xff]
        %v1111 = vld [vmem:[#allocation10 + $0x1d0] sm:$0xff]
        %v1112 = vld [vmem:[#allocation10 + $0x1d8] sm:$0xff]
        %v1113 = vld [vmem:[#allocation10 + $0x1e0] sm:$0xff]
        %v1114 = vld [vmem:[#allocation10 + $0x1e8] sm:$0xff]
        %v1115 = vld [vmem:[#allocation10 + $0x1f0] sm:$0xff]
        %v1116 = vld [vmem:[#allocation10 + $0x1f8] sm:$0xff]
        %v1117 = vld [vmem:[#allocation10 + $0x200] sm:$0xff]
        %v1118 = vld [vmem:[#allocation10 + $0x208] sm:$0xff]
        %v1119 = vld [vmem:[#allocation10 + $0x210] sm:$0xff]
        %v1120 = vld [vmem:[#allocation10 + $0x218] sm:$0xff]
        %v1121 = vld [vmem:[#allocation10 + $0x220] sm:$0xff]
        %v1122 = vld [vmem:[#allocation10 + $0x228] sm:$0xff]
        %v1123 = vld [vmem:[#allocation10 + $0x230] sm:$0xff]
        %v1124 = vld [vmem:[#allocation10 + $0x238] sm:$0xff]
        %v1125 = vld [vmem:[#allocation10 + $0x240] sm:$0xff]
        %v1126 = vld [vmem:[#allocation10 + $0x248] sm:$0xff]
        %v1127 = vld [vmem:[#allocation10 + $0x250] sm:$0xff]
        %v1128 = vld [vmem:[#allocation10 + $0x258] sm:$0xff]
        %v1129 = vld [vmem:[#allocation10 + $0x260] sm:$0xff]
        %v1130 = vld [vmem:[#allocation10 + $0x268] sm:$0xff]
        %v1131 = vld [vmem:[#allocation10 + $0x270] sm:$0xff]
        %v1132 = vld [vmem:[#allocation10 + $0x278] sm:$0xff]
        %v1133 = vld [vmem:[#allocation10 + $0x280] sm:$0xff]
        %v1134 = vld [vmem:[#allocation10 + $0x288] sm:$0xff]
        %v1135 = vld [vmem:[#allocation10 + $0x290] sm:$0xff]
        %v1136 = vld [vmem:[#allocation10 + $0x298] sm:$0xff]
        %v1137 = vld [vmem:[#allocation10 + $0x2a0] sm:$0xff]
        %v1138 = vld [vmem:[#allocation10 + $0x2a8] sm:$0xff]
        %v1139 = vld [vmem:[#allocation10 + $0x2b0] sm:$0xff]
        %v1140 = vld [vmem:[#allocation10 + $0x2b8] sm:$0xff]
        %v1141 = vld [vmem:[#allocation10 + $0x2c0] sm:$0xff]
        %v1142 = vld [vmem:[#allocation10 + $0x2c8] sm:$0xff]
        %v1143 = vld [vmem:[#allocation10 + $0x2d0] sm:$0xff]
        %v1144 = vld [vmem:[#allocation10 + $0x2d8] sm:$0xff]
        %v1145 = vld [vmem:[#allocation10 + $0x2e0] sm:$0xff]
        %v1146 = vld [vmem:[#allocation10 + $0x2e8] sm:$0xff]
        %v1147 = vld [vmem:[#allocation10 + $0x2f0] sm:$0xff]
        %v1148 = vld [vmem:[#allocation10 + $0x2f8] sm:$0xff]
        %v1149 = vld [vmem:[%s6] sm:$0x3f]
        %v1151 = vperm.slane %v1149, 0
        %v1152 = vperm.slane %v1149, 1
        %v1153 = vperm.slane %v1149, 2
        %v1154 = vperm.slane %v1149, 3
        %v1155 = vperm.slane %v1149, 4
        %v1156 = vperm.slane %v1149, 5
        %v1259 = vunpack.c.l.b16 %v1053
        %v1260 = vunpack.c.h.b16 %v1053
        %v1261 = vunpack.c.l.b16 %v1054
        %v1262 = vunpack.c.h.b16 %v1054
        %v1263 = vunpack.c.l.b16 %v1055
        %v1264 = vunpack.c.h.b16 %v1055
        %v1265 = vunpack.c.l.b16 %v1056
        %v1266 = vunpack.c.h.b16 %v1056
        %v1267 = vunpack.c.l.b16 %v1057
        %v1268 = vunpack.c.h.b16 %v1057
        %v1269 = vunpack.c.l.b16 %v1058
        %v1270 = vunpack.c.h.b16 %v1058
        %v1271 = vunpack.c.l.b16 %v1059
        %v1272 = vunpack.c.h.b16 %v1059
        %v1273 = vunpack.c.l.b16 %v1060
        %v1274 = vunpack.c.h.b16 %v1060
        %v1275 = vunpack.c.l.b16 %v1061
        %v1276 = vunpack.c.h.b16 %v1061
        %v1277 = vunpack.c.l.b16 %v1062
        %v1278 = vunpack.c.h.b16 %v1062
        %v1279 = vunpack.c.l.b16 %v1063
        %v1280 = vunpack.c.h.b16 %v1063
        %v1281 = vunpack.c.l.b16 %v1064
        %v1282 = vunpack.c.h.b16 %v1064
        %v1283 = vunpack.c.l.b16 %v1065
        %v1284 = vunpack.c.h.b16 %v1065
        %v1285 = vunpack.c.l.b16 %v1066
        %v1286 = vunpack.c.h.b16 %v1066
        %v1287 = vunpack.c.l.b16 %v1067
        %v1288 = vunpack.c.h.b16 %v1067
        %v1289 = vunpack.c.l.b16 %v1068
        %v1290 = vunpack.c.h.b16 %v1068
        %v1291 = vunpack.c.l.b16 %v1069
        %v1292 = vunpack.c.h.b16 %v1069
        %v1293 = vunpack.c.l.b16 %v1070
        %v1294 = vunpack.c.h.b16 %v1070
        %v1295 = vunpack.c.l.b16 %v1071
        %v1296 = vunpack.c.h.b16 %v1071
        %v1297 = vunpack.c.l.b16 %v1072
        %v1298 = vunpack.c.h.b16 %v1072
        %v1299 = vunpack.c.l.b16 %v1073
        %v1300 = vunpack.c.h.b16 %v1073
        %v1301 = vunpack.c.l.b16 %v1074
        %v1302 = vunpack.c.h.b16 %v1074
        %v1303 = vunpack.c.l.b16 %v1075
        %v1304 = vunpack.c.h.b16 %v1075
        %v1305 = vunpack.c.l.b16 %v1076
        %v1306 = vunpack.c.h.b16 %v1076
        %v1307 = vunpack.c.l.b16 %v1077
        %v1308 = vunpack.c.h.b16 %v1077
        %v1309 = vunpack.c.l.b16 %v1078
        %v1310 = vunpack.c.h.b16 %v1078
        %v1311 = vunpack.c.l.b16 %v1079
        %v1312 = vunpack.c.h.b16 %v1079
        %v1313 = vunpack.c.l.b16 %v1080
        %v1314 = vunpack.c.h.b16 %v1080
        %v1315 = vunpack.c.l.b16 %v1081
        %v1316 = vunpack.c.h.b16 %v1081
        %v1317 = vunpack.c.l.b16 %v1082
        %v1318 = vunpack.c.h.b16 %v1082
        %v1319 = vunpack.c.l.b16 %v1083
        %v1320 = vunpack.c.h.b16 %v1083
        %v1321 = vunpack.c.l.b16 %v1084
        %v1322 = vunpack.c.h.b16 %v1084
        %v1323 = vunpack.c.l.b16 %v1085
        %v1324 = vunpack.c.h.b16 %v1085
        %v1325 = vunpack.c.l.b16 %v1086
        %v1326 = vunpack.c.h.b16 %v1086
        %v1327 = vunpack.c.l.b16 %v1087
        %v1328 = vunpack.c.h.b16 %v1087
        %v1329 = vunpack.c.l.b16 %v1088
        %v1330 = vunpack.c.h.b16 %v1088
        %v1331 = vunpack.c.l.b16 %v1089
        %v1332 = vunpack.c.h.b16 %v1089
        %v1333 = vunpack.c.l.b16 %v1090
        %v1334 = vunpack.c.h.b16 %v1090
        %v1335 = vunpack.c.l.b16 %v1091
        %v1336 = vunpack.c.h.b16 %v1091
        %v1337 = vunpack.c.l.b16 %v1092
        %v1338 = vunpack.c.h.b16 %v1092
        %v1339 = vunpack.c.l.b16 %v1093
        %v1340 = vunpack.c.h.b16 %v1093
        %v1341 = vunpack.c.l.b16 %v1094
        %v1342 = vunpack.c.h.b16 %v1094
        %v1343 = vunpack.c.l.b16 %v1095
        %v1344 = vunpack.c.h.b16 %v1095
        %v1345 = vunpack.c.l.b16 %v1096
        %v1346 = vunpack.c.h.b16 %v1096
        %v1347 = vunpack.c.l.b16 %v1097
        %v1348 = vunpack.c.h.b16 %v1097
        %v1349 = vunpack.c.l.b16 %v1098
        %v1350 = vunpack.c.h.b16 %v1098
        %v1351 = vunpack.c.l.b16 %v1099
        %v1352 = vunpack.c.h.b16 %v1099
        %v1353 = vunpack.c.l.b16 %v1100
        %v1354 = vunpack.c.h.b16 %v1100
        %v1355 = vunpack.c.l.b16 %v1101
        %v1356 = vunpack.c.h.b16 %v1101
        %v1357 = vunpack.c.l.b16 %v1102
        %v1358 = vunpack.c.h.b16 %v1102
        %v1359 = vunpack.c.l.b16 %v1103
        %v1360 = vunpack.c.h.b16 %v1103
        %v1361 = vunpack.c.l.b16 %v1104
        %v1362 = vunpack.c.h.b16 %v1104
        %v1363 = vunpack.c.l.b16 %v1105
        %v1364 = vunpack.c.h.b16 %v1105
        %v1365 = vunpack.c.l.b16 %v1106
        %v1366 = vunpack.c.h.b16 %v1106
        %v1367 = vunpack.c.l.b16 %v1107
        %v1368 = vunpack.c.h.b16 %v1107
        %v1369 = vunpack.c.l.b16 %v1108
        %v1370 = vunpack.c.h.b16 %v1108
        %v1371 = vunpack.c.l.b16 %v1109
        %v1372 = vunpack.c.h.b16 %v1109
        %v1373 = vunpack.c.l.b16 %v1110
        %v1374 = vunpack.c.h.b16 %v1110
        %v1375 = vunpack.c.l.b16 %v1111
        %v1376 = vunpack.c.h.b16 %v1111
        %v1377 = vunpack.c.l.b16 %v1112
        %v1378 = vunpack.c.h.b16 %v1112
        %v1379 = vunpack.c.l.b16 %v1113
        %v1380 = vunpack.c.h.b16 %v1113
        %v1381 = vunpack.c.l.b16 %v1114
        %v1382 = vunpack.c.h.b16 %v1114
        %v1383 = vunpack.c.l.b16 %v1115
        %v1384 = vunpack.c.h.b16 %v1115
        %v1385 = vunpack.c.l.b16 %v1116
        %v1386 = vunpack.c.h.b16 %v1116
        %v1387 = vunpack.c.l.b16 %v1117
        %v1388 = vunpack.c.h.b16 %v1117
        %v1389 = vunpack.c.l.b16 %v1118
        %v1390 = vunpack.c.h.b16 %v1118
        %v1391 = vunpack.c.l.b16 %v1119
        %v1392 = vunpack.c.h.b16 %v1119
        %v1393 = vunpack.c.l.b16 %v1120
        %v1394 = vunpack.c.h.b16 %v1120
        %v1395 = vunpack.c.l.b16 %v1121
        %v1396 = vunpack.c.h.b16 %v1121
        %v1397 = vunpack.c.l.b16 %v1122
        %v1398 = vunpack.c.h.b16 %v1122
        %v1399 = vunpack.c.l.b16 %v1123
        %v1400 = vunpack.c.h.b16 %v1123
        %v1401 = vunpack.c.l.b16 %v1124
        %v1402 = vunpack.c.h.b16 %v1124
        %v1403 = vunpack.c.l.b16 %v1125
        %v1404 = vunpack.c.h.b16 %v1125
        %v1405 = vunpack.c.l.b16 %v1126
        %v1406 = vunpack.c.h.b16 %v1126
        %v1407 = vunpack.c.l.b16 %v1127
        %v1408 = vunpack.c.h.b16 %v1127
        %v1409 = vunpack.c.l.b16 %v1128
        %v1410 = vunpack.c.h.b16 %v1128
        %v1411 = vunpack.c.l.b16 %v1129
        %v1412 = vunpack.c.h.b16 %v1129
        %v1413 = vunpack.c.l.b16 %v1130
        %v1414 = vunpack.c.h.b16 %v1130
        %v1415 = vunpack.c.l.b16 %v1131
        %v1416 = vunpack.c.h.b16 %v1131
        %v1417 = vunpack.c.l.b16 %v1132
        %v1418 = vunpack.c.h.b16 %v1132
        %v1419 = vunpack.c.l.b16 %v1133
        %v1420 = vunpack.c.h.b16 %v1133
        %v1421 = vunpack.c.l.b16 %v1134
        %v1422 = vunpack.c.h.b16 %v1134
        %v1423 = vunpack.c.l.b16 %v1135
        %v1424 = vunpack.c.h.b16 %v1135
        %v1425 = vunpack.c.l.b16 %v1136
        %v1426 = vunpack.c.h.b16 %v1136
        %v1427 = vunpack.c.l.b16 %v1137
        %v1428 = vunpack.c.h.b16 %v1137
        %v1429 = vunpack.c.l.b16 %v1138
        %v1430 = vunpack.c.h.b16 %v1138
        %v1431 = vunpack.c.l.b16 %v1139
        %v1432 = vunpack.c.h.b16 %v1139
        %v1433 = vunpack.c.l.b16 %v1140
        %v1434 = vunpack.c.h.b16 %v1140
        %v1435 = vunpack.c.l.b16 %v1141
        %v1436 = vunpack.c.h.b16 %v1141
        %v1437 = vunpack.c.l.b16 %v1142
        %v1438 = vunpack.c.h.b16 %v1142
        %v1439 = vunpack.c.l.b16 %v1143
        %v1440 = vunpack.c.h.b16 %v1143
        %v1441 = vunpack.c.l.b16 %v1144
        %v1442 = vunpack.c.h.b16 %v1144
        %v1443 = vunpack.c.l.b16 %v1145
        %v1444 = vunpack.c.h.b16 %v1145
        %v1445 = vunpack.c.l.b16 %v1146
        %v1446 = vunpack.c.h.b16 %v1146
        %v1447 = vunpack.c.l.b16 %v1147
        %v1448 = vunpack.c.h.b16 %v1147
        %v1449 = vunpack.c.l.b16 %v1148
        %v1450 = vunpack.c.h.b16 %v1148
        %v1451 = vpack.c.b16 %v1265, %v1259
        %v1452 = vpack.c.b16 %v1266, %v1260
        %v1453 = vpack.c.b16 %v1267, %v1261
        %v1454 = vpack.c.b16 %v1268, %v1262
        %v1455 = vpack.c.b16 %v1269, %v1263
        %v1456 = vpack.c.b16 %v1270, %v1264
        %v1457 = vpack.c.b16 %v1277, %v1271
        %v1458 = vpack.c.b16 %v1278, %v1272
        %v1459 = vpack.c.b16 %v1279, %v1273
        %v1460 = vpack.c.b16 %v1280, %v1274
        %v1461 = vpack.c.b16 %v1281, %v1275
        %v1462 = vpack.c.b16 %v1282, %v1276
        %v1463 = vpack.c.b16 %v1289, %v1283
        %v1464 = vpack.c.b16 %v1290, %v1284
        %v1465 = vpack.c.b16 %v1291, %v1285
        %v1466 = vpack.c.b16 %v1292, %v1286
        %v1467 = vpack.c.b16 %v1293, %v1287
        %v1468 = vpack.c.b16 %v1294, %v1288
        %v1469 = vpack.c.b16 %v1301, %v1295
        %v1470 = vpack.c.b16 %v1302, %v1296
        %v1471 = vpack.c.b16 %v1303, %v1297
        %v1472 = vpack.c.b16 %v1304, %v1298
        %v1473 = vpack.c.b16 %v1305, %v1299
        %v1474 = vpack.c.b16 %v1306, %v1300
        %v1475 = vpack.c.b16 %v1313, %v1307
        %v1476 = vpack.c.b16 %v1314, %v1308
        %v1477 = vpack.c.b16 %v1315, %v1309
        %v1478 = vpack.c.b16 %v1316, %v1310
        %v1479 = vpack.c.b16 %v1317, %v1311
        %v1480 = vpack.c.b16 %v1318, %v1312
        %v1481 = vpack.c.b16 %v1325, %v1319
        %v1482 = vpack.c.b16 %v1326, %v1320
        %v1483 = vpack.c.b16 %v1327, %v1321
        %v1484 = vpack.c.b16 %v1328, %v1322
        %v1485 = vpack.c.b16 %v1329, %v1323
        %v1486 = vpack.c.b16 %v1330, %v1324
        %v1487 = vpack.c.b16 %v1337, %v1331
        %v1488 = vpack.c.b16 %v1338, %v1332
        %v1489 = vpack.c.b16 %v1339, %v1333
        %v1490 = vpack.c.b16 %v1340, %v1334
        %v1491 = vpack.c.b16 %v1341, %v1335
        %v1492 = vpack.c.b16 %v1342, %v1336
        %v1493 = vpack.c.b16 %v1349, %v1343
        %v1494 = vpack.c.b16 %v1350, %v1344
        %v1495 = vpack.c.b16 %v1351, %v1345
        %v1496 = vpack.c.b16 %v1352, %v1346
        %v1497 = vpack.c.b16 %v1353, %v1347
        %v1498 = vpack.c.b16 %v1354, %v1348
        %v1499 = vpack.c.b16 %v1361, %v1355
        %v1500 = vpack.c.b16 %v1362, %v1356
        %v1501 = vpack.c.b16 %v1363, %v1357
        %v1502 = vpack.c.b16 %v1364, %v1358
        %v1503 = vpack.c.b16 %v1365, %v1359
        %v1504 = vpack.c.b16 %v1366, %v1360
        %v1505 = vpack.c.b16 %v1373, %v1367
        %v1506 = vpack.c.b16 %v1374, %v1368
        %v1507 = vpack.c.b16 %v1375, %v1369
        %v1508 = vpack.c.b16 %v1376, %v1370
        %v1509 = vpack.c.b16 %v1377, %v1371
        %v1510 = vpack.c.b16 %v1378, %v1372
        %v1511 = vpack.c.b16 %v1385, %v1379
        %v1512 = vpack.c.b16 %v1386, %v1380
        %v1513 = vpack.c.b16 %v1387, %v1381
        %v1514 = vpack.c.b16 %v1388, %v1382
        %v1515 = vpack.c.b16 %v1389, %v1383
        %v1516 = vpack.c.b16 %v1390, %v1384
        %v1517 = vpack.c.b16 %v1397, %v1391
        %v1518 = vpack.c.b16 %v1398, %v1392
        %v1519 = vpack.c.b16 %v1399, %v1393
        %v1520 = vpack.c.b16 %v1400, %v1394
        %v1521 = vpack.c.b16 %v1401, %v1395
        %v1522 = vpack.c.b16 %v1402, %v1396
        %v1523 = vpack.c.b16 %v1409, %v1403
        %v1524 = vpack.c.b16 %v1410, %v1404
        %v1525 = vpack.c.b16 %v1411, %v1405
        %v1526 = vpack.c.b16 %v1412, %v1406
        %v1527 = vpack.c.b16 %v1413, %v1407
        %v1528 = vpack.c.b16 %v1414, %v1408
        %v1529 = vpack.c.b16 %v1421, %v1415
        %v1530 = vpack.c.b16 %v1422, %v1416
        %v1531 = vpack.c.b16 %v1423, %v1417
        %v1532 = vpack.c.b16 %v1424, %v1418
        %v1533 = vpack.c.b16 %v1425, %v1419
        %v1534 = vpack.c.b16 %v1426, %v1420
        %v1535 = vpack.c.b16 %v1433, %v1427
        %v1536 = vpack.c.b16 %v1434, %v1428
        %v1537 = vpack.c.b16 %v1435, %v1429
        %v1538 = vpack.c.b16 %v1436, %v1430
        %v1539 = vpack.c.b16 %v1437, %v1431
        %v1540 = vpack.c.b16 %v1438, %v1432
        %v1541 = vpack.c.b16 %v1445, %v1439
        %v1542 = vpack.c.b16 %v1446, %v1440
        %v1543 = vpack.c.b16 %v1447, %v1441
        %v1544 = vpack.c.b16 %v1448, %v1442
        %v1545 = vpack.c.b16 %v1449, %v1443
        %v1546 = vpack.c.b16 %v1450, %v1444
        %1643 = vmatpush.bf16.msra.mxu0 %v1493
        %1644 = vmatpush.bf16.msra.mxu0 %v1487
        %1645 = vmatpush.bf16.msra.mxu0 %v1481
        %1646 = vmatpush.bf16.msra.mxu0 %v1475
        %1647 = vmatpush.bf16.msra.mxu0 %v1469
        %1648 = vmatpush.bf16.msra.mxu0 %v1463
        %1649 = vmatpush.bf16.msra.mxu0 %v1457
        %1650 = vmatpush.bf16.msra.mxu0 %v1451
        %1651 = vmatmul.bf16.gmra.mxu0 %v1051
        %v1652 = vpop.f32.mrf.mxu0
        %v1653 = vadd.f32 %v1151, %v1652
        %v1654 = vpop.f32.mrf.mxu0
        %v1655 = vadd.f32 %v1151, %v1654
        %1656 = vdwg.mxu0
        %1657 = vmatpush.bf16.msra.mxu0 %v1541
        %1658 = vmatpush.bf16.msra.mxu0 %v1535
        %1659 = vmatpush.bf16.msra.mxu0 %v1529
        %1660 = vmatpush.bf16.msra.mxu0 %v1523
        %1661 = vmatpush.bf16.msra.mxu0 %v1517
        %1662 = vmatpush.bf16.msra.mxu0 %v1511
        %1663 = vmatpush.bf16.msra.mxu0 %v1505
        %1664 = vmatpush.bf16.msra.mxu0 %v1499
        %1665 = vmatmul.bf16.gmra.mxu0 %v1052
        %v1666 = vpop.f32.mrf.mxu0
        %v1667 = vadd.f32 %v1653, %v1666
        %v1668 = vpop.f32.mrf.mxu0
        %v1669 = vadd.f32 %v1655, %v1668
        %1670 = vdwg.mxu0
        %1671 = vmatpush.bf16.msra.mxu0 %v1494
        %1672 = vmatpush.bf16.msra.mxu0 %v1488
        %1673 = vmatpush.bf16.msra.mxu0 %v1482
        %1674 = vmatpush.bf16.msra.mxu0 %v1476
        %1675 = vmatpush.bf16.msra.mxu0 %v1470
        %1676 = vmatpush.bf16.msra.mxu0 %v1464
        %1677 = vmatpush.bf16.msra.mxu0 %v1458
        %1678 = vmatpush.bf16.msra.mxu0 %v1452
        %1679 = vmatmul.bf16.gmra.mxu0 %v1051
        %v1680 = vpop.f32.mrf.mxu0
        %v1681 = vadd.f32 %v1152, %v1680
        %v1682 = vpop.f32.mrf.mxu0
        %v1683 = vadd.f32 %v1152, %v1682
        %1684 = vdwg.mxu0
        %1685 = vmatpush.bf16.msra.mxu0 %v1542
        %1686 = vmatpush.bf16.msra.mxu0 %v1536
        %1687 = vmatpush.bf16.msra.mxu0 %v1530
        %1688 = vmatpush.bf16.msra.mxu0 %v1524
        %1689 = vmatpush.bf16.msra.mxu0 %v1518
        %1690 = vmatpush.bf16.msra.mxu0 %v1512
        %1691 = vmatpush.bf16.msra.mxu0 %v1506
        %1692 = vmatpush.bf16.msra.mxu0 %v1500
        %1693 = vmatmul.bf16.gmra.mxu0 %v1052
        %v1694 = vpop.f32.mrf.mxu0
        %v1695 = vadd.f32 %v1681, %v1694
        %v1696 = vpop.f32.mrf.mxu0
        %v1697 = vadd.f32 %v1683, %v1696
        %1698 = vdwg.mxu0
        %1699 = vmatpush.bf16.msra.mxu0 %v1495
        %1700 = vmatpush.bf16.msra.mxu0 %v1489
        %1701 = vmatpush.bf16.msra.mxu0 %v1483
        %1702 = vmatpush.bf16.msra.mxu0 %v1477
        %1703 = vmatpush.bf16.msra.mxu0 %v1471
        %1704 = vmatpush.bf16.msra.mxu0 %v1465
        %1705 = vmatpush.bf16.msra.mxu0 %v1459
        %1706 = vmatpush.bf16.msra.mxu0 %v1453
        %1707 = vmatmul.bf16.gmra.mxu0 %v1051
        %v1708 = vpop.f32.mrf.mxu0
        %v1709 = vadd.f32 %v1153, %v1708
        %v1710 = vpop.f32.mrf.mxu0
        %v1711 = vadd.f32 %v1153, %v1710
        %1712 = vdwg.mxu0
        %1713 = vmatpush.bf16.msra.mxu0 %v1543
        %1714 = vmatpush.bf16.msra.mxu0 %v1537
        %1715 = vmatpush.bf16.msra.mxu0 %v1531
        %1716 = vmatpush.bf16.msra.mxu0 %v1525
        %1717 = vmatpush.bf16.msra.mxu0 %v1519
        %1718 = vmatpush.bf16.msra.mxu0 %v1513
        %1719 = vmatpush.bf16.msra.mxu0 %v1507
        %1720 = vmatpush.bf16.msra.mxu0 %v1501
        %1721 = vmatmul.bf16.gmra.mxu0 %v1052
        %v1722 = vpop.f32.mrf.mxu0
        %v1723 = vadd.f32 %v1709, %v1722
        %v1724 = vpop.f32.mrf.mxu0
        %v1725 = vadd.f32 %v1711, %v1724
        %1726 = vdwg.mxu0
        %1727 = vmatpush.bf16.msra.mxu0 %v1496
        %1728 = vmatpush.bf16.msra.mxu0 %v1490
        %1729 = vmatpush.bf16.msra.mxu0 %v1484
        %1730 = vmatpush.bf16.msra.mxu0 %v1478
        %1731 = vmatpush.bf16.msra.mxu0 %v1472
        %1732 = vmatpush.bf16.msra.mxu0 %v1466
        %1733 = vmatpush.bf16.msra.mxu0 %v1460
        %1734 = vmatpush.bf16.msra.mxu0 %v1454
        %1735 = vmatmul.bf16.gmra.mxu0 %v1051
        %v1736 = vpop.f32.mrf.mxu0
        %v1737 = vadd.f32 %v1154, %v1736
        %v1738 = vpop.f32.mrf.mxu0
        %v1739 = vadd.f32 %v1154, %v1738
        %1740 = vdwg.mxu0
        %1741 = vmatpush.bf16.msra.mxu0 %v1544
        %1742 = vmatpush.bf16.msra.mxu0 %v1538
        %1743 = vmatpush.bf16.msra.mxu0 %v1532
        %1744 = vmatpush.bf16.msra.mxu0 %v1526
        %1745 = vmatpush.bf16.msra.mxu0 %v1520
        %1746 = vmatpush.bf16.msra.mxu0 %v1514
        %1747 = vmatpush.bf16.msra.mxu0 %v1508
        %1748 = vmatpush.bf16.msra.mxu0 %v1502
        %1749 = vmatmul.bf16.gmra.mxu0 %v1052
        %v1750 = vpop.f32.mrf.mxu0
        %v1751 = vadd.f32 %v1737, %v1750
        %v1752 = vpop.f32.mrf.mxu0
        %v1753 = vadd.f32 %v1739, %v1752
        %1754 = vdwg.mxu0
        %1755 = vmatpush.bf16.msra.mxu0 %v1497
        %1756 = vmatpush.bf16.msra.mxu0 %v1491
        %1757 = vmatpush.bf16.msra.mxu0 %v1485
        %1758 = vmatpush.bf16.msra.mxu0 %v1479
        %1759 = vmatpush.bf16.msra.mxu0 %v1473
        %1760 = vmatpush.bf16.msra.mxu0 %v1467
        %1761 = vmatpush.bf16.msra.mxu0 %v1461
        %1762 = vmatpush.bf16.msra.mxu0 %v1455
        %1763 = vmatmul.bf16.gmra.mxu0 %v1051
        %v1764 = vpop.f32.mrf.mxu0
        %v1765 = vadd.f32 %v1155, %v1764
        %v1766 = vpop.f32.mrf.mxu0
        %v1767 = vadd.f32 %v1155, %v1766
        %1768 = vdwg.mxu0
        %1769 = vmatpush.bf16.msra.mxu0 %v1545
        %1770 = vmatpush.bf16.msra.mxu0 %v1539
        %1771 = vmatpush.bf16.msra.mxu0 %v1533
        %1772 = vmatpush.bf16.msra.mxu0 %v1527
        %1773 = vmatpush.bf16.msra.mxu0 %v1521
        %1774 = vmatpush.bf16.msra.mxu0 %v1515
        %1775 = vmatpush.bf16.msra.mxu0 %v1509
        %1776 = vmatpush.bf16.msra.mxu0 %v1503
        %1777 = vmatmul.bf16.gmra.mxu0 %v1052
        %v1778 = vpop.f32.mrf.mxu0
        %v1779 = vadd.f32 %v1765, %v1778
        %v1780 = vpop.f32.mrf.mxu0
        %v1781 = vadd.f32 %v1767, %v1780
        %1782 = vdwg.mxu0
        %1783 = vmatpush.bf16.msra.mxu0 %v1498
        %1784 = vmatpush.bf16.msra.mxu0 %v1492
        %1785 = vmatpush.bf16.msra.mxu0 %v1486
        %1786 = vmatpush.bf16.msra.mxu0 %v1480
        %1787 = vmatpush.bf16.msra.mxu0 %v1474
        %1788 = vmatpush.bf16.msra.mxu0 %v1468
        %1789 = vmatpush.bf16.msra.mxu0 %v1462
        %1790 = vmatpush.bf16.msra.mxu0 %v1456
        %1791 = vmatmul.bf16.gmra.mxu0 %v1051
        %v1792 = vpop.f32.mrf.mxu0
        %v1793 = vadd.f32 %v1156, %v1792
        %v1794 = vpop.f32.mrf.mxu0
        %v1795 = vadd.f32 %v1156, %v1794
        %1796 = vdwg.mxu0
        %1797 = vmatpush.bf16.msra.mxu0 %v1546
        %1798 = vmatpush.bf16.msra.mxu0 %v1540
        %1799 = vmatpush.bf16.msra.mxu0 %v1534
        %1800 = vmatpush.bf16.msra.mxu0 %v1528
        %1801 = vmatpush.bf16.msra.mxu0 %v1522
        %1802 = vmatpush.bf16.msra.mxu0 %v1516
        %1803 = vmatpush.bf16.msra.mxu0 %v1510
        %1804 = vmatpush.bf16.msra.mxu0 %v1504
        %1805 = vmatmul.bf16.gmra.mxu0 %v1052
        %v1806 = vpop.f32.mrf.mxu0
        %v1807 = vadd.f32 %v1793, %v1806
        %v1808 = vpop.f32.mrf.mxu0
        %v1809 = vadd.f32 %v1795, %v1808
        %1810 = vdwg.mxu0
        %1811 = vst [vmem:[#allocation2] sm:$0xff] %v1667
        %1812 = vst [vmem:[#allocation2 + $0x8] sm:$0xff] %v1695
        %1813 = vst [vmem:[#allocation2 + $0x10] sm:$0xff] %v1723
        %1814 = vst [vmem:[#allocation2 + $0x18] sm:$0xff] %v1751
        %1815 = vst [vmem:[#allocation2 + $0x20] sm:$0xff] %v1779
        %1816 = vst [vmem:[#allocation2 + $0x28] sm:$0xff] %v1807
        %1817 = vst [vmem:[#allocation2 + $0x30] sm:$0xff] %v1669
        %1818 = vst [vmem:[#allocation2 + $0x38] sm:$0xff] %v1697
        %1819 = vst [vmem:[#allocation2 + $0x40] sm:$0xff] %v1725
        %1820 = vst [vmem:[#allocation2 + $0x48] sm:$0xff] %v1753
        %1821 = vst [vmem:[#allocation2 + $0x50] sm:$0xff] %v1781
        %1822 = vst [vmem:[#allocation2 + $0x58] sm:$0xff] %v1809
        %v1823 = vld [vmem:[#allocation2] sm:$0xff]
        %v1824 = vld [vmem:[#allocation2 + $0x30] sm:$0xff]
        %v1825 = vmul.f32 %v1823, 0.125
        %v1826 = vmul.f32 %v1824, 0.125
        %v1827 = vpack.c.bf16 %v1826, %v1825
        %v1828 = vld [vmem:[#allocation2 + $0x10] sm:$0xff]
        %v1829 = vld [vmem:[#allocation2 + $0x40] sm:$0xff]
        %v1830 = vpack.c.bf16 %v1829, %v1828
        %v1831 = vld [vmem:[#allocation2 + $0x20] sm:$0xff]
        %v1832 = vld [vmem:[#allocation2 + $0x50] sm:$0xff]
        %v1833 = vpack.c.bf16 %v1832, %v1831
        %vm1834 = vcmask 523264
        %v1836 = vsel %vm1834, %v1827, 0
        %v1839 = vsel %vm1834, %v1830, 0
        %1841 = vmatpush.bf16.xpose.msra.mxu0 0
        %1842 = vmatpush.bf16.xpose.msra.mxu0 0
        %1843 = vmatpush.bf16.xpose.msra.mxu0 0
        %1844 = vmatpush.bf16.xpose.msra.mxu0 0
        %1845 = vmatpush.bf16.xpose.msra.mxu0 0
        %1846 = vmatpush.bf16.xpose.msra.mxu0 0
        %1847 = vmatpush.bf16.xpose.msra.mxu0 0
        %1848 = vmatpush.bf16.xpose.msra.mxu0 %v1839
        %1849 = vmatmul.bf16.gmra.mxu0 %v1836
        %v1850 = vpop.f32.mrf.mxu0
        %v1851 = vadd.f32 0.0, %v1850
        %v1852 = vpop.f32.mrf.mxu0
        %v1853 = vadd.f32 0.0, %v1852
        %1854 = vdwg.mxu0
        %vm1855 = vcmask 130048
        %v1856 = vsel %vm1855, %v1851, -inf
        %1857 = vmax.xlane.f32.xlu0 %v1856
        %v1858 = vpop.xlane.xlu0 %1857
        %v1859 = vsel %vm1855, %v1853, -inf
        %1860 = vmax.xlane.f32.xlu0 %v1859
        %v1861 = vpop.xlane.xlu0 %1860
        %v1862 = vsub.f32 %v1851, %v1858
        %v1863 = vsub.f32 %v1853, %v1861
        %v1864 = vmul.f32 %v1862, 1.442695
        %v1865 = vpow.pop %v1864
        %v1866 = vmul.f32 %v1863, 1.442695
        %v1867 = vpow.pop %v1866
        %v1868 = vsel %vm1855, %v1865, 0.0
        %1869 = vadd.xlane.f32.xlu0 %v1868
        %v1870 = vpop.xlane.xlu0 %1869
        %v1871 = vsel %vm1855, %v1867, 0.0
        %1872 = vadd.xlane.f32.xlu0 %v1871
        %v1873 = vpop.xlane.xlu0 %1872
        %v1874 = vrcp.pop %v1870
        %v1875 = vrcp.pop %v1873
        %v1876 = vmul.f32 %v1865, %v1874
        %v1877 = vmul.f32 %v1867, %v1875
        %v1878 = vpack.c.bf16 %v1877, %v1876
        %v1880 = vsel %vm1855, %v1878, 0
        %1882 = vmatpush.bf16.msra.mxu0 0
        %1883 = vmatpush.bf16.msra.mxu0 0
        %1884 = vmatpush.bf16.msra.mxu0 0
        %1885 = vmatpush.bf16.msra.mxu0 0
        %1886 = vmatpush.bf16.msra.mxu0 0
        %1887 = vmatpush.bf16.msra.mxu0 0
        %1888 = vmatpush.bf16.msra.mxu0 0
        %1889 = vmatpush.bf16.msra.mxu0 %v1833
        %1890 = vmatmul.bf16.gmra.mxu0 %v1880
        %v1891 = vpop.f32.mrf.mxu0
        %v1892 = vadd.f32 0.0, %v1891
        %v1893 = vpop.f32.mrf.mxu0
        %v1894 = vadd.f32 0.0, %v1893
        %1895 = vdwg.mxu0
        %1896 = vst.msk [vmem:[#allocation3] sm:$0xff] %vm1834, %v1892
        %1897 = vst.msk [vmem:[#allocation3 + $0x10] sm:$0xff] %vm1834, %v1894
        %v1898 = vld [vmem:[#allocation2] sm:$0xff]
        %v1899 = vld [vmem:[#allocation2 + $0x30] sm:$0xff]
        %v1900 = vmul.f32 %v1898, 0.125
        %v1901 = vmul.f32 %v1899, 0.125
        %v1902 = vpack.c.bf16 %v1901, %v1900
        %v1903 = vld [vmem:[#allocation2 + $0x10] sm:$0xff]
        %v1904 = vld [vmem:[#allocation2 + $0x40] sm:$0xff]
        %v1905 = vpack.c.bf16 %v1904, %v1903
        %v1906 = vld [vmem:[#allocation2 + $0x20] sm:$0xff]
        %v1907 = vld [vmem:[#allocation2 + $0x50] sm:$0xff]
        %v1908 = vpack.c.bf16 %v1907, %v1906
        %1910 = vrot.lane.b32.xlu0 %v1902, 64
        %v1911 = vpop.permute.xlu0 %1910
        %1913 = vrot.lane.b32.xlu0 %v1905, 64
        %v1914 = vpop.permute.xlu0 %1913
        %v1916 = vsel %vm1834, %v1911, 0
        %v1919 = vsel %vm1834, %v1914, 0
        %1921 = vmatpush.bf16.xpose.msra.mxu0 0
        %1922 = vmatpush.bf16.xpose.msra.mxu0 0
        %1923 = vmatpush.bf16.xpose.msra.mxu0 0
        %1924 = vmatpush.bf16.xpose.msra.mxu0 0
        %1925 = vmatpush.bf16.xpose.msra.mxu0 0
        %1926 = vmatpush.bf16.xpose.msra.mxu0 0
        %1927 = vmatpush.bf16.xpose.msra.mxu0 0
        %1928 = vmatpush.bf16.xpose.msra.mxu0 %v1919
        %1929 = vmatmul.bf16.gmra.mxu0 %v1916
        %v1930 = vpop.f32.mrf.mxu0
        %v1931 = vadd.f32 0.0, %v1930
        %v1932 = vpop.f32.mrf.mxu0
        %v1933 = vadd.f32 0.0, %v1932
        %1934 = vdwg.mxu0
        %v1935 = vsel %vm1855, %v1931, -inf
        %1936 = vmax.xlane.f32.xlu0 %v1935
        %v1937 = vpop.xlane.xlu0 %1936
        %v1938 = vsel %vm1855, %v1933, -inf
        %1939 = vmax.xlane.f32.xlu0 %v1938
        %v1940 = vpop.xlane.xlu0 %1939
        %v1941 = vsub.f32 %v1931, %v1937
        %v1942 = vsub.f32 %v1933, %v1940
        %v1943 = vmul.f32 %v1941, 1.442695
        %v1944 = vpow.pop %v1943
        %v1945 = vmul.f32 %v1942, 1.442695
        %v1946 = vpow.pop %v1945
        %v1947 = vsel %vm1855, %v1944, 0.0
        %1948 = vadd.xlane.f32.xlu0 %v1947
        %v1949 = vpop.xlane.xlu0 %1948
        %v1950 = vsel %vm1855, %v1946, 0.0
        %1951 = vadd.xlane.f32.xlu0 %v1950
        %v1952 = vpop.xlane.xlu0 %1951
        %v1953 = vrcp.pop %v1949
        %v1954 = vrcp.pop %v1952
        %v1955 = vmul.f32 %v1944, %v1953
        %v1956 = vmul.f32 %v1946, %v1954
        %v1957 = vpack.c.bf16 %v1956, %v1955
        %1959 = vrot.lane.b32.xlu0 %v1908, 64
        %v1960 = vpop.permute.xlu0 %1959
        %v1963 = vsel %vm1855, %v1957, 0
        %1965 = vmatpush.bf16.msra.mxu0 0
        %1966 = vmatpush.bf16.msra.mxu0 0
        %1967 = vmatpush.bf16.msra.mxu0 0
        %1968 = vmatpush.bf16.msra.mxu0 0
        %1969 = vmatpush.bf16.msra.mxu0 0
        %1970 = vmatpush.bf16.msra.mxu0 0
        %1971 = vmatpush.bf16.msra.mxu0 0
        %1972 = vmatpush.bf16.msra.mxu0 %v1960
        %1973 = vmatmul.bf16.gmra.mxu0 %v1963
        %v1974 = vpop.f32.mrf.mxu0
        %v1975 = vadd.f32 0.0, %v1974
        %v1976 = vpop.f32.mrf.mxu0
        %v1977 = vadd.f32 0.0, %v1976
        %1978 = vdwg.mxu0
        %1981 = vrot.lane.b32.xlu0 %v1975, 64
        %v1982 = vpop.permute.xlu0 %1981
        %1983 = vrot.lane.b32.xlu0 %v1977, 64
        %v1984 = vpop.permute.xlu0 %1983
        %vm1987 = vcmask 1048064
        %1988 = vst.msk [vmem:[#allocation3] sm:$0xff] %vm1987, %v1982
        %1989 = vst.msk [vmem:[#allocation3 + $0x10] sm:$0xff] %vm1987, %v1984
        %v1990 = vld [vmem:[#allocation2 + $0x8] sm:$0xff]
        %v1991 = vld [vmem:[#allocation2 + $0x38] sm:$0xff]
        %v1992 = vmul.f32 %v1990, 0.125
        %v1993 = vmul.f32 %v1991, 0.125
        %v1994 = vpack.c.bf16 %v1993, %v1992
        %v1995 = vld [vmem:[#allocation2 + $0x18] sm:$0xff]
        %v1996 = vld [vmem:[#allocation2 + $0x48] sm:$0xff]
        %v1997 = vpack.c.bf16 %v1996, %v1995
        %v1998 = vld [vmem:[#allocation2 + $0x28] sm:$0xff]
        %v1999 = vld [vmem:[#allocation2 + $0x58] sm:$0xff]
        %v2000 = vpack.c.bf16 %v1999, %v1998
        %v2002 = vsel %vm1834, %v1994, 0
        %v2005 = vsel %vm1834, %v1997, 0
        %2007 = vmatpush.bf16.xpose.msra.mxu0 0
        %2008 = vmatpush.bf16.xpose.msra.mxu0 0
        %2009 = vmatpush.bf16.xpose.msra.mxu0 0
        %2010 = vmatpush.bf16.xpose.msra.mxu0 0
        %2011 = vmatpush.bf16.xpose.msra.mxu0 0
        %2012 = vmatpush.bf16.xpose.msra.mxu0 0
        %2013 = vmatpush.bf16.xpose.msra.mxu0 0
        %2014 = vmatpush.bf16.xpose.msra.mxu0 %v2005
        %2015 = vmatmul.bf16.gmra.mxu0 %v2002
        %v2016 = vpop.f32.mrf.mxu0
        %v2017 = vadd.f32 0.0, %v2016
        %v2018 = vpop.f32.mrf.mxu0
        %v2019 = vadd.f32 0.0, %v2018
        %2020 = vdwg.mxu0
        %v2021 = vsel %vm1855, %v2017, -inf
        %2022 = vmax.xlane.f32.xlu0 %v2021
        %v2023 = vpop.xlane.xlu0 %2022
        %v2024 = vsel %vm1855, %v2019, -inf
        %2025 = vmax.xlane.f32.xlu0 %v2024
        %v2026 = vpop.xlane.xlu0 %2025
        %v2027 = vsub.f32 %v2017, %v2023
        %v2028 = vsub.f32 %v2019, %v2026
        %v2029 = vmul.f32 %v2027, 1.442695
        %v2030 = vpow.pop %v2029
        %v2031 = vmul.f32 %v2028, 1.442695
        %v2032 = vpow.pop %v2031
        %v2033 = vsel %vm1855, %v2030, 0.0
        %2034 = vadd.xlane.f32.xlu0 %v2033
        %v2035 = vpop.xlane.xlu0 %2034
        %v2036 = vsel %vm1855, %v2032, 0.0
        %2037 = vadd.xlane.f32.xlu0 %v2036
        %v2038 = vpop.xlane.xlu0 %2037
        %v2039 = vrcp.pop %v2035
        %v2040 = vrcp.pop %v2038
        %v2041 = vmul.f32 %v2030, %v2039
        %v2042 = vmul.f32 %v2032, %v2040
        %v2043 = vpack.c.bf16 %v2042, %v2041
        %v2045 = vsel %vm1855, %v2043, 0
        %2047 = vmatpush.bf16.msra.mxu0 0
        %2048 = vmatpush.bf16.msra.mxu0 0
        %2049 = vmatpush.bf16.msra.mxu0 0
        %2050 = vmatpush.bf16.msra.mxu0 0
        %2051 = vmatpush.bf16.msra.mxu0 0
        %2052 = vmatpush.bf16.msra.mxu0 0
        %2053 = vmatpush.bf16.msra.mxu0 0
        %2054 = vmatpush.bf16.msra.mxu0 %v2000
        %2055 = vmatmul.bf16.gmra.mxu0 %v2045
        %v2056 = vpop.f32.mrf.mxu0
        %v2057 = vadd.f32 0.0, %v2056
        %v2058 = vpop.f32.mrf.mxu0
        %v2059 = vadd.f32 0.0, %v2058
        %2060 = vdwg.mxu0
        %2061 = vst.msk [vmem:[#allocation3 + $0x8] sm:$0xff] %vm1834, %v2057
        %2062 = vst.msk [vmem:[#allocation3 + $0x18] sm:$0xff] %vm1834, %v2059
        %v2063 = vld [vmem:[#allocation2 + $0x8] sm:$0xff]
        %v2064 = vld [vmem:[#allocation2 + $0x38] sm:$0xff]
        %v2065 = vmul.f32 %v2063, 0.125
        %v2066 = vmul.f32 %v2064, 0.125
        %v2067 = vpack.c.bf16 %v2066, %v2065
        %v2068 = vld [vmem:[#allocation2 + $0x18] sm:$0xff]
        %v2069 = vld [vmem:[#allocation2 + $0x48] sm:$0xff]
        %v2070 = vpack.c.bf16 %v2069, %v2068
        %v2071 = vld [vmem:[#allocation2 + $0x28] sm:$0xff]
        %v2072 = vld [vmem:[#allocation2 + $0x58] sm:$0xff]
        %v2073 = vpack.c.bf16 %v2072, %v2071
        %2075 = vrot.lane.b32.xlu0 %v2067, 64
        %v2076 = vpop.permute.xlu0 %2075
        %2078 = vrot.lane.b32.xlu0 %v2070, 64
        %v2079 = vpop.permute.xlu0 %2078
        %v2081 = vsel %vm1834, %v2076, 0
        %v2084 = vsel %vm1834, %v2079, 0
        %2086 = vmatpush.bf16.xpose.msra.mxu0 0
        %2087 = vmatpush.bf16.xpose.msra.mxu0 0
        %2088 = vmatpush.bf16.xpose.msra.mxu0 0
        %2089 = vmatpush.bf16.xpose.msra.mxu0 0
        %2090 = vmatpush.bf16.xpose.msra.mxu0 0
        %2091 = vmatpush.bf16.xpose.msra.mxu0 0
        %2092 = vmatpush.bf16.xpose.msra.mxu0 0
        %2093 = vmatpush.bf16.xpose.msra.mxu0 %v2084
        %2094 = vmatmul.bf16.gmra.mxu0 %v2081
        %v2095 = vpop.f32.mrf.mxu0
        %v2096 = vadd.f32 0.0, %v2095
        %v2097 = vpop.f32.mrf.mxu0
        %v2098 = vadd.f32 0.0, %v2097
        %2099 = vdwg.mxu0
        %v2100 = vsel %vm1855, %v2096, -inf
        %2101 = vmax.xlane.f32.xlu0 %v2100
        %v2102 = vpop.xlane.xlu0 %2101
        %v2103 = vsel %vm1855, %v2098, -inf
        %2104 = vmax.xlane.f32.xlu0 %v2103
        %v2105 = vpop.xlane.xlu0 %2104
        %v2106 = vsub.f32 %v2096, %v2102
        %v2107 = vsub.f32 %v2098, %v2105
        %v2108 = vmul.f32 %v2106, 1.442695
        %v2109 = vpow.pop %v2108
        %v2110 = vmul.f32 %v2107, 1.442695
        %v2111 = vpow.pop %v2110
        %v2112 = vsel %vm1855, %v2109, 0.0
        %2113 = vadd.xlane.f32.xlu0 %v2112
        %v2114 = vpop.xlane.xlu0 %2113
        %v2115 = vsel %vm1855, %v2111, 0.0
        %2116 = vadd.xlane.f32.xlu0 %v2115
        %v2117 = vpop.xlane.xlu0 %2116
        %v2118 = vrcp.pop %v2114
        %v2119 = vrcp.pop %v2117
        %v2120 = vmul.f32 %v2109, %v2118
        %v2121 = vmul.f32 %v2111, %v2119
        %v2122 = vpack.c.bf16 %v2121, %v2120
        %2124 = vrot.lane.b32.xlu0 %v2073, 64
        %v2125 = vpop.permute.xlu0 %2124
        %v2128 = vsel %vm1855, %v2122, 0
        %2130 = vmatpush.bf16.msra.mxu0 0
        %2131 = vmatpush.bf16.msra.mxu0 0
        %2132 = vmatpush.bf16.msra.mxu0 0
        %2133 = vmatpush.bf16.msra.mxu0 0
        %2134 = vmatpush.bf16.msra.mxu0 0
        %2135 = vmatpush.bf16.msra.mxu0 0
        %2136 = vmatpush.bf16.msra.mxu0 0
        %2137 = vmatpush.bf16.msra.mxu0 %v2125
        %2138 = vmatmul.bf16.gmra.mxu0 %v2128
        %v2139 = vpop.f32.mrf.mxu0
        %v2140 = vadd.f32 0.0, %v2139
        %v2141 = vpop.f32.mrf.mxu0
        %v2142 = vadd.f32 0.0, %v2141
        %2143 = vdwg.mxu0
        %2146 = vrot.lane.b32.xlu0 %v2140, 64
        %v2147 = vpop.permute.xlu0 %2146
        %2148 = vrot.lane.b32.xlu0 %v2142, 64
        %v2149 = vpop.permute.xlu0 %2148
        %2152 = vst.msk [vmem:[#allocation3 + $0x8] sm:$0xff] %vm1987, %v2147
        %2153 = vst.msk [vmem:[#allocation3 + $0x18] sm:$0xff] %vm1987, %v2149
        %v2154 = vld [vmem:[#allocation3] sm:$0xff]
        %v2155 = vld [vmem:[#allocation3 + $0x8] sm:$0xff]
        %v2156 = vld [vmem:[#allocation3 + $0x10] sm:$0xff]
        %v2157 = vld [vmem:[#allocation3 + $0x18] sm:$0xff]
        %v2158 = vpack.c.bf16 %v2156, %v2154
        %v2159 = vpack.c.bf16 %v2157, %v2155
        %v2160 = vld [vmem:[#allocation12] sm:$0xff]
        %v2161 = vld [vmem:[#allocation12 + $0x8] sm:$0xff]
        %v2162 = vld [vmem:[#allocation12 + $0x10] sm:$0xff]
        %v2163 = vld [vmem:[#allocation12 + $0x18] sm:$0xff]
        %v2164 = vld [vmem:[#allocation12 + $0x20] sm:$0xff]
        %v2165 = vld [vmem:[#allocation12 + $0x28] sm:$0xff]
        %v2166 = vld [vmem:[#allocation12 + $0x30] sm:$0xff]
        %v2167 = vld [vmem:[#allocation12 + $0x38] sm:$0xff]
        %v2168 = vld [vmem:[#allocation12 + $0x40] sm:$0xff]
        %v2169 = vld [vmem:[#allocation12 + $0x48] sm:$0xff]
        %v2170 = vld [vmem:[#allocation12 + $0x50] sm:$0xff]
        %v2171 = vld [vmem:[#allocation12 + $0x58] sm:$0xff]
        %v2172 = vld [vmem:[#allocation12 + $0x60] sm:$0xff]
        %v2173 = vld [vmem:[#allocation12 + $0x68] sm:$0xff]
        %v2174 = vld [vmem:[#allocation12 + $0x70] sm:$0xff]
        %v2175 = vld [vmem:[#allocation12 + $0x78] sm:$0xff]
        %v2176 = vld [vmem:[#allocation12 + $0x80] sm:$0xff]
        %v2177 = vld [vmem:[#allocation12 + $0x88] sm:$0xff]
        %v2178 = vld [vmem:[#allocation12 + $0x90] sm:$0xff]
        %v2179 = vld [vmem:[#allocation12 + $0x98] sm:$0xff]
        %v2180 = vld [vmem:[#allocation12 + $0xa0] sm:$0xff]
        %v2181 = vld [vmem:[#allocation12 + $0xa8] sm:$0xff]
        %v2182 = vld [vmem:[#allocation12 + $0xb0] sm:$0xff]
        %v2183 = vld [vmem:[#allocation12 + $0xb8] sm:$0xff]
        %v2184 = vld [vmem:[#allocation12 + $0xc0] sm:$0xff]
        %v2185 = vld [vmem:[#allocation12 + $0xc8] sm:$0xff]
        %v2186 = vld [vmem:[#allocation12 + $0xd0] sm:$0xff]
        %v2187 = vld [vmem:[#allocation12 + $0xd8] sm:$0xff]
        %v2188 = vld [vmem:[#allocation12 + $0xe0] sm:$0xff]
        %v2189 = vld [vmem:[#allocation12 + $0xe8] sm:$0xff]
        %v2190 = vld [vmem:[#allocation12 + $0xf0] sm:$0xff]
        %v2191 = vld [vmem:[#allocation12 + $0xf8] sm:$0xff]
        %v2192 = vld [vmem:[%s8] sm:$0x3]
        %v2194 = vperm.slane %v2192, 0
        %v2195 = vperm.slane %v2192, 1
        %v2230 = vunpack.c.l.b16 %v2160
        %v2231 = vunpack.c.h.b16 %v2160
        %v2232 = vunpack.c.l.b16 %v2161
        %v2233 = vunpack.c.h.b16 %v2161
        %v2234 = vunpack.c.l.b16 %v2162
        %v2235 = vunpack.c.h.b16 %v2162
        %v2236 = vunpack.c.l.b16 %v2163
        %v2237 = vunpack.c.h.b16 %v2163
        %v2238 = vunpack.c.l.b16 %v2164
        %v2239 = vunpack.c.h.b16 %v2164
        %v2240 = vunpack.c.l.b16 %v2165
        %v2241 = vunpack.c.h.b16 %v2165
        %v2242 = vunpack.c.l.b16 %v2166
        %v2243 = vunpack.c.h.b16 %v2166
        %v2244 = vunpack.c.l.b16 %v2167
        %v2245 = vunpack.c.h.b16 %v2167
        %v2246 = vunpack.c.l.b16 %v2168
        %v2247 = vunpack.c.h.b16 %v2168
        %v2248 = vunpack.c.l.b16 %v2169
        %v2249 = vunpack.c.h.b16 %v2169
        %v2250 = vunpack.c.l.b16 %v2170
        %v2251 = vunpack.c.h.b16 %v2170
        %v2252 = vunpack.c.l.b16 %v2171
        %v2253 = vunpack.c.h.b16 %v2171
        %v2254 = vunpack.c.l.b16 %v2172
        %v2255 = vunpack.c.h.b16 %v2172
        %v2256 = vunpack.c.l.b16 %v2173
        %v2257 = vunpack.c.h.b16 %v2173
        %v2258 = vunpack.c.l.b16 %v2174
        %v2259 = vunpack.c.h.b16 %v2174
        %v2260 = vunpack.c.l.b16 %v2175
        %v2261 = vunpack.c.h.b16 %v2175
        %v2262 = vunpack.c.l.b16 %v2176
        %v2263 = vunpack.c.h.b16 %v2176
        %v2264 = vunpack.c.l.b16 %v2177
        %v2265 = vunpack.c.h.b16 %v2177
        %v2266 = vunpack.c.l.b16 %v2178
        %v2267 = vunpack.c.h.b16 %v2178
        %v2268 = vunpack.c.l.b16 %v2179
        %v2269 = vunpack.c.h.b16 %v2179
        %v2270 = vunpack.c.l.b16 %v2180
        %v2271 = vunpack.c.h.b16 %v2180
        %v2272 = vunpack.c.l.b16 %v2181
        %v2273 = vunpack.c.h.b16 %v2181
        %v2274 = vunpack.c.l.b16 %v2182
        %v2275 = vunpack.c.h.b16 %v2182
        %v2276 = vunpack.c.l.b16 %v2183
        %v2277 = vunpack.c.h.b16 %v2183
        %v2278 = vunpack.c.l.b16 %v2184
        %v2279 = vunpack.c.h.b16 %v2184
        %v2280 = vunpack.c.l.b16 %v2185
        %v2281 = vunpack.c.h.b16 %v2185
        %v2282 = vunpack.c.l.b16 %v2186
        %v2283 = vunpack.c.h.b16 %v2186
        %v2284 = vunpack.c.l.b16 %v2187
        %v2285 = vunpack.c.h.b16 %v2187
        %v2286 = vunpack.c.l.b16 %v2188
        %v2287 = vunpack.c.h.b16 %v2188
        %v2288 = vunpack.c.l.b16 %v2189
        %v2289 = vunpack.c.h.b16 %v2189
        %v2290 = vunpack.c.l.b16 %v2190
        %v2291 = vunpack.c.h.b16 %v2190
        %v2292 = vunpack.c.l.b16 %v2191
        %v2293 = vunpack.c.h.b16 %v2191
        %v2294 = vpack.c.b16 %v2232, %v2230
        %v2295 = vpack.c.b16 %v2233, %v2231
        %v2296 = vpack.c.b16 %v2236, %v2234
        %v2297 = vpack.c.b16 %v2237, %v2235
        %v2298 = vpack.c.b16 %v2240, %v2238
        %v2299 = vpack.c.b16 %v2241, %v2239
        %v2300 = vpack.c.b16 %v2244, %v2242
        %v2301 = vpack.c.b16 %v2245, %v2243
        %v2302 = vpack.c.b16 %v2248, %v2246
        %v2303 = vpack.c.b16 %v2249, %v2247
        %v2304 = vpack.c.b16 %v2252, %v2250
        %v2305 = vpack.c.b16 %v2253, %v2251
        %v2306 = vpack.c.b16 %v2256, %v2254
        %v2307 = vpack.c.b16 %v2257, %v2255
        %v2308 = vpack.c.b16 %v2260, %v2258
        %v2309 = vpack.c.b16 %v2261, %v2259
        %v2310 = vpack.c.b16 %v2264, %v2262
        %v2311 = vpack.c.b16 %v2265, %v2263
        %v2312 = vpack.c.b16 %v2268, %v2266
        %v2313 = vpack.c.b16 %v2269, %v2267
        %v2314 = vpack.c.b16 %v2272, %v2270
        %v2315 = vpack.c.b16 %v2273, %v2271
        %v2316 = vpack.c.b16 %v2276, %v2274
        %v2317 = vpack.c.b16 %v2277, %v2275
        %v2318 = vpack.c.b16 %v2280, %v2278
        %v2319 = vpack.c.b16 %v2281, %v2279
        %v2320 = vpack.c.b16 %v2284, %v2282
        %v2321 = vpack.c.b16 %v2285, %v2283
        %v2322 = vpack.c.b16 %v2288, %v2286
        %v2323 = vpack.c.b16 %v2289, %v2287
        %v2324 = vpack.c.b16 %v2292, %v2290
        %v2325 = vpack.c.b16 %v2293, %v2291
        %2358 = vmatpush.bf16.msra.mxu0 %v2308
        %2359 = vmatpush.bf16.msra.mxu0 %v2306
        %2360 = vmatpush.bf16.msra.mxu0 %v2304
        %2361 = vmatpush.bf16.msra.mxu0 %v2302
        %2362 = vmatpush.bf16.msra.mxu0 %v2300
        %2363 = vmatpush.bf16.msra.mxu0 %v2298
        %2364 = vmatpush.bf16.msra.mxu0 %v2296
        %2365 = vmatpush.bf16.msra.mxu0 %v2294
        %2366 = vmatmul.bf16.gmra.mxu0 %v2158
        %v2367 = vpop.f32.mrf.mxu0
        %v2368 = vadd.f32 %v2194, %v2367
        %v2369 = vpop.f32.mrf.mxu0
        %v2370 = vadd.f32 %v2194, %v2369
        %2371 = vdwg.mxu0
        %2372 = vmatpush.bf16.msra.mxu0 %v2324
        %2373 = vmatpush.bf16.msra.mxu0 %v2322
        %2374 = vmatpush.bf16.msra.mxu0 %v2320
        %2375 = vmatpush.bf16.msra.mxu0 %v2318
        %2376 = vmatpush.bf16.msra.mxu0 %v2316
        %2377 = vmatpush.bf16.msra.mxu0 %v2314
        %2378 = vmatpush.bf16.msra.mxu0 %v2312
        %2379 = vmatpush.bf16.msra.mxu0 %v2310
        %2380 = vmatmul.bf16.gmra.mxu0 %v2159
        %v2381 = vpop.f32.mrf.mxu0
        %v2382 = vadd.f32 %v2368, %v2381
        %v2383 = vpop.f32.mrf.mxu0
        %v2384 = vadd.f32 %v2370, %v2383
        %2385 = vdwg.mxu0
        %2386 = vmatpush.bf16.msra.mxu0 %v2309
        %2387 = vmatpush.bf16.msra.mxu0 %v2307
        %2388 = vmatpush.bf16.msra.mxu0 %v2305
        %2389 = vmatpush.bf16.msra.mxu0 %v2303
        %2390 = vmatpush.bf16.msra.mxu0 %v2301
        %2391 = vmatpush.bf16.msra.mxu0 %v2299
        %2392 = vmatpush.bf16.msra.mxu0 %v2297
        %2393 = vmatpush.bf16.msra.mxu0 %v2295
        %2394 = vmatmul.bf16.gmra.mxu0 %v2158
        %v2395 = vpop.f32.mrf.mxu0
        %v2396 = vadd.f32 %v2195, %v2395
        %v2397 = vpop.f32.mrf.mxu0
        %v2398 = vadd.f32 %v2195, %v2397
        %2399 = vdwg.mxu0
        %2400 = vmatpush.bf16.msra.mxu0 %v2325
        %2401 = vmatpush.bf16.msra.mxu0 %v2323
        %2402 = vmatpush.bf16.msra.mxu0 %v2321
        %2403 = vmatpush.bf16.msra.mxu0 %v2319
        %2404 = vmatpush.bf16.msra.mxu0 %v2317
        %2405 = vmatpush.bf16.msra.mxu0 %v2315
        %2406 = vmatpush.bf16.msra.mxu0 %v2313
        %2407 = vmatpush.bf16.msra.mxu0 %v2311
        %2408 = vmatmul.bf16.gmra.mxu0 %v2159
        %v2409 = vpop.f32.mrf.mxu0
        %v2410 = vadd.f32 %v2396, %v2409
        %v2411 = vpop.f32.mrf.mxu0
        %v2412 = vadd.f32 %v2398, %v2411
        %2413 = vdwg.mxu0
        %v2414 = vadd.f32 %v1047, %v2382
        %v2415 = vadd.f32 %v1048, %v2410
        %v2416 = vadd.f32 %v1049, %v2384
        %v2417 = vadd.f32 %v1050, %v2412
        %v2418 = vld [vmem:[%s9] sm:$0x3]
        %v2419 = vld [vmem:[%s10] sm:$0x3]
        %v2420 = vadd.f32 %v2414, %v2415
        %2421 = vadd.xlane.f32.xlu0 %v2420
        %v2422 = vpop.xlane.xlu0 %2421
        %v2423 = vadd.f32 %v2416, %v2417
        %2424 = vadd.xlane.f32.xlu0 %v2423
        %v2425 = vpop.xlane.xlu0 %2424
        %v2426 = vmul.f32 %v2422, %v988
        %v2427 = vmul.f32 %v2425, %v988
        %v2428 = vsub.f32 %v2414, %v2426
        %v2429 = vsub.f32 %v2415, %v2426
        %v2430 = vsub.f32 %v2416, %v2427
        %v2431 = vsub.f32 %v2417, %v2427
        %v2432 = vmul.f32 %v2428, %v2428
        %v2433 = vmul.f32 %v2429, %v2429
        %v2434 = vmul.f32 %v2430, %v2430
        %v2435 = vmul.f32 %v2431, %v2431
        %v2436 = vadd.f32 %v2432, %v2433
        %2437 = vadd.xlane.f32.xlu0 %v2436
        %v2438 = vpop.xlane.xlu0 %2437
        %v2439 = vadd.f32 %v2434, %v2435
        %2440 = vadd.xlane.f32.xlu0 %v2439
        %v2441 = vpop.xlane.xlu0 %2440
        %v2442 = vmul.f32 %v2438, %v988
        %v2443 = vmul.f32 %v2441, %v988
        %v2444 = vadd.f32 %v2442, 1e-12
        %v2445 = vadd.f32 %v2443, 1e-12
        %v2446 = vrsqrt.pop %v2444
        %v2447 = vmul.f32 %v2446, %v2444
        %v2448 = vmul.f32 %v2447, %v2446
        %v2449 = vmul.f32 0.5, %v2448
        %v2450 = vsub.f32 1.5, %v2449
        %v2451 = vmul.f32 %v2446, %v2450
        %vm2452 = vweird.f32 %v2444
        %vm2453 = vweird.f32 %v2446
        %vm2454 = vmor %vm2452, %vm2453
        %v2455 = vsel %vm2454, %v2446, %v2451
        %v2456 = vrsqrt.pop %v2445
        %v2457 = vmul.f32 %v2456, %v2445
        %v2458 = vmul.f32 %v2457, %v2456
        %v2459 = vmul.f32 0.5, %v2458
        %v2460 = vsub.f32 1.5, %v2459
        %v2461 = vmul.f32 %v2456, %v2460
        %vm2462 = vweird.f32 %v2445
        %vm2463 = vweird.f32 %v2456
        %vm2464 = vmor %vm2462, %vm2463
        %v2465 = vsel %vm2464, %v2456, %v2461
        %v2466 = vmul.f32 %v2428, %v2455
        %v2467 = vmul.f32 %v2429, %v2455
        %v2468 = vmul.f32 %v2430, %v2465
        %v2469 = vmul.f32 %v2431, %v2465
        %v2471 = vperm.slane %v2418, 0
        %v2472 = vperm.slane %v2418, 1
        %v2475 = vmul.f32 %v2466, %v2471
        %v2476 = vmul.f32 %v2467, %v2472
        %v2477 = vmul.f32 %v2468, %v2471
        %v2478 = vmul.f32 %v2469, %v2472
        %v2480 = vperm.slane %v2419, 0
        %v2481 = vperm.slane %v2419, 1
        %v2484 = vadd.f32 %v2475, %v2480
        %v2485 = vadd.f32 %v2476, %v2481
        %v2486 = vadd.f32 %v2477, %v2480
        %v2487 = vadd.f32 %v2478, %v2481
        %v2488 = vpack.c.bf16 %v2486, %v2484
        %v2489 = vpack.c.bf16 %v2487, %v2485
        %v2490 = vld [vmem:[#allocation13] sm:$0xff]
        %v2491 = vld [vmem:[#allocation13 + $0x8] sm:$0xff]
        %v2492 = vld [vmem:[#allocation13 + $0x10] sm:$0xff]
        %v2493 = vld [vmem:[#allocation13 + $0x18] sm:$0xff]
        %v2494 = vld [vmem:[#allocation13 + $0x20] sm:$0xff]
        %v2495 = vld [vmem:[#allocation13 + $0x28] sm:$0xff]
        %v2496 = vld [vmem:[#allocation13 + $0x30] sm:$0xff]
        %v2497 = vld [vmem:[#allocation13 + $0x38] sm:$0xff]
        %v2498 = vld [vmem:[#allocation13 + $0x40] sm:$0xff]
        %v2499 = vld [vmem:[#allocation13 + $0x48] sm:$0xff]
        %v2500 = vld [vmem:[#allocation13 + $0x50] sm:$0xff]
        %v2501 = vld [vmem:[#allocation13 + $0x58] sm:$0xff]
        %v2502 = vld [vmem:[#allocation13 + $0x60] sm:$0xff]
        %v2503 = vld [vmem:[#allocation13 + $0x68] sm:$0xff]
        %v2504 = vld [vmem:[#allocation13 + $0x70] sm:$0xff]
        %v2505 = vld [vmem:[#allocation13 + $0x78] sm:$0xff]
        %v2506 = vld [vmem:[#allocation13 + $0x80] sm:$0xff]
        %v2507 = vld [vmem:[#allocation13 + $0x88] sm:$0xff]
        %v2508 = vld [vmem:[#allocation13 + $0x90] sm:$0xff]
        %v2509 = vld [vmem:[#allocation13 + $0x98] sm:$0xff]
        %v2510 = vld [vmem:[#allocation13 + $0xa0] sm:$0xff]
        %v2511 = vld [vmem:[#allocation13 + $0xa8] sm:$0xff]
        %v2512 = vld [vmem:[#allocation13 + $0xb0] sm:$0xff]
        %v2513 = vld [vmem:[#allocation13 + $0xb8] sm:$0xff]
        %v2514 = vld [vmem:[#allocation13 + $0xc0] sm:$0xff]
        %v2515 = vld [vmem:[#allocation13 + $0xc8] sm:$0xff]
        %v2516 = vld [vmem:[#allocation13 + $0xd0] sm:$0xff]
        %v2517 = vld [vmem:[#allocation13 + $0xd8] sm:$0xff]
        %v2518 = vld [vmem:[#allocation13 + $0xe0] sm:$0xff]
        %v2519 = vld [vmem:[#allocation13 + $0xe8] sm:$0xff]
        %v2520 = vld [vmem:[#allocation13 + $0xf0] sm:$0xff]
        %v2521 = vld [vmem:[#allocation13 + $0xf8] sm:$0xff]
        %v2522 = vld [vmem:[#allocation13 + $0x100] sm:$0xff]
        %v2523 = vld [vmem:[#allocation13 + $0x108] sm:$0xff]
        %v2524 = vld [vmem:[#allocation13 + $0x110] sm:$0xff]
        %v2525 = vld [vmem:[#allocation13 + $0x118] sm:$0xff]
        %v2526 = vld [vmem:[#allocation13 + $0x120] sm:$0xff]
        %v2527 = vld [vmem:[#allocation13 + $0x128] sm:$0xff]
        %v2528 = vld [vmem:[#allocation13 + $0x130] sm:$0xff]
        %v2529 = vld [vmem:[#allocation13 + $0x138] sm:$0xff]
        %v2530 = vld [vmem:[#allocation13 + $0x140] sm:$0xff]
        %v2531 = vld [vmem:[#allocation13 + $0x148] sm:$0xff]
        %v2532 = vld [vmem:[#allocation13 + $0x150] sm:$0xff]
        %v2533 = vld [vmem:[#allocation13 + $0x158] sm:$0xff]
        %v2534 = vld [vmem:[#allocation13 + $0x160] sm:$0xff]
        %v2535 = vld [vmem:[#allocation13 + $0x168] sm:$0xff]
        %v2536 = vld [vmem:[#allocation13 + $0x170] sm:$0xff]
        %v2537 = vld [vmem:[#allocation13 + $0x178] sm:$0xff]
        %v2538 = vld [vmem:[#allocation13 + $0x180] sm:$0xff]
        %v2539 = vld [vmem:[#allocation13 + $0x188] sm:$0xff]
        %v2540 = vld [vmem:[#allocation13 + $0x190] sm:$0xff]
        %v2541 = vld [vmem:[#allocation13 + $0x198] sm:$0xff]
        %v2542 = vld [vmem:[#allocation13 + $0x1a0] sm:$0xff]
        %v2543 = vld [vmem:[#allocation13 + $0x1a8] sm:$0xff]
        %v2544 = vld [vmem:[#allocation13 + $0x1b0] sm:$0xff]
        %v2545 = vld [vmem:[#allocation13 + $0x1b8] sm:$0xff]
        %v2546 = vld [vmem:[#allocation13 + $0x1c0] sm:$0xff]
        %v2547 = vld [vmem:[#allocation13 + $0x1c8] sm:$0xff]
        %v2548 = vld [vmem:[#allocation13 + $0x1d0] sm:$0xff]
        %v2549 = vld [vmem:[#allocation13 + $0x1d8] sm:$0xff]
        %v2550 = vld [vmem:[#allocation13 + $0x1e0] sm:$0xff]
        %v2551 = vld [vmem:[#allocation13 + $0x1e8] sm:$0xff]
        %v2552 = vld [vmem:[#allocation13 + $0x1f0] sm:$0xff]
        %v2553 = vld [vmem:[#allocation13 + $0x1f8] sm:$0xff]
        %v2554 = vld [vmem:[#allocation13 + $0x200] sm:$0xff]
        %v2555 = vld [vmem:[#allocation13 + $0x208] sm:$0xff]
        %v2556 = vld [vmem:[#allocation13 + $0x210] sm:$0xff]
        %v2557 = vld [vmem:[#allocation13 + $0x218] sm:$0xff]
        %v2558 = vld [vmem:[#allocation13 + $0x220] sm:$0xff]
        %v2559 = vld [vmem:[#allocation13 + $0x228] sm:$0xff]
        %v2560 = vld [vmem:[#allocation13 + $0x230] sm:$0xff]
        %v2561 = vld [vmem:[#allocation13 + $0x238] sm:$0xff]
        %v2562 = vld [vmem:[#allocation13 + $0x240] sm:$0xff]
        %v2563 = vld [vmem:[#allocation13 + $0x248] sm:$0xff]
        %v2564 = vld [vmem:[#allocation13 + $0x250] sm:$0xff]
        %v2565 = vld [vmem:[#allocation13 + $0x258] sm:$0xff]
        %v2566 = vld [vmem:[#allocation13 + $0x260] sm:$0xff]
        %v2567 = vld [vmem:[#allocation13 + $0x268] sm:$0xff]
        %v2568 = vld [vmem:[#allocation13 + $0x270] sm:$0xff]
        %v2569 = vld [vmem:[#allocation13 + $0x278] sm:$0xff]
        %v2570 = vld [vmem:[#allocation13 + $0x280] sm:$0xff]
        %v2571 = vld [vmem:[#allocation13 + $0x288] sm:$0xff]
        %v2572 = vld [vmem:[#allocation13 + $0x290] sm:$0xff]
        %v2573 = vld [vmem:[#allocation13 + $0x298] sm:$0xff]
        %v2574 = vld [vmem:[#allocation13 + $0x2a0] sm:$0xff]
        %v2575 = vld [vmem:[#allocation13 + $0x2a8] sm:$0xff]
        %v2576 = vld [vmem:[#allocation13 + $0x2b0] sm:$0xff]
        %v2577 = vld [vmem:[#allocation13 + $0x2b8] sm:$0xff]
        %v2578 = vld [vmem:[#allocation13 + $0x2c0] sm:$0xff]
        %v2579 = vld [vmem:[#allocation13 + $0x2c8] sm:$0xff]
        %v2580 = vld [vmem:[#allocation13 + $0x2d0] sm:$0xff]
        %v2581 = vld [vmem:[#allocation13 + $0x2d8] sm:$0xff]
        %v2582 = vld [vmem:[#allocation13 + $0x2e0] sm:$0xff]
        %v2583 = vld [vmem:[#allocation13 + $0x2e8] sm:$0xff]
        %v2584 = vld [vmem:[#allocation13 + $0x2f0] sm:$0xff]
        %v2585 = vld [vmem:[#allocation13 + $0x2f8] sm:$0xff]
        %v2586 = vld [vmem:[#allocation13 + $0x300] sm:$0xff]
        %v2587 = vld [vmem:[#allocation13 + $0x308] sm:$0xff]
        %v2588 = vld [vmem:[#allocation13 + $0x310] sm:$0xff]
        %v2589 = vld [vmem:[#allocation13 + $0x318] sm:$0xff]
        %v2590 = vld [vmem:[#allocation13 + $0x320] sm:$0xff]
        %v2591 = vld [vmem:[#allocation13 + $0x328] sm:$0xff]
        %v2592 = vld [vmem:[#allocation13 + $0x330] sm:$0xff]
        %v2593 = vld [vmem:[#allocation13 + $0x338] sm:$0xff]
        %v2594 = vld [vmem:[#allocation13 + $0x340] sm:$0xff]
        %v2595 = vld [vmem:[#allocation13 + $0x348] sm:$0xff]
        %v2596 = vld [vmem:[#allocation13 + $0x350] sm:$0xff]
        %v2597 = vld [vmem:[#allocation13 + $0x358] sm:$0xff]
        %v2598 = vld [vmem:[#allocation13 + $0x360] sm:$0xff]
        %v2599 = vld [vmem:[#allocation13 + $0x368] sm:$0xff]
        %v2600 = vld [vmem:[#allocation13 + $0x370] sm:$0xff]
        %v2601 = vld [vmem:[#allocation13 + $0x378] sm:$0xff]
        %v2602 = vld [vmem:[#allocation13 + $0x380] sm:$0xff]
        %v2603 = vld [vmem:[#allocation13 + $0x388] sm:$0xff]
        %v2604 = vld [vmem:[#allocation13 + $0x390] sm:$0xff]
        %v2605 = vld [vmem:[#allocation13 + $0x398] sm:$0xff]
        %v2606 = vld [vmem:[#allocation13 + $0x3a0] sm:$0xff]
        %v2607 = vld [vmem:[#allocation13 + $0x3a8] sm:$0xff]
        %v2608 = vld [vmem:[#allocation13 + $0x3b0] sm:$0xff]
        %v2609 = vld [vmem:[#allocation13 + $0x3b8] sm:$0xff]
        %v2610 = vld [vmem:[#allocation13 + $0x3c0] sm:$0xff]
        %v2611 = vld [vmem:[#allocation13 + $0x3c8] sm:$0xff]
        %v2612 = vld [vmem:[#allocation13 + $0x3d0] sm:$0xff]
        %v2613 = vld [vmem:[#allocation13 + $0x3d8] sm:$0xff]
        %v2614 = vld [vmem:[#allocation13 + $0x3e0] sm:$0xff]
        %v2615 = vld [vmem:[#allocation13 + $0x3e8] sm:$0xff]
        %v2616 = vld [vmem:[#allocation13 + $0x3f0] sm:$0xff]
        %v2617 = vld [vmem:[#allocation13 + $0x3f8] sm:$0xff]
        %v2618 = vld [vmem:[%s12] sm:$0xff]
        %v2620 = vperm.slane %v2618, 0
        %v2621 = vperm.slane %v2618, 1
        %v2622 = vperm.slane %v2618, 2
        %v2623 = vperm.slane %v2618, 3
        %v2624 = vperm.slane %v2618, 4
        %v2625 = vperm.slane %v2618, 5
        %v2626 = vperm.slane %v2618, 6
        %v2627 = vperm.slane %v2618, 7
        %v2764 = vunpack.c.l.b16 %v2490
        %v2765 = vunpack.c.h.b16 %v2490
        %v2766 = vunpack.c.l.b16 %v2491
        %v2767 = vunpack.c.h.b16 %v2491
        %v2768 = vunpack.c.l.b16 %v2492
        %v2769 = vunpack.c.h.b16 %v2492
        %v2770 = vunpack.c.l.b16 %v2493
        %v2771 = vunpack.c.h.b16 %v2493
        %v2772 = vunpack.c.l.b16 %v2494
        %v2773 = vunpack.c.h.b16 %v2494
        %v2774 = vunpack.c.l.b16 %v2495
        %v2775 = vunpack.c.h.b16 %v2495
        %v2776 = vunpack.c.l.b16 %v2496
        %v2777 = vunpack.c.h.b16 %v2496
        %v2778 = vunpack.c.l.b16 %v2497
        %v2779 = vunpack.c.h.b16 %v2497
        %v2780 = vunpack.c.l.b16 %v2498
        %v2781 = vunpack.c.h.b16 %v2498
        %v2782 = vunpack.c.l.b16 %v2499
        %v2783 = vunpack.c.h.b16 %v2499
        %v2784 = vunpack.c.l.b16 %v2500
        %v2785 = vunpack.c.h.b16 %v2500
        %v2786 = vunpack.c.l.b16 %v2501
        %v2787 = vunpack.c.h.b16 %v2501
        %v2788 = vunpack.c.l.b16 %v2502
        %v2789 = vunpack.c.h.b16 %v2502
        %v2790 = vunpack.c.l.b16 %v2503
        %v2791 = vunpack.c.h.b16 %v2503
        %v2792 = vunpack.c.l.b16 %v2504
        %v2793 = vunpack.c.h.b16 %v2504
        %v2794 = vunpack.c.l.b16 %v2505
        %v2795 = vunpack.c.h.b16 %v2505
        %v2796 = vunpack.c.l.b16 %v2506
        %v2797 = vunpack.c.h.b16 %v2506
        %v2798 = vunpack.c.l.b16 %v2507
        %v2799 = vunpack.c.h.b16 %v2507
        %v2800 = vunpack.c.l.b16 %v2508
        %v2801 = vunpack.c.h.b16 %v2508
        %v2802 = vunpack.c.l.b16 %v2509
        %v2803 = vunpack.c.h.b16 %v2509
        %v2804 = vunpack.c.l.b16 %v2510
        %v2805 = vunpack.c.h.b16 %v2510
        %v2806 = vunpack.c.l.b16 %v2511
        %v2807 = vunpack.c.h.b16 %v2511
        %v2808 = vunpack.c.l.b16 %v2512
        %v2809 = vunpack.c.h.b16 %v2512
        %v2810 = vunpack.c.l.b16 %v2513
        %v2811 = vunpack.c.h.b16 %v2513
        %v2812 = vunpack.c.l.b16 %v2514
        %v2813 = vunpack.c.h.b16 %v2514
        %v2814 = vunpack.c.l.b16 %v2515
        %v2815 = vunpack.c.h.b16 %v2515
        %v2816 = vunpack.c.l.b16 %v2516
        %v2817 = vunpack.c.h.b16 %v2516
        %v2818 = vunpack.c.l.b16 %v2517
        %v2819 = vunpack.c.h.b16 %v2517
        %v2820 = vunpack.c.l.b16 %v2518
        %v2821 = vunpack.c.h.b16 %v2518
        %v2822 = vunpack.c.l.b16 %v2519
        %v2823 = vunpack.c.h.b16 %v2519
        %v2824 = vunpack.c.l.b16 %v2520
        %v2825 = vunpack.c.h.b16 %v2520
        %v2826 = vunpack.c.l.b16 %v2521
        %v2827 = vunpack.c.h.b16 %v2521
        %v2828 = vunpack.c.l.b16 %v2522
        %v2829 = vunpack.c.h.b16 %v2522
        %v2830 = vunpack.c.l.b16 %v2523
        %v2831 = vunpack.c.h.b16 %v2523
        %v2832 = vunpack.c.l.b16 %v2524
        %v2833 = vunpack.c.h.b16 %v2524
        %v2834 = vunpack.c.l.b16 %v2525
        %v2835 = vunpack.c.h.b16 %v2525
        %v2836 = vunpack.c.l.b16 %v2526
        %v2837 = vunpack.c.h.b16 %v2526
        %v2838 = vunpack.c.l.b16 %v2527
        %v2839 = vunpack.c.h.b16 %v2527
        %v2840 = vunpack.c.l.b16 %v2528
        %v2841 = vunpack.c.h.b16 %v2528
        %v2842 = vunpack.c.l.b16 %v2529
        %v2843 = vunpack.c.h.b16 %v2529
        %v2844 = vunpack.c.l.b16 %v2530
        %v2845 = vunpack.c.h.b16 %v2530
        %v2846 = vunpack.c.l.b16 %v2531
        %v2847 = vunpack.c.h.b16 %v2531
        %v2848 = vunpack.c.l.b16 %v2532
        %v2849 = vunpack.c.h.b16 %v2532
        %v2850 = vunpack.c.l.b16 %v2533
        %v2851 = vunpack.c.h.b16 %v2533
        %v2852 = vunpack.c.l.b16 %v2534
        %v2853 = vunpack.c.h.b16 %v2534
        %v2854 = vunpack.c.l.b16 %v2535
        %v2855 = vunpack.c.h.b16 %v2535
        %v2856 = vunpack.c.l.b16 %v2536
        %v2857 = vunpack.c.h.b16 %v2536
        %v2858 = vunpack.c.l.b16 %v2537
        %v2859 = vunpack.c.h.b16 %v2537
        %v2860 = vunpack.c.l.b16 %v2538
        %v2861 = vunpack.c.h.b16 %v2538
        %v2862 = vunpack.c.l.b16 %v2539
        %v2863 = vunpack.c.h.b16 %v2539
        %v2864 = vunpack.c.l.b16 %v2540
        %v2865 = vunpack.c.h.b16 %v2540
        %v2866 = vunpack.c.l.b16 %v2541
        %v2867 = vunpack.c.h.b16 %v2541
        %v2868 = vunpack.c.l.b16 %v2542
        %v2869 = vunpack.c.h.b16 %v2542
        %v2870 = vunpack.c.l.b16 %v2543
        %v2871 = vunpack.c.h.b16 %v2543
        %v2872 = vunpack.c.l.b16 %v2544
        %v2873 = vunpack.c.h.b16 %v2544
        %v2874 = vunpack.c.l.b16 %v2545
        %v2875 = vunpack.c.h.b16 %v2545
        %v2876 = vunpack.c.l.b16 %v2546
        %v2877 = vunpack.c.h.b16 %v2546
        %v2878 = vunpack.c.l.b16 %v2547
        %v2879 = vunpack.c.h.b16 %v2547
        %v2880 = vunpack.c.l.b16 %v2548
        %v2881 = vunpack.c.h.b16 %v2548
        %v2882 = vunpack.c.l.b16 %v2549
        %v2883 = vunpack.c.h.b16 %v2549
        %v2884 = vunpack.c.l.b16 %v2550
        %v2885 = vunpack.c.h.b16 %v2550
        %v2886 = vunpack.c.l.b16 %v2551
        %v2887 = vunpack.c.h.b16 %v2551
        %v2888 = vunpack.c.l.b16 %v2552
        %v2889 = vunpack.c.h.b16 %v2552
        %v2890 = vunpack.c.l.b16 %v2553
        %v2891 = vunpack.c.h.b16 %v2553
        %v2892 = vunpack.c.l.b16 %v2554
        %v2893 = vunpack.c.h.b16 %v2554
        %v2894 = vunpack.c.l.b16 %v2555
        %v2895 = vunpack.c.h.b16 %v2555
        %v2896 = vunpack.c.l.b16 %v2556
        %v2897 = vunpack.c.h.b16 %v2556
        %v2898 = vunpack.c.l.b16 %v2557
        %v2899 = vunpack.c.h.b16 %v2557
        %v2900 = vunpack.c.l.b16 %v2558
        %v2901 = vunpack.c.h.b16 %v2558
        %v2902 = vunpack.c.l.b16 %v2559
        %v2903 = vunpack.c.h.b16 %v2559
        %v2904 = vunpack.c.l.b16 %v2560
        %v2905 = vunpack.c.h.b16 %v2560
        %v2906 = vunpack.c.l.b16 %v2561
        %v2907 = vunpack.c.h.b16 %v2561
        %v2908 = vunpack.c.l.b16 %v2562
        %v2909 = vunpack.c.h.b16 %v2562
        %v2910 = vunpack.c.l.b16 %v2563
        %v2911 = vunpack.c.h.b16 %v2563
        %v2912 = vunpack.c.l.b16 %v2564
        %v2913 = vunpack.c.h.b16 %v2564
        %v2914 = vunpack.c.l.b16 %v2565
        %v2915 = vunpack.c.h.b16 %v2565
        %v2916 = vunpack.c.l.b16 %v2566
        %v2917 = vunpack.c.h.b16 %v2566
        %v2918 = vunpack.c.l.b16 %v2567
        %v2919 = vunpack.c.h.b16 %v2567
        %v2920 = vunpack.c.l.b16 %v2568
        %v2921 = vunpack.c.h.b16 %v2568
        %v2922 = vunpack.c.l.b16 %v2569
        %v2923 = vunpack.c.h.b16 %v2569
        %v2924 = vunpack.c.l.b16 %v2570
        %v2925 = vunpack.c.h.b16 %v2570
        %v2926 = vunpack.c.l.b16 %v2571
        %v2927 = vunpack.c.h.b16 %v2571
        %v2928 = vunpack.c.l.b16 %v2572
        %v2929 = vunpack.c.h.b16 %v2572
        %v2930 = vunpack.c.l.b16 %v2573
        %v2931 = vunpack.c.h.b16 %v2573
        %v2932 = vunpack.c.l.b16 %v2574
        %v2933 = vunpack.c.h.b16 %v2574
        %v2934 = vunpack.c.l.b16 %v2575
        %v2935 = vunpack.c.h.b16 %v2575
        %v2936 = vunpack.c.l.b16 %v2576
        %v2937 = vunpack.c.h.b16 %v2576
        %v2938 = vunpack.c.l.b16 %v2577
        %v2939 = vunpack.c.h.b16 %v2577
        %v2940 = vunpack.c.l.b16 %v2578
        %v2941 = vunpack.c.h.b16 %v2578
        %v2942 = vunpack.c.l.b16 %v2579
        %v2943 = vunpack.c.h.b16 %v2579
        %v2944 = vunpack.c.l.b16 %v2580
        %v2945 = vunpack.c.h.b16 %v2580
        %v2946 = vunpack.c.l.b16 %v2581
        %v2947 = vunpack.c.h.b16 %v2581
        %v2948 = vunpack.c.l.b16 %v2582
        %v2949 = vunpack.c.h.b16 %v2582
        %v2950 = vunpack.c.l.b16 %v2583
        %v2951 = vunpack.c.h.b16 %v2583
        %v2952 = vunpack.c.l.b16 %v2584
        %v2953 = vunpack.c.h.b16 %v2584
        %v2954 = vunpack.c.l.b16 %v2585
        %v2955 = vunpack.c.h.b16 %v2585
        %v2956 = vunpack.c.l.b16 %v2586
        %v2957 = vunpack.c.h.b16 %v2586
        %v2958 = vunpack.c.l.b16 %v2587
        %v2959 = vunpack.c.h.b16 %v2587
        %v2960 = vunpack.c.l.b16 %v2588
        %v2961 = vunpack.c.h.b16 %v2588
        %v2962 = vunpack.c.l.b16 %v2589
        %v2963 = vunpack.c.h.b16 %v2589
        %v2964 = vunpack.c.l.b16 %v2590
        %v2965 = vunpack.c.h.b16 %v2590
        %v2966 = vunpack.c.l.b16 %v2591
        %v2967 = vunpack.c.h.b16 %v2591
        %v2968 = vunpack.c.l.b16 %v2592
        %v2969 = vunpack.c.h.b16 %v2592
        %v2970 = vunpack.c.l.b16 %v2593
        %v2971 = vunpack.c.h.b16 %v2593
        %v2972 = vunpack.c.l.b16 %v2594
        %v2973 = vunpack.c.h.b16 %v2594
        %v2974 = vunpack.c.l.b16 %v2595
        %v2975 = vunpack.c.h.b16 %v2595
        %v2976 = vunpack.c.l.b16 %v2596
        %v2977 = vunpack.c.h.b16 %v2596
        %v2978 = vunpack.c.l.b16 %v2597
        %v2979 = vunpack.c.h.b16 %v2597
        %v2980 = vunpack.c.l.b16 %v2598
        %v2981 = vunpack.c.h.b16 %v2598
        %v2982 = vunpack.c.l.b16 %v2599
        %v2983 = vunpack.c.h.b16 %v2599
        %v2984 = vunpack.c.l.b16 %v2600
        %v2985 = vunpack.c.h.b16 %v2600
        %v2986 = vunpack.c.l.b16 %v2601
        %v2987 = vunpack.c.h.b16 %v2601
        %v2988 = vunpack.c.l.b16 %v2602
        %v2989 = vunpack.c.h.b16 %v2602
        %v2990 = vunpack.c.l.b16 %v2603
        %v2991 = vunpack.c.h.b16 %v2603
        %v2992 = vunpack.c.l.b16 %v2604
        %v2993 = vunpack.c.h.b16 %v2604
        %v2994 = vunpack.c.l.b16 %v2605
        %v2995 = vunpack.c.h.b16 %v2605
        %v2996 = vunpack.c.l.b16 %v2606
        %v2997 = vunpack.c.h.b16 %v2606
        %v2998 = vunpack.c.l.b16 %v2607
        %v2999 = vunpack.c.h.b16 %v2607
        %v3000 = vunpack.c.l.b16 %v2608
        %v3001 = vunpack.c.h.b16 %v2608
        %v3002 = vunpack.c.l.b16 %v2609
        %v3003 = vunpack.c.h.b16 %v2609
        %v3004 = vunpack.c.l.b16 %v2610
        %v3005 = vunpack.c.h.b16 %v2610
        %v3006 = vunpack.c.l.b16 %v2611
        %v3007 = vunpack.c.h.b16 %v2611
        %v3008 = vunpack.c.l.b16 %v2612
        %v3009 = vunpack.c.h.b16 %v2612
        %v3010 = vunpack.c.l.b16 %v2613
        %v3011 = vunpack.c.h.b16 %v2613
        %v3012 = vunpack.c.l.b16 %v2614
        %v3013 = vunpack.c.h.b16 %v2614
        %v3014 = vunpack.c.l.b16 %v2615
        %v3015 = vunpack.c.h.b16 %v2615
        %v3016 = vunpack.c.l.b16 %v2616
        %v3017 = vunpack.c.h.b16 %v2616
        %v3018 = vunpack.c.l.b16 %v2617
        %v3019 = vunpack.c.h.b16 %v2617
        %v3020 = vpack.c.b16 %v2772, %v2764
        %v3021 = vpack.c.b16 %v2773, %v2765
        %v3022 = vpack.c.b16 %v2774, %v2766
        %v3023 = vpack.c.b16 %v2775, %v2767
        %v3024 = vpack.c.b16 %v2776, %v2768
        %v3025 = vpack.c.b16 %v2777, %v2769
        %v3026 = vpack.c.b16 %v2778, %v2770
        %v3027 = vpack.c.b16 %v2779, %v2771
        %v3028 = vpack.c.b16 %v2788, %v2780
        %v3029 = vpack.c.b16 %v2789, %v2781
        %v3030 = vpack.c.b16 %v2790, %v2782
        %v3031 = vpack.c.b16 %v2791, %v2783
        %v3032 = vpack.c.b16 %v2792, %v2784
        %v3033 = vpack.c.b16 %v2793, %v2785
        %v3034 = vpack.c.b16 %v2794, %v2786
        %v3035 = vpack.c.b16 %v2795, %v2787
        %v3036 = vpack.c.b16 %v2804, %v2796
        %v3037 = vpack.c.b16 %v2805, %v2797
        %v3038 = vpack.c.b16 %v2806, %v2798
        %v3039 = vpack.c.b16 %v2807, %v2799
        %v3040 = vpack.c.b16 %v2808, %v2800
        %v3041 = vpack.c.b16 %v2809, %v2801
        %v3042 = vpack.c.b16 %v2810, %v2802
        %v3043 = vpack.c.b16 %v2811, %v2803
        %v3044 = vpack.c.b16 %v2820, %v2812
        %v3045 = vpack.c.b16 %v2821, %v2813
        %v3046 = vpack.c.b16 %v2822, %v2814
        %v3047 = vpack.c.b16 %v2823, %v2815
        %v3048 = vpack.c.b16 %v2824, %v2816
        %v3049 = vpack.c.b16 %v2825, %v2817
        %v3050 = vpack.c.b16 %v2826, %v2818
        %v3051 = vpack.c.b16 %v2827, %v2819
        %v3052 = vpack.c.b16 %v2836, %v2828
        %v3053 = vpack.c.b16 %v2837, %v2829
        %v3054 = vpack.c.b16 %v2838, %v2830
        %v3055 = vpack.c.b16 %v2839, %v2831
        %v3056 = vpack.c.b16 %v2840, %v2832
        %v3057 = vpack.c.b16 %v2841, %v2833
        %v3058 = vpack.c.b16 %v2842, %v2834
        %v3059 = vpack.c.b16 %v2843, %v2835
        %v3060 = vpack.c.b16 %v2852, %v2844
        %v3061 = vpack.c.b16 %v2853, %v2845
        %v3062 = vpack.c.b16 %v2854, %v2846
        %v3063 = vpack.c.b16 %v2855, %v2847
        %v3064 = vpack.c.b16 %v2856, %v2848
        %v3065 = vpack.c.b16 %v2857, %v2849
        %v3066 = vpack.c.b16 %v2858, %v2850
        %v3067 = vpack.c.b16 %v2859, %v2851
        %v3068 = vpack.c.b16 %v2868, %v2860
        %v3069 = vpack.c.b16 %v2869, %v2861
        %v3070 = vpack.c.b16 %v2870, %v2862
        %v3071 = vpack.c.b16 %v2871, %v2863
        %v3072 = vpack.c.b16 %v2872, %v2864
        %v3073 = vpack.c.b16 %v2873, %v2865
        %v3074 = vpack.c.b16 %v2874, %v2866
        %v3075 = vpack.c.b16 %v2875, %v2867
        %v3076 = vpack.c.b16 %v2884, %v2876
        %v3077 = vpack.c.b16 %v2885, %v2877
        %v3078 = vpack.c.b16 %v2886, %v2878
        %v3079 = vpack.c.b16 %v2887, %v2879
        %v3080 = vpack.c.b16 %v2888, %v2880
        %v3081 = vpack.c.b16 %v2889, %v2881
        %v3082 = vpack.c.b16 %v2890, %v2882
        %v3083 = vpack.c.b16 %v2891, %v2883
        %v3084 = vpack.c.b16 %v2900, %v2892
        %v3085 = vpack.c.b16 %v2901, %v2893
        %v3086 = vpack.c.b16 %v2902, %v2894
        %v3087 = vpack.c.b16 %v2903, %v2895
        %v3088 = vpack.c.b16 %v2904, %v2896
        %v3089 = vpack.c.b16 %v2905, %v2897
        %v3090 = vpack.c.b16 %v2906, %v2898
        %v3091 = vpack.c.b16 %v2907, %v2899
        %v3092 = vpack.c.b16 %v2916, %v2908
        %v3093 = vpack.c.b16 %v2917, %v2909
        %v3094 = vpack.c.b16 %v2918, %v2910
        %v3095 = vpack.c.b16 %v2919, %v2911
        %v3096 = vpack.c.b16 %v2920, %v2912
        %v3097 = vpack.c.b16 %v2921, %v2913
        %v3098 = vpack.c.b16 %v2922, %v2914
        %v3099 = vpack.c.b16 %v2923, %v2915
        %v3100 = vpack.c.b16 %v2932, %v2924
        %v3101 = vpack.c.b16 %v2933, %v2925
        %v3102 = vpack.c.b16 %v2934, %v2926
        %v3103 = vpack.c.b16 %v2935, %v2927
        %v3104 = vpack.c.b16 %v2936, %v2928
        %v3105 = vpack.c.b16 %v2937, %v2929
        %v3106 = vpack.c.b16 %v2938, %v2930
        %v3107 = vpack.c.b16 %v2939, %v2931
        %v3108 = vpack.c.b16 %v2948, %v2940
        %v3109 = vpack.c.b16 %v2949, %v2941
        %v3110 = vpack.c.b16 %v2950, %v2942
        %v3111 = vpack.c.b16 %v2951, %v2943
        %v3112 = vpack.c.b16 %v2952, %v2944
        %v3113 = vpack.c.b16 %v2953, %v2945
        %v3114 = vpack.c.b16 %v2954, %v2946
        %v3115 = vpack.c.b16 %v2955, %v2947
        %v3116 = vpack.c.b16 %v2964, %v2956
        %v3117 = vpack.c.b16 %v2965, %v2957
        %v3118 = vpack.c.b16 %v2966, %v2958
        %v3119 = vpack.c.b16 %v2967, %v2959
        %v3120 = vpack.c.b16 %v2968, %v2960
        %v3121 = vpack.c.b16 %v2969, %v2961
        %v3122 = vpack.c.b16 %v2970, %v2962
        %v3123 = vpack.c.b16 %v2971, %v2963
        %v3124 = vpack.c.b16 %v2980, %v2972
        %v3125 = vpack.c.b16 %v2981, %v2973
        %v3126 = vpack.c.b16 %v2982, %v2974
        %v3127 = vpack.c.b16 %v2983, %v2975
        %v3128 = vpack.c.b16 %v2984, %v2976
        %v3129 = vpack.c.b16 %v2985, %v2977
        %v3130 = vpack.c.b16 %v2986, %v2978
        %v3131 = vpack.c.b16 %v2987, %v2979
        %v3132 = vpack.c.b16 %v2996, %v2988
        %v3133 = vpack.c.b16 %v2997, %v2989
        %v3134 = vpack.c.b16 %v2998, %v2990
        %v3135 = vpack.c.b16 %v2999, %v2991
        %v3136 = vpack.c.b16 %v3000, %v2992
        %v3137 = vpack.c.b16 %v3001, %v2993
        %v3138 = vpack.c.b16 %v3002, %v2994
        %v3139 = vpack.c.b16 %v3003, %v2995
        %v3140 = vpack.c.b16 %v3012, %v3004
        %v3141 = vpack.c.b16 %v3013, %v3005
        %v3142 = vpack.c.b16 %v3014, %v3006
        %v3143 = vpack.c.b16 %v3015, %v3007
        %v3144 = vpack.c.b16 %v3016, %v3008
        %v3145 = vpack.c.b16 %v3017, %v3009
        %v3146 = vpack.c.b16 %v3018, %v3010
        %v3147 = vpack.c.b16 %v3019, %v3011
        %3276 = vmatpush.bf16.msra.mxu0 %v3076
        %3277 = vmatpush.bf16.msra.mxu0 %v3068
        %3278 = vmatpush.bf16.msra.mxu0 %v3060
        %3279 = vmatpush.bf16.msra.mxu0 %v3052
        %3280 = vmatpush.bf16.msra.mxu0 %v3044
        %3281 = vmatpush.bf16.msra.mxu0 %v3036
        %3282 = vmatpush.bf16.msra.mxu0 %v3028
        %3283 = vmatpush.bf16.msra.mxu0 %v3020
        %3284 = vmatmul.bf16.gmra.mxu0 %v2488
        %v3285 = vpop.f32.mrf.mxu0
        %v3286 = vadd.f32 %v2620, %v3285
        %v3287 = vpop.f32.mrf.mxu0
        %v3288 = vadd.f32 %v2620, %v3287
        %3289 = vdwg.mxu0
        %3290 = vmatpush.bf16.msra.mxu0 %v3140
        %3291 = vmatpush.bf16.msra.mxu0 %v3132
        %3292 = vmatpush.bf16.msra.mxu0 %v3124
        %3293 = vmatpush.bf16.msra.mxu0 %v3116
        %3294 = vmatpush.bf16.msra.mxu0 %v3108
        %3295 = vmatpush.bf16.msra.mxu0 %v3100
        %3296 = vmatpush.bf16.msra.mxu0 %v3092
        %3297 = vmatpush.bf16.msra.mxu0 %v3084
        %3298 = vmatmul.bf16.gmra.mxu0 %v2489
        %v3299 = vpop.f32.mrf.mxu0
        %v3300 = vadd.f32 %v3286, %v3299
        %v3301 = vpop.f32.mrf.mxu0
        %v3302 = vadd.f32 %v3288, %v3301
        %3303 = vdwg.mxu0
        %3304 = vmatpush.bf16.msra.mxu0 %v3077
        %3305 = vmatpush.bf16.msra.mxu0 %v3069
        %3306 = vmatpush.bf16.msra.mxu0 %v3061
        %3307 = vmatpush.bf16.msra.mxu0 %v3053
        %3308 = vmatpush.bf16.msra.mxu0 %v3045
        %3309 = vmatpush.bf16.msra.mxu0 %v3037
        %3310 = vmatpush.bf16.msra.mxu0 %v3029
        %3311 = vmatpush.bf16.msra.mxu0 %v3021
        %3312 = vmatmul.bf16.gmra.mxu0 %v2488
        %v3313 = vpop.f32.mrf.mxu0
        %v3314 = vadd.f32 %v2621, %v3313
        %v3315 = vpop.f32.mrf.mxu0
        %v3316 = vadd.f32 %v2621, %v3315
        %3317 = vdwg.mxu0
        %3318 = vmatpush.bf16.msra.mxu0 %v3141
        %3319 = vmatpush.bf16.msra.mxu0 %v3133
        %3320 = vmatpush.bf16.msra.mxu0 %v3125
        %3321 = vmatpush.bf16.msra.mxu0 %v3117
        %3322 = vmatpush.bf16.msra.mxu0 %v3109
        %3323 = vmatpush.bf16.msra.mxu0 %v3101
        %3324 = vmatpush.bf16.msra.mxu0 %v3093
        %3325 = vmatpush.bf16.msra.mxu0 %v3085
        %3326 = vmatmul.bf16.gmra.mxu0 %v2489
        %v3327 = vpop.f32.mrf.mxu0
        %v3328 = vadd.f32 %v3314, %v3327
        %v3329 = vpop.f32.mrf.mxu0
        %v3330 = vadd.f32 %v3316, %v3329
        %3331 = vdwg.mxu0
        %3332 = vmatpush.bf16.msra.mxu0 %v3078
        %3333 = vmatpush.bf16.msra.mxu0 %v3070
        %3334 = vmatpush.bf16.msra.mxu0 %v3062
        %3335 = vmatpush.bf16.msra.mxu0 %v3054
        %3336 = vmatpush.bf16.msra.mxu0 %v3046
        %3337 = vmatpush.bf16.msra.mxu0 %v3038
        %3338 = vmatpush.bf16.msra.mxu0 %v3030
        %3339 = vmatpush.bf16.msra.mxu0 %v3022
        %3340 = vmatmul.bf16.gmra.mxu0 %v2488
        %v3341 = vpop.f32.mrf.mxu0
        %v3342 = vadd.f32 %v2622, %v3341
        %v3343 = vpop.f32.mrf.mxu0
        %v3344 = vadd.f32 %v2622, %v3343
        %3345 = vdwg.mxu0
        %3346 = vmatpush.bf16.msra.mxu0 %v3142
        %3347 = vmatpush.bf16.msra.mxu0 %v3134
        %3348 = vmatpush.bf16.msra.mxu0 %v3126
        %3349 = vmatpush.bf16.msra.mxu0 %v3118
        %3350 = vmatpush.bf16.msra.mxu0 %v3110
        %3351 = vmatpush.bf16.msra.mxu0 %v3102
        %3352 = vmatpush.bf16.msra.mxu0 %v3094
        %3353 = vmatpush.bf16.msra.mxu0 %v3086
        %3354 = vmatmul.bf16.gmra.mxu0 %v2489
        %v3355 = vpop.f32.mrf.mxu0
        %v3356 = vadd.f32 %v3342, %v3355
        %v3357 = vpop.f32.mrf.mxu0
        %v3358 = vadd.f32 %v3344, %v3357
        %3359 = vdwg.mxu0
        %3360 = vmatpush.bf16.msra.mxu0 %v3079
        %3361 = vmatpush.bf16.msra.mxu0 %v3071
        %3362 = vmatpush.bf16.msra.mxu0 %v3063
        %3363 = vmatpush.bf16.msra.mxu0 %v3055
        %3364 = vmatpush.bf16.msra.mxu0 %v3047
        %3365 = vmatpush.bf16.msra.mxu0 %v3039
        %3366 = vmatpush.bf16.msra.mxu0 %v3031
        %3367 = vmatpush.bf16.msra.mxu0 %v3023
        %3368 = vmatmul.bf16.gmra.mxu0 %v2488
        %v3369 = vpop.f32.mrf.mxu0
        %v3370 = vadd.f32 %v2623, %v3369
        %v3371 = vpop.f32.mrf.mxu0
        %v3372 = vadd.f32 %v2623, %v3371
        %3373 = vdwg.mxu0
        %3374 = vmatpush.bf16.msra.mxu0 %v3143
        %3375 = vmatpush.bf16.msra.mxu0 %v3135
        %3376 = vmatpush.bf16.msra.mxu0 %v3127
        %3377 = vmatpush.bf16.msra.mxu0 %v3119
        %3378 = vmatpush.bf16.msra.mxu0 %v3111
        %3379 = vmatpush.bf16.msra.mxu0 %v3103
        %3380 = vmatpush.bf16.msra.mxu0 %v3095
        %3381 = vmatpush.bf16.msra.mxu0 %v3087
        %3382 = vmatmul.bf16.gmra.mxu0 %v2489
        %v3383 = vpop.f32.mrf.mxu0
        %v3384 = vadd.f32 %v3370, %v3383
        %v3385 = vpop.f32.mrf.mxu0
        %v3386 = vadd.f32 %v3372, %v3385
        %3387 = vdwg.mxu0
        %3388 = vmatpush.bf16.msra.mxu0 %v3080
        %3389 = vmatpush.bf16.msra.mxu0 %v3072
        %3390 = vmatpush.bf16.msra.mxu0 %v3064
        %3391 = vmatpush.bf16.msra.mxu0 %v3056
        %3392 = vmatpush.bf16.msra.mxu0 %v3048
        %3393 = vmatpush.bf16.msra.mxu0 %v3040
        %3394 = vmatpush.bf16.msra.mxu0 %v3032
        %3395 = vmatpush.bf16.msra.mxu0 %v3024
        %3396 = vmatmul.bf16.gmra.mxu0 %v2488
        %v3397 = vpop.f32.mrf.mxu0
        %v3398 = vadd.f32 %v2624, %v3397
        %v3399 = vpop.f32.mrf.mxu0
        %v3400 = vadd.f32 %v2624, %v3399
        %3401 = vdwg.mxu0
        %3402 = vmatpush.bf16.msra.mxu0 %v3144
        %3403 = vmatpush.bf16.msra.mxu0 %v3136
        %3404 = vmatpush.bf16.msra.mxu0 %v3128
        %3405 = vmatpush.bf16.msra.mxu0 %v3120
        %3406 = vmatpush.bf16.msra.mxu0 %v3112
        %3407 = vmatpush.bf16.msra.mxu0 %v3104
        %3408 = vmatpush.bf16.msra.mxu0 %v3096
        %3409 = vmatpush.bf16.msra.mxu0 %v3088
        %3410 = vmatmul.bf16.gmra.mxu0 %v2489
        %v3411 = vpop.f32.mrf.mxu0
        %v3412 = vadd.f32 %v3398, %v3411
        %v3413 = vpop.f32.mrf.mxu0
        %v3414 = vadd.f32 %v3400, %v3413
        %3415 = vdwg.mxu0
        %3416 = vmatpush.bf16.msra.mxu0 %v3081
        %3417 = vmatpush.bf16.msra.mxu0 %v3073
        %3418 = vmatpush.bf16.msra.mxu0 %v3065
        %3419 = vmatpush.bf16.msra.mxu0 %v3057
        %3420 = vmatpush.bf16.msra.mxu0 %v3049
        %3421 = vmatpush.bf16.msra.mxu0 %v3041
        %3422 = vmatpush.bf16.msra.mxu0 %v3033
        %3423 = vmatpush.bf16.msra.mxu0 %v3025
        %3424 = vmatmul.bf16.gmra.mxu0 %v2488
        %v3425 = vpop.f32.mrf.mxu0
        %v3426 = vadd.f32 %v2625, %v3425
        %v3427 = vpop.f32.mrf.mxu0
        %v3428 = vadd.f32 %v2625, %v3427
        %3429 = vdwg.mxu0
        %3430 = vmatpush.bf16.msra.mxu0 %v3145
        %3431 = vmatpush.bf16.msra.mxu0 %v3137
        %3432 = vmatpush.bf16.msra.mxu0 %v3129
        %3433 = vmatpush.bf16.msra.mxu0 %v3121
        %3434 = vmatpush.bf16.msra.mxu0 %v3113
        %3435 = vmatpush.bf16.msra.mxu0 %v3105
        %3436 = vmatpush.bf16.msra.mxu0 %v3097
        %3437 = vmatpush.bf16.msra.mxu0 %v3089
        %3438 = vmatmul.bf16.gmra.mxu0 %v2489
        %v3439 = vpop.f32.mrf.mxu0
        %v3440 = vadd.f32 %v3426, %v3439
        %v3441 = vpop.f32.mrf.mxu0
        %v3442 = vadd.f32 %v3428, %v3441
        %3443 = vdwg.mxu0
        %3444 = vmatpush.bf16.msra.mxu0 %v3082
        %3445 = vmatpush.bf16.msra.mxu0 %v3074
        %3446 = vmatpush.bf16.msra.mxu0 %v3066
        %3447 = vmatpush.bf16.msra.mxu0 %v3058
        %3448 = vmatpush.bf16.msra.mxu0 %v3050
        %3449 = vmatpush.bf16.msra.mxu0 %v3042
        %3450 = vmatpush.bf16.msra.mxu0 %v3034
        %3451 = vmatpush.bf16.msra.mxu0 %v3026
        %3452 = vmatmul.bf16.gmra.mxu0 %v2488
        %v3453 = vpop.f32.mrf.mxu0
        %v3454 = vadd.f32 %v2626, %v3453
        %v3455 = vpop.f32.mrf.mxu0
        %v3456 = vadd.f32 %v2626, %v3455
        %3457 = vdwg.mxu0
        %3458 = vmatpush.bf16.msra.mxu0 %v3146
        %3459 = vmatpush.bf16.msra.mxu0 %v3138
        %3460 = vmatpush.bf16.msra.mxu0 %v3130
        %3461 = vmatpush.bf16.msra.mxu0 %v3122
        %3462 = vmatpush.bf16.msra.mxu0 %v3114
        %3463 = vmatpush.bf16.msra.mxu0 %v3106
        %3464 = vmatpush.bf16.msra.mxu0 %v3098
        %3465 = vmatpush.bf16.msra.mxu0 %v3090
        %3466 = vmatmul.bf16.gmra.mxu0 %v2489
        %v3467 = vpop.f32.mrf.mxu0
        %v3468 = vadd.f32 %v3454, %v3467
        %v3469 = vpop.f32.mrf.mxu0
        %v3470 = vadd.f32 %v3456, %v3469
        %3471 = vdwg.mxu0
        %3472 = vmatpush.bf16.msra.mxu0 %v3083
        %3473 = vmatpush.bf16.msra.mxu0 %v3075
        %3474 = vmatpush.bf16.msra.mxu0 %v3067
        %3475 = vmatpush.bf16.msra.mxu0 %v3059
        %3476 = vmatpush.bf16.msra.mxu0 %v3051
        %3477 = vmatpush.bf16.msra.mxu0 %v3043
        %3478 = vmatpush.bf16.msra.mxu0 %v3035
        %3479 = vmatpush.bf16.msra.mxu0 %v3027
        %3480 = vmatmul.bf16.gmra.mxu0 %v2488
        %v3481 = vpop.f32.mrf.mxu0
        %v3482 = vadd.f32 %v2627, %v3481
        %v3483 = vpop.f32.mrf.mxu0
        %v3484 = vadd.f32 %v2627, %v3483
        %3485 = vdwg.mxu0
        %3486 = vmatpush.bf16.msra.mxu0 %v3147
        %3487 = vmatpush.bf16.msra.mxu0 %v3139
        %3488 = vmatpush.bf16.msra.mxu0 %v3131
        %3489 = vmatpush.bf16.msra.mxu0 %v3123
        %3490 = vmatpush.bf16.msra.mxu0 %v3115
        %3491 = vmatpush.bf16.msra.mxu0 %v3107
        %3492 = vmatpush.bf16.msra.mxu0 %v3099
        %3493 = vmatpush.bf16.msra.mxu0 %v3091
        %3494 = vmatmul.bf16.gmra.mxu0 %v2489
        %v3495 = vpop.f32.mrf.mxu0
        %v3496 = vadd.f32 %v3482, %v3495
        %v3497 = vpop.f32.mrf.mxu0
        %v3498 = vadd.f32 %v3484, %v3497
        %3499 = vdwg.mxu0
        %v3500 = vmul.f32 %v3300, %v3300
        %v3501 = vmul.f32 %v3328, %v3328
        %v3502 = vmul.f32 %v3356, %v3356
        %v3503 = vmul.f32 %v3384, %v3384
        %v3504 = vmul.f32 %v3412, %v3412
        %v3505 = vmul.f32 %v3440, %v3440
        %v3506 = vmul.f32 %v3468, %v3468
        %v3507 = vmul.f32 %v3496, %v3496
        %v3508 = vmul.f32 %v3302, %v3302
        %v3509 = vmul.f32 %v3330, %v3330
        %v3510 = vmul.f32 %v3358, %v3358
        %v3511 = vmul.f32 %v3386, %v3386
        %v3512 = vmul.f32 %v3414, %v3414
        %v3513 = vmul.f32 %v3442, %v3442
        %v3514 = vmul.f32 %v3470, %v3470
        %v3515 = vmul.f32 %v3498, %v3498
        %v3516 = vmul.f32 %v3300, %v3500
        %v3517 = vmul.f32 %v3328, %v3501
        %v3518 = vmul.f32 %v3356, %v3502
        %v3519 = vmul.f32 %v3384, %v3503
        %v3520 = vmul.f32 %v3412, %v3504
        %v3521 = vmul.f32 %v3440, %v3505
        %v3522 = vmul.f32 %v3468, %v3506
        %v3523 = vmul.f32 %v3496, %v3507
        %v3524 = vmul.f32 %v3302, %v3508
        %v3525 = vmul.f32 %v3330, %v3509
        %v3526 = vmul.f32 %v3358, %v3510
        %v3527 = vmul.f32 %v3386, %v3511
        %v3528 = vmul.f32 %v3414, %v3512
        %v3529 = vmul.f32 %v3442, %v3513
        %v3530 = vmul.f32 %v3470, %v3514
        %v3531 = vmul.f32 %v3498, %v3515
        %v3532 = vmul.f32 %v3516, 0.044715
        %v3533 = vmul.f32 %v3517, 0.044715
        %v3534 = vmul.f32 %v3518, 0.044715
        %v3535 = vmul.f32 %v3519, 0.044715
        %v3536 = vmul.f32 %v3520, 0.044715
        %v3537 = vmul.f32 %v3521, 0.044715
        %v3538 = vmul.f32 %v3522, 0.044715
        %v3539 = vmul.f32 %v3523, 0.044715
        %v3540 = vmul.f32 %v3524, 0.044715
        %v3541 = vmul.f32 %v3525, 0.044715
        %v3542 = vmul.f32 %v3526, 0.044715
        %v3543 = vmul.f32 %v3527, 0.044715
        %v3544 = vmul.f32 %v3528, 0.044715
        %v3545 = vmul.f32 %v3529, 0.044715
        %v3546 = vmul.f32 %v3530, 0.044715
        %v3547 = vmul.f32 %v3531, 0.044715
        %v3548 = vadd.f32 %v3300, %v3532
        %v3549 = vadd.f32 %v3328, %v3533
        %v3550 = vadd.f32 %v3356, %v3534
        %v3551 = vadd.f32 %v3384, %v3535
        %v3552 = vadd.f32 %v3412, %v3536
        %v3553 = vadd.f32 %v3440, %v3537
        %v3554 = vadd.f32 %v3468, %v3538
        %v3555 = vadd.f32 %v3496, %v3539
        %v3556 = vadd.f32 %v3302, %v3540
        %v3557 = vadd.f32 %v3330, %v3541
        %v3558 = vadd.f32 %v3358, %v3542
        %v3559 = vadd.f32 %v3386, %v3543
        %v3560 = vadd.f32 %v3414, %v3544
        %v3561 = vadd.f32 %v3442, %v3545
        %v3562 = vadd.f32 %v3470, %v3546
        %v3563 = vadd.f32 %v3498, %v3547
        %v3564 = vmul.f32 %v3548, 0.7978846
        %v3565 = vmul.f32 %v3549, 0.7978846
        %v3566 = vmul.f32 %v3550, 0.7978846
        %v3567 = vmul.f32 %v3551, 0.7978846
        %v3568 = vmul.f32 %v3552, 0.7978846
        %v3569 = vmul.f32 %v3553, 0.7978846
        %v3570 = vmul.f32 %v3554, 0.7978846
        %v3571 = vmul.f32 %v3555, 0.7978846
        %v3572 = vmul.f32 %v3556, 0.7978846
        %v3573 = vmul.f32 %v3557, 0.7978846
        %v3574 = vmul.f32 %v3558, 0.7978846
        %v3575 = vmul.f32 %v3559, 0.7978846
        %v3576 = vmul.f32 %v3560, 0.7978846
        %v3577 = vmul.f32 %v3561, 0.7978846
        %v3578 = vmul.f32 %v3562, 0.7978846
        %v3579 = vmul.f32 %v3563, 0.7978846
        %v3580 = vtanh.pop %v3564
        %v3581 = vtanh.pop %v3565
        %v3582 = vtanh.pop %v3566
        %v3583 = vtanh.pop %v3567
        %v3584 = vtanh.pop %v3568
        %v3585 = vtanh.pop %v3569
        %v3586 = vtanh.pop %v3570
        %v3587 = vtanh.pop %v3571
        %v3588 = vtanh.pop %v3572
        %v3589 = vtanh.pop %v3573
        %v3590 = vtanh.pop %v3574
        %v3591 = vtanh.pop %v3575
        %v3592 = vtanh.pop %v3576
        %v3593 = vtanh.pop %v3577
        %v3594 = vtanh.pop %v3578
        %v3595 = vtanh.pop %v3579
        %v3596 = vadd.f32 %v3580, 1.0
        %v3597 = vadd.f32 %v3581, 1.0
        %v3598 = vadd.f32 %v3582, 1.0
        %v3599 = vadd.f32 %v3583, 1.0
        %v3600 = vadd.f32 %v3584, 1.0
        %v3601 = vadd.f32 %v3585, 1.0
        %v3602 = vadd.f32 %v3586, 1.0
        %v3603 = vadd.f32 %v3587, 1.0
        %v3604 = vadd.f32 %v3588, 1.0
        %v3605 = vadd.f32 %v3589, 1.0
        %v3606 = vadd.f32 %v3590, 1.0
        %v3607 = vadd.f32 %v3591, 1.0
        %v3608 = vadd.f32 %v3592, 1.0
        %v3609 = vadd.f32 %v3593, 1.0
        %v3610 = vadd.f32 %v3594, 1.0
        %v3611 = vadd.f32 %v3595, 1.0
        %v3612 = vmul.f32 %v3596, 0.5
        %v3613 = vmul.f32 %v3597, 0.5
        %v3614 = vmul.f32 %v3598, 0.5
        %v3615 = vmul.f32 %v3599, 0.5
        %v3616 = vmul.f32 %v3600, 0.5
        %v3617 = vmul.f32 %v3601, 0.5
        %v3618 = vmul.f32 %v3602, 0.5
        %v3619 = vmul.f32 %v3603, 0.5
        %v3620 = vmul.f32 %v3604, 0.5
        %v3621 = vmul.f32 %v3605, 0.5
        %v3622 = vmul.f32 %v3606, 0.5
        %v3623 = vmul.f32 %v3607, 0.5
        %v3624 = vmul.f32 %v3608, 0.5
        %v3625 = vmul.f32 %v3609, 0.5
        %v3626 = vmul.f32 %v3610, 0.5
        %v3627 = vmul.f32 %v3611, 0.5
        %v3628 = vmul.f32 %v3300, %v3612
        %v3629 = vmul.f32 %v3328, %v3613
        %v3630 = vmul.f32 %v3356, %v3614
        %v3631 = vmul.f32 %v3384, %v3615
        %v3632 = vmul.f32 %v3412, %v3616
        %v3633 = vmul.f32 %v3440, %v3617
        %v3634 = vmul.f32 %v3468, %v3618
        %v3635 = vmul.f32 %v3496, %v3619
        %v3636 = vmul.f32 %v3302, %v3620
        %v3637 = vmul.f32 %v3330, %v3621
        %v3638 = vmul.f32 %v3358, %v3622
        %v3639 = vmul.f32 %v3386, %v3623
        %v3640 = vmul.f32 %v3414, %v3624
        %v3641 = vmul.f32 %v3442, %v3625
        %v3642 = vmul.f32 %v3470, %v3626
        %v3643 = vmul.f32 %v3498, %v3627
        %v3644 = vpack.c.bf16 %v3636, %v3628
        %v3645 = vpack.c.bf16 %v3637, %v3629
        %v3646 = vpack.c.bf16 %v3638, %v3630
        %v3647 = vpack.c.bf16 %v3639, %v3631
        %v3648 = vpack.c.bf16 %v3640, %v3632
        %v3649 = vpack.c.bf16 %v3641, %v3633
        %v3650 = vpack.c.bf16 %v3642, %v3634
        %v3651 = vpack.c.bf16 %v3643, %v3635
        %v3652 = vld [vmem:[#allocation15] sm:$0xff]
        %v3653 = vld [vmem:[#allocation15 + $0x8] sm:$0xff]
        %v3654 = vld [vmem:[#allocation15 + $0x10] sm:$0xff]
        %v3655 = vld [vmem:[#allocation15 + $0x18] sm:$0xff]
        %v3656 = vld [vmem:[#allocation15 + $0x20] sm:$0xff]
        %v3657 = vld [vmem:[#allocation15 + $0x28] sm:$0xff]
        %v3658 = vld [vmem:[#allocation15 + $0x30] sm:$0xff]
        %v3659 = vld [vmem:[#allocation15 + $0x38] sm:$0xff]
        %v3660 = vld [vmem:[#allocation15 + $0x40] sm:$0xff]
        %v3661 = vld [vmem:[#allocation15 + $0x48] sm:$0xff]
        %v3662 = vld [vmem:[#allocation15 + $0x50] sm:$0xff]
        %v3663 = vld [vmem:[#allocation15 + $0x58] sm:$0xff]
        %v3664 = vld [vmem:[#allocation15 + $0x60] sm:$0xff]
        %v3665 = vld [vmem:[#allocation15 + $0x68] sm:$0xff]
        %v3666 = vld [vmem:[#allocation15 + $0x70] sm:$0xff]
        %v3667 = vld [vmem:[#allocation15 + $0x78] sm:$0xff]
        %v3668 = vld [vmem:[#allocation15 + $0x80] sm:$0xff]
        %v3669 = vld [vmem:[#allocation15 + $0x88] sm:$0xff]
        %v3670 = vld [vmem:[#allocation15 + $0x90] sm:$0xff]
        %v3671 = vld [vmem:[#allocation15 + $0x98] sm:$0xff]
        %v3672 = vld [vmem:[#allocation15 + $0xa0] sm:$0xff]
        %v3673 = vld [vmem:[#allocation15 + $0xa8] sm:$0xff]
        %v3674 = vld [vmem:[#allocation15 + $0xb0] sm:$0xff]
        %v3675 = vld [vmem:[#allocation15 + $0xb8] sm:$0xff]
        %v3676 = vld [vmem:[#allocation15 + $0xc0] sm:$0xff]
        %v3677 = vld [vmem:[#allocation15 + $0xc8] sm:$0xff]
        %v3678 = vld [vmem:[#allocation15 + $0xd0] sm:$0xff]
        %v3679 = vld [vmem:[#allocation15 + $0xd8] sm:$0xff]
        %v3680 = vld [vmem:[#allocation15 + $0xe0] sm:$0xff]
        %v3681 = vld [vmem:[#allocation15 + $0xe8] sm:$0xff]
        %v3682 = vld [vmem:[#allocation15 + $0xf0] sm:$0xff]
        %v3683 = vld [vmem:[#allocation15 + $0xf8] sm:$0xff]
        %v3684 = vld [vmem:[#allocation15 + $0x100] sm:$0xff]
        %v3685 = vld [vmem:[#allocation15 + $0x108] sm:$0xff]
        %v3686 = vld [vmem:[#allocation15 + $0x110] sm:$0xff]
        %v3687 = vld [vmem:[#allocation15 + $0x118] sm:$0xff]
        %v3688 = vld [vmem:[#allocation15 + $0x120] sm:$0xff]
        %v3689 = vld [vmem:[#allocation15 + $0x128] sm:$0xff]
        %v3690 = vld [vmem:[#allocation15 + $0x130] sm:$0xff]
        %v3691 = vld [vmem:[#allocation15 + $0x138] sm:$0xff]
        %v3692 = vld [vmem:[#allocation15 + $0x140] sm:$0xff]
        %v3693 = vld [vmem:[#allocation15 + $0x148] sm:$0xff]
        %v3694 = vld [vmem:[#allocation15 + $0x150] sm:$0xff]
        %v3695 = vld [vmem:[#allocation15 + $0x158] sm:$0xff]
        %v3696 = vld [vmem:[#allocation15 + $0x160] sm:$0xff]
        %v3697 = vld [vmem:[#allocation15 + $0x168] sm:$0xff]
        %v3698 = vld [vmem:[#allocation15 + $0x170] sm:$0xff]
        %v3699 = vld [vmem:[#allocation15 + $0x178] sm:$0xff]
        %v3700 = vld [vmem:[#allocation15 + $0x180] sm:$0xff]
        %v3701 = vld [vmem:[#allocation15 + $0x188] sm:$0xff]
        %v3702 = vld [vmem:[#allocation15 + $0x190] sm:$0xff]
        %v3703 = vld [vmem:[#allocation15 + $0x198] sm:$0xff]
        %v3704 = vld [vmem:[#allocation15 + $0x1a0] sm:$0xff]
        %v3705 = vld [vmem:[#allocation15 + $0x1a8] sm:$0xff]
        %v3706 = vld [vmem:[#allocation15 + $0x1b0] sm:$0xff]
        %v3707 = vld [vmem:[#allocation15 + $0x1b8] sm:$0xff]
        %v3708 = vld [vmem:[#allocation15 + $0x1c0] sm:$0xff]
        %v3709 = vld [vmem:[#allocation15 + $0x1c8] sm:$0xff]
        %v3710 = vld [vmem:[#allocation15 + $0x1d0] sm:$0xff]
        %v3711 = vld [vmem:[#allocation15 + $0x1d8] sm:$0xff]
        %v3712 = vld [vmem:[#allocation15 + $0x1e0] sm:$0xff]
        %v3713 = vld [vmem:[#allocation15 + $0x1e8] sm:$0xff]
        %v3714 = vld [vmem:[#allocation15 + $0x1f0] sm:$0xff]
        %v3715 = vld [vmem:[#allocation15 + $0x1f8] sm:$0xff]
        %v3716 = vld [vmem:[#allocation15 + $0x200] sm:$0xff]
        %v3717 = vld [vmem:[#allocation15 + $0x208] sm:$0xff]
        %v3718 = vld [vmem:[#allocation15 + $0x210] sm:$0xff]
        %v3719 = vld [vmem:[#allocation15 + $0x218] sm:$0xff]
        %v3720 = vld [vmem:[#allocation15 + $0x220] sm:$0xff]
        %v3721 = vld [vmem:[#allocation15 + $0x228] sm:$0xff]
        %v3722 = vld [vmem:[#allocation15 + $0x230] sm:$0xff]
        %v3723 = vld [vmem:[#allocation15 + $0x238] sm:$0xff]
        %v3724 = vld [vmem:[#allocation15 + $0x240] sm:$0xff]
        %v3725 = vld [vmem:[#allocation15 + $0x248] sm:$0xff]
        %v3726 = vld [vmem:[#allocation15 + $0x250] sm:$0xff]
        %v3727 = vld [vmem:[#allocation15 + $0x258] sm:$0xff]
        %v3728 = vld [vmem:[#allocation15 + $0x260] sm:$0xff]
        %v3729 = vld [vmem:[#allocation15 + $0x268] sm:$0xff]
        %v3730 = vld [vmem:[#allocation15 + $0x270] sm:$0xff]
        %v3731 = vld [vmem:[#allocation15 + $0x278] sm:$0xff]
        %v3732 = vld [vmem:[#allocation15 + $0x280] sm:$0xff]
        %v3733 = vld [vmem:[#allocation15 + $0x288] sm:$0xff]
        %v3734 = vld [vmem:[#allocation15 + $0x290] sm:$0xff]
        %v3735 = vld [vmem:[#allocation15 + $0x298] sm:$0xff]
        %v3736 = vld [vmem:[#allocation15 + $0x2a0] sm:$0xff]
        %v3737 = vld [vmem:[#allocation15 + $0x2a8] sm:$0xff]
        %v3738 = vld [vmem:[#allocation15 + $0x2b0] sm:$0xff]
        %v3739 = vld [vmem:[#allocation15 + $0x2b8] sm:$0xff]
        %v3740 = vld [vmem:[#allocation15 + $0x2c0] sm:$0xff]
        %v3741 = vld [vmem:[#allocation15 + $0x2c8] sm:$0xff]
        %v3742 = vld [vmem:[#allocation15 + $0x2d0] sm:$0xff]
        %v3743 = vld [vmem:[#allocation15 + $0x2d8] sm:$0xff]
        %v3744 = vld [vmem:[#allocation15 + $0x2e0] sm:$0xff]
        %v3745 = vld [vmem:[#allocation15 + $0x2e8] sm:$0xff]
        %v3746 = vld [vmem:[#allocation15 + $0x2f0] sm:$0xff]
        %v3747 = vld [vmem:[#allocation15 + $0x2f8] sm:$0xff]
        %v3748 = vld [vmem:[#allocation15 + $0x300] sm:$0xff]
        %v3749 = vld [vmem:[#allocation15 + $0x308] sm:$0xff]
        %v3750 = vld [vmem:[#allocation15 + $0x310] sm:$0xff]
        %v3751 = vld [vmem:[#allocation15 + $0x318] sm:$0xff]
        %v3752 = vld [vmem:[#allocation15 + $0x320] sm:$0xff]
        %v3753 = vld [vmem:[#allocation15 + $0x328] sm:$0xff]
        %v3754 = vld [vmem:[#allocation15 + $0x330] sm:$0xff]
        %v3755 = vld [vmem:[#allocation15 + $0x338] sm:$0xff]
        %v3756 = vld [vmem:[#allocation15 + $0x340] sm:$0xff]
        %v3757 = vld [vmem:[#allocation15 + $0x348] sm:$0xff]
        %v3758 = vld [vmem:[#allocation15 + $0x350] sm:$0xff]
        %v3759 = vld [vmem:[#allocation15 + $0x358] sm:$0xff]
        %v3760 = vld [vmem:[#allocation15 + $0x360] sm:$0xff]
        %v3761 = vld [vmem:[#allocation15 + $0x368] sm:$0xff]
        %v3762 = vld [vmem:[#allocation15 + $0x370] sm:$0xff]
        %v3763 = vld [vmem:[#allocation15 + $0x378] sm:$0xff]
        %v3764 = vld [vmem:[#allocation15 + $0x380] sm:$0xff]
        %v3765 = vld [vmem:[#allocation15 + $0x388] sm:$0xff]
        %v3766 = vld [vmem:[#allocation15 + $0x390] sm:$0xff]
        %v3767 = vld [vmem:[#allocation15 + $0x398] sm:$0xff]
        %v3768 = vld [vmem:[#allocation15 + $0x3a0] sm:$0xff]
        %v3769 = vld [vmem:[#allocation15 + $0x3a8] sm:$0xff]
        %v3770 = vld [vmem:[#allocation15 + $0x3b0] sm:$0xff]
        %v3771 = vld [vmem:[#allocation15 + $0x3b8] sm:$0xff]
        %v3772 = vld [vmem:[#allocation15 + $0x3c0] sm:$0xff]
        %v3773 = vld [vmem:[#allocation15 + $0x3c8] sm:$0xff]
        %v3774 = vld [vmem:[#allocation15 + $0x3d0] sm:$0xff]
        %v3775 = vld [vmem:[#allocation15 + $0x3d8] sm:$0xff]
        %v3776 = vld [vmem:[#allocation15 + $0x3e0] sm:$0xff]
        %v3777 = vld [vmem:[#allocation15 + $0x3e8] sm:$0xff]
        %v3778 = vld [vmem:[#allocation15 + $0x3f0] sm:$0xff]
        %v3779 = vld [vmem:[#allocation15 + $0x3f8] sm:$0xff]
        %v3780 = vld [vmem:[#allocation16] sm:$0x3]
        %v3782 = vperm.slane %v3780, 0
        %v3783 = vperm.slane %v3780, 1
        %v3914 = vunpack.c.l.b16 %v3652
        %v3915 = vunpack.c.h.b16 %v3652
        %v3916 = vunpack.c.l.b16 %v3653
        %v3917 = vunpack.c.h.b16 %v3653
        %v3918 = vunpack.c.l.b16 %v3654
        %v3919 = vunpack.c.h.b16 %v3654
        %v3920 = vunpack.c.l.b16 %v3655
        %v3921 = vunpack.c.h.b16 %v3655
        %v3922 = vunpack.c.l.b16 %v3656
        %v3923 = vunpack.c.h.b16 %v3656
        %v3924 = vunpack.c.l.b16 %v3657
        %v3925 = vunpack.c.h.b16 %v3657
        %v3926 = vunpack.c.l.b16 %v3658
        %v3927 = vunpack.c.h.b16 %v3658
        %v3928 = vunpack.c.l.b16 %v3659
        %v3929 = vunpack.c.h.b16 %v3659
        %v3930 = vunpack.c.l.b16 %v3660
        %v3931 = vunpack.c.h.b16 %v3660
        %v3932 = vunpack.c.l.b16 %v3661
        %v3933 = vunpack.c.h.b16 %v3661
        %v3934 = vunpack.c.l.b16 %v3662
        %v3935 = vunpack.c.h.b16 %v3662
        %v3936 = vunpack.c.l.b16 %v3663
        %v3937 = vunpack.c.h.b16 %v3663
        %v3938 = vunpack.c.l.b16 %v3664
        %v3939 = vunpack.c.h.b16 %v3664
        %v3940 = vunpack.c.l.b16 %v3665
        %v3941 = vunpack.c.h.b16 %v3665
        %v3942 = vunpack.c.l.b16 %v3666
        %v3943 = vunpack.c.h.b16 %v3666
        %v3944 = vunpack.c.l.b16 %v3667
        %v3945 = vunpack.c.h.b16 %v3667
        %v3946 = vunpack.c.l.b16 %v3668
        %v3947 = vunpack.c.h.b16 %v3668
        %v3948 = vunpack.c.l.b16 %v3669
        %v3949 = vunpack.c.h.b16 %v3669
        %v3950 = vunpack.c.l.b16 %v3670
        %v3951 = vunpack.c.h.b16 %v3670
        %v3952 = vunpack.c.l.b16 %v3671
        %v3953 = vunpack.c.h.b16 %v3671
        %v3954 = vunpack.c.l.b16 %v3672
        %v3955 = vunpack.c.h.b16 %v3672
        %v3956 = vunpack.c.l.b16 %v3673
        %v3957 = vunpack.c.h.b16 %v3673
        %v3958 = vunpack.c.l.b16 %v3674
        %v3959 = vunpack.c.h.b16 %v3674
        %v3960 = vunpack.c.l.b16 %v3675
        %v3961 = vunpack.c.h.b16 %v3675
        %v3962 = vunpack.c.l.b16 %v3676
        %v3963 = vunpack.c.h.b16 %v3676
        %v3964 = vunpack.c.l.b16 %v3677
        %v3965 = vunpack.c.h.b16 %v3677
        %v3966 = vunpack.c.l.b16 %v3678
        %v3967 = vunpack.c.h.b16 %v3678
        %v3968 = vunpack.c.l.b16 %v3679
        %v3969 = vunpack.c.h.b16 %v3679
        %v3970 = vunpack.c.l.b16 %v3680
        %v3971 = vunpack.c.h.b16 %v3680
        %v3972 = vunpack.c.l.b16 %v3681
        %v3973 = vunpack.c.h.b16 %v3681
        %v3974 = vunpack.c.l.b16 %v3682
        %v3975 = vunpack.c.h.b16 %v3682
        %v3976 = vunpack.c.l.b16 %v3683
        %v3977 = vunpack.c.h.b16 %v3683
        %v3978 = vunpack.c.l.b16 %v3684
        %v3979 = vunpack.c.h.b16 %v3684
        %v3980 = vunpack.c.l.b16 %v3685
        %v3981 = vunpack.c.h.b16 %v3685
        %v3982 = vunpack.c.l.b16 %v3686
        %v3983 = vunpack.c.h.b16 %v3686
        %v3984 = vunpack.c.l.b16 %v3687
        %v3985 = vunpack.c.h.b16 %v3687
        %v3986 = vunpack.c.l.b16 %v3688
        %v3987 = vunpack.c.h.b16 %v3688
        %v3988 = vunpack.c.l.b16 %v3689
        %v3989 = vunpack.c.h.b16 %v3689
        %v3990 = vunpack.c.l.b16 %v3690
        %v3991 = vunpack.c.h.b16 %v3690
        %v3992 = vunpack.c.l.b16 %v3691
        %v3993 = vunpack.c.h.b16 %v3691
        %v3994 = vunpack.c.l.b16 %v3692
        %v3995 = vunpack.c.h.b16 %v3692
        %v3996 = vunpack.c.l.b16 %v3693
        %v3997 = vunpack.c.h.b16 %v3693
        %v3998 = vunpack.c.l.b16 %v3694
        %v3999 = vunpack.c.h.b16 %v3694
        %v4000 = vunpack.c.l.b16 %v3695
        %v4001 = vunpack.c.h.b16 %v3695
        %v4002 = vunpack.c.l.b16 %v3696
        %v4003 = vunpack.c.h.b16 %v3696
        %v4004 = vunpack.c.l.b16 %v3697
        %v4005 = vunpack.c.h.b16 %v3697
        %v4006 = vunpack.c.l.b16 %v3698
        %v4007 = vunpack.c.h.b16 %v3698
        %v4008 = vunpack.c.l.b16 %v3699
        %v4009 = vunpack.c.h.b16 %v3699
        %v4010 = vunpack.c.l.b16 %v3700
        %v4011 = vunpack.c.h.b16 %v3700
        %v4012 = vunpack.c.l.b16 %v3701
        %v4013 = vunpack.c.h.b16 %v3701
        %v4014 = vunpack.c.l.b16 %v3702
        %v4015 = vunpack.c.h.b16 %v3702
        %v4016 = vunpack.c.l.b16 %v3703
        %v4017 = vunpack.c.h.b16 %v3703
        %v4018 = vunpack.c.l.b16 %v3704
        %v4019 = vunpack.c.h.b16 %v3704
        %v4020 = vunpack.c.l.b16 %v3705
        %v4021 = vunpack.c.h.b16 %v3705
        %v4022 = vunpack.c.l.b16 %v3706
        %v4023 = vunpack.c.h.b16 %v3706
        %v4024 = vunpack.c.l.b16 %v3707
        %v4025 = vunpack.c.h.b16 %v3707
        %v4026 = vunpack.c.l.b16 %v3708
        %v4027 = vunpack.c.h.b16 %v3708
        %v4028 = vunpack.c.l.b16 %v3709
        %v4029 = vunpack.c.h.b16 %v3709
        %v4030 = vunpack.c.l.b16 %v3710
        %v4031 = vunpack.c.h.b16 %v3710
        %v4032 = vunpack.c.l.b16 %v3711
        %v4033 = vunpack.c.h.b16 %v3711
        %v4034 = vunpack.c.l.b16 %v3712
        %v4035 = vunpack.c.h.b16 %v3712
        %v4036 = vunpack.c.l.b16 %v3713
        %v4037 = vunpack.c.h.b16 %v3713
        %v4038 = vunpack.c.l.b16 %v3714
        %v4039 = vunpack.c.h.b16 %v3714
        %v4040 = vunpack.c.l.b16 %v3715
        %v4041 = vunpack.c.h.b16 %v3715
        %v4042 = vunpack.c.l.b16 %v3716
        %v4043 = vunpack.c.h.b16 %v3716
        %v4044 = vunpack.c.l.b16 %v3717
        %v4045 = vunpack.c.h.b16 %v3717
        %v4046 = vunpack.c.l.b16 %v3718
        %v4047 = vunpack.c.h.b16 %v3718
        %v4048 = vunpack.c.l.b16 %v3719
        %v4049 = vunpack.c.h.b16 %v3719
        %v4050 = vunpack.c.l.b16 %v3720
        %v4051 = vunpack.c.h.b16 %v3720
        %v4052 = vunpack.c.l.b16 %v3721
        %v4053 = vunpack.c.h.b16 %v3721
        %v4054 = vunpack.c.l.b16 %v3722
        %v4055 = vunpack.c.h.b16 %v3722
        %v4056 = vunpack.c.l.b16 %v3723
        %v4057 = vunpack.c.h.b16 %v3723
        %v4058 = vunpack.c.l.b16 %v3724
        %v4059 = vunpack.c.h.b16 %v3724
        %v4060 = vunpack.c.l.b16 %v3725
        %v4061 = vunpack.c.h.b16 %v3725
        %v4062 = vunpack.c.l.b16 %v3726
        %v4063 = vunpack.c.h.b16 %v3726
        %v4064 = vunpack.c.l.b16 %v3727
        %v4065 = vunpack.c.h.b16 %v3727
        %v4066 = vunpack.c.l.b16 %v3728
        %v4067 = vunpack.c.h.b16 %v3728
        %v4068 = vunpack.c.l.b16 %v3729
        %v4069 = vunpack.c.h.b16 %v3729
        %v4070 = vunpack.c.l.b16 %v3730
        %v4071 = vunpack.c.h.b16 %v3730
        %v4072 = vunpack.c.l.b16 %v3731
        %v4073 = vunpack.c.h.b16 %v3731
        %v4074 = vunpack.c.l.b16 %v3732
        %v4075 = vunpack.c.h.b16 %v3732
        %v4076 = vunpack.c.l.b16 %v3733
        %v4077 = vunpack.c.h.b16 %v3733
        %v4078 = vunpack.c.l.b16 %v3734
        %v4079 = vunpack.c.h.b16 %v3734
        %v4080 = vunpack.c.l.b16 %v3735
        %v4081 = vunpack.c.h.b16 %v3735
        %v4082 = vunpack.c.l.b16 %v3736
        %v4083 = vunpack.c.h.b16 %v3736
        %v4084 = vunpack.c.l.b16 %v3737
        %v4085 = vunpack.c.h.b16 %v3737
        %v4086 = vunpack.c.l.b16 %v3738
        %v4087 = vunpack.c.h.b16 %v3738
        %v4088 = vunpack.c.l.b16 %v3739
        %v4089 = vunpack.c.h.b16 %v3739
        %v4090 = vunpack.c.l.b16 %v3740
        %v4091 = vunpack.c.h.b16 %v3740
        %v4092 = vunpack.c.l.b16 %v3741
        %v4093 = vunpack.c.h.b16 %v3741
        %v4094 = vunpack.c.l.b16 %v3742
        %v4095 = vunpack.c.h.b16 %v3742
        %v4096 = vunpack.c.l.b16 %v3743
        %v4097 = vunpack.c.h.b16 %v3743
        %v4098 = vunpack.c.l.b16 %v3744
        %v4099 = vunpack.c.h.b16 %v3744
        %v4100 = vunpack.c.l.b16 %v3745
        %v4101 = vunpack.c.h.b16 %v3745
        %v4102 = vunpack.c.l.b16 %v3746
        %v4103 = vunpack.c.h.b16 %v3746
        %v4104 = vunpack.c.l.b16 %v3747
        %v4105 = vunpack.c.h.b16 %v3747
        %v4106 = vunpack.c.l.b16 %v3748
        %v4107 = vunpack.c.h.b16 %v3748
        %v4108 = vunpack.c.l.b16 %v3749
        %v4109 = vunpack.c.h.b16 %v3749
        %v4110 = vunpack.c.l.b16 %v3750
        %v4111 = vunpack.c.h.b16 %v3750
        %v4112 = vunpack.c.l.b16 %v3751
        %v4113 = vunpack.c.h.b16 %v3751
        %v4114 = vunpack.c.l.b16 %v3752
        %v4115 = vunpack.c.h.b16 %v3752
        %v4116 = vunpack.c.l.b16 %v3753
        %v4117 = vunpack.c.h.b16 %v3753
        %v4118 = vunpack.c.l.b16 %v3754
        %v4119 = vunpack.c.h.b16 %v3754
        %v4120 = vunpack.c.l.b16 %v3755
        %v4121 = vunpack.c.h.b16 %v3755
        %v4122 = vunpack.c.l.b16 %v3756
        %v4123 = vunpack.c.h.b16 %v3756
        %v4124 = vunpack.c.l.b16 %v3757
        %v4125 = vunpack.c.h.b16 %v3757
        %v4126 = vunpack.c.l.b16 %v3758
        %v4127 = vunpack.c.h.b16 %v3758
        %v4128 = vunpack.c.l.b16 %v3759
        %v4129 = vunpack.c.h.b16 %v3759
        %v4130 = vunpack.c.l.b16 %v3760
        %v4131 = vunpack.c.h.b16 %v3760
        %v4132 = vunpack.c.l.b16 %v3761
        %v4133 = vunpack.c.h.b16 %v3761
        %v4134 = vunpack.c.l.b16 %v3762
        %v4135 = vunpack.c.h.b16 %v3762
        %v4136 = vunpack.c.l.b16 %v3763
        %v4137 = vunpack.c.h.b16 %v3763
        %v4138 = vunpack.c.l.b16 %v3764
        %v4139 = vunpack.c.h.b16 %v3764
        %v4140 = vunpack.c.l.b16 %v3765
        %v4141 = vunpack.c.h.b16 %v3765
        %v4142 = vunpack.c.l.b16 %v3766
        %v4143 = vunpack.c.h.b16 %v3766
        %v4144 = vunpack.c.l.b16 %v3767
        %v4145 = vunpack.c.h.b16 %v3767
        %v4146 = vunpack.c.l.b16 %v3768
        %v4147 = vunpack.c.h.b16 %v3768
        %v4148 = vunpack.c.l.b16 %v3769
        %v4149 = vunpack.c.h.b16 %v3769
        %v4150 = vunpack.c.l.b16 %v3770
        %v4151 = vunpack.c.h.b16 %v3770
        %v4152 = vunpack.c.l.b16 %v3771
        %v4153 = vunpack.c.h.b16 %v3771
        %v4154 = vunpack.c.l.b16 %v3772
        %v4155 = vunpack.c.h.b16 %v3772
        %v4156 = vunpack.c.l.b16 %v3773
        %v4157 = vunpack.c.h.b16 %v3773
        %v4158 = vunpack.c.l.b16 %v3774
        %v4159 = vunpack.c.h.b16 %v3774
        %v4160 = vunpack.c.l.b16 %v3775
        %v4161 = vunpack.c.h.b16 %v3775
        %v4162 = vunpack.c.l.b16 %v3776
        %v4163 = vunpack.c.h.b16 %v3776
        %v4164 = vunpack.c.l.b16 %v3777
        %v4165 = vunpack.c.h.b16 %v3777
        %v4166 = vunpack.c.l.b16 %v3778
        %v4167 = vunpack.c.h.b16 %v3778
        %v4168 = vunpack.c.l.b16 %v3779
        %v4169 = vunpack.c.h.b16 %v3779
        %v4170 = vpack.c.b16 %v3916, %v3914
        %v4171 = vpack.c.b16 %v3917, %v3915
        %v4172 = vpack.c.b16 %v3920, %v3918
        %v4173 = vpack.c.b16 %v3921, %v3919
        %v4174 = vpack.c.b16 %v3924, %v3922
        %v4175 = vpack.c.b16 %v3925, %v3923
        %v4176 = vpack.c.b16 %v3928, %v3926
        %v4177 = vpack.c.b16 %v3929, %v3927
        %v4178 = vpack.c.b16 %v3932, %v3930
        %v4179 = vpack.c.b16 %v3933, %v3931
        %v4180 = vpack.c.b16 %v3936, %v3934
        %v4181 = vpack.c.b16 %v3937, %v3935
        %v4182 = vpack.c.b16 %v3940, %v3938
        %v4183 = vpack.c.b16 %v3941, %v3939
        %v4184 = vpack.c.b16 %v3944, %v3942
        %v4185 = vpack.c.b16 %v3945, %v3943
        %v4186 = vpack.c.b16 %v3948, %v3946
        %v4187 = vpack.c.b16 %v3949, %v3947
        %v4188 = vpack.c.b16 %v3952, %v3950
        %v4189 = vpack.c.b16 %v3953, %v3951
        %v4190 = vpack.c.b16 %v3956, %v3954
        %v4191 = vpack.c.b16 %v3957, %v3955
        %v4192 = vpack.c.b16 %v3960, %v3958
        %v4193 = vpack.c.b16 %v3961, %v3959
        %v4194 = vpack.c.b16 %v3964, %v3962
        %v4195 = vpack.c.b16 %v3965, %v3963
        %v4196 = vpack.c.b16 %v3968, %v3966
        %v4197 = vpack.c.b16 %v3969, %v3967
        %v4198 = vpack.c.b16 %v3972, %v3970
        %v4199 = vpack.c.b16 %v3973, %v3971
        %v4200 = vpack.c.b16 %v3976, %v3974
        %v4201 = vpack.c.b16 %v3977, %v3975
        %v4202 = vpack.c.b16 %v3980, %v3978
        %v4203 = vpack.c.b16 %v3981, %v3979
        %v4204 = vpack.c.b16 %v3984, %v3982
        %v4205 = vpack.c.b16 %v3985, %v3983
        %v4206 = vpack.c.b16 %v3988, %v3986
        %v4207 = vpack.c.b16 %v3989, %v3987
        %v4208 = vpack.c.b16 %v3992, %v3990
        %v4209 = vpack.c.b16 %v3993, %v3991
        %v4210 = vpack.c.b16 %v3996, %v3994
        %v4211 = vpack.c.b16 %v3997, %v3995
        %v4212 = vpack.c.b16 %v4000, %v3998
        %v4213 = vpack.c.b16 %v4001, %v3999
        %v4214 = vpack.c.b16 %v4004, %v4002
        %v4215 = vpack.c.b16 %v4005, %v4003
        %v4216 = vpack.c.b16 %v4008, %v4006
        %v4217 = vpack.c.b16 %v4009, %v4007
        %v4218 = vpack.c.b16 %v4012, %v4010
        %v4219 = vpack.c.b16 %v4013, %v4011
        %v4220 = vpack.c.b16 %v4016, %v4014
        %v4221 = vpack.c.b16 %v4017, %v4015
        %v4222 = vpack.c.b16 %v4020, %v4018
        %v4223 = vpack.c.b16 %v4021, %v4019
        %v4224 = vpack.c.b16 %v4024, %v4022
        %v4225 = vpack.c.b16 %v4025, %v4023
        %v4226 = vpack.c.b16 %v4028, %v4026
        %v4227 = vpack.c.b16 %v4029, %v4027
        %v4228 = vpack.c.b16 %v4032, %v4030
        %v4229 = vpack.c.b16 %v4033, %v4031
        %v4230 = vpack.c.b16 %v4036, %v4034
        %v4231 = vpack.c.b16 %v4037, %v4035
        %v4232 = vpack.c.b16 %v4040, %v4038
        %v4233 = vpack.c.b16 %v4041, %v4039
        %v4234 = vpack.c.b16 %v4044, %v4042
        %v4235 = vpack.c.b16 %v4045, %v4043
        %v4236 = vpack.c.b16 %v4048, %v4046
        %v4237 = vpack.c.b16 %v4049, %v4047
        %v4238 = vpack.c.b16 %v4052, %v4050
        %v4239 = vpack.c.b16 %v4053, %v4051
        %v4240 = vpack.c.b16 %v4056, %v4054
        %v4241 = vpack.c.b16 %v4057, %v4055
        %v4242 = vpack.c.b16 %v4060, %v4058
        %v4243 = vpack.c.b16 %v4061, %v4059
        %v4244 = vpack.c.b16 %v4064, %v4062
        %v4245 = vpack.c.b16 %v4065, %v4063
        %v4246 = vpack.c.b16 %v4068, %v4066
        %v4247 = vpack.c.b16 %v4069, %v4067
        %v4248 = vpack.c.b16 %v4072, %v4070
        %v4249 = vpack.c.b16 %v4073, %v4071
        %v4250 = vpack.c.b16 %v4076, %v4074
        %v4251 = vpack.c.b16 %v4077, %v4075
        %v4252 = vpack.c.b16 %v4080, %v4078
        %v4253 = vpack.c.b16 %v4081, %v4079
        %v4254 = vpack.c.b16 %v4084, %v4082
        %v4255 = vpack.c.b16 %v4085, %v4083
        %v4256 = vpack.c.b16 %v4088, %v4086
        %v4257 = vpack.c.b16 %v4089, %v4087
        %v4258 = vpack.c.b16 %v4092, %v4090
        %v4259 = vpack.c.b16 %v4093, %v4091
        %v4260 = vpack.c.b16 %v4096, %v4094
        %v4261 = vpack.c.b16 %v4097, %v4095
        %v4262 = vpack.c.b16 %v4100, %v4098
        %v4263 = vpack.c.b16 %v4101, %v4099
        %v4264 = vpack.c.b16 %v4104, %v4102
        %v4265 = vpack.c.b16 %v4105, %v4103
        %v4266 = vpack.c.b16 %v4108, %v4106
        %v4267 = vpack.c.b16 %v4109, %v4107
        %v4268 = vpack.c.b16 %v4112, %v4110
        %v4269 = vpack.c.b16 %v4113, %v4111
        %v4270 = vpack.c.b16 %v4116, %v4114
        %v4271 = vpack.c.b16 %v4117, %v4115
        %v4272 = vpack.c.b16 %v4120, %v4118
        %v4273 = vpack.c.b16 %v4121, %v4119
        %v4274 = vpack.c.b16 %v4124, %v4122
        %v4275 = vpack.c.b16 %v4125, %v4123
        %v4276 = vpack.c.b16 %v4128, %v4126
        %v4277 = vpack.c.b16 %v4129, %v4127
        %v4278 = vpack.c.b16 %v4132, %v4130
        %v4279 = vpack.c.b16 %v4133, %v4131
        %v4280 = vpack.c.b16 %v4136, %v4134
        %v4281 = vpack.c.b16 %v4137, %v4135
        %v4282 = vpack.c.b16 %v4140, %v4138
        %v4283 = vpack.c.b16 %v4141, %v4139
        %v4284 = vpack.c.b16 %v4144, %v4142
        %v4285 = vpack.c.b16 %v4145, %v4143
        %v4286 = vpack.c.b16 %v4148, %v4146
        %v4287 = vpack.c.b16 %v4149, %v4147
        %v4288 = vpack.c.b16 %v4152, %v4150
        %v4289 = vpack.c.b16 %v4153, %v4151
        %v4290 = vpack.c.b16 %v4156, %v4154
        %v4291 = vpack.c.b16 %v4157, %v4155
        %v4292 = vpack.c.b16 %v4160, %v4158
        %v4293 = vpack.c.b16 %v4161, %v4159
        %v4294 = vpack.c.b16 %v4164, %v4162
        %v4295 = vpack.c.b16 %v4165, %v4163
        %v4296 = vpack.c.b16 %v4168, %v4166
        %v4297 = vpack.c.b16 %v4169, %v4167
        %4426 = vmatpush.bf16.msra.mxu0 %v4184
        %4427 = vmatpush.bf16.msra.mxu0 %v4182
        %4428 = vmatpush.bf16.msra.mxu0 %v4180
        %4429 = vmatpush.bf16.msra.mxu0 %v4178
        %4430 = vmatpush.bf16.msra.mxu0 %v4176
        %4431 = vmatpush.bf16.msra.mxu0 %v4174
        %4432 = vmatpush.bf16.msra.mxu0 %v4172
        %4433 = vmatpush.bf16.msra.mxu0 %v4170
        %4434 = vmatmul.bf16.gmra.mxu0 %v3644
        %v4435 = vpop.f32.mrf.mxu0
        %v4436 = vadd.f32 %v3782, %v4435
        %v4437 = vpop.f32.mrf.mxu0
        %v4438 = vadd.f32 %v3782, %v4437
        %4439 = vdwg.mxu0
        %4440 = vmatpush.bf16.msra.mxu0 %v4200
        %4441 = vmatpush.bf16.msra.mxu0 %v4198
        %4442 = vmatpush.bf16.msra.mxu0 %v4196
        %4443 = vmatpush.bf16.msra.mxu0 %v4194
        %4444 = vmatpush.bf16.msra.mxu0 %v4192
        %4445 = vmatpush.bf16.msra.mxu0 %v4190
        %4446 = vmatpush.bf16.msra.mxu0 %v4188
        %4447 = vmatpush.bf16.msra.mxu0 %v4186
        %4448 = vmatmul.bf16.gmra.mxu0 %v3645
        %v4449 = vpop.f32.mrf.mxu0
        %v4450 = vadd.f32 %v4436, %v4449
        %v4451 = vpop.f32.mrf.mxu0
        %v4452 = vadd.f32 %v4438, %v4451
        %4453 = vdwg.mxu0
        %4454 = vmatpush.bf16.msra.mxu0 %v4216
        %4455 = vmatpush.bf16.msra.mxu0 %v4214
        %4456 = vmatpush.bf16.msra.mxu0 %v4212
        %4457 = vmatpush.bf16.msra.mxu0 %v4210
        %4458 = vmatpush.bf16.msra.mxu0 %v4208
        %4459 = vmatpush.bf16.msra.mxu0 %v4206
        %4460 = vmatpush.bf16.msra.mxu0 %v4204
        %4461 = vmatpush.bf16.msra.mxu0 %v4202
        %4462 = vmatmul.bf16.gmra.mxu0 %v3646
        %v4463 = vpop.f32.mrf.mxu0
        %v4464 = vadd.f32 %v4450, %v4463
        %v4465 = vpop.f32.mrf.mxu0
        %v4466 = vadd.f32 %v4452, %v4465
        %4467 = vdwg.mxu0
        %4468 = vmatpush.bf16.msra.mxu0 %v4232
        %4469 = vmatpush.bf16.msra.mxu0 %v4230
        %4470 = vmatpush.bf16.msra.mxu0 %v4228
        %4471 = vmatpush.bf16.msra.mxu0 %v4226
        %4472 = vmatpush.bf16.msra.mxu0 %v4224
        %4473 = vmatpush.bf16.msra.mxu0 %v4222
        %4474 = vmatpush.bf16.msra.mxu0 %v4220
        %4475 = vmatpush.bf16.msra.mxu0 %v4218
        %4476 = vmatmul.bf16.gmra.mxu0 %v3647
        %v4477 = vpop.f32.mrf.mxu0
        %v4478 = vadd.f32 %v4464, %v4477
        %v4479 = vpop.f32.mrf.mxu0
        %v4480 = vadd.f32 %v4466, %v4479
        %4481 = vdwg.mxu0
        %4482 = vmatpush.bf16.msra.mxu0 %v4248
        %4483 = vmatpush.bf16.msra.mxu0 %v4246
        %4484 = vmatpush.bf16.msra.mxu0 %v4244
        %4485 = vmatpush.bf16.msra.mxu0 %v4242
        %4486 = vmatpush.bf16.msra.mxu0 %v4240
        %4487 = vmatpush.bf16.msra.mxu0 %v4238
        %4488 = vmatpush.bf16.msra.mxu0 %v4236
        %4489 = vmatpush.bf16.msra.mxu0 %v4234
        %4490 = vmatmul.bf16.gmra.mxu0 %v3648
        %v4491 = vpop.f32.mrf.mxu0
        %v4492 = vadd.f32 %v4478, %v4491
        %v4493 = vpop.f32.mrf.mxu0
        %v4494 = vadd.f32 %v4480, %v4493
        %4495 = vdwg.mxu0
        %4496 = vmatpush.bf16.msra.mxu0 %v4264
        %4497 = vmatpush.bf16.msra.mxu0 %v4262
        %4498 = vmatpush.bf16.msra.mxu0 %v4260
        %4499 = vmatpush.bf16.msra.mxu0 %v4258
        %4500 = vmatpush.bf16.msra.mxu0 %v4256
        %4501 = vmatpush.bf16.msra.mxu0 %v4254
        %4502 = vmatpush.bf16.msra.mxu0 %v4252
        %4503 = vmatpush.bf16.msra.mxu0 %v4250
        %4504 = vmatmul.bf16.gmra.mxu0 %v3649
        %v4505 = vpop.f32.mrf.mxu0
        %v4506 = vadd.f32 %v4492, %v4505
        %v4507 = vpop.f32.mrf.mxu0
        %v4508 = vadd.f32 %v4494, %v4507
        %4509 = vdwg.mxu0
        %4510 = vmatpush.bf16.msra.mxu0 %v4280
        %4511 = vmatpush.bf16.msra.mxu0 %v4278
        %4512 = vmatpush.bf16.msra.mxu0 %v4276
        %4513 = vmatpush.bf16.msra.mxu0 %v4274
        %4514 = vmatpush.bf16.msra.mxu0 %v4272
        %4515 = vmatpush.bf16.msra.mxu0 %v4270
        %4516 = vmatpush.bf16.msra.mxu0 %v4268
        %4517 = vmatpush.bf16.msra.mxu0 %v4266
        %4518 = vmatmul.bf16.gmra.mxu0 %v3650
        %v4519 = vpop.f32.mrf.mxu0
        %v4520 = vadd.f32 %v4506, %v4519
        %v4521 = vpop.f32.mrf.mxu0
        %v4522 = vadd.f32 %v4508, %v4521
        %4523 = vdwg.mxu0
        %4524 = vmatpush.bf16.msra.mxu0 %v4296
        %4525 = vmatpush.bf16.msra.mxu0 %v4294
        %4526 = vmatpush.bf16.msra.mxu0 %v4292
        %4527 = vmatpush.bf16.msra.mxu0 %v4290
        %4528 = vmatpush.bf16.msra.mxu0 %v4288
        %4529 = vmatpush.bf16.msra.mxu0 %v4286
        %4530 = vmatpush.bf16.msra.mxu0 %v4284
        %4531 = vmatpush.bf16.msra.mxu0 %v4282
        %4532 = vmatmul.bf16.gmra.mxu0 %v3651
        %v4533 = vpop.f32.mrf.mxu0
        %v4534 = vadd.f32 %v4520, %v4533
        %v4535 = vpop.f32.mrf.mxu0
        %v4536 = vadd.f32 %v4522, %v4535
        %4537 = vdwg.mxu0
        %4538 = vmatpush.bf16.msra.mxu0 %v4185
        %4539 = vmatpush.bf16.msra.mxu0 %v4183
        %4540 = vmatpush.bf16.msra.mxu0 %v4181
        %4541 = vmatpush.bf16.msra.mxu0 %v4179
        %4542 = vmatpush.bf16.msra.mxu0 %v4177
        %4543 = vmatpush.bf16.msra.mxu0 %v4175
        %4544 = vmatpush.bf16.msra.mxu0 %v4173
        %4545 = vmatpush.bf16.msra.mxu0 %v4171
        %4546 = vmatmul.bf16.gmra.mxu0 %v3644
        %v4547 = vpop.f32.mrf.mxu0
        %v4548 = vadd.f32 %v3783, %v4547
        %v4549 = vpop.f32.mrf.mxu0
        %v4550 = vadd.f32 %v3783, %v4549
        %4551 = vdwg.mxu0
        %4552 = vmatpush.bf16.msra.mxu0 %v4201
        %4553 = vmatpush.bf16.msra.mxu0 %v4199
        %4554 = vmatpush.bf16.msra.mxu0 %v4197
        %4555 = vmatpush.bf16.msra.mxu0 %v4195
        %4556 = vmatpush.bf16.msra.mxu0 %v4193
        %4557 = vmatpush.bf16.msra.mxu0 %v4191
        %4558 = vmatpush.bf16.msra.mxu0 %v4189
        %4559 = vmatpush.bf16.msra.mxu0 %v4187
        %4560 = vmatmul.bf16.gmra.mxu0 %v3645
        %v4561 = vpop.f32.mrf.mxu0
        %v4562 = vadd.f32 %v4548, %v4561
        %v4563 = vpop.f32.mrf.mxu0
        %v4564 = vadd.f32 %v4550, %v4563
        %4565 = vdwg.mxu0
        %4566 = vmatpush.bf16.msra.mxu0 %v4217
        %4567 = vmatpush.bf16.msra.mxu0 %v4215
        %4568 = vmatpush.bf16.msra.mxu0 %v4213
        %4569 = vmatpush.bf16.msra.mxu0 %v4211
        %4570 = vmatpush.bf16.msra.mxu0 %v4209
        %4571 = vmatpush.bf16.msra.mxu0 %v4207
        %4572 = vmatpush.bf16.msra.mxu0 %v4205
        %4573 = vmatpush.bf16.msra.mxu0 %v4203
        %4574 = vmatmul.bf16.gmra.mxu0 %v3646
        %v4575 = vpop.f32.mrf.mxu0
        %v4576 = vadd.f32 %v4562, %v4575
        %v4577 = vpop.f32.mrf.mxu0
        %v4578 = vadd.f32 %v4564, %v4577
        %4579 = vdwg.mxu0
        %4580 = vmatpush.bf16.msra.mxu0 %v4233
        %4581 = vmatpush.bf16.msra.mxu0 %v4231
        %4582 = vmatpush.bf16.msra.mxu0 %v4229
        %4583 = vmatpush.bf16.msra.mxu0 %v4227
        %4584 = vmatpush.bf16.msra.mxu0 %v4225
        %4585 = vmatpush.bf16.msra.mxu0 %v4223
        %4586 = vmatpush.bf16.msra.mxu0 %v4221
        %4587 = vmatpush.bf16.msra.mxu0 %v4219
        %4588 = vmatmul.bf16.gmra.mxu0 %v3647
        %v4589 = vpop.f32.mrf.mxu0
        %v4590 = vadd.f32 %v4576, %v4589
        %v4591 = vpop.f32.mrf.mxu0
        %v4592 = vadd.f32 %v4578, %v4591
        %4593 = vdwg.mxu0
        %4594 = vmatpush.bf16.msra.mxu0 %v4249
        %4595 = vmatpush.bf16.msra.mxu0 %v4247
        %4596 = vmatpush.bf16.msra.mxu0 %v4245
        %4597 = vmatpush.bf16.msra.mxu0 %v4243
        %4598 = vmatpush.bf16.msra.mxu0 %v4241
        %4599 = vmatpush.bf16.msra.mxu0 %v4239
        %4600 = vmatpush.bf16.msra.mxu0 %v4237
        %4601 = vmatpush.bf16.msra.mxu0 %v4235
        %4602 = vmatmul.bf16.gmra.mxu0 %v3648
        %v4603 = vpop.f32.mrf.mxu0
        %v4604 = vadd.f32 %v4590, %v4603
        %v4605 = vpop.f32.mrf.mxu0
        %v4606 = vadd.f32 %v4592, %v4605
        %4607 = vdwg.mxu0
        %4608 = vmatpush.bf16.msra.mxu0 %v4265
        %4609 = vmatpush.bf16.msra.mxu0 %v4263
        %4610 = vmatpush.bf16.msra.mxu0 %v4261
        %4611 = vmatpush.bf16.msra.mxu0 %v4259
        %4612 = vmatpush.bf16.msra.mxu0 %v4257
        %4613 = vmatpush.bf16.msra.mxu0 %v4255
        %4614 = vmatpush.bf16.msra.mxu0 %v4253
        %4615 = vmatpush.bf16.msra.mxu0 %v4251
        %4616 = vmatmul.bf16.gmra.mxu0 %v3649
        %v4617 = vpop.f32.mrf.mxu0
        %v4618 = vadd.f32 %v4604, %v4617
        %v4619 = vpop.f32.mrf.mxu0
        %v4620 = vadd.f32 %v4606, %v4619
        %4621 = vdwg.mxu0
        %4622 = vmatpush.bf16.msra.mxu0 %v4281
        %4623 = vmatpush.bf16.msra.mxu0 %v4279
        %4624 = vmatpush.bf16.msra.mxu0 %v4277
        %4625 = vmatpush.bf16.msra.mxu0 %v4275
        %4626 = vmatpush.bf16.msra.mxu0 %v4273
        %4627 = vmatpush.bf16.msra.mxu0 %v4271
        %4628 = vmatpush.bf16.msra.mxu0 %v4269
        %4629 = vmatpush.bf16.msra.mxu0 %v4267
        %4630 = vmatmul.bf16.gmra.mxu0 %v3650
        %v4631 = vpop.f32.mrf.mxu0
        %v4632 = vadd.f32 %v4618, %v4631
        %v4633 = vpop.f32.mrf.mxu0
        %v4634 = vadd.f32 %v4620, %v4633
        %4635 = vdwg.mxu0
        %4636 = vmatpush.bf16.msra.mxu0 %v4297
        %4637 = vmatpush.bf16.msra.mxu0 %v4295
        %4638 = vmatpush.bf16.msra.mxu0 %v4293
        %4639 = vmatpush.bf16.msra.mxu0 %v4291
        %4640 = vmatpush.bf16.msra.mxu0 %v4289
        %4641 = vmatpush.bf16.msra.mxu0 %v4287
        %4642 = vmatpush.bf16.msra.mxu0 %v4285
        %4643 = vmatpush.bf16.msra.mxu0 %v4283
        %4644 = vmatmul.bf16.gmra.mxu0 %v3651
        %v4645 = vpop.f32.mrf.mxu0
        %v4646 = vadd.f32 %v4632, %v4645
        %v4647 = vpop.f32.mrf.mxu0
        %v4648 = vadd.f32 %v4634, %v4647
        %4649 = vdwg.mxu0
        %v4650 = vadd.f32 %v2484, %v4534
        %v4651 = vadd.f32 %v2485, %v4646
        %v4652 = vadd.f32 %v2486, %v4536
        %v4653 = vadd.f32 %v2487, %v4648
        %v4654 = vld [vmem:[%s15] sm:$0x3]
        %v4655 = vld [vmem:[%s16] sm:$0x3]
        %v4656 = vadd.f32 %v4650, %v4651
        %4657 = vadd.xlane.f32.xlu0 %v4656
        %v4658 = vpop.xlane.xlu0 %4657
        %v4659 = vadd.f32 %v4652, %v4653
        %4660 = vadd.xlane.f32.xlu0 %v4659
        %v4661 = vpop.xlane.xlu0 %4660
        %v4662 = vmul.f32 %v4658, %v988
        %v4663 = vmul.f32 %v4661, %v988
        %v4664 = vsub.f32 %v4650, %v4662
        %v4665 = vsub.f32 %v4651, %v4662
        %v4666 = vsub.f32 %v4652, %v4663
        %v4667 = vsub.f32 %v4653, %v4663
        %v4668 = vmul.f32 %v4664, %v4664
        %v4669 = vmul.f32 %v4665, %v4665
        %v4670 = vmul.f32 %v4666, %v4666
        %v4671 = vmul.f32 %v4667, %v4667
        %v4672 = vadd.f32 %v4668, %v4669
        %4673 = vadd.xlane.f32.xlu0 %v4672
        %v4674 = vpop.xlane.xlu0 %4673
        %v4675 = vadd.f32 %v4670, %v4671
        %4676 = vadd.xlane.f32.xlu0 %v4675
        %v4677 = vpop.xlane.xlu0 %4676
        %v4678 = vmul.f32 %v4674, %v988
        %v4679 = vmul.f32 %v4677, %v988
        %v4680 = vadd.f32 %v4678, 1e-12
        %v4681 = vadd.f32 %v4679, 1e-12
        %v4682 = vrsqrt.pop %v4680
        %v4683 = vmul.f32 %v4682, %v4680
        %v4684 = vmul.f32 %v4683, %v4682
        %v4685 = vmul.f32 0.5, %v4684
        %v4686 = vsub.f32 1.5, %v4685
        %v4687 = vmul.f32 %v4682, %v4686
        %vm4688 = vweird.f32 %v4680
        %vm4689 = vweird.f32 %v4682
        %vm4690 = vmor %vm4688, %vm4689
        %v4691 = vsel %vm4690, %v4682, %v4687
        %v4692 = vrsqrt.pop %v4681
        %v4693 = vmul.f32 %v4692, %v4681
        %v4694 = vmul.f32 %v4693, %v4692
        %v4695 = vmul.f32 0.5, %v4694
        %v4696 = vsub.f32 1.5, %v4695
        %v4697 = vmul.f32 %v4692, %v4696
        %vm4698 = vweird.f32 %v4681
        %vm4699 = vweird.f32 %v4692
        %vm4700 = vmor %vm4698, %vm4699
        %v4701 = vsel %vm4700, %v4692, %v4697
        %v4702 = vmul.f32 %v4664, %v4691
        %v4703 = vmul.f32 %v4665, %v4691
        %v4704 = vmul.f32 %v4666, %v4701
        %v4705 = vmul.f32 %v4667, %v4701
        %v4707 = vperm.slane %v4654, 0
        %v4708 = vperm.slane %v4654, 1
        %v4711 = vmul.f32 %v4702, %v4707
        %v4712 = vmul.f32 %v4703, %v4708
        %v4713 = vmul.f32 %v4704, %v4707
        %v4714 = vmul.f32 %v4705, %v4708
        %v4716 = vperm.slane %v4655, 0
        %v4717 = vperm.slane %v4655, 1
        %v4720 = vadd.f32 %v4711, %v4716
        %v4721 = vadd.f32 %v4712, %v4717
        %v4722 = vadd.f32 %v4713, %v4716
        %v4723 = vadd.f32 %v4714, %v4717
        %v4724 = vpack.c.bf16 %v4722, %v4720
        %v4725 = vpack.c.bf16 %v4723, %v4721
        %s4726 = scalar_lea.vmem [#allocation10], 768
        %v4727 = vld [vmem:[%s4726] sm:$0xff]
        %v4728 = vld [vmem:[%s4726 + $0x8] sm:$0xff]
        %v4729 = vld [vmem:[%s4726 + $0x10] sm:$0xff]
        %v4730 = vld [vmem:[%s4726 + $0x18] sm:$0xff]
        %v4731 = vld [vmem:[%s4726 + $0x20] sm:$0xff]
        %v4732 = vld [vmem:[%s4726 + $0x28] sm:$0xff]
        %v4733 = vld [vmem:[%s4726 + $0x30] sm:$0xff]
        %v4734 = vld [vmem:[%s4726 + $0x38] sm:$0xff]
        %v4735 = vld [vmem:[%s4726 + $0x40] sm:$0xff]
        %v4736 = vld [vmem:[%s4726 + $0x48] sm:$0xff]
        %v4737 = vld [vmem:[%s4726 + $0x50] sm:$0xff]
        %v4738 = vld [vmem:[%s4726 + $0x58] sm:$0xff]
        %v4739 = vld [vmem:[%s4726 + $0x60] sm:$0xff]
        %v4740 = vld [vmem:[%s4726 + $0x68] sm:$0xff]
        %v4741 = vld [vmem:[%s4726 + $0x70] sm:$0xff]
        %v4742 = vld [vmem:[%s4726 + $0x78] sm:$0xff]
        %v4743 = vld [vmem:[%s4726 + $0x80] sm:$0xff]
        %v4744 = vld [vmem:[%s4726 + $0x88] sm:$0xff]
        %v4745 = vld [vmem:[%s4726 + $0x90] sm:$0xff]
        %v4746 = vld [vmem:[%s4726 + $0x98] sm:$0xff]
        %v4747 = vld [vmem:[%s4726 + $0xa0] sm:$0xff]
        %v4748 = vld [vmem:[%s4726 + $0xa8] sm:$0xff]
        %v4749 = vld [vmem:[%s4726 + $0xb0] sm:$0xff]
        %v4750 = vld [vmem:[%s4726 + $0xb8] sm:$0xff]
        %v4751 = vld [vmem:[%s4726 + $0xc0] sm:$0xff]
        %v4752 = vld [vmem:[%s4726 + $0xc8] sm:$0xff]
        %v4753 = vld [vmem:[%s4726 + $0xd0] sm:$0xff]
        %v4754 = vld [vmem:[%s4726 + $0xd8] sm:$0xff]
        %v4755 = vld [vmem:[%s4726 + $0xe0] sm:$0xff]
        %v4756 = vld [vmem:[%s4726 + $0xe8] sm:$0xff]
        %v4757 = vld [vmem:[%s4726 + $0xf0] sm:$0xff]
        %v4758 = vld [vmem:[%s4726 + $0xf8] sm:$0xff]
        %v4759 = vld [vmem:[%s4726 + $0x100] sm:$0xff]
        %v4760 = vld [vmem:[%s4726 + $0x108] sm:$0xff]
        %v4761 = vld [vmem:[%s4726 + $0x110] sm:$0xff]
        %v4762 = vld [vmem:[%s4726 + $0x118] sm:$0xff]
        %v4763 = vld [vmem:[%s4726 + $0x120] sm:$0xff]
        %v4764 = vld [vmem:[%s4726 + $0x128] sm:$0xff]
        %v4765 = vld [vmem:[%s4726 + $0x130] sm:$0xff]
        %v4766 = vld [vmem:[%s4726 + $0x138] sm:$0xff]
        %v4767 = vld [vmem:[%s4726 + $0x140] sm:$0xff]
        %v4768 = vld [vmem:[%s4726 + $0x148] sm:$0xff]
        %v4769 = vld [vmem:[%s4726 + $0x150] sm:$0xff]
        %v4770 = vld [vmem:[%s4726 + $0x158] sm:$0xff]
        %v4771 = vld [vmem:[%s4726 + $0x160] sm:$0xff]
        %v4772 = vld [vmem:[%s4726 + $0x168] sm:$0xff]
        %v4773 = vld [vmem:[%s4726 + $0x170] sm:$0xff]
        %v4774 = vld [vmem:[%s4726 + $0x178] sm:$0xff]
        %v4775 = vld [vmem:[%s4726 + $0x180] sm:$0xff]
        %v4776 = vld [vmem:[%s4726 + $0x188] sm:$0xff]
        %v4777 = vld [vmem:[%s4726 + $0x190] sm:$0xff]
        %v4778 = vld [vmem:[%s4726 + $0x198] sm:$0xff]
        %v4779 = vld [vmem:[%s4726 + $0x1a0] sm:$0xff]
        %v4780 = vld [vmem:[%s4726 + $0x1a8] sm:$0xff]
        %v4781 = vld [vmem:[%s4726 + $0x1b0] sm:$0xff]
        %v4782 = vld [vmem:[%s4726 + $0x1b8] sm:$0xff]
        %v4783 = vld [vmem:[%s4726 + $0x1c0] sm:$0xff]
        %v4784 = vld [vmem:[%s4726 + $0x1c8] sm:$0xff]
        %v4785 = vld [vmem:[%s4726 + $0x1d0] sm:$0xff]
        %v4786 = vld [vmem:[%s4726 + $0x1d8] sm:$0xff]
        %v4787 = vld [vmem:[%s4726 + $0x1e0] sm:$0xff]
        %v4788 = vld [vmem:[%s4726 + $0x1e8] sm:$0xff]
        %v4789 = vld [vmem:[%s4726 + $0x1f0] sm:$0xff]
        %v4790 = vld [vmem:[%s4726 + $0x1f8] sm:$0xff]
        %v4791 = vld [vmem:[%s4726 + $0x200] sm:$0xff]
        %v4792 = vld [vmem:[%s4726 + $0x208] sm:$0xff]
        %v4793 = vld [vmem:[%s4726 + $0x210] sm:$0xff]
        %v4794 = vld [vmem:[%s4726 + $0x218] sm:$0xff]
        %v4795 = vld [vmem:[%s4726 + $0x220] sm:$0xff]
        %v4796 = vld [vmem:[%s4726 + $0x228] sm:$0xff]
        %v4797 = vld [vmem:[%s4726 + $0x230] sm:$0xff]
        %v4798 = vld [vmem:[%s4726 + $0x238] sm:$0xff]
        %v4799 = vld [vmem:[%s4726 + $0x240] sm:$0xff]
        %v4800 = vld [vmem:[%s4726 + $0x248] sm:$0xff]
        %v4801 = vld [vmem:[%s4726 + $0x250] sm:$0xff]
        %v4802 = vld [vmem:[%s4726 + $0x258] sm:$0xff]
        %v4803 = vld [vmem:[%s4726 + $0x260] sm:$0xff]
        %v4804 = vld [vmem:[%s4726 + $0x268] sm:$0xff]
        %v4805 = vld [vmem:[%s4726 + $0x270] sm:$0xff]
        %v4806 = vld [vmem:[%s4726 + $0x278] sm:$0xff]
        %v4807 = vld [vmem:[%s4726 + $0x280] sm:$0xff]
        %v4808 = vld [vmem:[%s4726 + $0x288] sm:$0xff]
        %v4809 = vld [vmem:[%s4726 + $0x290] sm:$0xff]
        %v4810 = vld [vmem:[%s4726 + $0x298] sm:$0xff]
        %v4811 = vld [vmem:[%s4726 + $0x2a0] sm:$0xff]
        %v4812 = vld [vmem:[%s4726 + $0x2a8] sm:$0xff]
        %v4813 = vld [vmem:[%s4726 + $0x2b0] sm:$0xff]
        %v4814 = vld [vmem:[%s4726 + $0x2b8] sm:$0xff]
        %v4815 = vld [vmem:[%s4726 + $0x2c0] sm:$0xff]
        %v4816 = vld [vmem:[%s4726 + $0x2c8] sm:$0xff]
        %v4817 = vld [vmem:[%s4726 + $0x2d0] sm:$0xff]
        %v4818 = vld [vmem:[%s4726 + $0x2d8] sm:$0xff]
        %v4819 = vld [vmem:[%s4726 + $0x2e0] sm:$0xff]
        %v4820 = vld [vmem:[%s4726 + $0x2e8] sm:$0xff]
        %v4821 = vld [vmem:[%s4726 + $0x2f0] sm:$0xff]
        %v4822 = vld [vmem:[%s4726 + $0x2f8] sm:$0xff]
        %s4823 = scalar_lea.vmem %s6, 6
        %v4824 = vld [vmem:[%s4823] sm:$0x3f]
        %v4826 = vperm.slane %v4824, 0
        %v4827 = vperm.slane %v4824, 1
        %v4828 = vperm.slane %v4824, 2
        %v4829 = vperm.slane %v4824, 3
        %v4830 = vperm.slane %v4824, 4
        %v4831 = vperm.slane %v4824, 5
        %v4934 = vunpack.c.l.b16 %v4727
        %v4935 = vunpack.c.h.b16 %v4727
        %v4936 = vunpack.c.l.b16 %v4728
        %v4937 = vunpack.c.h.b16 %v4728
        %v4938 = vunpack.c.l.b16 %v4729
        %v4939 = vunpack.c.h.b16 %v4729
        %v4940 = vunpack.c.l.b16 %v4730
        %v4941 = vunpack.c.h.b16 %v4730
        %v4942 = vunpack.c.l.b16 %v4731
        %v4943 = vunpack.c.h.b16 %v4731
        %v4944 = vunpack.c.l.b16 %v4732
        %v4945 = vunpack.c.h.b16 %v4732
        %v4946 = vunpack.c.l.b16 %v4733
        %v4947 = vunpack.c.h.b16 %v4733
        %v4948 = vunpack.c.l.b16 %v4734
        %v4949 = vunpack.c.h.b16 %v4734
        %v4950 = vunpack.c.l.b16 %v4735
        %v4951 = vunpack.c.h.b16 %v4735
        %v4952 = vunpack.c.l.b16 %v4736
        %v4953 = vunpack.c.h.b16 %v4736
        %v4954 = vunpack.c.l.b16 %v4737
        %v4955 = vunpack.c.h.b16 %v4737
        %v4956 = vunpack.c.l.b16 %v4738
        %v4957 = vunpack.c.h.b16 %v4738
        %v4958 = vunpack.c.l.b16 %v4739
        %v4959 = vunpack.c.h.b16 %v4739
        %v4960 = vunpack.c.l.b16 %v4740
        %v4961 = vunpack.c.h.b16 %v4740
        %v4962 = vunpack.c.l.b16 %v4741
        %v4963 = vunpack.c.h.b16 %v4741
        %v4964 = vunpack.c.l.b16 %v4742
        %v4965 = vunpack.c.h.b16 %v4742
        %v4966 = vunpack.c.l.b16 %v4743
        %v4967 = vunpack.c.h.b16 %v4743
        %v4968 = vunpack.c.l.b16 %v4744
        %v4969 = vunpack.c.h.b16 %v4744
        %v4970 = vunpack.c.l.b16 %v4745
        %v4971 = vunpack.c.h.b16 %v4745
        %v4972 = vunpack.c.l.b16 %v4746
        %v4973 = vunpack.c.h.b16 %v4746
        %v4974 = vunpack.c.l.b16 %v4747
        %v4975 = vunpack.c.h.b16 %v4747
        %v4976 = vunpack.c.l.b16 %v4748
        %v4977 = vunpack.c.h.b16 %v4748
        %v4978 = vunpack.c.l.b16 %v4749
        %v4979 = vunpack.c.h.b16 %v4749
        %v4980 = vunpack.c.l.b16 %v4750
        %v4981 = vunpack.c.h.b16 %v4750
        %v4982 = vunpack.c.l.b16 %v4751
        %v4983 = vunpack.c.h.b16 %v4751
        %v4984 = vunpack.c.l.b16 %v4752
        %v4985 = vunpack.c.h.b16 %v4752
        %v4986 = vunpack.c.l.b16 %v4753
        %v4987 = vunpack.c.h.b16 %v4753
        %v4988 = vunpack.c.l.b16 %v4754
        %v4989 = vunpack.c.h.b16 %v4754
        %v4990 = vunpack.c.l.b16 %v4755
        %v4991 = vunpack.c.h.b16 %v4755
        %v4992 = vunpack.c.l.b16 %v4756
        %v4993 = vunpack.c.h.b16 %v4756
        %v4994 = vunpack.c.l.b16 %v4757
        %v4995 = vunpack.c.h.b16 %v4757
        %v4996 = vunpack.c.l.b16 %v4758
        %v4997 = vunpack.c.h.b16 %v4758
        %v4998 = vunpack.c.l.b16 %v4759
        %v4999 = vunpack.c.h.b16 %v4759
        %v5000 = vunpack.c.l.b16 %v4760
        %v5001 = vunpack.c.h.b16 %v4760
        %v5002 = vunpack.c.l.b16 %v4761
        %v5003 = vunpack.c.h.b16 %v4761
        %v5004 = vunpack.c.l.b16 %v4762
        %v5005 = vunpack.c.h.b16 %v4762
        %v5006 = vunpack.c.l.b16 %v4763
        %v5007 = vunpack.c.h.b16 %v4763
        %v5008 = vunpack.c.l.b16 %v4764
        %v5009 = vunpack.c.h.b16 %v4764
        %v5010 = vunpack.c.l.b16 %v4765
        %v5011 = vunpack.c.h.b16 %v4765
        %v5012 = vunpack.c.l.b16 %v4766
        %v5013 = vunpack.c.h.b16 %v4766
        %v5014 = vunpack.c.l.b16 %v4767
        %v5015 = vunpack.c.h.b16 %v4767
        %v5016 = vunpack.c.l.b16 %v4768
        %v5017 = vunpack.c.h.b16 %v4768
        %v5018 = vunpack.c.l.b16 %v4769
        %v5019 = vunpack.c.h.b16 %v4769
        %v5020 = vunpack.c.l.b16 %v4770
        %v5021 = vunpack.c.h.b16 %v4770
        %v5022 = vunpack.c.l.b16 %v4771
        %v5023 = vunpack.c.h.b16 %v4771
        %v5024 = vunpack.c.l.b16 %v4772
        %v5025 = vunpack.c.h.b16 %v4772
        %v5026 = vunpack.c.l.b16 %v4773
        %v5027 = vunpack.c.h.b16 %v4773
        %v5028 = vunpack.c.l.b16 %v4774
        %v5029 = vunpack.c.h.b16 %v4774
        %v5030 = vunpack.c.l.b16 %v4775
        %v5031 = vunpack.c.h.b16 %v4775
        %v5032 = vunpack.c.l.b16 %v4776
        %v5033 = vunpack.c.h.b16 %v4776
        %v5034 = vunpack.c.l.b16 %v4777
        %v5035 = vunpack.c.h.b16 %v4777
        %v5036 = vunpack.c.l.b16 %v4778
        %v5037 = vunpack.c.h.b16 %v4778
        %v5038 = vunpack.c.l.b16 %v4779
        %v5039 = vunpack.c.h.b16 %v4779
        %v5040 = vunpack.c.l.b16 %v4780
        %v5041 = vunpack.c.h.b16 %v4780
        %v5042 = vunpack.c.l.b16 %v4781
        %v5043 = vunpack.c.h.b16 %v4781
        %v5044 = vunpack.c.l.b16 %v4782
        %v5045 = vunpack.c.h.b16 %v4782
        %v5046 = vunpack.c.l.b16 %v4783
        %v5047 = vunpack.c.h.b16 %v4783
        %v5048 = vunpack.c.l.b16 %v4784
        %v5049 = vunpack.c.h.b16 %v4784
        %v5050 = vunpack.c.l.b16 %v4785
        %v5051 = vunpack.c.h.b16 %v4785
        %v5052 = vunpack.c.l.b16 %v4786
        %v5053 = vunpack.c.h.b16 %v4786
        %v5054 = vunpack.c.l.b16 %v4787
        %v5055 = vunpack.c.h.b16 %v4787
        %v5056 = vunpack.c.l.b16 %v4788
        %v5057 = vunpack.c.h.b16 %v4788
        %v5058 = vunpack.c.l.b16 %v4789
        %v5059 = vunpack.c.h.b16 %v4789
        %v5060 = vunpack.c.l.b16 %v4790
        %v5061 = vunpack.c.h.b16 %v4790
        %v5062 = vunpack.c.l.b16 %v4791
        %v5063 = vunpack.c.h.b16 %v4791
        %v5064 = vunpack.c.l.b16 %v4792
        %v5065 = vunpack.c.h.b16 %v4792
        %v5066 = vunpack.c.l.b16 %v4793
        %v5067 = vunpack.c.h.b16 %v4793
        %v5068 = vunpack.c.l.b16 %v4794
        %v5069 = vunpack.c.h.b16 %v4794
        %v5070 = vunpack.c.l.b16 %v4795
        %v5071 = vunpack.c.h.b16 %v4795
        %v5072 = vunpack.c.l.b16 %v4796
        %v5073 = vunpack.c.h.b16 %v4796
        %v5074 = vunpack.c.l.b16 %v4797
        %v5075 = vunpack.c.h.b16 %v4797
        %v5076 = vunpack.c.l.b16 %v4798
        %v5077 = vunpack.c.h.b16 %v4798
        %v5078 = vunpack.c.l.b16 %v4799
        %v5079 = vunpack.c.h.b16 %v4799
        %v5080 = vunpack.c.l.b16 %v4800
        %v5081 = vunpack.c.h.b16 %v4800
        %v5082 = vunpack.c.l.b16 %v4801
        %v5083 = vunpack.c.h.b16 %v4801
        %v5084 = vunpack.c.l.b16 %v4802
        %v5085 = vunpack.c.h.b16 %v4802
        %v5086 = vunpack.c.l.b16 %v4803
        %v5087 = vunpack.c.h.b16 %v4803
        %v5088 = vunpack.c.l.b16 %v4804
        %v5089 = vunpack.c.h.b16 %v4804
        %v5090 = vunpack.c.l.b16 %v4805
        %v5091 = vunpack.c.h.b16 %v4805
        %v5092 = vunpack.c.l.b16 %v4806
        %v5093 = vunpack.c.h.b16 %v4806
        %v5094 = vunpack.c.l.b16 %v4807
        %v5095 = vunpack.c.h.b16 %v4807
        %v5096 = vunpack.c.l.b16 %v4808
        %v5097 = vunpack.c.h.b16 %v4808
        %v5098 = vunpack.c.l.b16 %v4809
        %v5099 = vunpack.c.h.b16 %v4809
        %v5100 = vunpack.c.l.b16 %v4810
        %v5101 = vunpack.c.h.b16 %v4810
        %v5102 = vunpack.c.l.b16 %v4811
        %v5103 = vunpack.c.h.b16 %v4811
        %v5104 = vunpack.c.l.b16 %v4812
        %v5105 = vunpack.c.h.b16 %v4812
        %v5106 = vunpack.c.l.b16 %v4813
        %v5107 = vunpack.c.h.b16 %v4813
        %v5108 = vunpack.c.l.b16 %v4814
        %v5109 = vunpack.c.h.b16 %v4814
        %v5110 = vunpack.c.l.b16 %v4815
        %v5111 = vunpack.c.h.b16 %v4815
        %v5112 = vunpack.c.l.b16 %v4816
        %v5113 = vunpack.c.h.b16 %v4816
        %v5114 = vunpack.c.l.b16 %v4817
        %v5115 = vunpack.c.h.b16 %v4817
        %v5116 = vunpack.c.l.b16 %v4818
        %v5117 = vunpack.c.h.b16 %v4818
        %v5118 = vunpack.c.l.b16 %v4819
        %v5119 = vunpack.c.h.b16 %v4819
        %v5120 = vunpack.c.l.b16 %v4820
        %v5121 = vunpack.c.h.b16 %v4820
        %v5122 = vunpack.c.l.b16 %v4821
        %v5123 = vunpack.c.h.b16 %v4821
        %v5124 = vunpack.c.l.b16 %v4822
        %v5125 = vunpack.c.h.b16 %v4822
        %v5126 = vpack.c.b16 %v4940, %v4934
        %v5127 = vpack.c.b16 %v4941, %v4935
        %v5128 = vpack.c.b16 %v4942, %v4936
        %v5129 = vpack.c.b16 %v4943, %v4937
        %v5130 = vpack.c.b16 %v4944, %v4938
        %v5131 = vpack.c.b16 %v4945, %v4939
        %v5132 = vpack.c.b16 %v4952, %v4946
        %v5133 = vpack.c.b16 %v4953, %v4947
        %v5134 = vpack.c.b16 %v4954, %v4948
        %v5135 = vpack.c.b16 %v4955, %v4949
        %v5136 = vpack.c.b16 %v4956, %v4950
        %v5137 = vpack.c.b16 %v4957, %v4951
        %v5138 = vpack.c.b16 %v4964, %v4958
        %v5139 = vpack.c.b16 %v4965, %v4959
        %v5140 = vpack.c.b16 %v4966, %v4960
        %v5141 = vpack.c.b16 %v4967, %v4961
        %v5142 = vpack.c.b16 %v4968, %v4962
        %v5143 = vpack.c.b16 %v4969, %v4963
        %v5144 = vpack.c.b16 %v4976, %v4970
        %v5145 = vpack.c.b16 %v4977, %v4971
        %v5146 = vpack.c.b16 %v4978, %v4972
        %v5147 = vpack.c.b16 %v4979, %v4973
        %v5148 = vpack.c.b16 %v4980, %v4974
        %v5149 = vpack.c.b16 %v4981, %v4975
        %v5150 = vpack.c.b16 %v4988, %v4982
        %v5151 = vpack.c.b16 %v4989, %v4983
        %v5152 = vpack.c.b16 %v4990, %v4984
        %v5153 = vpack.c.b16 %v4991, %v4985
        %v5154 = vpack.c.b16 %v4992, %v4986
        %v5155 = vpack.c.b16 %v4993, %v4987
        %v5156 = vpack.c.b16 %v5000, %v4994
        %v5157 = vpack.c.b16 %v5001, %v4995
        %v5158 = vpack.c.b16 %v5002, %v4996
        %v5159 = vpack.c.b16 %v5003, %v4997
        %v5160 = vpack.c.b16 %v5004, %v4998
        %v5161 = vpack.c.b16 %v5005, %v4999
        %v5162 = vpack.c.b16 %v5012, %v5006
        %v5163 = vpack.c.b16 %v5013, %v5007
        %v5164 = vpack.c.b16 %v5014, %v5008
        %v5165 = vpack.c.b16 %v5015, %v5009
        %v5166 = vpack.c.b16 %v5016, %v5010
        %v5167 = vpack.c.b16 %v5017, %v5011
        %v5168 = vpack.c.b16 %v5024, %v5018
        %v5169 = vpack.c.b16 %v5025, %v5019
        %v5170 = vpack.c.b16 %v5026, %v5020
        %v5171 = vpack.c.b16 %v5027, %v5021
        %v5172 = vpack.c.b16 %v5028, %v5022
        %v5173 = vpack.c.b16 %v5029, %v5023
        %v5174 = vpack.c.b16 %v5036, %v5030
        %v5175 = vpack.c.b16 %v5037, %v5031
        %v5176 = vpack.c.b16 %v5038, %v5032
        %v5177 = vpack.c.b16 %v5039, %v5033
        %v5178 = vpack.c.b16 %v5040, %v5034
        %v5179 = vpack.c.b16 %v5041, %v5035
        %v5180 = vpack.c.b16 %v5048, %v5042
        %v5181 = vpack.c.b16 %v5049, %v5043
        %v5182 = vpack.c.b16 %v5050, %v5044
        %v5183 = vpack.c.b16 %v5051, %v5045
        %v5184 = vpack.c.b16 %v5052, %v5046
        %v5185 = vpack.c.b16 %v5053, %v5047
        %v5186 = vpack.c.b16 %v5060, %v5054
        %v5187 = vpack.c.b16 %v5061, %v5055
        %v5188 = vpack.c.b16 %v5062, %v5056
        %v5189 = vpack.c.b16 %v5063, %v5057
        %v5190 = vpack.c.b16 %v5064, %v5058
        %v5191 = vpack.c.b16 %v5065, %v5059
        %v5192 = vpack.c.b16 %v5072, %v5066
        %v5193 = vpack.c.b16 %v5073, %v5067
        %v5194 = vpack.c.b16 %v5074, %v5068
        %v5195 = vpack.c.b16 %v5075, %v5069
        %v5196 = vpack.c.b16 %v5076, %v5070
        %v5197 = vpack.c.b16 %v5077, %v5071
        %v5198 = vpack.c.b16 %v5084, %v5078
        %v5199 = vpack.c.b16 %v5085, %v5079
        %v5200 = vpack.c.b16 %v5086, %v5080
        %v5201 = vpack.c.b16 %v5087, %v5081
        %v5202 = vpack.c.b16 %v5088, %v5082
        %v5203 = vpack.c.b16 %v5089, %v5083
        %v5204 = vpack.c.b16 %v5096, %v5090
        %v5205 = vpack.c.b16 %v5097, %v5091
        %v5206 = vpack.c.b16 %v5098, %v5092
        %v5207 = vpack.c.b16 %v5099, %v5093
        %v5208 = vpack.c.b16 %v5100, %v5094
        %v5209 = vpack.c.b16 %v5101, %v5095
        %v5210 = vpack.c.b16 %v5108, %v5102
        %v5211 = vpack.c.b16 %v5109, %v5103
        %v5212 = vpack.c.b16 %v5110, %v5104
        %v5213 = vpack.c.b16 %v5111, %v5105
        %v5214 = vpack.c.b16 %v5112, %v5106
        %v5215 = vpack.c.b16 %v5113, %v5107
        %v5216 = vpack.c.b16 %v5120, %v5114
        %v5217 = vpack.c.b16 %v5121, %v5115
        %v5218 = vpack.c.b16 %v5122, %v5116
        %v5219 = vpack.c.b16 %v5123, %v5117
        %v5220 = vpack.c.b16 %v5124, %v5118
        %v5221 = vpack.c.b16 %v5125, %v5119
        %5318 = vmatpush.bf16.msra.mxu0 %v5168
        %5319 = vmatpush.bf16.msra.mxu0 %v5162
        %5320 = vmatpush.bf16.msra.mxu0 %v5156
        %5321 = vmatpush.bf16.msra.mxu0 %v5150
        %5322 = vmatpush.bf16.msra.mxu0 %v5144
        %5323 = vmatpush.bf16.msra.mxu0 %v5138
        %5324 = vmatpush.bf16.msra.mxu0 %v5132
        %5325 = vmatpush.bf16.msra.mxu0 %v5126
        %5326 = vmatmul.bf16.gmra.mxu0 %v4724
        %v5327 = vpop.f32.mrf.mxu0
        %v5328 = vadd.f32 %v4826, %v5327
        %v5329 = vpop.f32.mrf.mxu0
        %v5330 = vadd.f32 %v4826, %v5329
        %5331 = vdwg.mxu0
        %5332 = vmatpush.bf16.msra.mxu0 %v5216
        %5333 = vmatpush.bf16.msra.mxu0 %v5210
        %5334 = vmatpush.bf16.msra.mxu0 %v5204
        %5335 = vmatpush.bf16.msra.mxu0 %v5198
        %5336 = vmatpush.bf16.msra.mxu0 %v5192
        %5337 = vmatpush.bf16.msra.mxu0 %v5186
        %5338 = vmatpush.bf16.msra.mxu0 %v5180
        %5339 = vmatpush.bf16.msra.mxu0 %v5174
        %5340 = vmatmul.bf16.gmra.mxu0 %v4725
        %v5341 = vpop.f32.mrf.mxu0
        %v5342 = vadd.f32 %v5328, %v5341
        %v5343 = vpop.f32.mrf.mxu0
        %v5344 = vadd.f32 %v5330, %v5343
        %5345 = vdwg.mxu0
        %5346 = vmatpush.bf16.msra.mxu0 %v5169
        %5347 = vmatpush.bf16.msra.mxu0 %v5163
        %5348 = vmatpush.bf16.msra.mxu0 %v5157
        %5349 = vmatpush.bf16.msra.mxu0 %v5151
        %5350 = vmatpush.bf16.msra.mxu0 %v5145
        %5351 = vmatpush.bf16.msra.mxu0 %v5139
        %5352 = vmatpush.bf16.msra.mxu0 %v5133
        %5353 = vmatpush.bf16.msra.mxu0 %v5127
        %5354 = vmatmul.bf16.gmra.mxu0 %v4724
        %v5355 = vpop.f32.mrf.mxu0
        %v5356 = vadd.f32 %v4827, %v5355
        %v5357 = vpop.f32.mrf.mxu0
        %v5358 = vadd.f32 %v4827, %v5357
        %5359 = vdwg.mxu0
        %5360 = vmatpush.bf16.msra.mxu0 %v5217
        %5361 = vmatpush.bf16.msra.mxu0 %v5211
        %5362 = vmatpush.bf16.msra.mxu0 %v5205
        %5363 = vmatpush.bf16.msra.mxu0 %v5199
        %5364 = vmatpush.bf16.msra.mxu0 %v5193
        %5365 = vmatpush.bf16.msra.mxu0 %v5187
        %5366 = vmatpush.bf16.msra.mxu0 %v5181
        %5367 = vmatpush.bf16.msra.mxu0 %v5175
        %5368 = vmatmul.bf16.gmra.mxu0 %v4725
        %v5369 = vpop.f32.mrf.mxu0
        %v5370 = vadd.f32 %v5356, %v5369
        %v5371 = vpop.f32.mrf.mxu0
        %v5372 = vadd.f32 %v5358, %v5371
        %5373 = vdwg.mxu0
        %5374 = vmatpush.bf16.msra.mxu0 %v5170
        %5375 = vmatpush.bf16.msra.mxu0 %v5164
        %5376 = vmatpush.bf16.msra.mxu0 %v5158
        %5377 = vmatpush.bf16.msra.mxu0 %v5152
        %5378 = vmatpush.bf16.msra.mxu0 %v5146
        %5379 = vmatpush.bf16.msra.mxu0 %v5140
        %5380 = vmatpush.bf16.msra.mxu0 %v5134
        %5381 = vmatpush.bf16.msra.mxu0 %v5128
        %5382 = vmatmul.bf16.gmra.mxu0 %v4724
        %v5383 = vpop.f32.mrf.mxu0
        %v5384 = vadd.f32 %v4828, %v5383
        %v5385 = vpop.f32.mrf.mxu0
        %v5386 = vadd.f32 %v4828, %v5385
        %5387 = vdwg.mxu0
        %5388 = vmatpush.bf16.msra.mxu0 %v5218
        %5389 = vmatpush.bf16.msra.mxu0 %v5212
        %5390 = vmatpush.bf16.msra.mxu0 %v5206
        %5391 = vmatpush.bf16.msra.mxu0 %v5200
        %5392 = vmatpush.bf16.msra.mxu0 %v5194
        %5393 = vmatpush.bf16.msra.mxu0 %v5188
        %5394 = vmatpush.bf16.msra.mxu0 %v5182
        %5395 = vmatpush.bf16.msra.mxu0 %v5176
        %5396 = vmatmul.bf16.gmra.mxu0 %v4725
        %v5397 = vpop.f32.mrf.mxu0
        %v5398 = vadd.f32 %v5384, %v5397
        %v5399 = vpop.f32.mrf.mxu0
        %v5400 = vadd.f32 %v5386, %v5399
        %5401 = vdwg.mxu0
        %5402 = vmatpush.bf16.msra.mxu0 %v5171
        %5403 = vmatpush.bf16.msra.mxu0 %v5165
        %5404 = vmatpush.bf16.msra.mxu0 %v5159
        %5405 = vmatpush.bf16.msra.mxu0 %v5153
        %5406 = vmatpush.bf16.msra.mxu0 %v5147
        %5407 = vmatpush.bf16.msra.mxu0 %v5141
        %5408 = vmatpush.bf16.msra.mxu0 %v5135
        %5409 = vmatpush.bf16.msra.mxu0 %v5129
        %5410 = vmatmul.bf16.gmra.mxu0 %v4724
        %v5411 = vpop.f32.mrf.mxu0
        %v5412 = vadd.f32 %v4829, %v5411
        %v5413 = vpop.f32.mrf.mxu0
        %v5414 = vadd.f32 %v4829, %v5413
        %5415 = vdwg.mxu0
        %5416 = vmatpush.bf16.msra.mxu0 %v5219
        %5417 = vmatpush.bf16.msra.mxu0 %v5213
        %5418 = vmatpush.bf16.msra.mxu0 %v5207
        %5419 = vmatpush.bf16.msra.mxu0 %v5201
        %5420 = vmatpush.bf16.msra.mxu0 %v5195
        %5421 = vmatpush.bf16.msra.mxu0 %v5189
        %5422 = vmatpush.bf16.msra.mxu0 %v5183
        %5423 = vmatpush.bf16.msra.mxu0 %v5177
        %5424 = vmatmul.bf16.gmra.mxu0 %v4725
        %v5425 = vpop.f32.mrf.mxu0
        %v5426 = vadd.f32 %v5412, %v5425
        %v5427 = vpop.f32.mrf.mxu0
        %v5428 = vadd.f32 %v5414, %v5427
        %5429 = vdwg.mxu0
        %5430 = vmatpush.bf16.msra.mxu0 %v5172
        %5431 = vmatpush.bf16.msra.mxu0 %v5166
        %5432 = vmatpush.bf16.msra.mxu0 %v5160
        %5433 = vmatpush.bf16.msra.mxu0 %v5154
        %5434 = vmatpush.bf16.msra.mxu0 %v5148
        %5435 = vmatpush.bf16.msra.mxu0 %v5142
        %5436 = vmatpush.bf16.msra.mxu0 %v5136
        %5437 = vmatpush.bf16.msra.mxu0 %v5130
        %5438 = vmatmul.bf16.gmra.mxu0 %v4724
        %v5439 = vpop.f32.mrf.mxu0
        %v5440 = vadd.f32 %v4830, %v5439
        %v5441 = vpop.f32.mrf.mxu0
        %v5442 = vadd.f32 %v4830, %v5441
        %5443 = vdwg.mxu0
        %5444 = vmatpush.bf16.msra.mxu0 %v5220
        %5445 = vmatpush.bf16.msra.mxu0 %v5214
        %5446 = vmatpush.bf16.msra.mxu0 %v5208
        %5447 = vmatpush.bf16.msra.mxu0 %v5202
        %5448 = vmatpush.bf16.msra.mxu0 %v5196
        %5449 = vmatpush.bf16.msra.mxu0 %v5190
        %5450 = vmatpush.bf16.msra.mxu0 %v5184
        %5451 = vmatpush.bf16.msra.mxu0 %v5178
        %5452 = vmatmul.bf16.gmra.mxu0 %v4725
        %v5453 = vpop.f32.mrf.mxu0
        %v5454 = vadd.f32 %v5440, %v5453
        %v5455 = vpop.f32.mrf.mxu0
        %v5456 = vadd.f32 %v5442, %v5455
        %5457 = vdwg.mxu0
        %5458 = vmatpush.bf16.msra.mxu0 %v5173
        %5459 = vmatpush.bf16.msra.mxu0 %v5167
        %5460 = vmatpush.bf16.msra.mxu0 %v5161
        %5461 = vmatpush.bf16.msra.mxu0 %v5155
        %5462 = vmatpush.bf16.msra.mxu0 %v5149
        %5463 = vmatpush.bf16.msra.mxu0 %v5143
        %5464 = vmatpush.bf16.msra.mxu0 %v5137
        %5465 = vmatpush.bf16.msra.mxu0 %v5131
        %5466 = vmatmul.bf16.gmra.mxu0 %v4724
        %v5467 = vpop.f32.mrf.mxu0
        %v5468 = vadd.f32 %v4831, %v5467
        %v5469 = vpop.f32.mrf.mxu0
        %v5470 = vadd.f32 %v4831, %v5469
        %5471 = vdwg.mxu0
        %5472 = vmatpush.bf16.msra.mxu0 %v5221
        %5473 = vmatpush.bf16.msra.mxu0 %v5215
        %5474 = vmatpush.bf16.msra.mxu0 %v5209
        %5475 = vmatpush.bf16.msra.mxu0 %v5203
        %5476 = vmatpush.bf16.msra.mxu0 %v5197
        %5477 = vmatpush.bf16.msra.mxu0 %v5191
        %5478 = vmatpush.bf16.msra.mxu0 %v5185
        %5479 = vmatpush.bf16.msra.mxu0 %v5179
        %5480 = vmatmul.bf16.gmra.mxu0 %v4725
        %v5481 = vpop.f32.mrf.mxu0
        %v5482 = vadd.f32 %v5468, %v5481
        %v5483 = vpop.f32.mrf.mxu0
        %v5484 = vadd.f32 %v5470, %v5483
        %5485 = vdwg.mxu0
        %5486 = vst [vmem:[#allocation2] sm:$0xff] %v5342
        %5487 = vst [vmem:[#allocation2 + $0x8] sm:$0xff] %v5370
        %5488 = vst [vmem:[#allocation2 + $0x10] sm:$0xff] %v5398
        %5489 = vst [vmem:[#allocation2 + $0x18] sm:$0xff] %v5426
        %5490 = vst [vmem:[#allocation2 + $0x20] sm:$0xff] %v5454
        %5491 = vst [vmem:[#allocation2 + $0x28] sm:$0xff] %v5482
        %5492 = vst [vmem:[#allocation2 + $0x30] sm:$0xff] %v5344
        %5493 = vst [vmem:[#allocation2 + $0x38] sm:$0xff] %v5372
        %5494 = vst [vmem:[#allocation2 + $0x40] sm:$0xff] %v5400
        %5495 = vst [vmem:[#allocation2 + $0x48] sm:$0xff] %v5428
        %5496 = vst [vmem:[#allocation2 + $0x50] sm:$0xff] %v5456
        %5497 = vst [vmem:[#allocation2 + $0x58] sm:$0xff] %v5484
        %v5498 = vld [vmem:[#allocation2] sm:$0xff]
        %v5499 = vld [vmem:[#allocation2 + $0x30] sm:$0xff]
        %v5500 = vmul.f32 %v5498, 0.125
        %v5501 = vmul.f32 %v5499, 0.125
        %v5502 = vpack.c.bf16 %v5501, %v5500
        %v5503 = vld [vmem:[#allocation2 + $0x10] sm:$0xff]
        %v5504 = vld [vmem:[#allocation2 + $0x40] sm:$0xff]
        %v5505 = vpack.c.bf16 %v5504, %v5503
        %v5506 = vld [vmem:[#allocation2 + $0x20] sm:$0xff]
        %v5507 = vld [vmem:[#allocation2 + $0x50] sm:$0xff]
        %v5508 = vpack.c.bf16 %v5507, %v5506
        %v5510 = vsel %vm1834, %v5502, 0
        %v5513 = vsel %vm1834, %v5505, 0
        %5515 = vmatpush.bf16.xpose.msra.mxu0 0
        %5516 = vmatpush.bf16.xpose.msra.mxu0 0
        %5517 = vmatpush.bf16.xpose.msra.mxu0 0
        %5518 = vmatpush.bf16.xpose.msra.mxu0 0
        %5519 = vmatpush.bf16.xpose.msra.mxu0 0
        %5520 = vmatpush.bf16.xpose.msra.mxu0 0
        %5521 = vmatpush.bf16.xpose.msra.mxu0 0
        %5522 = vmatpush.bf16.xpose.msra.mxu0 %v5513
        %5523 = vmatmul.bf16.gmra.mxu0 %v5510
        %v5524 = vpop.f32.mrf.mxu0
        %v5525 = vadd.f32 0.0, %v5524
        %v5526 = vpop.f32.mrf.mxu0
        %v5527 = vadd.f32 0.0, %v5526
        %5528 = vdwg.mxu0
        %v5529 = vsel %vm1855, %v5525, -inf
        %5530 = vmax.xlane.f32.xlu0 %v5529
        %v5531 = vpop.xlane.xlu0 %5530
        %v5532 = vsel %vm1855, %v5527, -inf
        %5533 = vmax.xlane.f32.xlu0 %v5532
        %v5534 = vpop.xlane.xlu0 %5533
        %v5535 = vsub.f32 %v5525, %v5531
        %v5536 = vsub.f32 %v5527, %v5534
        %v5537 = vmul.f32 %v5535, 1.442695
        %v5538 = vpow.pop %v5537
        %v5539 = vmul.f32 %v5536, 1.442695
        %v5540 = vpow.pop %v5539
        %v5541 = vsel %vm1855, %v5538, 0.0
        %5542 = vadd.xlane.f32.xlu0 %v5541
        %v5543 = vpop.xlane.xlu0 %5542
        %v5544 = vsel %vm1855, %v5540, 0.0
        %5545 = vadd.xlane.f32.xlu0 %v5544
        %v5546 = vpop.xlane.xlu0 %5545
        %v5547 = vrcp.pop %v5543
        %v5548 = vrcp.pop %v5546
        %v5549 = vmul.f32 %v5538, %v5547
        %v5550 = vmul.f32 %v5540, %v5548
        %v5551 = vpack.c.bf16 %v5550, %v5549
        %v5553 = vsel %vm1855, %v5551, 0
        %5555 = vmatpush.bf16.msra.mxu0 0
        %5556 = vmatpush.bf16.msra.mxu0 0
        %5557 = vmatpush.bf16.msra.mxu0 0
        %5558 = vmatpush.bf16.msra.mxu0 0
        %5559 = vmatpush.bf16.msra.mxu0 0
        %5560 = vmatpush.bf16.msra.mxu0 0
        %5561 = vmatpush.bf16.msra.mxu0 0
        %5562 = vmatpush.bf16.msra.mxu0 %v5508
        %5563 = vmatmul.bf16.gmra.mxu0 %v5553
        %v5564 = vpop.f32.mrf.mxu0
        %v5565 = vadd.f32 0.0, %v5564
        %v5566 = vpop.f32.mrf.mxu0
        %v5567 = vadd.f32 0.0, %v5566
        %5568 = vdwg.mxu0
        %5569 = vst.msk [vmem:[#allocation3] sm:$0xff] %vm1834, %v5565
        %5570 = vst.msk [vmem:[#allocation3 + $0x10] sm:$0xff] %vm1834, %v5567
        %v5571 = vld [vmem:[#allocation2] sm:$0xff]
        %v5572 = vld [vmem:[#allocation2 + $0x30] sm:$0xff]
        %v5573 = vmul.f32 %v5571, 0.125
        %v5574 = vmul.f32 %v5572, 0.125
        %v5575 = vpack.c.bf16 %v5574, %v5573
        %v5576 = vld [vmem:[#allocation2 + $0x10] sm:$0xff]
        %v5577 = vld [vmem:[#allocation2 + $0x40] sm:$0xff]
        %v5578 = vpack.c.bf16 %v5577, %v5576
        %v5579 = vld [vmem:[#allocation2 + $0x20] sm:$0xff]
        %v5580 = vld [vmem:[#allocation2 + $0x50] sm:$0xff]
        %v5581 = vpack.c.bf16 %v5580, %v5579
        %5583 = vrot.lane.b32.xlu0 %v5575, 64
        %v5584 = vpop.permute.xlu0 %5583
        %5586 = vrot.lane.b32.xlu0 %v5578, 64
        %v5587 = vpop.permute.xlu0 %5586
        %v5589 = vsel %vm1834, %v5584, 0
        %v5592 = vsel %vm1834, %v5587, 0
        %5594 = vmatpush.bf16.xpose.msra.mxu0 0
        %5595 = vmatpush.bf16.xpose.msra.mxu0 0
        %5596 = vmatpush.bf16.xpose.msra.mxu0 0
        %5597 = vmatpush.bf16.xpose.msra.mxu0 0
        %5598 = vmatpush.bf16.xpose.msra.mxu0 0
        %5599 = vmatpush.bf16.xpose.msra.mxu0 0
        %5600 = vmatpush.bf16.xpose.msra.mxu0 0
        %5601 = vmatpush.bf16.xpose.msra.mxu0 %v5592
        %5602 = vmatmul.bf16.gmra.mxu0 %v5589
        %v5603 = vpop.f32.mrf.mxu0
        %v5604 = vadd.f32 0.0, %v5603
        %v5605 = vpop.f32.mrf.mxu0
        %v5606 = vadd.f32 0.0, %v5605
        %5607 = vdwg.mxu0
        %v5608 = vsel %vm1855, %v5604, -inf
        %5609 = vmax.xlane.f32.xlu0 %v5608
        %v5610 = vpop.xlane.xlu0 %5609
        %v5611 = vsel %vm1855, %v5606, -inf
        %5612 = vmax.xlane.f32.xlu0 %v5611
        %v5613 = vpop.xlane.xlu0 %5612
        %v5614 = vsub.f32 %v5604, %v5610
        %v5615 = vsub.f32 %v5606, %v5613
        %v5616 = vmul.f32 %v5614, 1.442695
        %v5617 = vpow.pop %v5616
        %v5618 = vmul.f32 %v5615, 1.442695
        %v5619 = vpow.pop %v5618
        %v5620 = vsel %vm1855, %v5617, 0.0
        %5621 = vadd.xlane.f32.xlu0 %v5620
        %v5622 = vpop.xlane.xlu0 %5621
        %v5623 = vsel %vm1855, %v5619, 0.0
        %5624 = vadd.xlane.f32.xlu0 %v5623
        %v5625 = vpop.xlane.xlu0 %5624
        %v5626 = vrcp.pop %v5622
        %v5627 = vrcp.pop %v5625
        %v5628 = vmul.f32 %v5617, %v5626
        %v5629 = vmul.f32 %v5619, %v5627
        %v5630 = vpack.c.bf16 %v5629, %v5628
        %5632 = vrot.lane.b32.xlu0 %v5581, 64
        %v5633 = vpop.permute.xlu0 %5632
        %v5636 = vsel %vm1855, %v5630, 0
        %5638 = vmatpush.bf16.msra.mxu0 0
        %5639 = vmatpush.bf16.msra.mxu0 0
        %5640 = vmatpush.bf16.msra.mxu0 0
        %5641 = vmatpush.bf16.msra.mxu0 0
        %5642 = vmatpush.bf16.msra.mxu0 0
        %5643 = vmatpush.bf16.msra.mxu0 0
        %5644 = vmatpush.bf16.msra.mxu0 0
        %5645 = vmatpush.bf16.msra.mxu0 %v5633
        %5646 = vmatmul.bf16.gmra.mxu0 %v5636
        %v5647 = vpop.f32.mrf.mxu0
        %v5648 = vadd.f32 0.0, %v5647
        %v5649 = vpop.f32.mrf.mxu0
        %v5650 = vadd.f32 0.0, %v5649
        %5651 = vdwg.mxu0
        %5654 = vrot.lane.b32.xlu0 %v5648, 64
        %v5655 = vpop.permute.xlu0 %5654
        %5656 = vrot.lane.b32.xlu0 %v5650, 64
        %v5657 = vpop.permute.xlu0 %5656
        %5660 = vst.msk [vmem:[#allocation3] sm:$0xff] %vm1987, %v5655
        %5661 = vst.msk [vmem:[#allocation3 + $0x10] sm:$0xff] %vm1987, %v5657
        %v5662 = vld [vmem:[#allocation2 + $0x8] sm:$0xff]
        %v5663 = vld [vmem:[#allocation2 + $0x38] sm:$0xff]
        %v5664 = vmul.f32 %v5662, 0.125
        %v5665 = vmul.f32 %v5663, 0.125
        %v5666 = vpack.c.bf16 %v5665, %v5664
        %v5667 = vld [vmem:[#allocation2 + $0x18] sm:$0xff]
        %v5668 = vld [vmem:[#allocation2 + $0x48] sm:$0xff]
        %v5669 = vpack.c.bf16 %v5668, %v5667
        %v5670 = vld [vmem:[#allocation2 + $0x28] sm:$0xff]
        %v5671 = vld [vmem:[#allocation2 + $0x58] sm:$0xff]
        %v5672 = vpack.c.bf16 %v5671, %v5670
        %v5674 = vsel %vm1834, %v5666, 0
        %v5677 = vsel %vm1834, %v5669, 0
        %5679 = vmatpush.bf16.xpose.msra.mxu0 0
        %5680 = vmatpush.bf16.xpose.msra.mxu0 0
        %5681 = vmatpush.bf16.xpose.msra.mxu0 0
        %5682 = vmatpush.bf16.xpose.msra.mxu0 0
        %5683 = vmatpush.bf16.xpose.msra.mxu0 0
        %5684 = vmatpush.bf16.xpose.msra.mxu0 0
        %5685 = vmatpush.bf16.xpose.msra.mxu0 0
        %5686 = vmatpush.bf16.xpose.msra.mxu0 %v5677
        %5687 = vmatmul.bf16.gmra.mxu0 %v5674
        %v5688 = vpop.f32.mrf.mxu0
        %v5689 = vadd.f32 0.0, %v5688
        %v5690 = vpop.f32.mrf.mxu0
        %v5691 = vadd.f32 0.0, %v5690
        %5692 = vdwg.mxu0
        %v5693 = vsel %vm1855, %v5689, -inf
        %5694 = vmax.xlane.f32.xlu0 %v5693
        %v5695 = vpop.xlane.xlu0 %5694
        %v5696 = vsel %vm1855, %v5691, -inf
        %5697 = vmax.xlane.f32.xlu0 %v5696
        %v5698 = vpop.xlane.xlu0 %5697
        %v5699 = vsub.f32 %v5689, %v5695
        %v5700 = vsub.f32 %v5691, %v5698
        %v5701 = vmul.f32 %v5699, 1.442695
        %v5702 = vpow.pop %v5701
        %v5703 = vmul.f32 %v5700, 1.442695
        %v5704 = vpow.pop %v5703
        %v5705 = vsel %vm1855, %v5702, 0.0
        %5706 = vadd.xlane.f32.xlu0 %v5705
        %v5707 = vpop.xlane.xlu0 %5706
        %v5708 = vsel %vm1855, %v5704, 0.0
        %5709 = vadd.xlane.f32.xlu0 %v5708
        %v5710 = vpop.xlane.xlu0 %5709
        %v5711 = vrcp.pop %v5707
        %v5712 = vrcp.pop %v5710
        %v5713 = vmul.f32 %v5702, %v5711
        %v5714 = vmul.f32 %v5704, %v5712
        %v5715 = vpack.c.bf16 %v5714, %v5713
        %v5717 = vsel %vm1855, %v5715, 0
        %5719 = vmatpush.bf16.msra.mxu0 0
        %5720 = vmatpush.bf16.msra.mxu0 0
        %5721 = vmatpush.bf16.msra.mxu0 0
        %5722 = vmatpush.bf16.msra.mxu0 0
        %5723 = vmatpush.bf16.msra.mxu0 0
        %5724 = vmatpush.bf16.msra.mxu0 0
        %5725 = vmatpush.bf16.msra.mxu0 0
        %5726 = vmatpush.bf16.msra.mxu0 %v5672
        %5727 = vmatmul.bf16.gmra.mxu0 %v5717
        %v5728 = vpop.f32.mrf.mxu0
        %v5729 = vadd.f32 0.0, %v5728
        %v5730 = vpop.f32.mrf.mxu0
        %v5731 = vadd.f32 0.0, %v5730
        %5732 = vdwg.mxu0
        %5733 = vst.msk [vmem:[#allocation3 + $0x8] sm:$0xff] %vm1834, %v5729
        %5734 = vst.msk [vmem:[#allocation3 + $0x18] sm:$0xff] %vm1834, %v5731
        %v5735 = vld [vmem:[#allocation2 + $0x8] sm:$0xff]
        %v5736 = vld [vmem:[#allocation2 + $0x38] sm:$0xff]
        %v5737 = vmul.f32 %v5735, 0.125
        %v5738 = vmul.f32 %v5736, 0.125
        %v5739 = vpack.c.bf16 %v5738, %v5737
        %v5740 = vld [vmem:[#allocation2 + $0x18] sm:$0xff]
        %v5741 = vld [vmem:[#allocation2 + $0x48] sm:$0xff]
        %v5742 = vpack.c.bf16 %v5741, %v5740
        %v5743 = vld [vmem:[#allocation2 + $0x28] sm:$0xff]
        %v5744 = vld [vmem:[#allocation2 + $0x58] sm:$0xff]
        %v5745 = vpack.c.bf16 %v5744, %v5743
        %5747 = vrot.lane.b32.xlu0 %v5739, 64
        %v5748 = vpop.permute.xlu0 %5747
        %5750 = vrot.lane.b32.xlu0 %v5742, 64
        %v5751 = vpop.permute.xlu0 %5750
        %v5753 = vsel %vm1834, %v5748, 0
        %v5756 = vsel %vm1834, %v5751, 0
        %5758 = vmatpush.bf16.xpose.msra.mxu0 0
        %5759 = vmatpush.bf16.xpose.msra.mxu0 0
        %5760 = vmatpush.bf16.xpose.msra.mxu0 0
        %5761 = vmatpush.bf16.xpose.msra.mxu0 0
        %5762 = vmatpush.bf16.xpose.msra.mxu0 0
        %5763 = vmatpush.bf16.xpose.msra.mxu0 0
        %5764 = vmatpush.bf16.xpose.msra.mxu0 0
        %5765 = vmatpush.bf16.xpose.msra.mxu0 %v5756
        %5766 = vmatmul.bf16.gmra.mxu0 %v5753
        %v5767 = vpop.f32.mrf.mxu0
        %v5768 = vadd.f32 0.0, %v5767
        %v5769 = vpop.f32.mrf.mxu0
        %v5770 = vadd.f32 0.0, %v5769
        %5771 = vdwg.mxu0
        %v5772 = vsel %vm1855, %v5768, -inf
        %5773 = vmax.xlane.f32.xlu0 %v5772
        %v5774 = vpop.xlane.xlu0 %5773
        %v5775 = vsel %vm1855, %v5770, -inf
        %5776 = vmax.xlane.f32.xlu0 %v5775
        %v5777 = vpop.xlane.xlu0 %5776
        %v5778 = vsub.f32 %v5768, %v5774
        %v5779 = vsub.f32 %v5770, %v5777
        %v5780 = vmul.f32 %v5778, 1.442695
        %v5781 = vpow.pop %v5780
        %v5782 = vmul.f32 %v5779, 1.442695
        %v5783 = vpow.pop %v5782
        %v5784 = vsel %vm1855, %v5781, 0.0
        %5785 = vadd.xlane.f32.xlu0 %v5784
        %v5786 = vpop.xlane.xlu0 %5785
        %v5787 = vsel %vm1855, %v5783, 0.0
        %5788 = vadd.xlane.f32.xlu0 %v5787
        %v5789 = vpop.xlane.xlu0 %5788
        %v5790 = vrcp.pop %v5786
        %v5791 = vrcp.pop %v5789
        %v5792 = vmul.f32 %v5781, %v5790
        %v5793 = vmul.f32 %v5783, %v5791
        %v5794 = vpack.c.bf16 %v5793, %v5792
        %5796 = vrot.lane.b32.xlu0 %v5745, 64
        %v5797 = vpop.permute.xlu0 %5796
        %v5800 = vsel %vm1855, %v5794, 0
        %5802 = vmatpush.bf16.msra.mxu0 0
        %5803 = vmatpush.bf16.msra.mxu0 0
        %5804 = vmatpush.bf16.msra.mxu0 0
        %5805 = vmatpush.bf16.msra.mxu0 0
        %5806 = vmatpush.bf16.msra.mxu0 0
        %5807 = vmatpush.bf16.msra.mxu0 0
        %5808 = vmatpush.bf16.msra.mxu0 0
        %5809 = vmatpush.bf16.msra.mxu0 %v5797
        %5810 = vmatmul.bf16.gmra.mxu0 %v5800
        %v5811 = vpop.f32.mrf.mxu0
        %v5812 = vadd.f32 0.0, %v5811
        %v5813 = vpop.f32.mrf.mxu0
        %v5814 = vadd.f32 0.0, %v5813
        %5815 = vdwg.mxu0
        %5818 = vrot.lane.b32.xlu0 %v5812, 64
        %v5819 = vpop.permute.xlu0 %5818
        %5820 = vrot.lane.b32.xlu0 %v5814, 64
        %v5821 = vpop.permute.xlu0 %5820
        %5824 = vst.msk [vmem:[#allocation3 + $0x8] sm:$0xff] %vm1987, %v5819
        %5825 = vst.msk [vmem:[#allocation3 + $0x18] sm:$0xff] %vm1987, %v5821
        %v5826 = vld [vmem:[#allocation3] sm:$0xff]
        %v5827 = vld [vmem:[#allocation3 + $0x8] sm:$0xff]
        %v5828 = vld [vmem:[#allocation3 + $0x10] sm:$0xff]
        %v5829 = vld [vmem:[#allocation3 + $0x18] sm:$0xff]
        %v5830 = vpack.c.bf16 %v5828, %v5826
        %v5831 = vpack.c.bf16 %v5829, %v5827
        %s5832 = scalar_lea.vmem [#allocation12], 256
        %v5833 = vld [vmem:[%s5832] sm:$0xff]
        %v5834 = vld [vmem:[%s5832 + $0x8] sm:$0xff]
        %v5835 = vld [vmem:[%s5832 + $0x10] sm:$0xff]
        %v5836 = vld [vmem:[%s5832 + $0x18] sm:$0xff]
        %v5837 = vld [vmem:[%s5832 + $0x20] sm:$0xff]
        %v5838 = vld [vmem:[%s5832 + $0x28] sm:$0xff]
        %v5839 = vld [vmem:[%s5832 + $0x30] sm:$0xff]
        %v5840 = vld [vmem:[%s5832 + $0x38] sm:$0xff]
        %v5841 = vld [vmem:[%s5832 + $0x40] sm:$0xff]
        %v5842 = vld [vmem:[%s5832 + $0x48] sm:$0xff]
        %v5843 = vld [vmem:[%s5832 + $0x50] sm:$0xff]
        %v5844 = vld [vmem:[%s5832 + $0x58] sm:$0xff]
        %v5845 = vld [vmem:[%s5832 + $0x60] sm:$0xff]
        %v5846 = vld [vmem:[%s5832 + $0x68] sm:$0xff]
        %v5847 = vld [vmem:[%s5832 + $0x70] sm:$0xff]
        %v5848 = vld [vmem:[%s5832 + $0x78] sm:$0xff]
        %v5849 = vld [vmem:[%s5832 + $0x80] sm:$0xff]
        %v5850 = vld [vmem:[%s5832 + $0x88] sm:$0xff]
        %v5851 = vld [vmem:[%s5832 + $0x90] sm:$0xff]
        %v5852 = vld [vmem:[%s5832 + $0x98] sm:$0xff]
        %v5853 = vld [vmem:[%s5832 + $0xa0] sm:$0xff]
        %v5854 = vld [vmem:[%s5832 + $0xa8] sm:$0xff]
        %v5855 = vld [vmem:[%s5832 + $0xb0] sm:$0xff]
        %v5856 = vld [vmem:[%s5832 + $0xb8] sm:$0xff]
        %v5857 = vld [vmem:[%s5832 + $0xc0] sm:$0xff]
        %v5858 = vld [vmem:[%s5832 + $0xc8] sm:$0xff]
        %v5859 = vld [vmem:[%s5832 + $0xd0] sm:$0xff]
        %v5860 = vld [vmem:[%s5832 + $0xd8] sm:$0xff]
        %v5861 = vld [vmem:[%s5832 + $0xe0] sm:$0xff]
        %v5862 = vld [vmem:[%s5832 + $0xe8] sm:$0xff]
        %v5863 = vld [vmem:[%s5832 + $0xf0] sm:$0xff]
        %v5864 = vld [vmem:[%s5832 + $0xf8] sm:$0xff]
        %s5865 = scalar_lea.vmem %s8, 2
        %v5866 = vld [vmem:[%s5865] sm:$0x3]
        %v5868 = vperm.slane %v5866, 0
        %v5869 = vperm.slane %v5866, 1
        %v5904 = vunpack.c.l.b16 %v5833
        %v5905 = vunpack.c.h.b16 %v5833
        %v5906 = vunpack.c.l.b16 %v5834
        %v5907 = vunpack.c.h.b16 %v5834
        %v5908 = vunpack.c.l.b16 %v5835
        %v5909 = vunpack.c.h.b16 %v5835
        %v5910 = vunpack.c.l.b16 %v5836
        %v5911 = vunpack.c.h.b16 %v5836
        %v5912 = vunpack.c.l.b16 %v5837
        %v5913 = vunpack.c.h.b16 %v5837
        %v5914 = vunpack.c.l.b16 %v5838
        %v5915 = vunpack.c.h.b16 %v5838
        %v5916 = vunpack.c.l.b16 %v5839
        %v5917 = vunpack.c.h.b16 %v5839
        %v5918 = vunpack.c.l.b16 %v5840
        %v5919 = vunpack.c.h.b16 %v5840
        %v5920 = vunpack.c.l.b16 %v5841
        %v5921 = vunpack.c.h.b16 %v5841
        %v5922 = vunpack.c.l.b16 %v5842
        %v5923 = vunpack.c.h.b16 %v5842
        %v5924 = vunpack.c.l.b16 %v5843
        %v5925 = vunpack.c.h.b16 %v5843
        %v5926 = vunpack.c.l.b16 %v5844
        %v5927 = vunpack.c.h.b16 %v5844
        %v5928 = vunpack.c.l.b16 %v5845
        %v5929 = vunpack.c.h.b16 %v5845
        %v5930 = vunpack.c.l.b16 %v5846
        %v5931 = vunpack.c.h.b16 %v5846
        %v5932 = vunpack.c.l.b16 %v5847
        %v5933 = vunpack.c.h.b16 %v5847
        %v5934 = vunpack.c.l.b16 %v5848
        %v5935 = vunpack.c.h.b16 %v5848
        %v5936 = vunpack.c.l.b16 %v5849
        %v5937 = vunpack.c.h.b16 %v5849
        %v5938 = vunpack.c.l.b16 %v5850
        %v5939 = vunpack.c.h.b16 %v5850
        %v5940 = vunpack.c.l.b16 %v5851
        %v5941 = vunpack.c.h.b16 %v5851
        %v5942 = vunpack.c.l.b16 %v5852
        %v5943 = vunpack.c.h.b16 %v5852
        %v5944 = vunpack.c.l.b16 %v5853
        %v5945 = vunpack.c.h.b16 %v5853
        %v5946 = vunpack.c.l.b16 %v5854
        %v5947 = vunpack.c.h.b16 %v5854
        %v5948 = vunpack.c.l.b16 %v5855
        %v5949 = vunpack.c.h.b16 %v5855
        %v5950 = vunpack.c.l.b16 %v5856
        %v5951 = vunpack.c.h.b16 %v5856
        %v5952 = vunpack.c.l.b16 %v5857
        %v5953 = vunpack.c.h.b16 %v5857
        %v5954 = vunpack.c.l.b16 %v5858
        %v5955 = vunpack.c.h.b16 %v5858
        %v5956 = vunpack.c.l.b16 %v5859
        %v5957 = vunpack.c.h.b16 %v5859
        %v5958 = vunpack.c.l.b16 %v5860
        %v5959 = vunpack.c.h.b16 %v5860
        %v5960 = vunpack.c.l.b16 %v5861
        %v5961 = vunpack.c.h.b16 %v5861
        %v5962 = vunpack.c.l.b16 %v5862
        %v5963 = vunpack.c.h.b16 %v5862
        %v5964 = vunpack.c.l.b16 %v5863
        %v5965 = vunpack.c.h.b16 %v5863
        %v5966 = vunpack.c.l.b16 %v5864
        %v5967 = vunpack.c.h.b16 %v5864
        %v5968 = vpack.c.b16 %v5906, %v5904
        %v5969 = vpack.c.b16 %v5907, %v5905
        %v5970 = vpack.c.b16 %v5910, %v5908
        %v5971 = vpack.c.b16 %v5911, %v5909
        %v5972 = vpack.c.b16 %v5914, %v5912
        %v5973 = vpack.c.b16 %v5915, %v5913
        %v5974 = vpack.c.b16 %v5918, %v5916
        %v5975 = vpack.c.b16 %v5919, %v5917
        %v5976 = vpack.c.b16 %v5922, %v5920
        %v5977 = vpack.c.b16 %v5923, %v5921
        %v5978 = vpack.c.b16 %v5926, %v5924
        %v5979 = vpack.c.b16 %v5927, %v5925
        %v5980 = vpack.c.b16 %v5930, %v5928
        %v5981 = vpack.c.b16 %v5931, %v5929
        %v5982 = vpack.c.b16 %v5934, %v5932
        %v5983 = vpack.c.b16 %v5935, %v5933
        %v5984 = vpack.c.b16 %v5938, %v5936
        %v5985 = vpack.c.b16 %v5939, %v5937
        %v5986 = vpack.c.b16 %v5942, %v5940
        %v5987 = vpack.c.b16 %v5943, %v5941
        %v5988 = vpack.c.b16 %v5946, %v5944
        %v5989 = vpack.c.b16 %v5947, %v5945
        %v5990 = vpack.c.b16 %v5950, %v5948
        %v5991 = vpack.c.b16 %v5951, %v5949
        %v5992 = vpack.c.b16 %v5954, %v5952
        %v5993 = vpack.c.b16 %v5955, %v5953
        %v5994 = vpack.c.b16 %v5958, %v5956
        %v5995 = vpack.c.b16 %v5959, %v5957
        %v5996 = vpack.c.b16 %v5962, %v5960
        %v5997 = vpack.c.b16 %v5963, %v5961
        %v5998 = vpack.c.b16 %v5966, %v5964
        %v5999 = vpack.c.b16 %v5967, %v5965
        %6032 = vmatpush.bf16.msra.mxu0 %v5982
        %6033 = vmatpush.bf16.msra.mxu0 %v5980
        %6034 = vmatpush.bf16.msra.mxu0 %v5978
        %6035 = vmatpush.bf16.msra.mxu0 %v5976
        %6036 = vmatpush.bf16.msra.mxu0 %v5974
        %6037 = vmatpush.bf16.msra.mxu0 %v5972
        %6038 = vmatpush.bf16.msra.mxu0 %v5970
        %6039 = vmatpush.bf16.msra.mxu0 %v5968
        %6040 = vmatmul.bf16.gmra.mxu0 %v5830
        %v6041 = vpop.f32.mrf.mxu0
        %v6042 = vadd.f32 %v5868, %v6041
        %v6043 = vpop.f32.mrf.mxu0
        %v6044 = vadd.f32 %v5868, %v6043
        %6045 = vdwg.mxu0
        %6046 = vmatpush.bf16.msra.mxu0 %v5998
        %6047 = vmatpush.bf16.msra.mxu0 %v5996
        %6048 = vmatpush.bf16.msra.mxu0 %v5994
        %6049 = vmatpush.bf16.msra.mxu0 %v5992
        %6050 = vmatpush.bf16.msra.mxu0 %v5990
        %6051 = vmatpush.bf16.msra.mxu0 %v5988
        %6052 = vmatpush.bf16.msra.mxu0 %v5986
        %6053 = vmatpush.bf16.msra.mxu0 %v5984
        %6054 = vmatmul.bf16.gmra.mxu0 %v5831
        %v6055 = vpop.f32.mrf.mxu0
        %v6056 = vadd.f32 %v6042, %v6055
        %v6057 = vpop.f32.mrf.mxu0
        %v6058 = vadd.f32 %v6044, %v6057
        %6059 = vdwg.mxu0
        %6060 = vmatpush.bf16.msra.mxu0 %v5983
        %6061 = vmatpush.bf16.msra.mxu0 %v5981
        %6062 = vmatpush.bf16.msra.mxu0 %v5979
        %6063 = vmatpush.bf16.msra.mxu0 %v5977
        %6064 = vmatpush.bf16.msra.mxu0 %v5975
        %6065 = vmatpush.bf16.msra.mxu0 %v5973
        %6066 = vmatpush.bf16.msra.mxu0 %v5971
        %6067 = vmatpush.bf16.msra.mxu0 %v5969
        %6068 = vmatmul.bf16.gmra.mxu0 %v5830
        %v6069 = vpop.f32.mrf.mxu0
        %v6070 = vadd.f32 %v5869, %v6069
        %v6071 = vpop.f32.mrf.mxu0
        %v6072 = vadd.f32 %v5869, %v6071
        %6073 = vdwg.mxu0
        %6074 = vmatpush.bf16.msra.mxu0 %v5999
        %6075 = vmatpush.bf16.msra.mxu0 %v5997
        %6076 = vmatpush.bf16.msra.mxu0 %v5995
        %6077 = vmatpush.bf16.msra.mxu0 %v5993
        %6078 = vmatpush.bf16.msra.mxu0 %v5991
        %6079 = vmatpush.bf16.msra.mxu0 %v5989
        %6080 = vmatpush.bf16.msra.mxu0 %v5987
        %6081 = vmatpush.bf16.msra.mxu0 %v5985
        %6082 = vmatmul.bf16.gmra.mxu0 %v5831
        %v6083 = vpop.f32.mrf.mxu0
        %v6084 = vadd.f32 %v6070, %v6083
        %v6085 = vpop.f32.mrf.mxu0
        %v6086 = vadd.f32 %v6072, %v6085
        %6087 = vdwg.mxu0
        %v6088 = vadd.f32 %v4720, %v6056
        %v6089 = vadd.f32 %v4721, %v6084
        %v6090 = vadd.f32 %v4722, %v6058
        %v6091 = vadd.f32 %v4723, %v6086
        %s6092 = scalar_lea.vmem %s9, 2
        %v6093 = vld [vmem:[%s6092] sm:$0x3]
        %s6094 = scalar_lea.vmem %s10, 2
        %v6095 = vld [vmem:[%s6094] sm:$0x3]
        %v6096 = vadd.f32 %v6088, %v6089
        %6097 = vadd.xlane.f32.xlu0 %v6096
        %v6098 = vpop.xlane.xlu0 %6097
        %v6099 = vadd.f32 %v6090, %v6091
        %6100 = vadd.xlane.f32.xlu0 %v6099
        %v6101 = vpop.xlane.xlu0 %6100
        %v6102 = vmul.f32 %v6098, %v988
        %v6103 = vmul.f32 %v6101, %v988
        %v6104 = vsub.f32 %v6088, %v6102
        %v6105 = vsub.f32 %v6089, %v6102
        %v6106 = vsub.f32 %v6090, %v6103
        %v6107 = vsub.f32 %v6091, %v6103
        %v6108 = vmul.f32 %v6104, %v6104
        %v6109 = vmul.f32 %v6105, %v6105
        %v6110 = vmul.f32 %v6106, %v6106
        %v6111 = vmul.f32 %v6107, %v6107
        %v6112 = vadd.f32 %v6108, %v6109
        %6113 = vadd.xlane.f32.xlu0 %v6112
        %v6114 = vpop.xlane.xlu0 %6113
        %v6115 = vadd.f32 %v6110, %v6111
        %6116 = vadd.xlane.f32.xlu0 %v6115
        %v6117 = vpop.xlane.xlu0 %6116
        %v6118 = vmul.f32 %v6114, %v988
        %v6119 = vmul.f32 %v6117, %v988
        %v6120 = vadd.f32 %v6118, 1e-12
        %v6121 = vadd.f32 %v6119, 1e-12
        %v6122 = vrsqrt.pop %v6120
        %v6123 = vmul.f32 %v6122, %v6120
        %v6124 = vmul.f32 %v6123, %v6122
        %v6125 = vmul.f32 0.5, %v6124
        %v6126 = vsub.f32 1.5, %v6125
        %v6127 = vmul.f32 %v6122, %v6126
        %vm6128 = vweird.f32 %v6120
        %vm6129 = vweird.f32 %v6122
        %vm6130 = vmor %vm6128, %vm6129
        %v6131 = vsel %vm6130, %v6122, %v6127
        %v6132 = vrsqrt.pop %v6121
        %v6133 = vmul.f32 %v6132, %v6121
        %v6134 = vmul.f32 %v6133, %v6132
        %v6135 = vmul.f32 0.5, %v6134
        %v6136 = vsub.f32 1.5, %v6135
        %v6137 = vmul.f32 %v6132, %v6136
        %vm6138 = vweird.f32 %v6121
        %vm6139 = vweird.f32 %v6132
        %vm6140 = vmor %vm6138, %vm6139
        %v6141 = vsel %vm6140, %v6132, %v6137
        %v6142 = vmul.f32 %v6104, %v6131
        %v6143 = vmul.f32 %v6105, %v6131
        %v6144 = vmul.f32 %v6106, %v6141
        %v6145 = vmul.f32 %v6107, %v6141
        %v6147 = vperm.slane %v6093, 0
        %v6148 = vperm.slane %v6093, 1
        %v6151 = vmul.f32 %v6142, %v6147
        %v6152 = vmul.f32 %v6143, %v6148
        %v6153 = vmul.f32 %v6144, %v6147
        %v6154 = vmul.f32 %v6145, %v6148
        %v6156 = vperm.slane %v6095, 0
        %v6157 = vperm.slane %v6095, 1
        %v6160 = vadd.f32 %v6151, %v6156
        %v6161 = vadd.f32 %v6152, %v6157
        %v6162 = vadd.f32 %v6153, %v6156
        %v6163 = vadd.f32 %v6154, %v6157
        %v6164 = vpack.c.bf16 %v6162, %v6160
        %v6165 = vpack.c.bf16 %v6163, %v6161
        %s6166 = scalar_lea.vmem [#allocation13], 1024
        %v6167 = vld [vmem:[%s6166] sm:$0xff]
        %v6168 = vld [vmem:[%s6166 + $0x8] sm:$0xff]
        %v6169 = vld [vmem:[%s6166 + $0x10] sm:$0xff]
        %v6170 = vld [vmem:[%s6166 + $0x18] sm:$0xff]
        %v6171 = vld [vmem:[%s6166 + $0x20] sm:$0xff]
        %v6172 = vld [vmem:[%s6166 + $0x28] sm:$0xff]
        %v6173 = vld [vmem:[%s6166 + $0x30] sm:$0xff]
        %v6174 = vld [vmem:[%s6166 + $0x38] sm:$0xff]
        %v6175 = vld [vmem:[%s6166 + $0x40] sm:$0xff]
        %v6176 = vld [vmem:[%s6166 + $0x48] sm:$0xff]
        %v6177 = vld [vmem:[%s6166 + $0x50] sm:$0xff]
        %v6178 = vld [vmem:[%s6166 + $0x58] sm:$0xff]
        %v6179 = vld [vmem:[%s6166 + $0x60] sm:$0xff]
        %v6180 = vld [vmem:[%s6166 + $0x68] sm:$0xff]
        %v6181 = vld [vmem:[%s6166 + $0x70] sm:$0xff]
        %v6182 = vld [vmem:[%s6166 + $0x78] sm:$0xff]
        %v6183 = vld [vmem:[%s6166 + $0x80] sm:$0xff]
        %v6184 = vld [vmem:[%s6166 + $0x88] sm:$0xff]
        %v6185 = vld [vmem:[%s6166 + $0x90] sm:$0xff]
        %v6186 = vld [vmem:[%s6166 + $0x98] sm:$0xff]
        %v6187 = vld [vmem:[%s6166 + $0xa0] sm:$0xff]
        %v6188 = vld [vmem:[%s6166 + $0xa8] sm:$0xff]
        %v6189 = vld [vmem:[%s6166 + $0xb0] sm:$0xff]
        %v6190 = vld [vmem:[%s6166 + $0xb8] sm:$0xff]
        %v6191 = vld [vmem:[%s6166 + $0xc0] sm:$0xff]
        %v6192 = vld [vmem:[%s6166 + $0xc8] sm:$0xff]
        %v6193 = vld [vmem:[%s6166 + $0xd0] sm:$0xff]
        %v6194 = vld [vmem:[%s6166 + $0xd8] sm:$0xff]
        %v6195 = vld [vmem:[%s6166 + $0xe0] sm:$0xff]
        %v6196 = vld [vmem:[%s6166 + $0xe8] sm:$0xff]
        %v6197 = vld [vmem:[%s6166 + $0xf0] sm:$0xff]
        %v6198 = vld [vmem:[%s6166 + $0xf8] sm:$0xff]
        %v6199 = vld [vmem:[%s6166 + $0x100] sm:$0xff]
        %v6200 = vld [vmem:[%s6166 + $0x108] sm:$0xff]
        %v6201 = vld [vmem:[%s6166 + $0x110] sm:$0xff]
        %v6202 = vld [vmem:[%s6166 + $0x118] sm:$0xff]
        %v6203 = vld [vmem:[%s6166 + $0x120] sm:$0xff]
        %v6204 = vld [vmem:[%s6166 + $0x128] sm:$0xff]
        %v6205 = vld [vmem:[%s6166 + $0x130] sm:$0xff]
        %v6206 = vld [vmem:[%s6166 + $0x138] sm:$0xff]
        %v6207 = vld [vmem:[%s6166 + $0x140] sm:$0xff]
        %v6208 = vld [vmem:[%s6166 + $0x148] sm:$0xff]
        %v6209 = vld [vmem:[%s6166 + $0x150] sm:$0xff]
        %v6210 = vld [vmem:[%s6166 + $0x158] sm:$0xff]
        %v6211 = vld [vmem:[%s6166 + $0x160] sm:$0xff]
        %v6212 = vld [vmem:[%s6166 + $0x168] sm:$0xff]
        %v6213 = vld [vmem:[%s6166 + $0x170] sm:$0xff]
        %v6214 = vld [vmem:[%s6166 + $0x178] sm:$0xff]
        %v6215 = vld [vmem:[%s6166 + $0x180] sm:$0xff]
        %v6216 = vld [vmem:[%s6166 + $0x188] sm:$0xff]
        %v6217 = vld [vmem:[%s6166 + $0x190] sm:$0xff]
        %v6218 = vld [vmem:[%s6166 + $0x198] sm:$0xff]
        %v6219 = vld [vmem:[%s6166 + $0x1a0] sm:$0xff]
        %v6220 = vld [vmem:[%s6166 + $0x1a8] sm:$0xff]
        %v6221 = vld [vmem:[%s6166 + $0x1b0] sm:$0xff]
        %v6222 = vld [vmem:[%s6166 + $0x1b8] sm:$0xff]
        %v6223 = vld [vmem:[%s6166 + $0x1c0] sm:$0xff]
        %v6224 = vld [vmem:[%s6166 + $0x1c8] sm:$0xff]
        %v6225 = vld [vmem:[%s6166 + $0x1d0] sm:$0xff]
        %v6226 = vld [vmem:[%s6166 + $0x1d8] sm:$0xff]
        %v6227 = vld [vmem:[%s6166 + $0x1e0] sm:$0xff]
        %v6228 = vld [vmem:[%s6166 + $0x1e8] sm:$0xff]
        %v6229 = vld [vmem:[%s6166 + $0x1f0] sm:$0xff]
        %v6230 = vld [vmem:[%s6166 + $0x1f8] sm:$0xff]
        %v6231 = vld [vmem:[%s6166 + $0x200] sm:$0xff]
        %v6232 = vld [vmem:[%s6166 + $0x208] sm:$0xff]
        %v6233 = vld [vmem:[%s6166 + $0x210] sm:$0xff]
        %v6234 = vld [vmem:[%s6166 + $0x218] sm:$0xff]
        %v6235 = vld [vmem:[%s6166 + $0x220] sm:$0xff]
        %v6236 = vld [vmem:[%s6166 + $0x228] sm:$0xff]
        %v6237 = vld [vmem:[%s6166 + $0x230] sm:$0xff]
        %v6238 = vld [vmem:[%s6166 + $0x238] sm:$0xff]
        %v6239 = vld [vmem:[%s6166 + $0x240] sm:$0xff]
        %v6240 = vld [vmem:[%s6166 + $0x248] sm:$0xff]
        %v6241 = vld [vmem:[%s6166 + $0x250] sm:$0xff]
        %v6242 = vld [vmem:[%s6166 + $0x258] sm:$0xff]
        %v6243 = vld [vmem:[%s6166 + $0x260] sm:$0xff]
        %v6244 = vld [vmem:[%s6166 + $0x268] sm:$0xff]
        %v6245 = vld [vmem:[%s6166 + $0x270] sm:$0xff]
        %v6246 = vld [vmem:[%s6166 + $0x278] sm:$0xff]
        %v6247 = vld [vmem:[%s6166 + $0x280] sm:$0xff]
        %v6248 = vld [vmem:[%s6166 + $0x288] sm:$0xff]
        %v6249 = vld [vmem:[%s6166 + $0x290] sm:$0xff]
        %v6250 = vld [vmem:[%s6166 + $0x298] sm:$0xff]
        %v6251 = vld [vmem:[%s6166 + $0x2a0] sm:$0xff]
        %v6252 = vld [vmem:[%s6166 + $0x2a8] sm:$0xff]
        %v6253 = vld [vmem:[%s6166 + $0x2b0] sm:$0xff]
        %v6254 = vld [vmem:[%s6166 + $0x2b8] sm:$0xff]
        %v6255 = vld [vmem:[%s6166 + $0x2c0] sm:$0xff]
        %v6256 = vld [vmem:[%s6166 + $0x2c8] sm:$0xff]
        %v6257 = vld [vmem:[%s6166 + $0x2d0] sm:$0xff]
        %v6258 = vld [vmem:[%s6166 + $0x2d8] sm:$0xff]
        %v6259 = vld [vmem:[%s6166 + $0x2e0] sm:$0xff]
        %v6260 = vld [vmem:[%s6166 + $0x2e8] sm:$0xff]
        %v6261 = vld [vmem:[%s6166 + $0x2f0] sm:$0xff]
        %v6262 = vld [vmem:[%s6166 + $0x2f8] sm:$0xff]
        %v6263 = vld [vmem:[%s6166 + $0x300] sm:$0xff]
        %v6264 = vld [vmem:[%s6166 + $0x308] sm:$0xff]
        %v6265 = vld [vmem:[%s6166 + $0x310] sm:$0xff]
        %v6266 = vld [vmem:[%s6166 + $0x318] sm:$0xff]
        %v6267 = vld [vmem:[%s6166 + $0x320] sm:$0xff]
        %v6268 = vld [vmem:[%s6166 + $0x328] sm:$0xff]
        %v6269 = vld [vmem:[%s6166 + $0x330] sm:$0xff]
        %v6270 = vld [vmem:[%s6166 + $0x338] sm:$0xff]
        %v6271 = vld [vmem:[%s6166 + $0x340] sm:$0xff]
        %v6272 = vld [vmem:[%s6166 + $0x348] sm:$0xff]
        %v6273 = vld [vmem:[%s6166 + $0x350] sm:$0xff]
        %v6274 = vld [vmem:[%s6166 + $0x358] sm:$0xff]
        %v6275 = vld [vmem:[%s6166 + $0x360] sm:$0xff]
        %v6276 = vld [vmem:[%s6166 + $0x368] sm:$0xff]
        %v6277 = vld [vmem:[%s6166 + $0x370] sm:$0xff]
        %v6278 = vld [vmem:[%s6166 + $0x378] sm:$0xff]
        %v6279 = vld [vmem:[%s6166 + $0x380] sm:$0xff]
        %v6280 = vld [vmem:[%s6166 + $0x388] sm:$0xff]
        %v6281 = vld [vmem:[%s6166 + $0x390] sm:$0xff]
        %v6282 = vld [vmem:[%s6166 + $0x398] sm:$0xff]
        %v6283 = vld [vmem:[%s6166 + $0x3a0] sm:$0xff]
        %v6284 = vld [vmem:[%s6166 + $0x3a8] sm:$0xff]
        %v6285 = vld [vmem:[%s6166 + $0x3b0] sm:$0xff]
        %v6286 = vld [vmem:[%s6166 + $0x3b8] sm:$0xff]
        %v6287 = vld [vmem:[%s6166 + $0x3c0] sm:$0xff]
        %v6288 = vld [vmem:[%s6166 + $0x3c8] sm:$0xff]
        %v6289 = vld [vmem:[%s6166 + $0x3d0] sm:$0xff]
        %v6290 = vld [vmem:[%s6166 + $0x3d8] sm:$0xff]
        %v6291 = vld [vmem:[%s6166 + $0x3e0] sm:$0xff]
        %v6292 = vld [vmem:[%s6166 + $0x3e8] sm:$0xff]
        %v6293 = vld [vmem:[%s6166 + $0x3f0] sm:$0xff]
        %v6294 = vld [vmem:[%s6166 + $0x3f8] sm:$0xff]
        %s6295 = scalar_lea.vmem %s12, 8
        %v6296 = vld [vmem:[%s6295] sm:$0xff]
        %v6298 = vperm.slane %v6296, 0
        %v6299 = vperm.slane %v6296, 1
        %v6300 = vperm.slane %v6296, 2
        %v6301 = vperm.slane %v6296, 3
        %v6302 = vperm.slane %v6296, 4
        %v6303 = vperm.slane %v6296, 5
        %v6304 = vperm.slane %v6296, 6
        %v6305 = vperm.slane %v6296, 7
        %v6442 = vunpack.c.l.b16 %v6167
        %v6443 = vunpack.c.h.b16 %v6167
        %v6444 = vunpack.c.l.b16 %v6168
        %v6445 = vunpack.c.h.b16 %v6168
        %v6446 = vunpack.c.l.b16 %v6169
        %v6447 = vunpack.c.h.b16 %v6169
        %v6448 = vunpack.c.l.b16 %v6170
        %v6449 = vunpack.c.h.b16 %v6170
        %v6450 = vunpack.c.l.b16 %v6171
        %v6451 = vunpack.c.h.b16 %v6171
        %v6452 = vunpack.c.l.b16 %v6172
        %v6453 = vunpack.c.h.b16 %v6172
        %v6454 = vunpack.c.l.b16 %v6173
        %v6455 = vunpack.c.h.b16 %v6173
        %v6456 = vunpack.c.l.b16 %v6174
        %v6457 = vunpack.c.h.b16 %v6174
        %v6458 = vunpack.c.l.b16 %v6175
        %v6459 = vunpack.c.h.b16 %v6175
        %v6460 = vunpack.c.l.b16 %v6176
        %v6461 = vunpack.c.h.b16 %v6176
        %v6462 = vunpack.c.l.b16 %v6177
        %v6463 = vunpack.c.h.b16 %v6177
        %v6464 = vunpack.c.l.b16 %v6178
        %v6465 = vunpack.c.h.b16 %v6178
        %v6466 = vunpack.c.l.b16 %v6179
        %v6467 = vunpack.c.h.b16 %v6179
        %v6468 = vunpack.c.l.b16 %v6180
        %v6469 = vunpack.c.h.b16 %v6180
        %v6470 = vunpack.c.l.b16 %v6181
        %v6471 = vunpack.c.h.b16 %v6181
        %v6472 = vunpack.c.l.b16 %v6182
        %v6473 = vunpack.c.h.b16 %v6182
        %v6474 = vunpack.c.l.b16 %v6183
        %v6475 = vunpack.c.h.b16 %v6183
        %v6476 = vunpack.c.l.b16 %v6184
        %v6477 = vunpack.c.h.b16 %v6184
        %v6478 = vunpack.c.l.b16 %v6185
        %v6479 = vunpack.c.h.b16 %v6185
        %v6480 = vunpack.c.l.b16 %v6186
        %v6481 = vunpack.c.h.b16 %v6186
        %v6482 = vunpack.c.l.b16 %v6187
        %v6483 = vunpack.c.h.b16 %v6187
        %v6484 = vunpack.c.l.b16 %v6188
        %v6485 = vunpack.c.h.b16 %v6188
        %v6486 = vunpack.c.l.b16 %v6189
        %v6487 = vunpack.c.h.b16 %v6189
        %v6488 = vunpack.c.l.b16 %v6190
        %v6489 = vunpack.c.h.b16 %v6190
        %v6490 = vunpack.c.l.b16 %v6191
        %v6491 = vunpack.c.h.b16 %v6191
        %v6492 = vunpack.c.l.b16 %v6192
        %v6493 = vunpack.c.h.b16 %v6192
        %v6494 = vunpack.c.l.b16 %v6193
        %v6495 = vunpack.c.h.b16 %v6193
        %v6496 = vunpack.c.l.b16 %v6194
        %v6497 = vunpack.c.h.b16 %v6194
        %v6498 = vunpack.c.l.b16 %v6195
        %v6499 = vunpack.c.h.b16 %v6195
        %v6500 = vunpack.c.l.b16 %v6196
        %v6501 = vunpack.c.h.b16 %v6196
        %v6502 = vunpack.c.l.b16 %v6197
        %v6503 = vunpack.c.h.b16 %v6197
        %v6504 = vunpack.c.l.b16 %v6198
        %v6505 = vunpack.c.h.b16 %v6198
        %v6506 = vunpack.c.l.b16 %v6199
        %v6507 = vunpack.c.h.b16 %v6199
        %v6508 = vunpack.c.l.b16 %v6200
        %v6509 = vunpack.c.h.b16 %v6200
        %v6510 = vunpack.c.l.b16 %v6201
        %v6511 = vunpack.c.h.b16 %v6201
        %v6512 = vunpack.c.l.b16 %v6202
        %v6513 = vunpack.c.h.b16 %v6202
        %v6514 = vunpack.c.l.b16 %v6203
        %v6515 = vunpack.c.h.b16 %v6203
        %v6516 = vunpack.c.l.b16 %v6204
        %v6517 = vunpack.c.h.b16 %v6204
        %v6518 = vunpack.c.l.b16 %v6205
        %v6519 = vunpack.c.h.b16 %v6205
        %v6520 = vunpack.c.l.b16 %v6206
        %v6521 = vunpack.c.h.b16 %v6206
        %v6522 = vunpack.c.l.b16 %v6207
        %v6523 = vunpack.c.h.b16 %v6207
        %v6524 = vunpack.c.l.b16 %v6208
        %v6525 = vunpack.c.h.b16 %v6208
        %v6526 = vunpack.c.l.b16 %v6209
        %v6527 = vunpack.c.h.b16 %v6209
        %v6528 = vunpack.c.l.b16 %v6210
        %v6529 = vunpack.c.h.b16 %v6210
        %v6530 = vunpack.c.l.b16 %v6211
        %v6531 = vunpack.c.h.b16 %v6211
        %v6532 = vunpack.c.l.b16 %v6212
        %v6533 = vunpack.c.h.b16 %v6212
        %v6534 = vunpack.c.l.b16 %v6213
        %v6535 = vunpack.c.h.b16 %v6213
        %v6536 = vunpack.c.l.b16 %v6214
        %v6537 = vunpack.c.h.b16 %v6214
        %v6538 = vunpack.c.l.b16 %v6215
        %v6539 = vunpack.c.h.b16 %v6215
        %v6540 = vunpack.c.l.b16 %v6216
        %v6541 = vunpack.c.h.b16 %v6216
        %v6542 = vunpack.c.l.b16 %v6217
        %v6543 = vunpack.c.h.b16 %v6217
        %v6544 = vunpack.c.l.b16 %v6218
        %v6545 = vunpack.c.h.b16 %v6218
        %v6546 = vunpack.c.l.b16 %v6219
        %v6547 = vunpack.c.h.b16 %v6219
        %v6548 = vunpack.c.l.b16 %v6220
        %v6549 = vunpack.c.h.b16 %v6220
        %v6550 = vunpack.c.l.b16 %v6221
        %v6551 = vunpack.c.h.b16 %v6221
        %v6552 = vunpack.c.l.b16 %v6222
        %v6553 = vunpack.c.h.b16 %v6222
        %v6554 = vunpack.c.l.b16 %v6223
        %v6555 = vunpack.c.h.b16 %v6223
        %v6556 = vunpack.c.l.b16 %v6224
        %v6557 = vunpack.c.h.b16 %v6224
        %v6558 = vunpack.c.l.b16 %v6225
        %v6559 = vunpack.c.h.b16 %v6225
        %v6560 = vunpack.c.l.b16 %v6226
        %v6561 = vunpack.c.h.b16 %v6226
        %v6562 = vunpack.c.l.b16 %v6227
        %v6563 = vunpack.c.h.b16 %v6227
        %v6564 = vunpack.c.l.b16 %v6228
        %v6565 = vunpack.c.h.b16 %v6228
        %v6566 = vunpack.c.l.b16 %v6229
        %v6567 = vunpack.c.h.b16 %v6229
        %v6568 = vunpack.c.l.b16 %v6230
        %v6569 = vunpack.c.h.b16 %v6230
        %v6570 = vunpack.c.l.b16 %v6231
        %v6571 = vunpack.c.h.b16 %v6231
        %v6572 = vunpack.c.l.b16 %v6232
        %v6573 = vunpack.c.h.b16 %v6232
        %v6574 = vunpack.c.l.b16 %v6233
        %v6575 = vunpack.c.h.b16 %v6233
        %v6576 = vunpack.c.l.b16 %v6234
        %v6577 = vunpack.c.h.b16 %v6234
        %v6578 = vunpack.c.l.b16 %v6235
        %v6579 = vunpack.c.h.b16 %v6235
        %v6580 = vunpack.c.l.b16 %v6236
        %v6581 = vunpack.c.h.b16 %v6236
        %v6582 = vunpack.c.l.b16 %v6237
        %v6583 = vunpack.c.h.b16 %v6237
        %v6584 = vunpack.c.l.b16 %v6238
        %v6585 = vunpack.c.h.b16 %v6238
        %v6586 = vunpack.c.l.b16 %v6239
        %v6587 = vunpack.c.h.b16 %v6239
        %v6588 = vunpack.c.l.b16 %v6240
        %v6589 = vunpack.c.h.b16 %v6240
        %v6590 = vunpack.c.l.b16 %v6241
        %v6591 = vunpack.c.h.b16 %v6241
        %v6592 = vunpack.c.l.b16 %v6242
        %v6593 = vunpack.c.h.b16 %v6242
        %v6594 = vunpack.c.l.b16 %v6243
        %v6595 = vunpack.c.h.b16 %v6243
        %v6596 = vunpack.c.l.b16 %v6244
        %v6597 = vunpack.c.h.b16 %v6244
        %v6598 = vunpack.c.l.b16 %v6245
        %v6599 = vunpack.c.h.b16 %v6245
        %v6600 = vunpack.c.l.b16 %v6246
        %v6601 = vunpack.c.h.b16 %v6246
        %v6602 = vunpack.c.l.b16 %v6247
        %v6603 = vunpack.c.h.b16 %v6247
        %v6604 = vunpack.c.l.b16 %v6248
        %v6605 = vunpack.c.h.b16 %v6248
        %v6606 = vunpack.c.l.b16 %v6249
        %v6607 = vunpack.c.h.b16 %v6249
        %v6608 = vunpack.c.l.b16 %v6250
        %v6609 = vunpack.c.h.b16 %v6250
        %v6610 = vunpack.c.l.b16 %v6251
        %v6611 = vunpack.c.h.b16 %v6251
        %v6612 = vunpack.c.l.b16 %v6252
        %v6613 = vunpack.c.h.b16 %v6252
        %v6614 = vunpack.c.l.b16 %v6253
        %v6615 = vunpack.c.h.b16 %v6253
        %v6616 = vunpack.c.l.b16 %v6254
        %v6617 = vunpack.c.h.b16 %v6254
        %v6618 = vunpack.c.l.b16 %v6255
        %v6619 = vunpack.c.h.b16 %v6255
        %v6620 = vunpack.c.l.b16 %v6256
        %v6621 = vunpack.c.h.b16 %v6256
        %v6622 = vunpack.c.l.b16 %v6257
        %v6623 = vunpack.c.h.b16 %v6257
        %v6624 = vunpack.c.l.b16 %v6258
        %v6625 = vunpack.c.h.b16 %v6258
        %v6626 = vunpack.c.l.b16 %v6259
        %v6627 = vunpack.c.h.b16 %v6259
        %v6628 = vunpack.c.l.b16 %v6260
        %v6629 = vunpack.c.h.b16 %v6260
        %v6630 = vunpack.c.l.b16 %v6261
        %v6631 = vunpack.c.h.b16 %v6261
        %v6632 = vunpack.c.l.b16 %v6262
        %v6633 = vunpack.c.h.b16 %v6262
        %v6634 = vunpack.c.l.b16 %v6263
        %v6635 = vunpack.c.h.b16 %v6263
        %v6636 = vunpack.c.l.b16 %v6264
        %v6637 = vunpack.c.h.b16 %v6264
        %v6638 = vunpack.c.l.b16 %v6265
        %v6639 = vunpack.c.h.b16 %v6265
        %v6640 = vunpack.c.l.b16 %v6266
        %v6641 = vunpack.c.h.b16 %v6266
        %v6642 = vunpack.c.l.b16 %v6267
        %v6643 = vunpack.c.h.b16 %v6267
        %v6644 = vunpack.c.l.b16 %v6268
        %v6645 = vunpack.c.h.b16 %v6268
        %v6646 = vunpack.c.l.b16 %v6269
        %v6647 = vunpack.c.h.b16 %v6269
        %v6648 = vunpack.c.l.b16 %v6270
        %v6649 = vunpack.c.h.b16 %v6270
        %v6650 = vunpack.c.l.b16 %v6271
        %v6651 = vunpack.c.h.b16 %v6271
        %v6652 = vunpack.c.l.b16 %v6272
        %v6653 = vunpack.c.h.b16 %v6272
        %v6654 = vunpack.c.l.b16 %v6273
        %v6655 = vunpack.c.h.b16 %v6273
        %v6656 = vunpack.c.l.b16 %v6274
        %v6657 = vunpack.c.h.b16 %v6274
        %v6658 = vunpack.c.l.b16 %v6275
        %v6659 = vunpack.c.h.b16 %v6275
        %v6660 = vunpack.c.l.b16 %v6276
        %v6661 = vunpack.c.h.b16 %v6276
        %v6662 = vunpack.c.l.b16 %v6277
        %v6663 = vunpack.c.h.b16 %v6277
        %v6664 = vunpack.c.l.b16 %v6278
        %v6665 = vunpack.c.h.b16 %v6278
        %v6666 = vunpack.c.l.b16 %v6279
        %v6667 = vunpack.c.h.b16 %v6279
        %v6668 = vunpack.c.l.b16 %v6280
        %v6669 = vunpack.c.h.b16 %v6280
        %v6670 = vunpack.c.l.b16 %v6281
        %v6671 = vunpack.c.h.b16 %v6281
        %v6672 = vunpack.c.l.b16 %v6282
        %v6673 = vunpack.c.h.b16 %v6282
        %v6674 = vunpack.c.l.b16 %v6283
        %v6675 = vunpack.c.h.b16 %v6283
        %v6676 = vunpack.c.l.b16 %v6284
        %v6677 = vunpack.c.h.b16 %v6284
        %v6678 = vunpack.c.l.b16 %v6285
        %v6679 = vunpack.c.h.b16 %v6285
        %v6680 = vunpack.c.l.b16 %v6286
        %v6681 = vunpack.c.h.b16 %v6286
        %v6682 = vunpack.c.l.b16 %v6287
        %v6683 = vunpack.c.h.b16 %v6287
        %v6684 = vunpack.c.l.b16 %v6288
        %v6685 = vunpack.c.h.b16 %v6288
        %v6686 = vunpack.c.l.b16 %v6289
        %v6687 = vunpack.c.h.b16 %v6289
        %v6688 = vunpack.c.l.b16 %v6290
        %v6689 = vunpack.c.h.b16 %v6290
        %v6690 = vunpack.c.l.b16 %v6291
        %v6691 = vunpack.c.h.b16 %v6291
        %v6692 = vunpack.c.l.b16 %v6292
        %v6693 = vunpack.c.h.b16 %v6292
        %v6694 = vunpack.c.l.b16 %v6293
        %v6695 = vunpack.c.h.b16 %v6293
        %v6696 = vunpack.c.l.b16 %v6294
        %v6697 = vunpack.c.h.b16 %v6294
        %v6698 = vpack.c.b16 %v6450, %v6442
        %v6699 = vpack.c.b16 %v6451, %v6443
        %v6700 = vpack.c.b16 %v6452, %v6444
        %v6701 = vpack.c.b16 %v6453, %v6445
        %v6702 = vpack.c.b16 %v6454, %v6446
        %v6703 = vpack.c.b16 %v6455, %v6447
        %v6704 = vpack.c.b16 %v6456, %v6448
        %v6705 = vpack.c.b16 %v6457, %v6449
        %v6706 = vpack.c.b16 %v6466, %v6458
        %v6707 = vpack.c.b16 %v6467, %v6459
        %v6708 = vpack.c.b16 %v6468, %v6460
        %v6709 = vpack.c.b16 %v6469, %v6461
        %v6710 = vpack.c.b16 %v6470, %v6462
        %v6711 = vpack.c.b16 %v6471, %v6463
        %v6712 = vpack.c.b16 %v6472, %v6464
        %v6713 = vpack.c.b16 %v6473, %v6465
        %v6714 = vpack.c.b16 %v6482, %v6474
        %v6715 = vpack.c.b16 %v6483, %v6475
        %v6716 = vpack.c.b16 %v6484, %v6476
        %v6717 = vpack.c.b16 %v6485, %v6477
        %v6718 = vpack.c.b16 %v6486, %v6478
        %v6719 = vpack.c.b16 %v6487, %v6479
        %v6720 = vpack.c.b16 %v6488, %v6480
        %v6721 = vpack.c.b16 %v6489, %v6481
        %v6722 = vpack.c.b16 %v6498, %v6490
        %v6723 = vpack.c.b16 %v6499, %v6491
        %v6724 = vpack.c.b16 %v6500, %v6492
        %v6725 = vpack.c.b16 %v6501, %v6493
        %v6726 = vpack.c.b16 %v6502, %v6494
        %v6727 = vpack.c.b16 %v6503, %v6495
        %v6728 = vpack.c.b16 %v6504, %v6496
        %v6729 = vpack.c.b16 %v6505, %v6497
        %v6730 = vpack.c.b16 %v6514, %v6506
        %v6731 = vpack.c.b16 %v6515, %v6507
        %v6732 = vpack.c.b16 %v6516, %v6508
        %v6733 = vpack.c.b16 %v6517, %v6509
        %v6734 = vpack.c.b16 %v6518, %v6510
        %v6735 = vpack.c.b16 %v6519, %v6511
        %v6736 = vpack.c.b16 %v6520, %v6512
        %v6737 = vpack.c.b16 %v6521, %v6513
        %v6738 = vpack.c.b16 %v6530, %v6522
        %v6739 = vpack.c.b16 %v6531, %v6523
        %v6740 = vpack.c.b16 %v6532, %v6524
        %v6741 = vpack.c.b16 %v6533, %v6525
        %v6742 = vpack.c.b16 %v6534, %v6526
        %v6743 = vpack.c.b16 %v6535, %v6527
        %v6744 = vpack.c.b16 %v6536, %v6528
        %v6745 = vpack.c.b16 %v6537, %v6529
        %v6746 = vpack.c.b16 %v6546, %v6538
        %v6747 = vpack.c.b16 %v6547, %v6539
        %v6748 = vpack.c.b16 %v6548, %v6540
        %v6749 = vpack.c.b16 %v6549, %v6541
        %v6750 = vpack.c.b16 %v6550, %v6542
        %v6751 = vpack.c.b16 %v6551, %v6543
        %v6752 = vpack.c.b16 %v6552, %v6544
        %v6753 = vpack.c.b16 %v6553, %v6545
        %v6754 = vpack.c.b16 %v6562, %v6554
        %v6755 = vpack.c.b16 %v6563, %v6555
        %v6756 = vpack.c.b16 %v6564, %v6556
        %v6757 = vpack.c.b16 %v6565, %v6557
        %v6758 = vpack.c.b16 %v6566, %v6558
        %v6759 = vpack.c.b16 %v6567, %v6559
        %v6760 = vpack.c.b16 %v6568, %v6560
        %v6761 = vpack.c.b16 %v6569, %v6561
        %v6762 = vpack.c.b16 %v6578, %v6570
        %v6763 = vpack.c.b16 %v6579, %v6571
        %v6764 = vpack.c.b16 %v6580, %v6572
        %v6765 = vpack.c.b16 %v6581, %v6573
        %v6766 = vpack.c.b16 %v6582, %v6574
        %v6767 = vpack.c.b16 %v6583, %v6575
        %v6768 = vpack.c.b16 %v6584, %v6576
        %v6769 = vpack.c.b16 %v6585, %v6577
        %v6770 = vpack.c.b16 %v6594, %v6586
        %v6771 = vpack.c.b16 %v6595, %v6587
        %v6772 = vpack.c.b16 %v6596, %v6588
        %v6773 = vpack.c.b16 %v6597, %v6589
        %v6774 = vpack.c.b16 %v6598, %v6590
        %v6775 = vpack.c.b16 %v6599, %v6591
        %v6776 = vpack.c.b16 %v6600, %v6592
        %v6777 = vpack.c.b16 %v6601, %v6593
        %v6778 = vpack.c.b16 %v6610, %v6602
        %v6779 = vpack.c.b16 %v6611, %v6603
        %v6780 = vpack.c.b16 %v6612, %v6604
        %v6781 = vpack.c.b16 %v6613, %v6605
        %v6782 = vpack.c.b16 %v6614, %v6606
        %v6783 = vpack.c.b16 %v6615, %v6607
        %v6784 = vpack.c.b16 %v6616, %v6608
        %v6785 = vpack.c.b16 %v6617, %v6609
        %v6786 = vpack.c.b16 %v6626, %v6618
        %v6787 = vpack.c.b16 %v6627, %v6619
        %v6788 = vpack.c.b16 %v6628, %v6620
        %v6789 = vpack.c.b16 %v6629, %v6621
        %v6790 = vpack.c.b16 %v6630, %v6622
        %v6791 = vpack.c.b16 %v6631, %v6623
        %v6792 = vpack.c.b16 %v6632, %v6624
        %v6793 = vpack.c.b16 %v6633, %v6625
        %v6794 = vpack.c.b16 %v6642, %v6634
        %v6795 = vpack.c.b16 %v6643, %v6635
        %v6796 = vpack.c.b16 %v6644, %v6636
        %v6797 = vpack.c.b16 %v6645, %v6637
        %v6798 = vpack.c.b16 %v6646, %v6638
        %v6799 = vpack.c.b16 %v6647, %v6639
        %v6800 = vpack.c.b16 %v6648, %v6640
        %v6801 = vpack.c.b16 %v6649, %v6641
        %v6802 = vpack.c.b16 %v6658, %v6650
        %v6803 = vpack.c.b16 %v6659, %v6651
        %v6804 = vpack.c.b16 %v6660, %v6652
        %v6805 = vpack.c.b16 %v6661, %v6653
        %v6806 = vpack.c.b16 %v6662, %v6654
        %v6807 = vpack.c.b16 %v6663, %v6655
        %v6808 = vpack.c.b16 %v6664, %v6656
        %v6809 = vpack.c.b16 %v6665, %v6657
        %v6810 = vpack.c.b16 %v6674, %v6666
        %v6811 = vpack.c.b16 %v6675, %v6667
        %v6812 = vpack.c.b16 %v6676, %v6668
        %v6813 = vpack.c.b16 %v6677, %v6669
        %v6814 = vpack.c.b16 %v6678, %v6670
        %v6815 = vpack.c.b16 %v6679, %v6671
        %v6816 = vpack.c.b16 %v6680, %v6672
        %v6817 = vpack.c.b16 %v6681, %v6673
        %v6818 = vpack.c.b16 %v6690, %v6682
        %v6819 = vpack.c.b16 %v6691, %v6683
        %v6820 = vpack.c.b16 %v6692, %v6684
        %v6821 = vpack.c.b16 %v6693, %v6685
        %v6822 = vpack.c.b16 %v6694, %v6686
        %v6823 = vpack.c.b16 %v6695, %v6687
        %v6824 = vpack.c.b16 %v6696, %v6688
        %v6825 = vpack.c.b16 %v6697, %v6689
        %6954 = vmatpush.bf16.msra.mxu0 %v6754
        %6955 = vmatpush.bf16.msra.mxu0 %v6746
        %6956 = vmatpush.bf16.msra.mxu0 %v6738
        %6957 = vmatpush.bf16.msra.mxu0 %v6730
        %6958 = vmatpush.bf16.msra.mxu0 %v6722
        %6959 = vmatpush.bf16.msra.mxu0 %v6714
        %6960 = vmatpush.bf16.msra.mxu0 %v6706
        %6961 = vmatpush.bf16.msra.mxu0 %v6698
        %6962 = vmatmul.bf16.gmra.mxu0 %v6164
        %v6963 = vpop.f32.mrf.mxu0
        %v6964 = vadd.f32 %v6298, %v6963
        %v6965 = vpop.f32.mrf.mxu0
        %v6966 = vadd.f32 %v6298, %v6965
        %6967 = vdwg.mxu0
        %6968 = vmatpush.bf16.msra.mxu0 %v6818
        %6969 = vmatpush.bf16.msra.mxu0 %v6810
        %6970 = vmatpush.bf16.msra.mxu0 %v6802
        %6971 = vmatpush.bf16.msra.mxu0 %v6794
        %6972 = vmatpush.bf16.msra.mxu0 %v6786
        %6973 = vmatpush.bf16.msra.mxu0 %v6778
        %6974 = vmatpush.bf16.msra.mxu0 %v6770
        %6975 = vmatpush.bf16.msra.mxu0 %v6762
        %6976 = vmatmul.bf16.gmra.mxu0 %v6165
        %v6977 = vpop.f32.mrf.mxu0
        %v6978 = vadd.f32 %v6964, %v6977
        %v6979 = vpop.f32.mrf.mxu0
        %v6980 = vadd.f32 %v6966, %v6979
        %6981 = vdwg.mxu0
        %6982 = vmatpush.bf16.msra.mxu0 %v6755
        %6983 = vmatpush.bf16.msra.mxu0 %v6747
        %6984 = vmatpush.bf16.msra.mxu0 %v6739
        %6985 = vmatpush.bf16.msra.mxu0 %v6731
        %6986 = vmatpush.bf16.msra.mxu0 %v6723
        %6987 = vmatpush.bf16.msra.mxu0 %v6715
        %6988 = vmatpush.bf16.msra.mxu0 %v6707
        %6989 = vmatpush.bf16.msra.mxu0 %v6699
        %6990 = vmatmul.bf16.gmra.mxu0 %v6164
        %v6991 = vpop.f32.mrf.mxu0
        %v6992 = vadd.f32 %v6299, %v6991
        %v6993 = vpop.f32.mrf.mxu0
        %v6994 = vadd.f32 %v6299, %v6993
        %6995 = vdwg.mxu0
        %6996 = vmatpush.bf16.msra.mxu0 %v6819
        %6997 = vmatpush.bf16.msra.mxu0 %v6811
        %6998 = vmatpush.bf16.msra.mxu0 %v6803
        %6999 = vmatpush.bf16.msra.mxu0 %v6795
        %7000 = vmatpush.bf16.msra.mxu0 %v6787
        %7001 = vmatpush.bf16.msra.mxu0 %v6779
        %7002 = vmatpush.bf16.msra.mxu0 %v6771
        %7003 = vmatpush.bf16.msra.mxu0 %v6763
        %7004 = vmatmul.bf16.gmra.mxu0 %v6165
        %v7005 = vpop.f32.mrf.mxu0
        %v7006 = vadd.f32 %v6992, %v7005
        %v7007 = vpop.f32.mrf.mxu0
        %v7008 = vadd.f32 %v6994, %v7007
        %7009 = vdwg.mxu0
        %7010 = vmatpush.bf16.msra.mxu0 %v6756
        %7011 = vmatpush.bf16.msra.mxu0 %v6748
        %7012 = vmatpush.bf16.msra.mxu0 %v6740
        %7013 = vmatpush.bf16.msra.mxu0 %v6732
        %7014 = vmatpush.bf16.msra.mxu0 %v6724
        %7015 = vmatpush.bf16.msra.mxu0 %v6716
        %7016 = vmatpush.bf16.msra.mxu0 %v6708
        %7017 = vmatpush.bf16.msra.mxu0 %v6700
        %7018 = vmatmul.bf16.gmra.mxu0 %v6164
        %v7019 = vpop.f32.mrf.mxu0
        %v7020 = vadd.f32 %v6300, %v7019
        %v7021 = vpop.f32.mrf.mxu0
        %v7022 = vadd.f32 %v6300, %v7021
        %7023 = vdwg.mxu0
        %7024 = vmatpush.bf16.msra.mxu0 %v6820
        %7025 = vmatpush.bf16.msra.mxu0 %v6812
        %7026 = vmatpush.bf16.msra.mxu0 %v6804
        %7027 = vmatpush.bf16.msra.mxu0 %v6796
        %7028 = vmatpush.bf16.msra.mxu0 %v6788
        %7029 = vmatpush.bf16.msra.mxu0 %v6780
        %7030 = vmatpush.bf16.msra.mxu0 %v6772
        %7031 = vmatpush.bf16.msra.mxu0 %v6764
        %7032 = vmatmul.bf16.gmra.mxu0 %v6165
        %v7033 = vpop.f32.mrf.mxu0
        %v7034 = vadd.f32 %v7020, %v7033
        %v7035 = vpop.f32.mrf.mxu0
        %v7036 = vadd.f32 %v7022, %v7035
        %7037 = vdwg.mxu0
        %7038 = vmatpush.bf16.msra.mxu0 %v6757
        %7039 = vmatpush.bf16.msra.mxu0 %v6749
        %7040 = vmatpush.bf16.msra.mxu0 %v6741
        %7041 = vmatpush.bf16.msra.mxu0 %v6733
        %7042 = vmatpush.bf16.msra.mxu0 %v6725
        %7043 = vmatpush.bf16.msra.mxu0 %v6717
        %7044 = vmatpush.bf16.msra.mxu0 %v6709
        %7045 = vmatpush.bf16.msra.mxu0 %v6701
        %7046 = vmatmul.bf16.gmra.mxu0 %v6164
        %v7047 = vpop.f32.mrf.mxu0
        %v7048 = vadd.f32 %v6301, %v7047
        %v7049 = vpop.f32.mrf.mxu0
        %v7050 = vadd.f32 %v6301, %v7049
        %7051 = vdwg.mxu0
        %7052 = vmatpush.bf16.msra.mxu0 %v6821
        %7053 = vmatpush.bf16.msra.mxu0 %v6813
        %7054 = vmatpush.bf16.msra.mxu0 %v6805
        %7055 = vmatpush.bf16.msra.mxu0 %v6797
        %7056 = vmatpush.bf16.msra.mxu0 %v6789
        %7057 = vmatpush.bf16.msra.mxu0 %v6781
        %7058 = vmatpush.bf16.msra.mxu0 %v6773
        %7059 = vmatpush.bf16.msra.mxu0 %v6765
        %7060 = vmatmul.bf16.gmra.mxu0 %v6165
        %v7061 = vpop.f32.mrf.mxu0
        %v7062 = vadd.f32 %v7048, %v7061
        %v7063 = vpop.f32.mrf.mxu0
        %v7064 = vadd.f32 %v7050, %v7063
        %7065 = vdwg.mxu0
        %7066 = vmatpush.bf16.msra.mxu0 %v6758
        %7067 = vmatpush.bf16.msra.mxu0 %v6750
        %7068 = vmatpush.bf16.msra.mxu0 %v6742
        %7069 = vmatpush.bf16.msra.mxu0 %v6734
        %7070 = vmatpush.bf16.msra.mxu0 %v6726
        %7071 = vmatpush.bf16.msra.mxu0 %v6718
        %7072 = vmatpush.bf16.msra.mxu0 %v6710
        %7073 = vmatpush.bf16.msra.mxu0 %v6702
        %7074 = vmatmul.bf16.gmra.mxu0 %v6164
        %v7075 = vpop.f32.mrf.mxu0
        %v7076 = vadd.f32 %v6302, %v7075
        %v7077 = vpop.f32.mrf.mxu0
        %v7078 = vadd.f32 %v6302, %v7077
        %7079 = vdwg.mxu0
        %7080 = vmatpush.bf16.msra.mxu0 %v6822
        %7081 = vmatpush.bf16.msra.mxu0 %v6814
        %7082 = vmatpush.bf16.msra.mxu0 %v6806
        %7083 = vmatpush.bf16.msra.mxu0 %v6798
        %7084 = vmatpush.bf16.msra.mxu0 %v6790
        %7085 = vmatpush.bf16.msra.mxu0 %v6782
        %7086 = vmatpush.bf16.msra.mxu0 %v6774
        %7087 = vmatpush.bf16.msra.mxu0 %v6766
        %7088 = vmatmul.bf16.gmra.mxu0 %v6165
        %v7089 = vpop.f32.mrf.mxu0
        %v7090 = vadd.f32 %v7076, %v7089
        %v7091 = vpop.f32.mrf.mxu0
        %v7092 = vadd.f32 %v7078, %v7091
        %7093 = vdwg.mxu0
        %7094 = vmatpush.bf16.msra.mxu0 %v6759
        %7095 = vmatpush.bf16.msra.mxu0 %v6751
        %7096 = vmatpush.bf16.msra.mxu0 %v6743
        %7097 = vmatpush.bf16.msra.mxu0 %v6735
        %7098 = vmatpush.bf16.msra.mxu0 %v6727
        %7099 = vmatpush.bf16.msra.mxu0 %v6719
        %7100 = vmatpush.bf16.msra.mxu0 %v6711
        %7101 = vmatpush.bf16.msra.mxu0 %v6703
        %7102 = vmatmul.bf16.gmra.mxu0 %v6164
        %v7103 = vpop.f32.mrf.mxu0
        %v7104 = vadd.f32 %v6303, %v7103
        %v7105 = vpop.f32.mrf.mxu0
        %v7106 = vadd.f32 %v6303, %v7105
        %7107 = vdwg.mxu0
        %7108 = vmatpush.bf16.msra.mxu0 %v6823
        %7109 = vmatpush.bf16.msra.mxu0 %v6815
        %7110 = vmatpush.bf16.msra.mxu0 %v6807
        %7111 = vmatpush.bf16.msra.mxu0 %v6799
        %7112 = vmatpush.bf16.msra.mxu0 %v6791
        %7113 = vmatpush.bf16.msra.mxu0 %v6783
        %7114 = vmatpush.bf16.msra.mxu0 %v6775
        %7115 = vmatpush.bf16.msra.mxu0 %v6767
        %7116 = vmatmul.bf16.gmra.mxu0 %v6165
        %v7117 = vpop.f32.mrf.mxu0
        %v7118 = vadd.f32 %v7104, %v7117
        %v7119 = vpop.f32.mrf.mxu0
        %v7120 = vadd.f32 %v7106, %v7119
        %7121 = vdwg.mxu0
        %7122 = vmatpush.bf16.msra.mxu0 %v6760
        %7123 = vmatpush.bf16.msra.mxu0 %v6752
        %7124 = vmatpush.bf16.msra.mxu0 %v6744
        %7125 = vmatpush.bf16.msra.mxu0 %v6736
        %7126 = vmatpush.bf16.msra.mxu0 %v6728
        %7127 = vmatpush.bf16.msra.mxu0 %v6720
        %7128 = vmatpush.bf16.msra.mxu0 %v6712
        %7129 = vmatpush.bf16.msra.mxu0 %v6704
        %7130 = vmatmul.bf16.gmra.mxu0 %v6164
        %v7131 = vpop.f32.mrf.mxu0
        %v7132 = vadd.f32 %v6304, %v7131
        %v7133 = vpop.f32.mrf.mxu0
        %v7134 = vadd.f32 %v6304, %v7133
        %7135 = vdwg.mxu0
        %7136 = vmatpush.bf16.msra.mxu0 %v6824
        %7137 = vmatpush.bf16.msra.mxu0 %v6816
        %7138 = vmatpush.bf16.msra.mxu0 %v6808
        %7139 = vmatpush.bf16.msra.mxu0 %v6800
        %7140 = vmatpush.bf16.msra.mxu0 %v6792
        %7141 = vmatpush.bf16.msra.mxu0 %v6784
        %7142 = vmatpush.bf16.msra.mxu0 %v6776
        %7143 = vmatpush.bf16.msra.mxu0 %v6768
        %7144 = vmatmul.bf16.gmra.mxu0 %v6165
        %v7145 = vpop.f32.mrf.mxu0
        %v7146 = vadd.f32 %v7132, %v7145
        %v7147 = vpop.f32.mrf.mxu0
        %v7148 = vadd.f32 %v7134, %v7147
        %7149 = vdwg.mxu0
        %7150 = vmatpush.bf16.msra.mxu0 %v6761
        %7151 = vmatpush.bf16.msra.mxu0 %v6753
        %7152 = vmatpush.bf16.msra.mxu0 %v6745
        %7153 = vmatpush.bf16.msra.mxu0 %v6737
        %7154 = vmatpush.bf16.msra.mxu0 %v6729
        %7155 = vmatpush.bf16.msra.mxu0 %v6721
        %7156 = vmatpush.bf16.msra.mxu0 %v6713
        %7157 = vmatpush.bf16.msra.mxu0 %v6705
        %7158 = vmatmul.bf16.gmra.mxu0 %v6164
        %v7159 = vpop.f32.mrf.mxu0
        %v7160 = vadd.f32 %v6305, %v7159
        %v7161 = vpop.f32.mrf.mxu0
        %v7162 = vadd.f32 %v6305, %v7161
        %7163 = vdwg.mxu0
        %7164 = vmatpush.bf16.msra.mxu0 %v6825
        %7165 = vmatpush.bf16.msra.mxu0 %v6817
        %7166 = vmatpush.bf16.msra.mxu0 %v6809
        %7167 = vmatpush.bf16.msra.mxu0 %v6801
        %7168 = vmatpush.bf16.msra.mxu0 %v6793
        %7169 = vmatpush.bf16.msra.mxu0 %v6785
        %7170 = vmatpush.bf16.msra.mxu0 %v6777
        %7171 = vmatpush.bf16.msra.mxu0 %v6769
        %7172 = vmatmul.bf16.gmra.mxu0 %v6165
        %v7173 = vpop.f32.mrf.mxu0
        %v7174 = vadd.f32 %v7160, %v7173
        %v7175 = vpop.f32.mrf.mxu0
        %v7176 = vadd.f32 %v7162, %v7175
        %7177 = vdwg.mxu0
        %v7178 = vmul.f32 %v6978, %v6978
        %v7179 = vmul.f32 %v7006, %v7006
        %v7180 = vmul.f32 %v7034, %v7034
        %v7181 = vmul.f32 %v7062, %v7062
        %v7182 = vmul.f32 %v7090, %v7090
        %v7183 = vmul.f32 %v7118, %v7118
        %v7184 = vmul.f32 %v7146, %v7146
        %v7185 = vmul.f32 %v7174, %v7174
        %v7186 = vmul.f32 %v6980, %v6980
        %v7187 = vmul.f32 %v7008, %v7008
        %v7188 = vmul.f32 %v7036, %v7036
        %v7189 = vmul.f32 %v7064, %v7064
        %v7190 = vmul.f32 %v7092, %v7092
        %v7191 = vmul.f32 %v7120, %v7120
        %v7192 = vmul.f32 %v7148, %v7148
        %v7193 = vmul.f32 %v7176, %v7176
        %v7194 = vmul.f32 %v6978, %v7178
        %v7195 = vmul.f32 %v7006, %v7179
        %v7196 = vmul.f32 %v7034, %v7180
        %v7197 = vmul.f32 %v7062, %v7181
        %v7198 = vmul.f32 %v7090, %v7182
        %v7199 = vmul.f32 %v7118, %v7183
        %v7200 = vmul.f32 %v7146, %v7184
        %v7201 = vmul.f32 %v7174, %v7185
        %v7202 = vmul.f32 %v6980, %v7186
        %v7203 = vmul.f32 %v7008, %v7187
        %v7204 = vmul.f32 %v7036, %v7188
        %v7205 = vmul.f32 %v7064, %v7189
        %v7206 = vmul.f32 %v7092, %v7190
        %v7207 = vmul.f32 %v7120, %v7191
        %v7208 = vmul.f32 %v7148, %v7192
        %v7209 = vmul.f32 %v7176, %v7193
        %v7210 = vmul.f32 %v7194, 0.044715
        %v7211 = vmul.f32 %v7195, 0.044715
        %v7212 = vmul.f32 %v7196, 0.044715
        %v7213 = vmul.f32 %v7197, 0.044715
        %v7214 = vmul.f32 %v7198, 0.044715
        %v7215 = vmul.f32 %v7199, 0.044715
        %v7216 = vmul.f32 %v7200, 0.044715
        %v7217 = vmul.f32 %v7201, 0.044715
        %v7218 = vmul.f32 %v7202, 0.044715
        %v7219 = vmul.f32 %v7203, 0.044715
        %v7220 = vmul.f32 %v7204, 0.044715
        %v7221 = vmul.f32 %v7205, 0.044715
        %v7222 = vmul.f32 %v7206, 0.044715
        %v7223 = vmul.f32 %v7207, 0.044715
        %v7224 = vmul.f32 %v7208, 0.044715
        %v7225 = vmul.f32 %v7209, 0.044715
        %v7226 = vadd.f32 %v6978, %v7210
        %v7227 = vadd.f32 %v7006, %v7211
        %v7228 = vadd.f32 %v7034, %v7212
        %v7229 = vadd.f32 %v7062, %v7213
        %v7230 = vadd.f32 %v7090, %v7214
        %v7231 = vadd.f32 %v7118, %v7215
        %v7232 = vadd.f32 %v7146, %v7216
        %v7233 = vadd.f32 %v7174, %v7217
        %v7234 = vadd.f32 %v6980, %v7218
        %v7235 = vadd.f32 %v7008, %v7219
        %v7236 = vadd.f32 %v7036, %v7220
        %v7237 = vadd.f32 %v7064, %v7221
        %v7238 = vadd.f32 %v7092, %v7222
        %v7239 = vadd.f32 %v7120, %v7223
        %v7240 = vadd.f32 %v7148, %v7224
        %v7241 = vadd.f32 %v7176, %v7225
        %v7242 = vmul.f32 %v7226, 0.7978846
        %v7243 = vmul.f32 %v7227, 0.7978846
        %v7244 = vmul.f32 %v7228, 0.7978846
        %v7245 = vmul.f32 %v7229, 0.7978846
        %v7246 = vmul.f32 %v7230, 0.7978846
        %v7247 = vmul.f32 %v7231, 0.7978846
        %v7248 = vmul.f32 %v7232, 0.7978846
        %v7249 = vmul.f32 %v7233, 0.7978846
        %v7250 = vmul.f32 %v7234, 0.7978846
        %v7251 = vmul.f32 %v7235, 0.7978846
        %v7252 = vmul.f32 %v7236, 0.7978846
        %v7253 = vmul.f32 %v7237, 0.7978846
        %v7254 = vmul.f32 %v7238, 0.7978846
        %v7255 = vmul.f32 %v7239, 0.7978846
        %v7256 = vmul.f32 %v7240, 0.7978846
        %v7257 = vmul.f32 %v7241, 0.7978846
        %v7258 = vtanh.pop %v7242
        %v7259 = vtanh.pop %v7243
        %v7260 = vtanh.pop %v7244
        %v7261 = vtanh.pop %v7245
        %v7262 = vtanh.pop %v7246
        %v7263 = vtanh.pop %v7247
        %v7264 = vtanh.pop %v7248
        %v7265 = vtanh.pop %v7249
        %v7266 = vtanh.pop %v7250
        %v7267 = vtanh.pop %v7251
        %v7268 = vtanh.pop %v7252
        %v7269 = vtanh.pop %v7253
        %v7270 = vtanh.pop %v7254
        %v7271 = vtanh.pop %v7255
        %v7272 = vtanh.pop %v7256
        %v7273 = vtanh.pop %v7257
        %v7274 = vadd.f32 %v7258, 1.0
        %v7275 = vadd.f32 %v7259, 1.0
        %v7276 = vadd.f32 %v7260, 1.0
        %v7277 = vadd.f32 %v7261, 1.0
        %v7278 = vadd.f32 %v7262, 1.0
        %v7279 = vadd.f32 %v7263, 1.0
        %v7280 = vadd.f32 %v7264, 1.0
        %v7281 = vadd.f32 %v7265, 1.0
        %v7282 = vadd.f32 %v7266, 1.0
        %v7283 = vadd.f32 %v7267, 1.0
        %v7284 = vadd.f32 %v7268, 1.0
        %v7285 = vadd.f32 %v7269, 1.0
        %v7286 = vadd.f32 %v7270, 1.0
        %v7287 = vadd.f32 %v7271, 1.0
        %v7288 = vadd.f32 %v7272, 1.0
        %v7289 = vadd.f32 %v7273, 1.0
        %v7290 = vmul.f32 %v7274, 0.5
        %v7291 = vmul.f32 %v7275, 0.5
        %v7292 = vmul.f32 %v7276, 0.5
        %v7293 = vmul.f32 %v7277, 0.5
        %v7294 = vmul.f32 %v7278, 0.5
        %v7295 = vmul.f32 %v7279, 0.5
        %v7296 = vmul.f32 %v7280, 0.5
        %v7297 = vmul.f32 %v7281, 0.5
        %v7298 = vmul.f32 %v7282, 0.5
        %v7299 = vmul.f32 %v7283, 0.5
        %v7300 = vmul.f32 %v7284, 0.5
        %v7301 = vmul.f32 %v7285, 0.5
        %v7302 = vmul.f32 %v7286, 0.5
        %v7303 = vmul.f32 %v7287, 0.5
        %v7304 = vmul.f32 %v7288, 0.5
        %v7305 = vmul.f32 %v7289, 0.5
        %v7306 = vmul.f32 %v6978, %v7290
        %v7307 = vmul.f32 %v7006, %v7291
        %v7308 = vmul.f32 %v7034, %v7292
        %v7309 = vmul.f32 %v7062, %v7293
        %v7310 = vmul.f32 %v7090, %v7294
        %v7311 = vmul.f32 %v7118, %v7295
        %v7312 = vmul.f32 %v7146, %v7296
        %v7313 = vmul.f32 %v7174, %v7297
        %v7314 = vmul.f32 %v6980, %v7298
        %v7315 = vmul.f32 %v7008, %v7299
        %v7316 = vmul.f32 %v7036, %v7300
        %v7317 = vmul.f32 %v7064, %v7301
        %v7318 = vmul.f32 %v7092, %v7302
        %v7319 = vmul.f32 %v7120, %v7303
        %v7320 = vmul.f32 %v7148, %v7304
        %v7321 = vmul.f32 %v7176, %v7305
        %v7322 = vpack.c.bf16 %v7314, %v7306
        %v7323 = vpack.c.bf16 %v7315, %v7307
        %v7324 = vpack.c.bf16 %v7316, %v7308
        %v7325 = vpack.c.bf16 %v7317, %v7309
        %v7326 = vpack.c.bf16 %v7318, %v7310
        %v7327 = vpack.c.bf16 %v7319, %v7311
        %v7328 = vpack.c.bf16 %v7320, %v7312
        %v7329 = vpack.c.bf16 %v7321, %v7313
        %s7330 = scalar_lea.vmem [#allocation15], 1024
        %v7331 = vld [vmem:[%s7330] sm:$0xff]
        %v7332 = vld [vmem:[%s7330 + $0x8] sm:$0xff]
        %v7333 = vld [vmem:[%s7330 + $0x10] sm:$0xff]
        %v7334 = vld [vmem:[%s7330 + $0x18] sm:$0xff]
        %v7335 = vld [vmem:[%s7330 + $0x20] sm:$0xff]
        %v7336 = vld [vmem:[%s7330 + $0x28] sm:$0xff]
        %v7337 = vld [vmem:[%s7330 + $0x30] sm:$0xff]
        %v7338 = vld [vmem:[%s7330 + $0x38] sm:$0xff]
        %v7339 = vld [vmem:[%s7330 + $0x40] sm:$0xff]
        %v7340 = vld [vmem:[%s7330 + $0x48] sm:$0xff]
        %v7341 = vld [vmem:[%s7330 + $0x50] sm:$0xff]
        %v7342 = vld [vmem:[%s7330 + $0x58] sm:$0xff]
        %v7343 = vld [vmem:[%s7330 + $0x60] sm:$0xff]
        %v7344 = vld [vmem:[%s7330 + $0x68] sm:$0xff]
        %v7345 = vld [vmem:[%s7330 + $0x70] sm:$0xff]
        %v7346 = vld [vmem:[%s7330 + $0x78] sm:$0xff]
        %v7347 = vld [vmem:[%s7330 + $0x80] sm:$0xff]
        %v7348 = vld [vmem:[%s7330 + $0x88] sm:$0xff]
        %v7349 = vld [vmem:[%s7330 + $0x90] sm:$0xff]
        %v7350 = vld [vmem:[%s7330 + $0x98] sm:$0xff]
        %v7351 = vld [vmem:[%s7330 + $0xa0] sm:$0xff]
        %v7352 = vld [vmem:[%s7330 + $0xa8] sm:$0xff]
        %v7353 = vld [vmem:[%s7330 + $0xb0] sm:$0xff]
        %v7354 = vld [vmem:[%s7330 + $0xb8] sm:$0xff]
        %v7355 = vld [vmem:[%s7330 + $0xc0] sm:$0xff]
        %v7356 = vld [vmem:[%s7330 + $0xc8] sm:$0xff]
        %v7357 = vld [vmem:[%s7330 + $0xd0] sm:$0xff]
        %v7358 = vld [vmem:[%s7330 + $0xd8] sm:$0xff]
        %v7359 = vld [vmem:[%s7330 + $0xe0] sm:$0xff]
        %v7360 = vld [vmem:[%s7330 + $0xe8] sm:$0xff]
        %v7361 = vld [vmem:[%s7330 + $0xf0] sm:$0xff]
        %v7362 = vld [vmem:[%s7330 + $0xf8] sm:$0xff]
        %v7363 = vld [vmem:[%s7330 + $0x100] sm:$0xff]
        %v7364 = vld [vmem:[%s7330 + $0x108] sm:$0xff]
        %v7365 = vld [vmem:[%s7330 + $0x110] sm:$0xff]
        %v7366 = vld [vmem:[%s7330 + $0x118] sm:$0xff]
        %v7367 = vld [vmem:[%s7330 + $0x120] sm:$0xff]
        %v7368 = vld [vmem:[%s7330 + $0x128] sm:$0xff]
        %v7369 = vld [vmem:[%s7330 + $0x130] sm:$0xff]
        %v7370 = vld [vmem:[%s7330 + $0x138] sm:$0xff]
        %v7371 = vld [vmem:[%s7330 + $0x140] sm:$0xff]
        %v7372 = vld [vmem:[%s7330 + $0x148] sm:$0xff]
        %v7373 = vld [vmem:[%s7330 + $0x150] sm:$0xff]
        %v7374 = vld [vmem:[%s7330 + $0x158] sm:$0xff]
        %v7375 = vld [vmem:[%s7330 + $0x160] sm:$0xff]
        %v7376 = vld [vmem:[%s7330 + $0x168] sm:$0xff]
        %v7377 = vld [vmem:[%s7330 + $0x170] sm:$0xff]
        %v7378 = vld [vmem:[%s7330 + $0x178] sm:$0xff]
        %v7379 = vld [vmem:[%s7330 + $0x180] sm:$0xff]
        %v7380 = vld [vmem:[%s7330 + $0x188] sm:$0xff]
        %v7381 = vld [vmem:[%s7330 + $0x190] sm:$0xff]
        %v7382 = vld [vmem:[%s7330 + $0x198] sm:$0xff]
        %v7383 = vld [vmem:[%s7330 + $0x1a0] sm:$0xff]
        %v7384 = vld [vmem:[%s7330 + $0x1a8] sm:$0xff]
        %v7385 = vld [vmem:[%s7330 + $0x1b0] sm:$0xff]
        %v7386 = vld [vmem:[%s7330 + $0x1b8] sm:$0xff]
        %v7387 = vld [vmem:[%s7330 + $0x1c0] sm:$0xff]
        %v7388 = vld [vmem:[%s7330 + $0x1c8] sm:$0xff]
        %v7389 = vld [vmem:[%s7330 + $0x1d0] sm:$0xff]
        %v7390 = vld [vmem:[%s7330 + $0x1d8] sm:$0xff]
        %v7391 = vld [vmem:[%s7330 + $0x1e0] sm:$0xff]
        %v7392 = vld [vmem:[%s7330 + $0x1e8] sm:$0xff]
        %v7393 = vld [vmem:[%s7330 + $0x1f0] sm:$0xff]
        %v7394 = vld [vmem:[%s7330 + $0x1f8] sm:$0xff]
        %v7395 = vld [vmem:[%s7330 + $0x200] sm:$0xff]
        %v7396 = vld [vmem:[%s7330 + $0x208] sm:$0xff]
        %v7397 = vld [vmem:[%s7330 + $0x210] sm:$0xff]
        %v7398 = vld [vmem:[%s7330 + $0x218] sm:$0xff]
        %v7399 = vld [vmem:[%s7330 + $0x220] sm:$0xff]
        %v7400 = vld [vmem:[%s7330 + $0x228] sm:$0xff]
        %v7401 = vld [vmem:[%s7330 + $0x230] sm:$0xff]
        %v7402 = vld [vmem:[%s7330 + $0x238] sm:$0xff]
        %v7403 = vld [vmem:[%s7330 + $0x240] sm:$0xff]
        %v7404 = vld [vmem:[%s7330 + $0x248] sm:$0xff]
        %v7405 = vld [vmem:[%s7330 + $0x250] sm:$0xff]
        %v7406 = vld [vmem:[%s7330 + $0x258] sm:$0xff]
        %v7407 = vld [vmem:[%s7330 + $0x260] sm:$0xff]
        %v7408 = vld [vmem:[%s7330 + $0x268] sm:$0xff]
        %v7409 = vld [vmem:[%s7330 + $0x270] sm:$0xff]
        %v7410 = vld [vmem:[%s7330 + $0x278] sm:$0xff]
        %v7411 = vld [vmem:[%s7330 + $0x280] sm:$0xff]
        %v7412 = vld [vmem:[%s7330 + $0x288] sm:$0xff]
        %v7413 = vld [vmem:[%s7330 + $0x290] sm:$0xff]
        %v7414 = vld [vmem:[%s7330 + $0x298] sm:$0xff]
        %v7415 = vld [vmem:[%s7330 + $0x2a0] sm:$0xff]
        %v7416 = vld [vmem:[%s7330 + $0x2a8] sm:$0xff]
        %v7417 = vld [vmem:[%s7330 + $0x2b0] sm:$0xff]
        %v7418 = vld [vmem:[%s7330 + $0x2b8] sm:$0xff]
        %v7419 = vld [vmem:[%s7330 + $0x2c0] sm:$0xff]
        %v7420 = vld [vmem:[%s7330 + $0x2c8] sm:$0xff]
        %v7421 = vld [vmem:[%s7330 + $0x2d0] sm:$0xff]
        %v7422 = vld [vmem:[%s7330 + $0x2d8] sm:$0xff]
        %v7423 = vld [vmem:[%s7330 + $0x2e0] sm:$0xff]
        %v7424 = vld [vmem:[%s7330 + $0x2e8] sm:$0xff]
        %v7425 = vld [vmem:[%s7330 + $0x2f0] sm:$0xff]
        %v7426 = vld [vmem:[%s7330 + $0x2f8] sm:$0xff]
        %v7427 = vld [vmem:[%s7330 + $0x300] sm:$0xff]
        %v7428 = vld [vmem:[%s7330 + $0x308] sm:$0xff]
        %v7429 = vld [vmem:[%s7330 + $0x310] sm:$0xff]
        %v7430 = vld [vmem:[%s7330 + $0x318] sm:$0xff]
        %v7431 = vld [vmem:[%s7330 + $0x320] sm:$0xff]
        %v7432 = vld [vmem:[%s7330 + $0x328] sm:$0xff]
        %v7433 = vld [vmem:[%s7330 + $0x330] sm:$0xff]
        %v7434 = vld [vmem:[%s7330 + $0x338] sm:$0xff]
        %v7435 = vld [vmem:[%s7330 + $0x340] sm:$0xff]
        %v7436 = vld [vmem:[%s7330 + $0x348] sm:$0xff]
        %v7437 = vld [vmem:[%s7330 + $0x350] sm:$0xff]
        %v7438 = vld [vmem:[%s7330 + $0x358] sm:$0xff]
        %v7439 = vld [vmem:[%s7330 + $0x360] sm:$0xff]
        %v7440 = vld [vmem:[%s7330 + $0x368] sm:$0xff]
        %v7441 = vld [vmem:[%s7330 + $0x370] sm:$0xff]
        %v7442 = vld [vmem:[%s7330 + $0x378] sm:$0xff]
        %v7443 = vld [vmem:[%s7330 + $0x380] sm:$0xff]
        %v7444 = vld [vmem:[%s7330 + $0x388] sm:$0xff]
        %v7445 = vld [vmem:[%s7330 + $0x390] sm:$0xff]
        %v7446 = vld [vmem:[%s7330 + $0x398] sm:$0xff]
        %v7447 = vld [vmem:[%s7330 + $0x3a0] sm:$0xff]
        %v7448 = vld [vmem:[%s7330 + $0x3a8] sm:$0xff]
        %v7449 = vld [vmem:[%s7330 + $0x3b0] sm:$0xff]
        %v7450 = vld [vmem:[%s7330 + $0x3b8] sm:$0xff]
        %v7451 = vld [vmem:[%s7330 + $0x3c0] sm:$0xff]
        %v7452 = vld [vmem:[%s7330 + $0x3c8] sm:$0xff]
        %v7453 = vld [vmem:[%s7330 + $0x3d0] sm:$0xff]
        %v7454 = vld [vmem:[%s7330 + $0x3d8] sm:$0xff]
        %v7455 = vld [vmem:[%s7330 + $0x3e0] sm:$0xff]
        %v7456 = vld [vmem:[%s7330 + $0x3e8] sm:$0xff]
        %v7457 = vld [vmem:[%s7330 + $0x3f0] sm:$0xff]
        %v7458 = vld [vmem:[%s7330 + $0x3f8] sm:$0xff]
        %s7459 = scalar_lea.vmem [#allocation16], 2
        %v7460 = vld [vmem:[%s7459] sm:$0x3]
        %v7462 = vperm.slane %v7460, 0
        %v7463 = vperm.slane %v7460, 1
        %v7594 = vunpack.c.l.b16 %v7331
        %v7595 = vunpack.c.h.b16 %v7331
        %v7596 = vunpack.c.l.b16 %v7332
        %v7597 = vunpack.c.h.b16 %v7332
        %v7598 = vunpack.c.l.b16 %v7333
        %v7599 = vunpack.c.h.b16 %v7333
        %v7600 = vunpack.c.l.b16 %v7334
        %v7601 = vunpack.c.h.b16 %v7334
        %v7602 = vunpack.c.l.b16 %v7335
        %v7603 = vunpack.c.h.b16 %v7335
        %v7604 = vunpack.c.l.b16 %v7336
        %v7605 = vunpack.c.h.b16 %v7336
        %v7606 = vunpack.c.l.b16 %v7337
        %v7607 = vunpack.c.h.b16 %v7337
        %v7608 = vunpack.c.l.b16 %v7338
        %v7609 = vunpack.c.h.b16 %v7338
        %v7610 = vunpack.c.l.b16 %v7339
        %v7611 = vunpack.c.h.b16 %v7339
        %v7612 = vunpack.c.l.b16 %v7340
        %v7613 = vunpack.c.h.b16 %v7340
        %v7614 = vunpack.c.l.b16 %v7341
        %v7615 = vunpack.c.h.b16 %v7341
        %v7616 = vunpack.c.l.b16 %v7342
        %v7617 = vunpack.c.h.b16 %v7342
        %v7618 = vunpack.c.l.b16 %v7343
        %v7619 = vunpack.c.h.b16 %v7343
        %v7620 = vunpack.c.l.b16 %v7344
        %v7621 = vunpack.c.h.b16 %v7344
        %v7622 = vunpack.c.l.b16 %v7345
        %v7623 = vunpack.c.h.b16 %v7345
        %v7624 = vunpack.c.l.b16 %v7346
        %v7625 = vunpack.c.h.b16 %v7346
        %v7626 = vunpack.c.l.b16 %v7347
        %v7627 = vunpack.c.h.b16 %v7347
        %v7628 = vunpack.c.l.b16 %v7348
        %v7629 = vunpack.c.h.b16 %v7348
        %v7630 = vunpack.c.l.b16 %v7349
        %v7631 = vunpack.c.h.b16 %v7349
        %v7632 = vunpack.c.l.b16 %v7350
        %v7633 = vunpack.c.h.b16 %v7350
        %v7634 = vunpack.c.l.b16 %v7351
        %v7635 = vunpack.c.h.b16 %v7351
        %v7636 = vunpack.c.l.b16 %v7352
        %v7637 = vunpack.c.h.b16 %v7352
        %v7638 = vunpack.c.l.b16 %v7353
        %v7639 = vunpack.c.h.b16 %v7353
        %v7640 = vunpack.c.l.b16 %v7354
        %v7641 = vunpack.c.h.b16 %v7354
        %v7642 = vunpack.c.l.b16 %v7355
        %v7643 = vunpack.c.h.b16 %v7355
        %v7644 = vunpack.c.l.b16 %v7356
        %v7645 = vunpack.c.h.b16 %v7356
        %v7646 = vunpack.c.l.b16 %v7357
        %v7647 = vunpack.c.h.b16 %v7357
        %v7648 = vunpack.c.l.b16 %v7358
        %v7649 = vunpack.c.h.b16 %v7358
        %v7650 = vunpack.c.l.b16 %v7359
        %v7651 = vunpack.c.h.b16 %v7359
        %v7652 = vunpack.c.l.b16 %v7360
        %v7653 = vunpack.c.h.b16 %v7360
        %v7654 = vunpack.c.l.b16 %v7361
        %v7655 = vunpack.c.h.b16 %v7361
        %v7656 = vunpack.c.l.b16 %v7362
        %v7657 = vunpack.c.h.b16 %v7362
        %v7658 = vunpack.c.l.b16 %v7363
        %v7659 = vunpack.c.h.b16 %v7363
        %v7660 = vunpack.c.l.b16 %v7364
        %v7661 = vunpack.c.h.b16 %v7364
        %v7662 = vunpack.c.l.b16 %v7365
        %v7663 = vunpack.c.h.b16 %v7365
        %v7664 = vunpack.c.l.b16 %v7366
        %v7665 = vunpack.c.h.b16 %v7366
        %v7666 = vunpack.c.l.b16 %v7367
        %v7667 = vunpack.c.h.b16 %v7367
        %v7668 = vunpack.c.l.b16 %v7368
        %v7669 = vunpack.c.h.b16 %v7368
        %v7670 = vunpack.c.l.b16 %v7369
        %v7671 = vunpack.c.h.b16 %v7369
        %v7672 = vunpack.c.l.b16 %v7370
        %v7673 = vunpack.c.h.b16 %v7370
        %v7674 = vunpack.c.l.b16 %v7371
        %v7675 = vunpack.c.h.b16 %v7371
        %v7676 = vunpack.c.l.b16 %v7372
        %v7677 = vunpack.c.h.b16 %v7372
        %v7678 = vunpack.c.l.b16 %v7373
        %v7679 = vunpack.c.h.b16 %v7373
        %v7680 = vunpack.c.l.b16 %v7374
        %v7681 = vunpack.c.h.b16 %v7374
        %v7682 = vunpack.c.l.b16 %v7375
        %v7683 = vunpack.c.h.b16 %v7375
        %v7684 = vunpack.c.l.b16 %v7376
        %v7685 = vunpack.c.h.b16 %v7376
        %v7686 = vunpack.c.l.b16 %v7377
        %v7687 = vunpack.c.h.b16 %v7377
        %v7688 = vunpack.c.l.b16 %v7378
        %v7689 = vunpack.c.h.b16 %v7378
        %v7690 = vunpack.c.l.b16 %v7379
        %v7691 = vunpack.c.h.b16 %v7379
        %v7692 = vunpack.c.l.b16 %v7380
        %v7693 = vunpack.c.h.b16 %v7380
        %v7694 = vunpack.c.l.b16 %v7381
        %v7695 = vunpack.c.h.b16 %v7381
        %v7696 = vunpack.c.l.b16 %v7382
        %v7697 = vunpack.c.h.b16 %v7382
        %v7698 = vunpack.c.l.b16 %v7383
        %v7699 = vunpack.c.h.b16 %v7383
        %v7700 = vunpack.c.l.b16 %v7384
        %v7701 = vunpack.c.h.b16 %v7384
        %v7702 = vunpack.c.l.b16 %v7385
        %v7703 = vunpack.c.h.b16 %v7385
        %v7704 = vunpack.c.l.b16 %v7386
        %v7705 = vunpack.c.h.b16 %v7386
        %v7706 = vunpack.c.l.b16 %v7387
        %v7707 = vunpack.c.h.b16 %v7387
        %v7708 = vunpack.c.l.b16 %v7388
        %v7709 = vunpack.c.h.b16 %v7388
        %v7710 = vunpack.c.l.b16 %v7389
        %v7711 = vunpack.c.h.b16 %v7389
        %v7712 = vunpack.c.l.b16 %v7390
        %v7713 = vunpack.c.h.b16 %v7390
        %v7714 = vunpack.c.l.b16 %v7391
        %v7715 = vunpack.c.h.b16 %v7391
        %v7716 = vunpack.c.l.b16 %v7392
        %v7717 = vunpack.c.h.b16 %v7392
        %v7718 = vunpack.c.l.b16 %v7393
        %v7719 = vunpack.c.h.b16 %v7393
        %v7720 = vunpack.c.l.b16 %v7394
        %v7721 = vunpack.c.h.b16 %v7394
        %v7722 = vunpack.c.l.b16 %v7395
        %v7723 = vunpack.c.h.b16 %v7395
        %v7724 = vunpack.c.l.b16 %v7396
        %v7725 = vunpack.c.h.b16 %v7396
        %v7726 = vunpack.c.l.b16 %v7397
        %v7727 = vunpack.c.h.b16 %v7397
        %v7728 = vunpack.c.l.b16 %v7398
        %v7729 = vunpack.c.h.b16 %v7398
        %v7730 = vunpack.c.l.b16 %v7399
        %v7731 = vunpack.c.h.b16 %v7399
        %v7732 = vunpack.c.l.b16 %v7400
        %v7733 = vunpack.c.h.b16 %v7400
        %v7734 = vunpack.c.l.b16 %v7401
        %v7735 = vunpack.c.h.b16 %v7401
        %v7736 = vunpack.c.l.b16 %v7402
        %v7737 = vunpack.c.h.b16 %v7402
        %v7738 = vunpack.c.l.b16 %v7403
        %v7739 = vunpack.c.h.b16 %v7403
        %v7740 = vunpack.c.l.b16 %v7404
        %v7741 = vunpack.c.h.b16 %v7404
        %v7742 = vunpack.c.l.b16 %v7405
        %v7743 = vunpack.c.h.b16 %v7405
        %v7744 = vunpack.c.l.b16 %v7406
        %v7745 = vunpack.c.h.b16 %v7406
        %v7746 = vunpack.c.l.b16 %v7407
        %v7747 = vunpack.c.h.b16 %v7407
        %v7748 = vunpack.c.l.b16 %v7408
        %v7749 = vunpack.c.h.b16 %v7408
        %v7750 = vunpack.c.l.b16 %v7409
        %v7751 = vunpack.c.h.b16 %v7409
        %v7752 = vunpack.c.l.b16 %v7410
        %v7753 = vunpack.c.h.b16 %v7410
        %v7754 = vunpack.c.l.b16 %v7411
        %v7755 = vunpack.c.h.b16 %v7411
        %v7756 = vunpack.c.l.b16 %v7412
        %v7757 = vunpack.c.h.b16 %v7412
        %v7758 = vunpack.c.l.b16 %v7413
        %v7759 = vunpack.c.h.b16 %v7413
        %v7760 = vunpack.c.l.b16 %v7414
        %v7761 = vunpack.c.h.b16 %v7414
        %v7762 = vunpack.c.l.b16 %v7415
        %v7763 = vunpack.c.h.b16 %v7415
        %v7764 = vunpack.c.l.b16 %v7416
        %v7765 = vunpack.c.h.b16 %v7416
        %v7766 = vunpack.c.l.b16 %v7417
        %v7767 = vunpack.c.h.b16 %v7417
        %v7768 = vunpack.c.l.b16 %v7418
        %v7769 = vunpack.c.h.b16 %v7418
        %v7770 = vunpack.c.l.b16 %v7419
        %v7771 = vunpack.c.h.b16 %v7419
        %v7772 = vunpack.c.l.b16 %v7420
        %v7773 = vunpack.c.h.b16 %v7420
        %v7774 = vunpack.c.l.b16 %v7421
        %v7775 = vunpack.c.h.b16 %v7421
        %v7776 = vunpack.c.l.b16 %v7422
        %v7777 = vunpack.c.h.b16 %v7422
        %v7778 = vunpack.c.l.b16 %v7423
        %v7779 = vunpack.c.h.b16 %v7423
        %v7780 = vunpack.c.l.b16 %v7424
        %v7781 = vunpack.c.h.b16 %v7424
        %v7782 = vunpack.c.l.b16 %v7425
        %v7783 = vunpack.c.h.b16 %v7425
        %v7784 = vunpack.c.l.b16 %v7426
        %v7785 = vunpack.c.h.b16 %v7426
        %v7786 = vunpack.c.l.b16 %v7427
        %v7787 = vunpack.c.h.b16 %v7427
        %v7788 = vunpack.c.l.b16 %v7428
        %v7789 = vunpack.c.h.b16 %v7428
        %v7790 = vunpack.c.l.b16 %v7429
        %v7791 = vunpack.c.h.b16 %v7429
        %v7792 = vunpack.c.l.b16 %v7430
        %v7793 = vunpack.c.h.b16 %v7430
        %v7794 = vunpack.c.l.b16 %v7431
        %v7795 = vunpack.c.h.b16 %v7431
        %v7796 = vunpack.c.l.b16 %v7432
        %v7797 = vunpack.c.h.b16 %v7432
        %v7798 = vunpack.c.l.b16 %v7433
        %v7799 = vunpack.c.h.b16 %v7433
        %v7800 = vunpack.c.l.b16 %v7434
        %v7801 = vunpack.c.h.b16 %v7434
        %v7802 = vunpack.c.l.b16 %v7435
        %v7803 = vunpack.c.h.b16 %v7435
        %v7804 = vunpack.c.l.b16 %v7436
        %v7805 = vunpack.c.h.b16 %v7436
        %v7806 = vunpack.c.l.b16 %v7437
        %v7807 = vunpack.c.h.b16 %v7437
        %v7808 = vunpack.c.l.b16 %v7438
        %v7809 = vunpack.c.h.b16 %v7438
        %v7810 = vunpack.c.l.b16 %v7439
        %v7811 = vunpack.c.h.b16 %v7439
        %v7812 = vunpack.c.l.b16 %v7440
        %v7813 = vunpack.c.h.b16 %v7440
        %v7814 = vunpack.c.l.b16 %v7441
        %v7815 = vunpack.c.h.b16 %v7441
        %v7816 = vunpack.c.l.b16 %v7442
        %v7817 = vunpack.c.h.b16 %v7442
        %v7818 = vunpack.c.l.b16 %v7443
        %v7819 = vunpack.c.h.b16 %v7443
        %v7820 = vunpack.c.l.b16 %v7444
        %v7821 = vunpack.c.h.b16 %v7444
        %v7822 = vunpack.c.l.b16 %v7445
        %v7823 = vunpack.c.h.b16 %v7445
        %v7824 = vunpack.c.l.b16 %v7446
        %v7825 = vunpack.c.h.b16 %v7446
        %v7826 = vunpack.c.l.b16 %v7447
        %v7827 = vunpack.c.h.b16 %v7447
        %v7828 = vunpack.c.l.b16 %v7448
        %v7829 = vunpack.c.h.b16 %v7448
        %v7830 = vunpack.c.l.b16 %v7449
        %v7831 = vunpack.c.h.b16 %v7449
        %v7832 = vunpack.c.l.b16 %v7450
        %v7833 = vunpack.c.h.b16 %v7450
        %v7834 = vunpack.c.l.b16 %v7451
        %v7835 = vunpack.c.h.b16 %v7451
        %v7836 = vunpack.c.l.b16 %v7452
        %v7837 = vunpack.c.h.b16 %v7452
        %v7838 = vunpack.c.l.b16 %v7453
        %v7839 = vunpack.c.h.b16 %v7453
        %v7840 = vunpack.c.l.b16 %v7454
        %v7841 = vunpack.c.h.b16 %v7454
        %v7842 = vunpack.c.l.b16 %v7455
        %v7843 = vunpack.c.h.b16 %v7455
        %v7844 = vunpack.c.l.b16 %v7456
        %v7845 = vunpack.c.h.b16 %v7456
        %v7846 = vunpack.c.l.b16 %v7457
        %v7847 = vunpack.c.h.b16 %v7457
        %v7848 = vunpack.c.l.b16 %v7458
        %v7849 = vunpack.c.h.b16 %v7458
        %v7850 = vpack.c.b16 %v7596, %v7594
        %v7851 = vpack.c.b16 %v7597, %v7595
        %v7852 = vpack.c.b16 %v7600, %v7598
        %v7853 = vpack.c.b16 %v7601, %v7599
        %v7854 = vpack.c.b16 %v7604, %v7602
        %v7855 = vpack.c.b16 %v7605, %v7603
        %v7856 = vpack.c.b16 %v7608, %v7606
        %v7857 = vpack.c.b16 %v7609, %v7607
        %v7858 = vpack.c.b16 %v7612, %v7610
        %v7859 = vpack.c.b16 %v7613, %v7611
        %v7860 = vpack.c.b16 %v7616, %v7614
        %v7861 = vpack.c.b16 %v7617, %v7615
        %v7862 = vpack.c.b16 %v7620, %v7618
        %v7863 = vpack.c.b16 %v7621, %v7619
        %v7864 = vpack.c.b16 %v7624, %v7622
        %v7865 = vpack.c.b16 %v7625, %v7623
        %v7866 = vpack.c.b16 %v7628, %v7626
        %v7867 = vpack.c.b16 %v7629, %v7627
        %v7868 = vpack.c.b16 %v7632, %v7630
        %v7869 = vpack.c.b16 %v7633, %v7631
        %v7870 = vpack.c.b16 %v7636, %v7634
        %v7871 = vpack.c.b16 %v7637, %v7635
        %v7872 = vpack.c.b16 %v7640, %v7638
        %v7873 = vpack.c.b16 %v7641, %v7639
        %v7874 = vpack.c.b16 %v7644, %v7642
        %v7875 = vpack.c.b16 %v7645, %v7643
        %v7876 = vpack.c.b16 %v7648, %v7646
        %v7877 = vpack.c.b16 %v7649, %v7647
        %v7878 = vpack.c.b16 %v7652, %v7650
        %v7879 = vpack.c.b16 %v7653, %v7651
        %v7880 = vpack.c.b16 %v7656, %v7654
        %v7881 = vpack.c.b16 %v7657, %v7655
        %v7882 = vpack.c.b16 %v7660, %v7658
        %v7883 = vpack.c.b16 %v7661, %v7659
        %v7884 = vpack.c.b16 %v7664, %v7662
        %v7885 = vpack.c.b16 %v7665, %v7663
        %v7886 = vpack.c.b16 %v7668, %v7666
        %v7887 = vpack.c.b16 %v7669, %v7667
        %v7888 = vpack.c.b16 %v7672, %v7670
        %v7889 = vpack.c.b16 %v7673, %v7671
        %v7890 = vpack.c.b16 %v7676, %v7674
        %v7891 = vpack.c.b16 %v7677, %v7675
        %v7892 = vpack.c.b16 %v7680, %v7678
        %v7893 = vpack.c.b16 %v7681, %v7679
        %v7894 = vpack.c.b16 %v7684, %v7682
        %v7895 = vpack.c.b16 %v7685, %v7683
        %v7896 = vpack.c.b16 %v7688, %v7686
        %v7897 = vpack.c.b16 %v7689, %v7687
        %v7898 = vpack.c.b16 %v7692, %v7690
        %v7899 = vpack.c.b16 %v7693, %v7691
        %v7900 = vpack.c.b16 %v7696, %v7694
        %v7901 = vpack.c.b16 %v7697, %v7695
        %v7902 = vpack.c.b16 %v7700, %v7698
        %v7903 = vpack.c.b16 %v7701, %v7699
        %v7904 = vpack.c.b16 %v7704, %v7702
        %v7905 = vpack.c.b16 %v7705, %v7703
        %v7906 = vpack.c.b16 %v7708, %v7706
        %v7907 = vpack.c.b16 %v7709, %v7707
        %v7908 = vpack.c.b16 %v7712, %v7710
        %v7909 = vpack.c.b16 %v7713, %v7711
        %v7910 = vpack.c.b16 %v7716, %v7714
        %v7911 = vpack.c.b16 %v7717, %v7715
        %v7912 = vpack.c.b16 %v7720, %v7718
        %v7913 = vpack.c.b16 %v7721, %v7719
        %v7914 = vpack.c.b16 %v7724, %v7722
        %v7915 = vpack.c.b16 %v7725, %v7723
        %v7916 = vpack.c.b16 %v7728, %v7726
        %v7917 = vpack.c.b16 %v7729, %v7727
        %v7918 = vpack.c.b16 %v7732, %v7730
        %v7919 = vpack.c.b16 %v7733, %v7731
        %v7920 = vpack.c.b16 %v7736, %v7734
        %v7921 = vpack.c.b16 %v7737, %v7735
        %v7922 = vpack.c.b16 %v7740, %v7738
        %v7923 = vpack.c.b16 %v7741, %v7739
        %v7924 = vpack.c.b16 %v7744, %v7742
        %v7925 = vpack.c.b16 %v7745, %v7743
        %v7926 = vpack.c.b16 %v7748, %v7746
        %v7927 = vpack.c.b16 %v7749, %v7747
        %v7928 = vpack.c.b16 %v7752, %v7750
        %v7929 = vpack.c.b16 %v7753, %v7751
        %v7930 = vpack.c.b16 %v7756, %v7754
        %v7931 = vpack.c.b16 %v7757, %v7755
        %v7932 = vpack.c.b16 %v7760, %v7758
        %v7933 = vpack.c.b16 %v7761, %v7759
        %v7934 = vpack.c.b16 %v7764, %v7762
        %v7935 = vpack.c.b16 %v7765, %v7763
        %v7936 = vpack.c.b16 %v7768, %v7766
        %v7937 = vpack.c.b16 %v7769, %v7767
        %v7938 = vpack.c.b16 %v7772, %v7770
        %v7939 = vpack.c.b16 %v7773, %v7771
        %v7940 = vpack.c.b16 %v7776, %v7774
        %v7941 = vpack.c.b16 %v7777, %v7775
        %v7942 = vpack.c.b16 %v7780, %v7778
        %v7943 = vpack.c.b16 %v7781, %v7779
        %v7944 = vpack.c.b16 %v7784, %v7782
        %v7945 = vpack.c.b16 %v7785, %v7783
        %v7946 = vpack.c.b16 %v7788, %v7786
        %v7947 = vpack.c.b16 %v7789, %v7787
        %v7948 = vpack.c.b16 %v7792, %v7790
        %v7949 = vpack.c.b16 %v7793, %v7791
        %v7950 = vpack.c.b16 %v7796, %v7794
        %v7951 = vpack.c.b16 %v7797, %v7795
        %v7952 = vpack.c.b16 %v7800, %v7798
        %v7953 = vpack.c.b16 %v7801, %v7799
        %v7954 = vpack.c.b16 %v7804, %v7802
        %v7955 = vpack.c.b16 %v7805, %v7803
        %v7956 = vpack.c.b16 %v7808, %v7806
        %v7957 = vpack.c.b16 %v7809, %v7807
        %v7958 = vpack.c.b16 %v7812, %v7810
        %v7959 = vpack.c.b16 %v7813, %v7811
        %v7960 = vpack.c.b16 %v7816, %v7814
        %v7961 = vpack.c.b16 %v7817, %v7815
        %v7962 = vpack.c.b16 %v7820, %v7818
        %v7963 = vpack.c.b16 %v7821, %v7819
        %v7964 = vpack.c.b16 %v7824, %v7822
        %v7965 = vpack.c.b16 %v7825, %v7823
        %v7966 = vpack.c.b16 %v7828, %v7826
        %v7967 = vpack.c.b16 %v7829, %v7827
        %v7968 = vpack.c.b16 %v7832, %v7830
        %v7969 = vpack.c.b16 %v7833, %v7831
        %v7970 = vpack.c.b16 %v7836, %v7834
        %v7971 = vpack.c.b16 %v7837, %v7835
        %v7972 = vpack.c.b16 %v7840, %v7838
        %v7973 = vpack.c.b16 %v7841, %v7839
        %v7974 = vpack.c.b16 %v7844, %v7842
        %v7975 = vpack.c.b16 %v7845, %v7843
        %v7976 = vpack.c.b16 %v7848, %v7846
        %v7977 = vpack.c.b16 %v7849, %v7847
        %8106 = vmatpush.bf16.msra.mxu0 %v7864
        %8107 = vmatpush.bf16.msra.mxu0 %v7862
        %8108 = vmatpush.bf16.msra.mxu0 %v7860
        %8109 = vmatpush.bf16.msra.mxu0 %v7858
        %8110 = vmatpush.bf16.msra.mxu0 %v7856
        %8111 = vmatpush.bf16.msra.mxu0 %v7854
        %8112 = vmatpush.bf16.msra.mxu0 %v7852
        %8113 = vmatpush.bf16.msra.mxu0 %v7850
        %8114 = vmatmul.bf16.gmra.mxu0 %v7322
        %v8115 = vpop.f32.mrf.mxu0
        %v8116 = vadd.f32 %v7462, %v8115
        %v8117 = vpop.f32.mrf.mxu0
        %v8118 = vadd.f32 %v7462, %v8117
        %8119 = vdwg.mxu0
        %8120 = vmatpush.bf16.msra.mxu0 %v7880
        %8121 = vmatpush.bf16.msra.mxu0 %v7878
        %8122 = vmatpush.bf16.msra.mxu0 %v7876
        %8123 = vmatpush.bf16.msra.mxu0 %v7874
        %8124 = vmatpush.bf16.msra.mxu0 %v7872
        %8125 = vmatpush.bf16.msra.mxu0 %v7870
        %8126 = vmatpush.bf16.msra.mxu0 %v7868
        %8127 = vmatpush.bf16.msra.mxu0 %v7866
        %8128 = vmatmul.bf16.gmra.mxu0 %v7323
        %v8129 = vpop.f32.mrf.mxu0
        %v8130 = vadd.f32 %v8116, %v8129
        %v8131 = vpop.f32.mrf.mxu0
        %v8132 = vadd.f32 %v8118, %v8131
        %8133 = vdwg.mxu0
        %8134 = vmatpush.bf16.msra.mxu0 %v7896
        %8135 = vmatpush.bf16.msra.mxu0 %v7894
        %8136 = vmatpush.bf16.msra.mxu0 %v7892
        %8137 = vmatpush.bf16.msra.mxu0 %v7890
        %8138 = vmatpush.bf16.msra.mxu0 %v7888
        %8139 = vmatpush.bf16.msra.mxu0 %v7886
        %8140 = vmatpush.bf16.msra.mxu0 %v7884
        %8141 = vmatpush.bf16.msra.mxu0 %v7882
        %8142 = vmatmul.bf16.gmra.mxu0 %v7324
        %v8143 = vpop.f32.mrf.mxu0
        %v8144 = vadd.f32 %v8130, %v8143
        %v8145 = vpop.f32.mrf.mxu0
        %v8146 = vadd.f32 %v8132, %v8145
        %8147 = vdwg.mxu0
        %8148 = vmatpush.bf16.msra.mxu0 %v7912
        %8149 = vmatpush.bf16.msra.mxu0 %v7910
        %8150 = vmatpush.bf16.msra.mxu0 %v7908
        %8151 = vmatpush.bf16.msra.mxu0 %v7906
        %8152 = vmatpush.bf16.msra.mxu0 %v7904
        %8153 = vmatpush.bf16.msra.mxu0 %v7902
        %8154 = vmatpush.bf16.msra.mxu0 %v7900
        %8155 = vmatpush.bf16.msra.mxu0 %v7898
        %8156 = vmatmul.bf16.gmra.mxu0 %v7325
        %v8157 = vpop.f32.mrf.mxu0
        %v8158 = vadd.f32 %v8144, %v8157
        %v8159 = vpop.f32.mrf.mxu0
        %v8160 = vadd.f32 %v8146, %v8159
        %8161 = vdwg.mxu0
        %8162 = vmatpush.bf16.msra.mxu0 %v7928
        %8163 = vmatpush.bf16.msra.mxu0 %v7926
        %8164 = vmatpush.bf16.msra.mxu0 %v7924
        %8165 = vmatpush.bf16.msra.mxu0 %v7922
        %8166 = vmatpush.bf16.msra.mxu0 %v7920
        %8167 = vmatpush.bf16.msra.mxu0 %v7918
        %8168 = vmatpush.bf16.msra.mxu0 %v7916
        %8169 = vmatpush.bf16.msra.mxu0 %v7914
        %8170 = vmatmul.bf16.gmra.mxu0 %v7326
        %v8171 = vpop.f32.mrf.mxu0
        %v8172 = vadd.f32 %v8158, %v8171
        %v8173 = vpop.f32.mrf.mxu0
        %v8174 = vadd.f32 %v8160, %v8173
        %8175 = vdwg.mxu0
        %8176 = vmatpush.bf16.msra.mxu0 %v7944
        %8177 = vmatpush.bf16.msra.mxu0 %v7942
        %8178 = vmatpush.bf16.msra.mxu0 %v7940
        %8179 = vmatpush.bf16.msra.mxu0 %v7938
        %8180 = vmatpush.bf16.msra.mxu0 %v7936
        %8181 = vmatpush.bf16.msra.mxu0 %v7934
        %8182 = vmatpush.bf16.msra.mxu0 %v7932
        %8183 = vmatpush.bf16.msra.mxu0 %v7930
        %8184 = vmatmul.bf16.gmra.mxu0 %v7327
        %v8185 = vpop.f32.mrf.mxu0
        %v8186 = vadd.f32 %v8172, %v8185
        %v8187 = vpop.f32.mrf.mxu0
        %v8188 = vadd.f32 %v8174, %v8187
        %8189 = vdwg.mxu0
        %8190 = vmatpush.bf16.msra.mxu0 %v7960
        %8191 = vmatpush.bf16.msra.mxu0 %v7958
        %8192 = vmatpush.bf16.msra.mxu0 %v7956
        %8193 = vmatpush.bf16.msra.mxu0 %v7954
        %8194 = vmatpush.bf16.msra.mxu0 %v7952
        %8195 = vmatpush.bf16.msra.mxu0 %v7950
        %8196 = vmatpush.bf16.msra.mxu0 %v7948
        %8197 = vmatpush.bf16.msra.mxu0 %v7946
        %8198 = vmatmul.bf16.gmra.mxu0 %v7328
        %v8199 = vpop.f32.mrf.mxu0
        %v8200 = vadd.f32 %v8186, %v8199
        %v8201 = vpop.f32.mrf.mxu0
        %v8202 = vadd.f32 %v8188, %v8201
        %8203 = vdwg.mxu0
        %8204 = vmatpush.bf16.msra.mxu0 %v7976
        %8205 = vmatpush.bf16.msra.mxu0 %v7974
        %8206 = vmatpush.bf16.msra.mxu0 %v7972
        %8207 = vmatpush.bf16.msra.mxu0 %v7970
        %8208 = vmatpush.bf16.msra.mxu0 %v7968
        %8209 = vmatpush.bf16.msra.mxu0 %v7966
        %8210 = vmatpush.bf16.msra.mxu0 %v7964
        %8211 = vmatpush.bf16.msra.mxu0 %v7962
        %8212 = vmatmul.bf16.gmra.mxu0 %v7329
        %v8213 = vpop.f32.mrf.mxu0
        %v8214 = vadd.f32 %v8200, %v8213
        %v8215 = vpop.f32.mrf.mxu0
        %v8216 = vadd.f32 %v8202, %v8215
        %8217 = vdwg.mxu0
        %8218 = vmatpush.bf16.msra.mxu0 %v7865
        %8219 = vmatpush.bf16.msra.mxu0 %v7863
        %8220 = vmatpush.bf16.msra.mxu0 %v7861
        %8221 = vmatpush.bf16.msra.mxu0 %v7859
        %8222 = vmatpush.bf16.msra.mxu0 %v7857
        %8223 = vmatpush.bf16.msra.mxu0 %v7855
        %8224 = vmatpush.bf16.msra.mxu0 %v7853
        %8225 = vmatpush.bf16.msra.mxu0 %v7851
        %8226 = vmatmul.bf16.gmra.mxu0 %v7322
        %v8227 = vpop.f32.mrf.mxu0
        %v8228 = vadd.f32 %v7463, %v8227
        %v8229 = vpop.f32.mrf.mxu0
        %v8230 = vadd.f32 %v7463, %v8229
        %8231 = vdwg.mxu0
        %8232 = vmatpush.bf16.msra.mxu0 %v7881
        %8233 = vmatpush.bf16.msra.mxu0 %v7879
        %8234 = vmatpush.bf16.msra.mxu0 %v7877
        %8235 = vmatpush.bf16.msra.mxu0 %v7875
        %8236 = vmatpush.bf16.msra.mxu0 %v7873
        %8237 = vmatpush.bf16.msra.mxu0 %v7871
        %8238 = vmatpush.bf16.msra.mxu0 %v7869
        %8239 = vmatpush.bf16.msra.mxu0 %v7867
        %8240 = vmatmul.bf16.gmra.mxu0 %v7323
        %v8241 = vpop.f32.mrf.mxu0
        %v8242 = vadd.f32 %v8228, %v8241
        %v8243 = vpop.f32.mrf.mxu0
        %v8244 = vadd.f32 %v8230, %v8243
        %8245 = vdwg.mxu0
        %8246 = vmatpush.bf16.msra.mxu0 %v7897
        %8247 = vmatpush.bf16.msra.mxu0 %v7895
        %8248 = vmatpush.bf16.msra.mxu0 %v7893
        %8249 = vmatpush.bf16.msra.mxu0 %v7891
        %8250 = vmatpush.bf16.msra.mxu0 %v7889
        %8251 = vmatpush.bf16.msra.mxu0 %v7887
        %8252 = vmatpush.bf16.msra.mxu0 %v7885
        %8253 = vmatpush.bf16.msra.mxu0 %v7883
        %8254 = vmatmul.bf16.gmra.mxu0 %v7324
        %v8255 = vpop.f32.mrf.mxu0
        %v8256 = vadd.f32 %v8242, %v8255
        %v8257 = vpop.f32.mrf.mxu0
        %v8258 = vadd.f32 %v8244, %v8257
        %8259 = vdwg.mxu0
        %8260 = vmatpush.bf16.msra.mxu0 %v7913
        %8261 = vmatpush.bf16.msra.mxu0 %v7911
        %8262 = vmatpush.bf16.msra.mxu0 %v7909
        %8263 = vmatpush.bf16.msra.mxu0 %v7907
        %8264 = vmatpush.bf16.msra.mxu0 %v7905
        %8265 = vmatpush.bf16.msra.mxu0 %v7903
        %8266 = vmatpush.bf16.msra.mxu0 %v7901
        %8267 = vmatpush.bf16.msra.mxu0 %v7899
        %8268 = vmatmul.bf16.gmra.mxu0 %v7325
        %v8269 = vpop.f32.mrf.mxu0
        %v8270 = vadd.f32 %v8256, %v8269
        %v8271 = vpop.f32.mrf.mxu0
        %v8272 = vadd.f32 %v8258, %v8271
        %8273 = vdwg.mxu0
        %8274 = vmatpush.bf16.msra.mxu0 %v7929
        %8275 = vmatpush.bf16.msra.mxu0 %v7927
        %8276 = vmatpush.bf16.msra.mxu0 %v7925
        %8277 = vmatpush.bf16.msra.mxu0 %v7923
        %8278 = vmatpush.bf16.msra.mxu0 %v7921
        %8279 = vmatpush.bf16.msra.mxu0 %v7919
        %8280 = vmatpush.bf16.msra.mxu0 %v7917
        %8281 = vmatpush.bf16.msra.mxu0 %v7915
        %8282 = vmatmul.bf16.gmra.mxu0 %v7326
        %v8283 = vpop.f32.mrf.mxu0
        %v8284 = vadd.f32 %v8270, %v8283
        %v8285 = vpop.f32.mrf.mxu0
        %v8286 = vadd.f32 %v8272, %v8285
        %8287 = vdwg.mxu0
        %8288 = vmatpush.bf16.msra.mxu0 %v7945
        %8289 = vmatpush.bf16.msra.mxu0 %v7943
        %8290 = vmatpush.bf16.msra.mxu0 %v7941
        %8291 = vmatpush.bf16.msra.mxu0 %v7939
        %8292 = vmatpush.bf16.msra.mxu0 %v7937
        %8293 = vmatpush.bf16.msra.mxu0 %v7935
        %8294 = vmatpush.bf16.msra.mxu0 %v7933
        %8295 = vmatpush.bf16.msra.mxu0 %v7931
        %8296 = vmatmul.bf16.gmra.mxu0 %v7327
        %v8297 = vpop.f32.mrf.mxu0
        %v8298 = vadd.f32 %v8284, %v8297
        %v8299 = vpop.f32.mrf.mxu0
        %v8300 = vadd.f32 %v8286, %v8299
        %8301 = vdwg.mxu0
        %8302 = vmatpush.bf16.msra.mxu0 %v7961
        %8303 = vmatpush.bf16.msra.mxu0 %v7959
        %8304 = vmatpush.bf16.msra.mxu0 %v7957
        %8305 = vmatpush.bf16.msra.mxu0 %v7955
        %8306 = vmatpush.bf16.msra.mxu0 %v7953
        %8307 = vmatpush.bf16.msra.mxu0 %v7951
        %8308 = vmatpush.bf16.msra.mxu0 %v7949
        %8309 = vmatpush.bf16.msra.mxu0 %v7947
        %8310 = vmatmul.bf16.gmra.mxu0 %v7328
        %v8311 = vpop.f32.mrf.mxu0
        %v8312 = vadd.f32 %v8298, %v8311
        %v8313 = vpop.f32.mrf.mxu0
        %v8314 = vadd.f32 %v8300, %v8313
        %8315 = vdwg.mxu0
        %8316 = vmatpush.bf16.msra.mxu0 %v7977
        %8317 = vmatpush.bf16.msra.mxu0 %v7975
        %8318 = vmatpush.bf16.msra.mxu0 %v7973
        %8319 = vmatpush.bf16.msra.mxu0 %v7971
        %8320 = vmatpush.bf16.msra.mxu0 %v7969
        %8321 = vmatpush.bf16.msra.mxu0 %v7967
        %8322 = vmatpush.bf16.msra.mxu0 %v7965
        %8323 = vmatpush.bf16.msra.mxu0 %v7963
        %8324 = vmatmul.bf16.gmra.mxu0 %v7329
        %v8325 = vpop.f32.mrf.mxu0
        %v8326 = vadd.f32 %v8312, %v8325
        %v8327 = vpop.f32.mrf.mxu0
        %v8328 = vadd.f32 %v8314, %v8327
        %8329 = vdwg.mxu0
        %v8330 = vadd.f32 %v6160, %v8214
        %v8331 = vadd.f32 %v6161, %v8326
        %v8332 = vadd.f32 %v6162, %v8216
        %v8333 = vadd.f32 %v6163, %v8328
        %s8334 = scalar_lea.vmem %s15, 2
        %v8335 = vld [vmem:[%s8334] sm:$0x3]
        %s8336 = scalar_lea.vmem %s16, 2
        %v8337 = vld [vmem:[%s8336] sm:$0x3]
        %v8338 = vadd.f32 %v8330, %v8331
        %8339 = vadd.xlane.f32.xlu0 %v8338
        %v8340 = vpop.xlane.xlu0 %8339
        %v8341 = vadd.f32 %v8332, %v8333
        %8342 = vadd.xlane.f32.xlu0 %v8341
        %v8343 = vpop.xlane.xlu0 %8342
        %v8344 = vmul.f32 %v8340, %v988
        %v8345 = vmul.f32 %v8343, %v988
        %v8346 = vsub.f32 %v8330, %v8344
        %v8347 = vsub.f32 %v8331, %v8344
        %v8348 = vsub.f32 %v8332, %v8345
        %v8349 = vsub.f32 %v8333, %v8345
        %v8350 = vmul.f32 %v8346, %v8346
        %v8351 = vmul.f32 %v8347, %v8347
        %v8352 = vmul.f32 %v8348, %v8348
        %v8353 = vmul.f32 %v8349, %v8349
        %v8354 = vadd.f32 %v8350, %v8351
        %8355 = vadd.xlane.f32.xlu0 %v8354
        %v8356 = vpop.xlane.xlu0 %8355
        %v8357 = vadd.f32 %v8352, %v8353
        %8358 = vadd.xlane.f32.xlu0 %v8357
        %v8359 = vpop.xlane.xlu0 %8358
        %v8360 = vmul.f32 %v8356, %v988
        %v8361 = vmul.f32 %v8359, %v988
        %v8362 = vadd.f32 %v8360, 1e-12
        %v8363 = vadd.f32 %v8361, 1e-12
        %v8364 = vrsqrt.pop %v8362
        %v8365 = vmul.f32 %v8364, %v8362
        %v8366 = vmul.f32 %v8365, %v8364
        %v8367 = vmul.f32 0.5, %v8366
        %v8368 = vsub.f32 1.5, %v8367
        %v8369 = vmul.f32 %v8364, %v8368
        %vm8370 = vweird.f32 %v8362
        %vm8371 = vweird.f32 %v8364
        %vm8372 = vmor %vm8370, %vm8371
        %v8373 = vsel %vm8372, %v8364, %v8369
        %v8374 = vrsqrt.pop %v8363
        %v8375 = vmul.f32 %v8374, %v8363
        %v8376 = vmul.f32 %v8375, %v8374
        %v8377 = vmul.f32 0.5, %v8376
        %v8378 = vsub.f32 1.5, %v8377
        %v8379 = vmul.f32 %v8374, %v8378
        %vm8380 = vweird.f32 %v8363
        %vm8381 = vweird.f32 %v8374
        %vm8382 = vmor %vm8380, %vm8381
        %v8383 = vsel %vm8382, %v8374, %v8379
        %v8384 = vmul.f32 %v8346, %v8373
        %v8385 = vmul.f32 %v8347, %v8373
        %v8386 = vmul.f32 %v8348, %v8383
        %v8387 = vmul.f32 %v8349, %v8383
        %v8389 = vperm.slane %v8335, 0
        %v8390 = vperm.slane %v8335, 1
        %v8393 = vmul.f32 %v8384, %v8389
        %v8394 = vmul.f32 %v8385, %v8390
        %v8395 = vmul.f32 %v8386, %v8389
        %v8396 = vmul.f32 %v8387, %v8390
        %v8398 = vperm.slane %v8337, 0
        %v8399 = vperm.slane %v8337, 1
        %v8402 = vadd.f32 %v8393, %v8398
        %v8403 = vadd.f32 %v8394, %v8399
        %v8404 = vadd.f32 %v8395, %v8398
        %v8405 = vadd.f32 %v8396, %v8399
        %v8406 = vadd.f32 %v8402, %v8404
        %v8407 = vrot.slane %v8406, 4
        %v8408 = vadd.f32 %v8406, %v8407
        %v8409 = vrot.slane %v8408, 2
        %v8410 = vadd.f32 %v8408, %v8409
        %v8411 = vrot.slane %v8410, 1
        %v8412 = vadd.f32 %v8410, %v8411
        %v8413 = vadd.f32 %v8403, %v8405
        %v8414 = vrot.slane %v8413, 4
        %v8415 = vadd.f32 %v8413, %v8414
        %v8416 = vrot.slane %v8415, 2
        %v8417 = vadd.f32 %v8415, %v8416
        %v8418 = vrot.slane %v8417, 1
        %v8419 = vadd.f32 %v8417, %v8418
        %v8420 = vrcp.pop 16.0
        %v8421 = vmul.f32 16.0, %v8420
        %v8422 = vsub.f32 1.0, %v8421
        %v8423 = vmul.f32 %v8420, %v8422
        %v8424 = vadd.f32 %v8420, %v8423
        %vm8425 = vweird.f32 %v8420
        %v8426 = vsel %vm8425, %v8420, %v8424
        %v8427 = vmul.f32 %v8412, %v8426
        %v8428 = vmul.f32 %v8419, %v8426
        %v8429 = vpack.c.bf16 %v8427, %v8427
        %v8430 = vpack.c.bf16 %v8428, %v8428
        %v8431 = vld [vmem:[#allocation18] sm:$0xf]
        %v8432 = vld [vmem:[#allocation18 + $0x4] sm:$0xf]
        %v8433 = vld [vmem:[#allocation18 + $0x8] sm:$0xf]
        %v8434 = vld [vmem:[#allocation18 + $0xc] sm:$0xf]
        %v8435 = vld [vmem:[#allocation18 + $0x10] sm:$0xf]
        %v8436 = vld [vmem:[#allocation18 + $0x14] sm:$0xf]
        %v8437 = vld [vmem:[#allocation18 + $0x18] sm:$0xf]
        %v8438 = vld [vmem:[#allocation18 + $0x1c] sm:$0xf]
        %v8439 = vld [vmem:[#allocation18 + $0x20] sm:$0xf]
        %v8440 = vld [vmem:[#allocation18 + $0x24] sm:$0xf]
        %v8441 = vld [vmem:[#allocation18 + $0x28] sm:$0xf]
        %v8442 = vld [vmem:[#allocation18 + $0x2c] sm:$0xf]
        %v8443 = vld [vmem:[#allocation18 + $0x30] sm:$0xf]
        %v8444 = vld [vmem:[#allocation18 + $0x34] sm:$0xf]
        %v8445 = vld [vmem:[#allocation18 + $0x38] sm:$0xf]
        %v8446 = vld [vmem:[#allocation18 + $0x3c] sm:$0xf]
        %v8447 = vld [vmem:[#allocation18 + $0x40] sm:$0xf]
        %v8448 = vld [vmem:[#allocation18 + $0x44] sm:$0xf]
        %v8449 = vld [vmem:[#allocation18 + $0x48] sm:$0xf]
        %v8450 = vld [vmem:[#allocation18 + $0x4c] sm:$0xf]
        %v8451 = vld [vmem:[#allocation18 + $0x50] sm:$0xf]
        %v8452 = vld [vmem:[#allocation18 + $0x54] sm:$0xf]
        %v8453 = vld [vmem:[#allocation18 + $0x58] sm:$0xf]
        %v8454 = vld [vmem:[#allocation18 + $0x5c] sm:$0xf]
        %v8455 = vld [vmem:[#allocation18 + $0x60] sm:$0xf]
        %v8456 = vld [vmem:[#allocation18 + $0x64] sm:$0xf]
        %v8457 = vld [vmem:[#allocation18 + $0x68] sm:$0xf]
        %v8458 = vld [vmem:[#allocation18 + $0x6c] sm:$0xf]
        %v8459 = vld [vmem:[#allocation18 + $0x70] sm:$0xf]
        %v8460 = vld [vmem:[#allocation18 + $0x74] sm:$0xf]
        %v8461 = vld [vmem:[#allocation18 + $0x78] sm:$0xf]
        %v8462 = vld [vmem:[#allocation18 + $0x7c] sm:$0xf]
        %v8463 = vld [vmem:[#allocation19] sm:$0x1]
        %v8496 = vunpack.c.l.b16 %v8431
        %v8497 = vunpack.c.l.b16 %v8432
        %v8498 = vunpack.c.l.b16 %v8433
        %v8499 = vunpack.c.l.b16 %v8434
        %v8500 = vunpack.c.l.b16 %v8435
        %v8501 = vunpack.c.l.b16 %v8436
        %v8502 = vunpack.c.l.b16 %v8437
        %v8503 = vunpack.c.l.b16 %v8438
        %v8504 = vunpack.c.l.b16 %v8439
        %v8505 = vunpack.c.l.b16 %v8440
        %v8506 = vunpack.c.l.b16 %v8441
        %v8507 = vunpack.c.l.b16 %v8442
        %v8508 = vunpack.c.l.b16 %v8443
        %v8509 = vunpack.c.l.b16 %v8444
        %v8510 = vunpack.c.l.b16 %v8445
        %v8511 = vunpack.c.l.b16 %v8446
        %v8512 = vunpack.c.l.b16 %v8447
        %v8513 = vunpack.c.l.b16 %v8448
        %v8514 = vunpack.c.l.b16 %v8449
        %v8515 = vunpack.c.l.b16 %v8450
        %v8516 = vunpack.c.l.b16 %v8451
        %v8517 = vunpack.c.l.b16 %v8452
        %v8518 = vunpack.c.l.b16 %v8453
        %v8519 = vunpack.c.l.b16 %v8454
        %v8520 = vunpack.c.l.b16 %v8455
        %v8521 = vunpack.c.l.b16 %v8456
        %v8522 = vunpack.c.l.b16 %v8457
        %v8523 = vunpack.c.l.b16 %v8458
        %v8524 = vunpack.c.l.b16 %v8459
        %v8525 = vunpack.c.l.b16 %v8460
        %v8526 = vunpack.c.l.b16 %v8461
        %v8527 = vunpack.c.l.b16 %v8462
        %v8528 = vpack.c.b16 %v8497, %v8496
        %v8529 = vpack.c.b16 %v8499, %v8498
        %v8530 = vpack.c.b16 %v8501, %v8500
        %v8531 = vpack.c.b16 %v8503, %v8502
        %v8532 = vpack.c.b16 %v8505, %v8504
        %v8533 = vpack.c.b16 %v8507, %v8506
        %v8534 = vpack.c.b16 %v8509, %v8508
        %v8535 = vpack.c.b16 %v8511, %v8510
        %v8536 = vpack.c.b16 %v8513, %v8512
        %v8537 = vpack.c.b16 %v8515, %v8514
        %v8538 = vpack.c.b16 %v8517, %v8516
        %v8539 = vpack.c.b16 %v8519, %v8518
        %v8540 = vpack.c.b16 %v8521, %v8520
        %v8541 = vpack.c.b16 %v8523, %v8522
        %v8542 = vpack.c.b16 %v8525, %v8524
        %v8543 = vpack.c.b16 %v8527, %v8526
        %8560 = vmatpush.bf16.msra.mxu0 %v8535
        %8561 = vmatpush.bf16.msra.mxu0 %v8534
        %8562 = vmatpush.bf16.msra.mxu0 %v8533
        %8563 = vmatpush.bf16.msra.mxu0 %v8532
        %8564 = vmatpush.bf16.msra.mxu0 %v8531
        %8565 = vmatpush.bf16.msra.mxu0 %v8530
        %8566 = vmatpush.bf16.msra.mxu0 %v8529
        %8567 = vmatpush.bf16.msra.mxu0 %v8528
        %8568 = vmatmul.bf16.gmra.mxu0 %v8429
        %v8569 = vpop.f32.mrf.mxu0
        %v8570 = vadd.f32 %v8463, %v8569
        %v8571 = vpop.f32.mrf.mxu0
        %8572 = vdwg.mxu0
        %8573 = vmatpush.bf16.msra.mxu0 %v8543
        %8574 = vmatpush.bf16.msra.mxu0 %v8542
        %8575 = vmatpush.bf16.msra.mxu0 %v8541
        %8576 = vmatpush.bf16.msra.mxu0 %v8540
        %8577 = vmatpush.bf16.msra.mxu0 %v8539
        %8578 = vmatpush.bf16.msra.mxu0 %v8538
        %8579 = vmatpush.bf16.msra.mxu0 %v8537
        %8580 = vmatpush.bf16.msra.mxu0 %v8536
        %8581 = vmatmul.bf16.gmra.mxu0 %v8430
        %v8582 = vpop.f32.mrf.mxu0
        %v8583 = vadd.f32 %v8570, %v8582
        %v8584 = vpop.f32.mrf.mxu0
        %8585 = vdwg.mxu0
        %v8586 = vtanh.pop %v8583
        %v8587 = vpack.c.bf16 %v8586, %v8586
        %v8588 = vld [vmem:[%s19] sm:$0xf]
        %v8589 = vld [vmem:[%s19 + $0x4] sm:$0xf]
        %v8590 = vld [vmem:[%s19 + $0x8] sm:$0xf]
        %v8591 = vld [vmem:[%s19 + $0xc] sm:$0xf]
        %v8592 = vld [vmem:[%s19 + $0x10] sm:$0xf]
        %v8593 = vld [vmem:[%s19 + $0x14] sm:$0xf]
        %v8594 = vld [vmem:[%s19 + $0x18] sm:$0xf]
        %v8595 = vld [vmem:[%s19 + $0x1c] sm:$0xf]
        %v8596 = vld [vmem:[%s19 + $0x20] sm:$0xf]
        %v8597 = vld [vmem:[%s19 + $0x24] sm:$0xf]
        %v8598 = vld [vmem:[%s19 + $0x28] sm:$0xf]
        %v8599 = vld [vmem:[%s19 + $0x2c] sm:$0xf]
        %v8600 = vld [vmem:[%s19 + $0x30] sm:$0xf]
        %v8601 = vld [vmem:[%s19 + $0x34] sm:$0xf]
        %v8602 = vld [vmem:[%s19 + $0x38] sm:$0xf]
        %v8603 = vld [vmem:[%s19 + $0x3c] sm:$0xf]
        %v8604 = vld [vmem:[#allocation21] sm:$0x1]
        %v8621 = vunpack.c.l.b16 %v8588
        %v8622 = vunpack.c.l.b16 %v8589
        %v8623 = vunpack.c.l.b16 %v8590
        %v8624 = vunpack.c.l.b16 %v8591
        %v8625 = vunpack.c.l.b16 %v8592
        %v8626 = vunpack.c.l.b16 %v8593
        %v8627 = vunpack.c.l.b16 %v8594
        %v8628 = vunpack.c.l.b16 %v8595
        %v8629 = vunpack.c.l.b16 %v8596
        %v8630 = vunpack.c.l.b16 %v8597
        %v8631 = vunpack.c.l.b16 %v8598
        %v8632 = vunpack.c.l.b16 %v8599
        %v8633 = vunpack.c.l.b16 %v8600
        %v8634 = vunpack.c.l.b16 %v8601
        %v8635 = vunpack.c.l.b16 %v8602
        %v8636 = vunpack.c.l.b16 %v8603
        %v8637 = vpack.c.b16 %v8622, %v8621
        %v8638 = vpack.c.b16 %v8624, %v8623
        %v8639 = vpack.c.b16 %v8626, %v8625
        %v8640 = vpack.c.b16 %v8628, %v8627
        %v8641 = vpack.c.b16 %v8630, %v8629
        %v8642 = vpack.c.b16 %v8632, %v8631
        %v8643 = vpack.c.b16 %v8634, %v8633
        %v8644 = vpack.c.b16 %v8636, %v8635
        %8653 = vmatpush.bf16.msra.mxu0 %v8644
        %8654 = vmatpush.bf16.msra.mxu0 %v8643
        %8655 = vmatpush.bf16.msra.mxu0 %v8642
        %8656 = vmatpush.bf16.msra.mxu0 %v8641
        %8657 = vmatpush.bf16.msra.mxu0 %v8640
        %8658 = vmatpush.bf16.msra.mxu0 %v8639
        %8659 = vmatpush.bf16.msra.mxu0 %v8638
        %8660 = vmatpush.bf16.msra.mxu0 %v8637
        %8661 = vmatmul.bf16.gmra.mxu0 %v8587
        %v8662 = vpop.f32.mrf.mxu0
        %v8663 = vadd.f32 %v8604, %v8662
        %v8664 = vpop.f32.mrf.mxu0
        %8665 = vdwg.mxu0
        %v8666 = vmul.f32 %v8663, %v8663
        %vm8667 = vcmask 1040384
        %v8668 = vsel %vm8667, %v8666, 0.0
        %8669 = vadd.xlane.f32.xlu0 %v8668
        %v8670 = vpop.xlane.xlu0 %8669
        %v8671 = vmax.f32 %v8670, 1e-24
        %v8672 = vrsqrt.pop %v8671
        %v8673 = vmul.f32 %v8672, %v8671
        %v8674 = vmul.f32 %v8673, %v8672
        %v8675 = vmul.f32 0.5, %v8674
        %v8676 = vsub.f32 1.5, %v8675
        %v8677 = vmul.f32 %v8672, %v8676
        %vm8678 = vweird.f32 %v8671
        %vm8679 = vweird.f32 %v8672
        %vm8680 = vmor %vm8678, %vm8679
        %v8681 = vsel %vm8680, %v8672, %v8677
        %v8682 = vmul.f32 %v8663, %v8681
        %8683 = vst [vmem:[%s822] sm:$0x1] %v8682
        %s8684 = sand.u32 %s495, 1
        %s8685 = scalar_lea.sflag [#allocation6], %s8684
        %s8686 = sand.u32 %s495, 1
        %s8687 = scalar_lea.vmem [#allocation22], %s8686
        // Predicated region
        $region149: #{bottom_model_forward.1} parent=103 // pred_check
          %p8688 = pneg %p505
        $region150: #{bottom_model_forward.1} parent=103 // pred_check_branch
          %8690 = sbr.rel (%p8688) target = $region152
        $region151: #{bottom_model_forward.1} parent=103 // pred_region
          %8692 = vsyncadd %s8685, 0
          %s8693 = scalar_lea.hbm %s21, %s41
          %s8695 = sshll.u32 %s8687, 4
          %s8696 = int_to_ptr.vmem [resolvable:$true] %s8695
          %s8697 = sshll.u32 %s8693, 4
          %s8698 = int_to_ptr.hbm [resolvable:$true] %s8697
          %8700 = dma.vmem_to_hbm [thread:$0]  %s8696, 16, %s8698, %s8685
        $region152: #{bottom_model_forward.1} parent=103 // pred_fallthru
          _
      $region104: #{bottom_model_forward.1} parent=5 // pred_fallthru
        _
      %p8701 = scmp.le.s32.totalorder 2, %s36
      // Predicated region
      $region153: #{bottom_model_forward.1} parent=5 // pred_check
        %p8702 = pneg %p8701
      $region154: #{bottom_model_forward.1} parent=5 // pred_check_branch
        %8704 = sbr.rel (%p8702) target = $region156
      $region155: #{bottom_model_forward.1} parent=5 // pred_region
        %s8705 = ssub.s32 %s36, 2
        // Predicated region
        $region157: #{bottom_model_forward.1} parent=155 // pred_check
          %p8706 = pneg %p511
        $region158: #{bottom_model_forward.1} parent=155 // pred_check_branch
          %8708 = sbr.rel (%p8706) target = $region160
        $region159: #{bottom_model_forward.1} parent=155 // pred_region
          %s8709 = sand.u32 %s496, 1
          %s8710 = scalar_lea.sflag [#allocation6], %s8709
          %s8711 = sand.u32 %s496, 1
          %s8712 = scalar_lea.vmem [#allocation22], %s8711
          %8714 = dma.done %s8710, 16
        $region160: #{bottom_model_forward.1} parent=155 // pred_fallthru
          _
      $region156: #{bottom_model_forward.1} parent=5 // pred_fallthru
        _
    $region6: #{bottom_model_forward.1} parent=1 // loop_footer
      %s40 = sadd.s32 1, %s36
    $region7: #{bottom_model_forward.1} parent=1 // loop_footer_branch
      %35 = sbr.rel target = $region3
    $region8: #{bottom_model_forward.1} parent=1 // loop_exit
      _
    %8715 = vsyncpa [#allocation5], 1
    %s8716 = scalar_lea.sflag [#allocation5], 1
    %8717 = vsyncpa %s8716, 1
    %8718 = vsyncpa [#allocation8], 1
    %8719 = vsyncpa [#allocation11], 1
    %8720 = vsyncpa [#allocation14], 1
    %8721 = vsyncpa [#allocation17], 1
    %8722 = vsyncpa [#allocation20], 1
    %8723 = vsyncpa [#allocation6], 1
    %s8724 = scalar_lea.sflag [#allocation6], 1
    %8725 = vsyncpa %s8724, 1

</llo_original>
